<compile_context>
chip_gen: v5e
topology: v5e:2x2
jax: 0.10.0
libtpu: 0.0.40
codegen_flags: <defaults>
</compile_context>

<pallas_src>
import functools

import jax
import jax.numpy as jnp
from jax.experimental import pallas as pl
from jax.experimental.pallas import tpu as pltpu

PRIMITIVES = [
    "none",
    "max_pool_3x3",
    "avg_pool_3x3",
    "skip_connect",
    "sep_conv_3x3",
    "sep_conv_5x5",
    "dil_conv_3x3",
    "dil_conv_5x5",
]

EPS = 1e-5
MAX_OFF = 4          # largest spatial offset used by any primitive (dil_conv_5x5)
BIG_NEG = 1e30       # stand-in for -inf in the masked max pool


# ----------------------------------------------------------------------------
# In-kernel helpers (trace-time Python; everything lives on (C, M) slabs)
# ----------------------------------------------------------------------------
def _bn(y):
    """BatchNorm2d(affine=False), training mode: per-channel stats over M."""
    mean = jnp.mean(y, axis=1, keepdims=True)
    var = jnp.mean((y - mean) ** 2, axis=1, keepdims=True)
    return (y - mean) * jax.lax.rsqrt(var + EPS)


def _make_tap_fn(x, mrow, mcol, W):
    """tap(dy, dx) -> (masked shifted slab (C, M), mask (1, M) or None).

    tap(dy, dx)[c, m] == x[c, m'] where m' is the flat index of spatial
    position (n, h+dy, w+dx) when inside the image, else 0 (zero padding).
    The shift is a lane rotation of the VMEM-resident slab (pltpu.roll follows
    jnp.roll semantics: roll(x, k)[i] == x[i-k]); out-of-image lanes
    (including circular wrap) are zeroed by the row/col boundary masks.
    Results are cached so taps are shared across primitives.
    """
    M = x.shape[-1]
    cache = {}

    def tap(dy, dx):
        key = (dy, dx)
        if key in cache:
            return cache[key]
        s = dy * W + dx
        v = x if s == 0 else pltpu.roll(x, shift=(-s) % M, axis=1)
        if dy != 0 and dx != 0:
            m = mrow[dy + MAX_OFF] * mcol[dx + MAX_OFF]
        elif dy != 0:
            m = mrow[dy + MAX_OFF]
        elif dx != 0:
            m = mcol[dx + MAX_OFF]
        else:
            m = None
        if m is not None:
            v = v * m
        cache[key] = (v, m)
        return v, m

    return tap


def _depthwise(tap, dw, k, dil):
    """Depthwise k x k conv, stride 1, dilation dil, 'same' zero padding."""
    pad = dil * (k - 1) // 2
    acc = None
    t = 0
    for ky in range(k):
        for kx in range(k):
            v, _ = tap(ky * dil - pad, kx * dil - pad)
            c = v * dw[t]                       # dw[t]: (C, 1) per-channel tap
            acc = c if acc is None else acc + c
            t += 1
    return acc


def _dw_pw_bn(tap, dw, pw, k, dil):
    """depthwise conv -> pointwise 1x1 conv (MXU) -> BN."""
    acc = _depthwise(tap, dw, k, dil)
    y = jnp.dot(pw, acc, preferred_element_type=jnp.float32)    # (Cout, M)
    return _bn(y)


def _sep_conv(tap_xr, mrow, mcol, W, dw1, pw1, dw2, pw2, k):
    """SepConv = (ReLU, dw k, pw 1x1, BN) x 2, stride 1, fully in VMEM."""
    y1 = _dw_pw_bn(tap_xr, dw1, pw1, k, 1)
    tap2 = _make_tap_fn(jnp.maximum(y1, 0.0), mrow, mcol, W)
    return _dw_pw_bn(tap2, dw2, pw2, k, 1)


def _max_pool_bn(tap):
    """MaxPool2d(3, stride=1, pad=1) -> BN; padding behaves like -inf."""
    best = None
    for dy in (-1, 0, 1):
        for dx in (-1, 0, 1):
            v, m = tap(dy, dx)
            if m is not None:
                v = v + (m - 1.0) * BIG_NEG     # invalid lanes -> -1e30
            best = v if best is None else jnp.maximum(best, v)
    return _bn(best)


def _avg_pool_bn(tap):
    """AvgPool2d(3, stride=1, pad=1, count_include_pad=False) -> BN."""
    s = None
    cnt = None
    for dy in (-1, 0, 1):
        for dx in (-1, 0, 1):
            v, m = tap(dy, dx)
            s = v if s is None else s + v
            mm = 1.0 if m is None else m
            cnt = mm if cnt is None else cnt + mm
    return _bn(s * (1.0 / cnt))


# ----------------------------------------------------------------------------
# Kernel 1: fused MixedOp for one DARTS edge
#           out (+)= sum_p weights[p] * op_p(x)      ("none" skipped: w*0 == 0)
# ----------------------------------------------------------------------------
def _edge_kernel(w_ref, mrow_ref, mcol_ref, x_ref,
                 s3dw1_ref, s3pw1_ref, s3dw2_ref, s3pw2_ref,
                 s5dw1_ref, s5pw1_ref, s5dw2_ref, s5pw2_ref,
                 d3dw_ref, d3pw_ref, d5dw_ref, d5pw_ref,
                 *rest, W):
    if len(rest) == 2:
        acc_ref, out_ref = rest          # acc_ref is aliased to out_ref
    else:
        (out_ref,) = rest
        acc_ref = None

    x = x_ref[...]                       # (C, M)
    mrow = mrow_ref[...]                 # (9, 1, M) row-offset validity masks
    mcol = mcol_ref[...]                 # (9, 1, M) col-offset validity masks

    tap_x = _make_tap_fn(x, mrow, mcol, W)                       # pools (no ReLU)
    tap_xr = _make_tap_fn(jnp.maximum(x, 0.0), mrow, mcol, W)    # conv stage 1,
                                                                 # ReLU hoisted once

    out = w_ref[1] * _max_pool_bn(tap_x)
    out = out + w_ref[2] * _avg_pool_bn(tap_x)
    out = out + w_ref[3] * x                                     # skip_connect
    out = out + w_ref[4] * _sep_conv(tap_xr, mrow, mcol, W,
                                     s3dw1_ref[...], s3pw1_ref[...],
                                     s3dw2_ref[...], s3pw2_ref[...], 3)
    out = out + w_ref[5] * _sep_conv(tap_xr, mrow, mcol, W,
                                     s5dw1_ref[...], s5pw1_ref[...],
                                     s5dw2_ref[...], s5pw2_ref[...], 5)
    out = out + w_ref[6] * _dw_pw_bn(tap_xr, d3dw_ref[...], d3pw_ref[...], 3, 2)
    out = out + w_ref[7] * _dw_pw_bn(tap_xr, d5dw_ref[...], d5pw_ref[...], 5, 2)

    if acc_ref is not None:
        out = out + acc_ref[...]
    out_ref[...] = out


# ----------------------------------------------------------------------------
# Kernel 2: both preprocess ReLUConvBN(1x1) stages fused
# ----------------------------------------------------------------------------
def _preprocess_kernel(x0_ref, w0_ref, x1_ref, w1_ref, o0_ref, o1_ref):
    o0_ref[...] = _bn(jnp.dot(w0_ref[...], jnp.maximum(x0_ref[...], 0.0),
                              preferred_element_type=jnp.float32))
    o1_ref[...] = _bn(jnp.dot(w1_ref[...], jnp.maximum(x1_ref[...], 0.0),
                              preferred_element_type=jnp.float32))


# ----------------------------------------------------------------------------
# pallas_call wrappers
# ----------------------------------------------------------------------------
def _full_spec(shape):
    nd = len(shape)
    return pl.BlockSpec(shape, lambda *_: (0,) * nd)


_SMEM_SPEC = pl.BlockSpec(memory_space=pltpu.MemorySpace.SMEM)

_COMPILER_PARAMS = pltpu.CompilerParams(
    dimension_semantics=("arbitrary",),
    vmem_limit_bytes=32 * 1024 * 1024,   # explicit VMEM budget (fits all chips)
)


def preprocess_pair(x0, w0, x1, w1):
    C = w0.shape[0]
    M = x0.shape[1]
    out = jax.ShapeDtypeStruct((C, M), jnp.float32)
    return pl.pallas_call(
        _preprocess_kernel,
        grid=(1,),
        in_specs=[_full_spec(x0.shape), _full_spec(w0.shape),
                  _full_spec(x1.shape), _full_spec(w1.shape)],
        out_specs=(_full_spec((C, M)), _full_spec((C, M))),
        out_shape=(out, out),
        compiler_params=_COMPILER_PARAMS,
    )(x0, w0, x1, w1)


def mixed_op_edge(x_slab, w8, ep, mrow, mcol, W, acc=None):
    """One fused MixedOp edge; accumulates into `acc` in place when given."""
    C, M = x_slab.shape
    args = [w8, mrow, mcol, x_slab,
            ep["sep3"]["dw1"], ep["sep3"]["pw1"],
            ep["sep3"]["dw2"], ep["sep3"]["pw2"],
            ep["sep5"]["dw1"], ep["sep5"]["pw1"],
            ep["sep5"]["dw2"], ep["sep5"]["pw2"],
            ep["dil3"]["dw"], ep["dil3"]["pw"],
            ep["dil5"]["dw"], ep["dil5"]["pw"]]
    in_specs = [_SMEM_SPEC] + [_full_spec(a.shape) for a in args[1:]]
    io_alias = {}
    if acc is not None:
        args.append(acc)
        in_specs.append(_full_spec(acc.shape))
        io_alias = {len(args) - 1: 0}     # accumulate the step sum in place
    return pl.pallas_call(
        functools.partial(_edge_kernel, W=W),
        grid=(1,),
        in_specs=in_specs,
        out_specs=_full_spec((C, M)),
        out_shape=jax.ShapeDtypeStruct((C, M), jnp.float32),
        input_output_aliases=io_alias,
        compiler_params=_COMPILER_PARAMS,
    )(*args)


# ----------------------------------------------------------------------------
# Cell forward (glue mirroring Cell.forward, normal cell)
# ----------------------------------------------------------------------------
def _boundary_masks(N, H, W):
    """Row/col validity masks for offsets -MAX_OFF..MAX_OFF, shape (9, 1, M)."""
    M = N * H * W
    m_idx = jnp.arange(M, dtype=jnp.int32)
    hh = (m_idx // W) % H
    ww = m_idx % W
    offs = range(-MAX_OFF, MAX_OFF + 1)
    mrow = jnp.stack([((hh + d >= 0) & (hh + d < H)).astype(jnp.float32)
                      for d in offs])
    mcol = jnp.stack([((ww + d >= 0) & (ww + d < W)).astype(jnp.float32)
                      for d in offs])
    n_off = 2 * MAX_OFF + 1
    return mrow.reshape(n_off, 1, M), mcol.reshape(n_off, 1, M)


def cell_forward(s0_nhwc, s1_nhwc, weights, params, *, steps, multiplier):
    N, H, W, _ = s0_nhwc.shape
    C = params["pre0"].shape[0]
    M = N * H * W

    def to_slab(x):   # NHWC -> channel-major (C, N*H*W) slab (lane dim = M)
        return jnp.transpose(x, (3, 0, 1, 2)).reshape(x.shape[-1], M)

    s0, s1 = preprocess_pair(to_slab(s0_nhwc), params["pre0"],
                             to_slab(s1_nhwc), params["pre1"])

    mrow, mcol = _boundary_masks(N, H, W)

    states = [s0, s1]
    offset = 0
    for _ in range(steps):
        acc = None
        for j, h in enumerate(states):
            e = offset + j
            acc = mixed_op_edge(h, weights[e], params["edges"][e],
                                mrow, mcol, W, acc)
        offset += len(states)
        states.append(acc)

    # torch.cat(states[-multiplier:], dim=1) == channel concat
    out = jnp.concatenate(states[-multiplier:], axis=0)        # (mult*C, M)
    out = out.reshape(multiplier * C, N, H, W)
    return jnp.transpose(out, (1, 2, 3, 0))                    # NHWC


# ----------------------------------------------------------------------------
# Deterministic parameter initialization (shapes from the module's __init__)
#   dw: (k*k, C, 1)  with tap index t = ky*k + kx  (== torch (C,1,ky,kx))
#   pw / 1x1: (Cout, Cin)                          (== torch weight[:, :, 0, 0])
# ----------------------------------------------------------------------------
def init_params(key, C_pp, C_p, C, num_edges):
    def nrm(k, shape):
        return 0.1 * jax.random.normal(k, shape, jnp.float32)

    keys = jax.random.split(key, 2 + num_edges)
    params = {
        "pre0": nrm(keys[0], (C, C_pp)),
        "pre1": nrm(keys[1], (C, C_p)),
        "edges": [],
    }
    for e in range(num_edges):
        ks = jax.random.split(keys[2 + e], 12)
        params["edges"].append({
            "sep3": {"dw1": nrm(ks[0], (9, C, 1)),  "pw1": nrm(ks[1], (C, C)),
                     "dw2": nrm(ks[2], (9, C, 1)),  "pw2": nrm(ks[3], (C, C))},
            "sep5": {"dw1": nrm(ks[4], (25, C, 1)), "pw1": nrm(ks[5], (C, C)),
                     "dw2": nrm(ks[6], (25, C, 1)), "pw2": nrm(ks[7], (C, C))},
            "dil3": {"dw": nrm(ks[8], (9, C, 1)),   "pw": nrm(ks[9], (C, C))},
            "dil5": {"dw": nrm(ks[10], (25, C, 1)), "pw": nrm(ks[11], (C, C))},
        })
    return params


# ----------------------------------------------------------------------------
if __name__ == "__main__":
    N, H, W = 2, 8, 8
    C_prev_prev, C_prev, C = 8, 8, 8
    steps, multiplier = 2, 2
    num_edges = sum(2 + i for i in range(steps))   # = 5

    key = jax.random.PRNGKey(0)
    k0, k1, k2, kp = jax.random.split(key, 4)
    s0 = jax.random.normal(k0, (N, H, W, C_prev_prev), jnp.float32)
    s1 = jax.random.normal(k1, (N, H, W, C_prev), jnp.float32)
    alphas = jax.random.normal(k2, (num_edges, len(PRIMITIVES)), jnp.float32)
    weights = jax.nn.softmax(alphas, axis=-1)
    params = init_params(kp, C_prev_prev, C_prev, C, num_edges)

    fwd = jax.jit(functools.partial(cell_forward, steps=steps,
                                    multiplier=multiplier))
    out = fwd(s0, s1, weights, params)
    out = jax.block_until_ready(out)

    assert out.shape == (N, H, W, multiplier * C), out.shape
    assert bool(jnp.all(jnp.isfinite(out)))
    print("KERNEL_OK")
</pallas_src>

<mosaic_0001>
module attributes {stable_mosaic.version = 11 : i64} {
  func.func @_preprocess_kernel(%arg0: i32, %arg1: memref<8x128xf32, #tpu.memory_space<vmem>>, %arg2: memref<8x8xf32, #tpu.memory_space<vmem>>, %arg3: memref<8x128xf32, #tpu.memory_space<vmem>>, %arg4: memref<8x8xf32, #tpu.memory_space<vmem>>, %arg5: memref<8x128xf32, #tpu.memory_space<vmem>>, %arg6: memref<8x128xf32, #tpu.memory_space<vmem>>) attributes {dimension_semantics = [#tpu.dimension_semantics<arbitrary>], iteration_bounds = array<i64: 1>, scalar_prefetch = 0 : i64, scratch_operands = 0 : i64, tpu.core_type = #tpu.core_type<tc>, window_params = [{pipeline_mode = #tpu.pipeline_mode<synchronous>, transform_indices = @transform_0, window_bounds = array<i64: 8, 128>}, {pipeline_mode = #tpu.pipeline_mode<synchronous>, transform_indices = @transform_1, window_bounds = array<i64: 8, 8>}, {pipeline_mode = #tpu.pipeline_mode<synchronous>, transform_indices = @transform_2, window_bounds = array<i64: 8, 128>}, {pipeline_mode = #tpu.pipeline_mode<synchronous>, transform_indices = @transform_3, window_bounds = array<i64: 8, 8>}, {pipeline_mode = #tpu.pipeline_mode<synchronous>, transform_indices = @transform_4, window_bounds = array<i64: 8, 128>}, {pipeline_mode = #tpu.pipeline_mode<synchronous>, transform_indices = @transform_5, window_bounds = array<i64: 8, 128>}]} {
    %c0 = arith.constant 0 : index
    %c0_0 = arith.constant 0 : index
    %0 = vector.load %arg2[%c0, %c0_0] : memref<8x8xf32, #tpu.memory_space<vmem>>, vector<8x8xf32>
    %c0_1 = arith.constant 0 : index
    %c0_2 = arith.constant 0 : index
    %1 = vector.load %arg1[%c0_1, %c0_2] : memref<8x128xf32, #tpu.memory_space<vmem>>, vector<8x128xf32>
    %cst = arith.constant 0.000000e+00 : f32
    %2 = vector.broadcast %cst : f32 to vector<8x128xf32>
    %3 = arith.maximumf %1, %2 : vector<8x128xf32>
    %cst_3 = arith.constant dense<0.000000e+00> : vector<8x128xf32>
    %4 = tpu.matmul %0, %3, %cst_3 {dimension_numbers = #tpu.dot_dimension_numbers<[1], [0], [0], [1], [0, 0, 1, 1], [], []>} : vector<8x8xf32>, vector<8x128xf32>, vector<8x128xf32> -> vector<8x128xf32>
    %cst_4 = arith.constant dense<0.000000e+00> : vector<8xf32>
    %5 = vector.multi_reduction <add>, %4, %cst_4 [1] : vector<8x128xf32> to vector<8xf32>
    %6 = vector.shape_cast %5 : vector<8xf32> to vector<8x1xf32>
    %cst_5 = arith.constant 1.280000e+02 : f32
    %7 = vector.broadcast %cst_5 : f32 to vector<8x1xf32>
    %8 = arith.divf %6, %7 : vector<8x1xf32>
    %9 = vector.broadcast %8 : vector<8x1xf32> to vector<8x128xf32>
    %10 = arith.subf %4, %9 : vector<8x128xf32>
    %11 = arith.mulf %10, %10 : vector<8x128xf32>
    %cst_6 = arith.constant dense<0.000000e+00> : vector<8xf32>
    %12 = vector.multi_reduction <add>, %11, %cst_6 [1] : vector<8x128xf32> to vector<8xf32>
    %13 = vector.shape_cast %12 : vector<8xf32> to vector<8x1xf32>
    %cst_7 = arith.constant 1.280000e+02 : f32
    %14 = vector.broadcast %cst_7 : f32 to vector<8x1xf32>
    %15 = arith.divf %13, %14 : vector<8x1xf32>
    %16 = vector.broadcast %8 : vector<8x1xf32> to vector<8x128xf32>
    %17 = arith.subf %4, %16 : vector<8x128xf32>
    %cst_8 = arith.constant 9.99999974E-6 : f32
    %18 = vector.broadcast %cst_8 : f32 to vector<8x1xf32>
    %19 = arith.addf %15, %18 : vector<8x1xf32>
    %20 = math.rsqrt %19 : vector<8x1xf32>
    %21 = vector.broadcast %20 : vector<8x1xf32> to vector<8x128xf32>
    %22 = arith.mulf %17, %21 : vector<8x128xf32>
    %c0_9 = arith.constant 0 : index
    %c0_10 = arith.constant 0 : index
    %23 = vector.load %arg5[%c0_9, %c0_10] : memref<8x128xf32, #tpu.memory_space<vmem>>, vector<8x128xf32>
    tpu.vector_store %arg5[%c0_9, %c0_10], %22 {strides = array<i32>} : memref<8x128xf32, #tpu.memory_space<vmem>>, vector<8x128xf32>,
    %c0_11 = arith.constant 0 : index
    %c0_12 = arith.constant 0 : index
    %24 = vector.load %arg4[%c0_11, %c0_12] : memref<8x8xf32, #tpu.memory_space<vmem>>, vector<8x8xf32>
    %c0_13 = arith.constant 0 : index
    %c0_14 = arith.constant 0 : index
    %25 = vector.load %arg3[%c0_13, %c0_14] : memref<8x128xf32, #tpu.memory_space<vmem>>, vector<8x128xf32>
    %cst_15 = arith.constant 0.000000e+00 : f32
    %26 = vector.broadcast %cst_15 : f32 to vector<8x128xf32>
    %27 = arith.maximumf %25, %26 : vector<8x128xf32>
    %cst_16 = arith.constant dense<0.000000e+00> : vector<8x128xf32>
    %28 = tpu.matmul %24, %27, %cst_16 {dimension_numbers = #tpu.dot_dimension_numbers<[1], [0], [0], [1], [0, 0, 1, 1], [], []>} : vector<8x8xf32>, vector<8x128xf32>, vector<8x128xf32> -> vector<8x128xf32>
    %cst_17 = arith.constant dense<0.000000e+00> : vector<8xf32>
    %29 = vector.multi_reduction <add>, %28, %cst_17 [1] : vector<8x128xf32> to vector<8xf32>
    %30 = vector.shape_cast %29 : vector<8xf32> to vector<8x1xf32>
    %cst_18 = arith.constant 1.280000e+02 : f32
    %31 = vector.broadcast %cst_18 : f32 to vector<8x1xf32>
    %32 = arith.divf %30, %31 : vector<8x1xf32>
    %33 = vector.broadcast %32 : vector<8x1xf32> to vector<8x128xf32>
    %34 = arith.subf %28, %33 : vector<8x128xf32>
    %35 = arith.mulf %34, %34 : vector<8x128xf32>
    %cst_19 = arith.constant dense<0.000000e+00> : vector<8xf32>
    %36 = vector.multi_reduction <add>, %35, %cst_19 [1] : vector<8x128xf32> to vector<8xf32>
    %37 = vector.shape_cast %36 : vector<8xf32> to vector<8x1xf32>
    %cst_20 = arith.constant 1.280000e+02 : f32
    %38 = vector.broadcast %cst_20 : f32 to vector<8x1xf32>
    %39 = arith.divf %37, %38 : vector<8x1xf32>
    %40 = vector.broadcast %32 : vector<8x1xf32> to vector<8x128xf32>
    %41 = arith.subf %28, %40 : vector<8x128xf32>
    %cst_21 = arith.constant 9.99999974E-6 : f32
    %42 = vector.broadcast %cst_21 : f32 to vector<8x1xf32>
    %43 = arith.addf %39, %42 : vector<8x1xf32>
    %44 = math.rsqrt %43 : vector<8x1xf32>
    %45 = vector.broadcast %44 : vector<8x1xf32> to vector<8x128xf32>
    %46 = arith.mulf %41, %45 : vector<8x128xf32>
    %c0_22 = arith.constant 0 : index
    %c0_23 = arith.constant 0 : index
    %47 = vector.load %arg6[%c0_22, %c0_23] : memref<8x128xf32, #tpu.memory_space<vmem>>, vector<8x128xf32>
    tpu.vector_store %arg6[%c0_22, %c0_23], %46 {strides = array<i32>} : memref<8x128xf32, #tpu.memory_space<vmem>>, vector<8x128xf32>,
    return
  }
  func.func @transform_0(%arg0: i32) -> (i32, i32) {
    %c0_i32 = arith.constant 0 : i32
    %c0_i32_0 = arith.constant 0 : i32
    %c0_i32_1 = arith.constant 0 : i32
    return %c0_i32, %c0_i32_0 : i32, i32
  }
  func.func @transform_1(%arg0: i32) -> (i32, i32) {
    %c0_i32 = arith.constant 0 : i32
    %c0_i32_0 = arith.constant 0 : i32
    %c0_i32_1 = arith.constant 0 : i32
    return %c0_i32, %c0_i32_0 : i32, i32
  }
  func.func @transform_2(%arg0: i32) -> (i32, i32) {
    %c0_i32 = arith.constant 0 : i32
    %c0_i32_0 = arith.constant 0 : i32
    %c0_i32_1 = arith.constant 0 : i32
    return %c0_i32, %c0_i32_0 : i32, i32
  }
  func.func @transform_3(%arg0: i32) -> (i32, i32) {
    %c0_i32 = arith.constant 0 : i32
    %c0_i32_0 = arith.constant 0 : i32
    %c0_i32_1 = arith.constant 0 : i32
    return %c0_i32, %c0_i32_0 : i32, i32
  }
  func.func @transform_4(%arg0: i32) -> (i32, i32) {
    %c0_i32 = arith.constant 0 : i32
    %c0_i32_0 = arith.constant 0 : i32
    %c0_i32_1 = arith.constant 0 : i32
    return %c0_i32, %c0_i32_0 : i32, i32
  }
  func.func @transform_5(%arg0: i32) -> (i32, i32) {
    %c0_i32 = arith.constant 0 : i32
    %c0_i32_0 = arith.constant 0 : i32
    %c0_i32_1 = arith.constant 0 : i32
    return %c0_i32, %c0_i32_0 : i32, i32
  }
}

module attributes {stable_mosaic.version = 11 : i64} {
  func.func @_edge_kernel(%arg0: i32, %arg1: memref<8xf32, #tpu.memory_space<smem>>, %arg2: memref<9x1x128xf32, #tpu.memory_space<vmem>>, %arg3: memref<9x1x128xf32, #tpu.memory_space<vmem>>, %arg4: memref<8x128xf32, #tpu.memory_space<vmem>>, %arg5: memref<9x8x1xf32, #tpu.memory_space<vmem>>, %arg6: memref<8x8xf32, #tpu.memory_space<vmem>>, %arg7: memref<9x8x1xf32, #tpu.memory_space<vmem>>, %arg8: memref<8x8xf32, #tpu.memory_space<vmem>>, %arg9: memref<25x8x1xf32, #tpu.memory_space<vmem>>, %arg10: memref<8x8xf32, #tpu.memory_space<vmem>>, %arg11: memref<25x8x1xf32, #tpu.memory_space<vmem>>, %arg12: memref<8x8xf32, #tpu.memory_space<vmem>>, %arg13: memref<9x8x1xf32, #tpu.memory_space<vmem>>, %arg14: memref<8x8xf32, #tpu.memory_space<vmem>>, %arg15: memref<25x8x1xf32, #tpu.memory_space<vmem>>, %arg16: memref<8x8xf32, #tpu.memory_space<vmem>>, %arg17: memref<8x128xf32, #tpu.memory_space<vmem>>) attributes {dimension_semantics = [#tpu.dimension_semantics<arbitrary>], iteration_bounds = array<i64: 1>, scalar_prefetch = 0 : i64, scratch_operands = 0 : i64, tpu.core_type = #tpu.core_type<tc>, window_params = [{transform_indices = @transform_0, window_bounds = array<i64: 8>}, {pipeline_mode = #tpu.pipeline_mode<synchronous>, transform_indices = @transform_1, window_bounds = array<i64: 9, 1, 128>}, {pipeline_mode = #tpu.pipeline_mode<synchronous>, transform_indices = @transform_2, window_bounds = array<i64: 9, 1, 128>}, {pipeline_mode = #tpu.pipeline_mode<synchronous>, transform_indices = @transform_3, window_bounds = array<i64: 8, 128>}, {pipeline_mode = #tpu.pipeline_mode<synchronous>, transform_indices = @transform_4, window_bounds = array<i64: 9, 8, 1>}, {pipeline_mode = #tpu.pipeline_mode<synchronous>, transform_indices = @transform_5, window_bounds = array<i64: 8, 8>}, {pipeline_mode = #tpu.pipeline_mode<synchronous>, transform_indices = @transform_6, window_bounds = array<i64: 9, 8, 1>}, {pipeline_mode = #tpu.pipeline_mode<synchronous>, transform_indices = @transform_7, window_bounds = array<i64: 8, 8>}, {pipeline_mode = #tpu.pipeline_mode<synchronous>, transform_indices = @transform_8, window_bounds = array<i64: 25, 8, 1>}, {pipeline_mode = #tpu.pipeline_mode<synchronous>, transform_indices = @transform_9, window_bounds = array<i64: 8, 8>}, {pipeline_mode = #tpu.pipeline_mode<synchronous>, transform_indices = @transform_10, window_bounds = array<i64: 25, 8, 1>}, {pipeline_mode = #tpu.pipeline_mode<synchronous>, transform_indices = @transform_11, window_bounds = array<i64: 8, 8>}, {pipeline_mode = #tpu.pipeline_mode<synchronous>, transform_indices = @transform_12, window_bounds = array<i64: 9, 8, 1>}, {pipeline_mode = #tpu.pipeline_mode<synchronous>, transform_indices = @transform_13, window_bounds = array<i64: 8, 8>}, {pipeline_mode = #tpu.pipeline_mode<synchronous>, transform_indices = @transform_14, window_bounds = array<i64: 25, 8, 1>}, {pipeline_mode = #tpu.pipeline_mode<synchronous>, transform_indices = @transform_15, window_bounds = array<i64: 8, 8>}, {pipeline_mode = #tpu.pipeline_mode<synchronous>, transform_indices = @transform_16, window_bounds = array<i64: 8, 128>}]} {
    %c0 = arith.constant 0 : index
    %c0_0 = arith.constant 0 : index
    %0 = vector.load %arg4[%c0, %c0_0] : memref<8x128xf32, #tpu.memory_space<vmem>>, vector<8x128xf32>
    %c0_1 = arith.constant 0 : index
    %c0_2 = arith.constant 0 : index
    %c0_3 = arith.constant 0 : index
    %1 = vector.load %arg2[%c0_1, %c0_2, %c0_3] : memref<9x1x128xf32, #tpu.memory_space<vmem>>, vector<9x1x128xf32>
    %c0_4 = arith.constant 0 : index
    %c0_5 = arith.constant 0 : index
    %c0_6 = arith.constant 0 : index
    %2 = vector.load %arg3[%c0_4, %c0_5, %c0_6] : memref<9x1x128xf32, #tpu.memory_space<vmem>>, vector<9x1x128xf32>
    %cst = arith.constant 0.000000e+00 : f32
    %3 = vector.broadcast %cst : f32 to vector<8x128xf32>
    %4 = arith.maximumf %0, %3 : vector<8x128xf32>
    %c1 = arith.constant 1 : index
    %5 = memref.load %arg1[%c1] : memref<8xf32, #tpu.memory_space<smem>>
    %c9_i32 = arith.constant 9 : i32
    %6 = tpu.dynamic_rotate %0 by %c9_i32 dim 1 : vector<8x128xf32>, i32 -> vector<8x128xf32>
    %7 = vector.extract_strided_slice %1 {offsets = [3, 0, 0], sizes = [1, 1, 128], strides = [1, 1, 1]} : vector<9x1x128xf32> to vector<1x1x128xf32>
    %8 = vector.shape_cast %7 : vector<1x1x128xf32> to vector<1x128xf32>
    %9 = vector.extract_strided_slice %2 {offsets = [3, 0, 0], sizes = [1, 1, 128], strides = [1, 1, 1]} : vector<9x1x128xf32> to vector<1x1x128xf32>
    %10 = vector.shape_cast %9 : vector<1x1x128xf32> to vector<1x128xf32>
    %11 = arith.mulf %8, %10 : vector<1x128xf32>
    %12 = vector.broadcast %11 : vector<1x128xf32> to vector<8x128xf32>
    %13 = arith.mulf %6, %12 : vector<8x128xf32>
    %cst_7 = arith.constant 1.000000e+00 : f32
    %14 = vector.broadcast %cst_7 : f32 to vector<1x128xf32>
    %15 = arith.subf %11, %14 : vector<1x128xf32>
    %cst_8 = arith.constant 1.000000e+30 : f32
    %16 = vector.broadcast %cst_8 : f32 to vector<1x128xf32>
    %17 = arith.mulf %15, %16 : vector<1x128xf32>
    %18 = vector.broadcast %17 : vector<1x128xf32> to vector<8x128xf32>
    %19 = arith.addf %13, %18 : vector<8x128xf32>
    %c8_i32 = arith.constant 8 : i32
    %20 = tpu.dynamic_rotate %0 by %c8_i32 dim 1 : vector<8x128xf32>, i32 -> vector<8x128xf32>
    %21 = vector.extract_strided_slice %1 {offsets = [3, 0, 0], sizes = [1, 1, 128], strides = [1, 1, 1]} : vector<9x1x128xf32> to vector<1x1x128xf32>
    %22 = vector.shape_cast %21 : vector<1x1x128xf32> to vector<1x128xf32>
    %23 = vector.broadcast %22 : vector<1x128xf32> to vector<8x128xf32>
    %24 = arith.mulf %20, %23 : vector<8x128xf32>
    %cst_9 = arith.constant 1.000000e+00 : f32
    %25 = vector.broadcast %cst_9 : f32 to vector<1x128xf32>
    %26 = arith.subf %22, %25 : vector<1x128xf32>
    %cst_10 = arith.constant 1.000000e+30 : f32
    %27 = vector.broadcast %cst_10 : f32 to vector<1x128xf32>
    %28 = arith.mulf %26, %27 : vector<1x128xf32>
    %29 = vector.broadcast %28 : vector<1x128xf32> to vector<8x128xf32>
    %30 = arith.addf %24, %29 : vector<8x128xf32>
    %31 = arith.maximumf %19, %30 : vector<8x128xf32>
    %c7_i32 = arith.constant 7 : i32
    %32 = tpu.dynamic_rotate %0 by %c7_i32 dim 1 : vector<8x128xf32>, i32 -> vector<8x128xf32>
    %33 = vector.extract_strided_slice %1 {offsets = [3, 0, 0], sizes = [1, 1, 128], strides = [1, 1, 1]} : vector<9x1x128xf32> to vector<1x1x128xf32>
    %34 = vector.shape_cast %33 : vector<1x1x128xf32> to vector<1x128xf32>
    %35 = vector.extract_strided_slice %2 {offsets = [5, 0, 0], sizes = [1, 1, 128], strides = [1, 1, 1]} : vector<9x1x128xf32> to vector<1x1x128xf32>
    %36 = vector.shape_cast %35 : vector<1x1x128xf32> to vector<1x128xf32>
    %37 = arith.mulf %34, %36 : vector<1x128xf32>
    %38 = vector.broadcast %37 : vector<1x128xf32> to vector<8x128xf32>
    %39 = arith.mulf %32, %38 : vector<8x128xf32>
    %cst_11 = arith.constant 1.000000e+00 : f32
    %40 = vector.broadcast %cst_11 : f32 to vector<1x128xf32>
    %41 = arith.subf %37, %40 : vector<1x128xf32>
    %cst_12 = arith.constant 1.000000e+30 : f32
    %42 = vector.broadcast %cst_12 : f32 to vector<1x128xf32>
    %43 = arith.mulf %41, %42 : vector<1x128xf32>
    %44 = vector.broadcast %43 : vector<1x128xf32> to vector<8x128xf32>
    %45 = arith.addf %39, %44 : vector<8x128xf32>
    %46 = arith.maximumf %31, %45 : vector<8x128xf32>
    %c1_i32 = arith.constant 1 : i32
    %47 = tpu.dynamic_rotate %0 by %c1_i32 dim 1 : vector<8x128xf32>, i32 -> vector<8x128xf32>
    %48 = vector.extract_strided_slice %2 {offsets = [3, 0, 0], sizes = [1, 1, 128], strides = [1, 1, 1]} : vector<9x1x128xf32> to vector<1x1x128xf32>
    %49 = vector.shape_cast %48 : vector<1x1x128xf32> to vector<1x128xf32>
    %50 = vector.broadcast %49 : vector<1x128xf32> to vector<8x128xf32>
    %51 = arith.mulf %47, %50 : vector<8x128xf32>
    %cst_13 = arith.constant 1.000000e+00 : f32
    %52 = vector.broadcast %cst_13 : f32 to vector<1x128xf32>
    %53 = arith.subf %49, %52 : vector<1x128xf32>
    %cst_14 = arith.constant 1.000000e+30 : f32
    %54 = vector.broadcast %cst_14 : f32 to vector<1x128xf32>
    %55 = arith.mulf %53, %54 : vector<1x128xf32>
    %56 = vector.broadcast %55 : vector<1x128xf32> to vector<8x128xf32>
    %57 = arith.addf %51, %56 : vector<8x128xf32>
    %58 = arith.maximumf %46, %57 : vector<8x128xf32>
    %59 = arith.maximumf %58, %0 : vector<8x128xf32>
    %c127_i32 = arith.constant 127 : i32
    %60 = tpu.dynamic_rotate %0 by %c127_i32 dim 1 : vector<8x128xf32>, i32 -> vector<8x128xf32>
    %61 = vector.extract_strided_slice %2 {offsets = [5, 0, 0], sizes = [1, 1, 128], strides = [1, 1, 1]} : vector<9x1x128xf32> to vector<1x1x128xf32>
    %62 = vector.shape_cast %61 : vector<1x1x128xf32> to vector<1x128xf32>
    %63 = vector.broadcast %62 : vector<1x128xf32> to vector<8x128xf32>
    %64 = arith.mulf %60, %63 : vector<8x128xf32>
    %cst_15 = arith.constant 1.000000e+00 : f32
    %65 = vector.broadcast %cst_15 : f32 to vector<1x128xf32>
    %66 = arith.subf %62, %65 : vector<1x128xf32>
    %cst_16 = arith.constant 1.000000e+30 : f32
    %67 = vector.broadcast %cst_16 : f32 to vector<1x128xf32>
    %68 = arith.mulf %66, %67 : vector<1x128xf32>
    %69 = vector.broadcast %68 : vector<1x128xf32> to vector<8x128xf32>
    %70 = arith.addf %64, %69 : vector<8x128xf32>
    %71 = arith.maximumf %59, %70 : vector<8x128xf32>
    %c121_i32 = arith.constant 121 : i32
    %72 = tpu.dynamic_rotate %0 by %c121_i32 dim 1 : vector<8x128xf32>, i32 -> vector<8x128xf32>
    %73 = vector.extract_strided_slice %1 {offsets = [5, 0, 0], sizes = [1, 1, 128], strides = [1, 1, 1]} : vector<9x1x128xf32> to vector<1x1x128xf32>
    %74 = vector.shape_cast %73 : vector<1x1x128xf32> to vector<1x128xf32>
    %75 = vector.extract_strided_slice %2 {offsets = [3, 0, 0], sizes = [1, 1, 128], strides = [1, 1, 1]} : vector<9x1x128xf32> to vector<1x1x128xf32>
    %76 = vector.shape_cast %75 : vector<1x1x128xf32> to vector<1x128xf32>
    %77 = arith.mulf %74, %76 : vector<1x128xf32>
    %78 = vector.broadcast %77 : vector<1x128xf32> to vector<8x128xf32>
    %79 = arith.mulf %72, %78 : vector<8x128xf32>
    %cst_17 = arith.constant 1.000000e+00 : f32
    %80 = vector.broadcast %cst_17 : f32 to vector<1x128xf32>
    %81 = arith.subf %77, %80 : vector<1x128xf32>
    %cst_18 = arith.constant 1.000000e+30 : f32
    %82 = vector.broadcast %cst_18 : f32 to vector<1x128xf32>
    %83 = arith.mulf %81, %82 : vector<1x128xf32>
    %84 = vector.broadcast %83 : vector<1x128xf32> to vector<8x128xf32>
    %85 = arith.addf %79, %84 : vector<8x128xf32>
    %86 = arith.maximumf %71, %85 : vector<8x128xf32>
    %c120_i32 = arith.constant 120 : i32
    %87 = tpu.dynamic_rotate %0 by %c120_i32 dim 1 : vector<8x128xf32>, i32 -> vector<8x128xf32>
    %88 = vector.extract_strided_slice %1 {offsets = [5, 0, 0], sizes = [1, 1, 128], strides = [1, 1, 1]} : vector<9x1x128xf32> to vector<1x1x128xf32>
    %89 = vector.shape_cast %88 : vector<1x1x128xf32> to vector<1x128xf32>
    %90 = vector.broadcast %89 : vector<1x128xf32> to vector<8x128xf32>
    %91 = arith.mulf %87, %90 : vector<8x128xf32>
    %cst_19 = arith.constant 1.000000e+00 : f32
    %92 = vector.broadcast %cst_19 : f32 to vector<1x128xf32>
    %93 = arith.subf %89, %92 : vector<1x128xf32>
    %cst_20 = arith.constant 1.000000e+30 : f32
    %94 = vector.broadcast %cst_20 : f32 to vector<1x128xf32>
    %95 = arith.mulf %93, %94 : vector<1x128xf32>
    %96 = vector.broadcast %95 : vector<1x128xf32> to vector<8x128xf32>
    %97 = arith.addf %91, %96 : vector<8x128xf32>
    %98 = arith.maximumf %86, %97 : vector<8x128xf32>
    %c119_i32 = arith.constant 119 : i32
    %99 = tpu.dynamic_rotate %0 by %c119_i32 dim 1 : vector<8x128xf32>, i32 -> vector<8x128xf32>
    %100 = vector.extract_strided_slice %1 {offsets = [5, 0, 0], sizes = [1, 1, 128], strides = [1, 1, 1]} : vector<9x1x128xf32> to vector<1x1x128xf32>
    %101 = vector.shape_cast %100 : vector<1x1x128xf32> to vector<1x128xf32>
    %102 = vector.extract_strided_slice %2 {offsets = [5, 0, 0], sizes = [1, 1, 128], strides = [1, 1, 1]} : vector<9x1x128xf32> to vector<1x1x128xf32>
    %103 = vector.shape_cast %102 : vector<1x1x128xf32> to vector<1x128xf32>
    %104 = arith.mulf %101, %103 : vector<1x128xf32>
    %105 = vector.broadcast %104 : vector<1x128xf32> to vector<8x128xf32>
    %106 = arith.mulf %99, %105 : vector<8x128xf32>
    %cst_21 = arith.constant 1.000000e+00 : f32
    %107 = vector.broadcast %cst_21 : f32 to vector<1x128xf32>
    %108 = arith.subf %104, %107 : vector<1x128xf32>
    %cst_22 = arith.constant 1.000000e+30 : f32
    %109 = vector.broadcast %cst_22 : f32 to vector<1x128xf32>
    %110 = arith.mulf %108, %109 : vector<1x128xf32>
    %111 = vector.broadcast %110 : vector<1x128xf32> to vector<8x128xf32>
    %112 = arith.addf %106, %111 : vector<8x128xf32>
    %113 = arith.maximumf %98, %112 : vector<8x128xf32>
    %cst_23 = arith.constant dense<0.000000e+00> : vector<8xf32>
    %114 = vector.multi_reduction <add>, %113, %cst_23 [1] : vector<8x128xf32> to vector<8xf32>
    %115 = vector.shape_cast %114 : vector<8xf32> to vector<8x1xf32>
    %cst_24 = arith.constant 1.280000e+02 : f32
    %116 = vector.broadcast %cst_24 : f32 to vector<8x1xf32>
    %117 = arith.divf %115, %116 : vector<8x1xf32>
    %118 = vector.broadcast %117 : vector<8x1xf32> to vector<8x128xf32>
    %119 = arith.subf %113, %118 : vector<8x128xf32>
    %120 = arith.mulf %119, %119 : vector<8x128xf32>
    %cst_25 = arith.constant dense<0.000000e+00> : vector<8xf32>
    %121 = vector.multi_reduction <add>, %120, %cst_25 [1] : vector<8x128xf32> to vector<8xf32>
    %122 = vector.shape_cast %121 : vector<8xf32> to vector<8x1xf32>
    %cst_26 = arith.constant 1.280000e+02 : f32
    %123 = vector.broadcast %cst_26 : f32 to vector<8x1xf32>
    %124 = arith.divf %122, %123 : vector<8x1xf32>
    %125 = vector.broadcast %117 : vector<8x1xf32> to vector<8x128xf32>
    %126 = arith.subf %113, %125 : vector<8x128xf32>
    %cst_27 = arith.constant 9.99999974E-6 : f32
    %127 = vector.broadcast %cst_27 : f32 to vector<8x1xf32>
    %128 = arith.addf %124, %127 : vector<8x1xf32>
    %129 = math.rsqrt %128 : vector<8x1xf32>
    %130 = vector.broadcast %129 : vector<8x1xf32> to vector<8x128xf32>
    %131 = arith.mulf %126, %130 : vector<8x128xf32>
    %132 = vector.broadcast %5 : f32 to vector<8x128xf32>
    %133 = arith.mulf %132, %131 : vector<8x128xf32>
    %c2 = arith.constant 2 : index
    %134 = memref.load %arg1[%c2] : memref<8xf32, #tpu.memory_space<smem>>
    %135 = arith.addf %13, %24 : vector<8x128xf32>
    %136 = arith.addf %11, %22 : vector<1x128xf32>
    %137 = arith.addf %135, %39 : vector<8x128xf32>
    %138 = arith.addf %136, %37 : vector<1x128xf32>
    %139 = arith.addf %137, %51 : vector<8x128xf32>
    %140 = arith.addf %138, %49 : vector<1x128xf32>
    %141 = arith.addf %139, %0 : vector<8x128xf32>
    %cst_28 = arith.constant 1.000000e+00 : f32
    %142 = vector.broadcast %cst_28 : f32 to vector<1x128xf32>
    %143 = arith.addf %140, %142 : vector<1x128xf32>
    %144 = arith.addf %141, %64 : vector<8x128xf32>
    %145 = arith.addf %143, %62 : vector<1x128xf32>
    %146 = arith.addf %144, %79 : vector<8x128xf32>
    %147 = arith.addf %145, %77 : vector<1x128xf32>
    %148 = arith.addf %146, %91 : vector<8x128xf32>
    %149 = arith.addf %147, %89 : vector<1x128xf32>
    %150 = arith.addf %148, %106 : vector<8x128xf32>
    %151 = arith.addf %149, %104 : vector<1x128xf32>
    %cst_29 = arith.constant 1.000000e+00 : f32
    %152 = vector.broadcast %cst_29 : f32 to vector<1x128xf32>
    %153 = arith.divf %152, %151 : vector<1x128xf32>
    %154 = vector.broadcast %153 : vector<1x128xf32> to vector<8x128xf32>
    %155 = arith.mulf %150, %154 : vector<8x128xf32>
    %cst_30 = arith.constant dense<0.000000e+00> : vector<8xf32>
    %156 = vector.multi_reduction <add>, %155, %cst_30 [1] : vector<8x128xf32> to vector<8xf32>
    %157 = vector.shape_cast %156 : vector<8xf32> to vector<8x1xf32>
    %cst_31 = arith.constant 1.280000e+02 : f32
    %158 = vector.broadcast %cst_31 : f32 to vector<8x1xf32>
    %159 = arith.divf %157, %158 : vector<8x1xf32>
    %160 = vector.broadcast %159 : vector<8x1xf32> to vector<8x128xf32>
    %161 = arith.subf %155, %160 : vector<8x128xf32>
    %162 = arith.mulf %161, %161 : vector<8x128xf32>
    %cst_32 = arith.constant dense<0.000000e+00> : vector<8xf32>
    %163 = vector.multi_reduction <add>, %162, %cst_32 [1] : vector<8x128xf32> to vector<8xf32>
    %164 = vector.shape_cast %163 : vector<8xf32> to vector<8x1xf32>
    %cst_33 = arith.constant 1.280000e+02 : f32
    %165 = vector.broadcast %cst_33 : f32 to vector<8x1xf32>
    %166 = arith.divf %164, %165 : vector<8x1xf32>
    %167 = vector.broadcast %159 : vector<8x1xf32> to vector<8x128xf32>
    %168 = arith.subf %155, %167 : vector<8x128xf32>
    %cst_34 = arith.constant 9.99999974E-6 : f32
    %169 = vector.broadcast %cst_34 : f32 to vector<8x1xf32>
    %170 = arith.addf %166, %169 : vector<8x1xf32>
    %171 = math.rsqrt %170 : vector<8x1xf32>
    %172 = vector.broadcast %171 : vector<8x1xf32> to vector<8x128xf32>
    %173 = arith.mulf %168, %172 : vector<8x128xf32>
    %174 = vector.broadcast %134 : f32 to vector<8x128xf32>
    %175 = arith.mulf %174, %173 : vector<8x128xf32>
    %176 = arith.addf %133, %175 : vector<8x128xf32>
    %c3 = arith.constant 3 : index
    %177 = memref.load %arg1[%c3] : memref<8xf32, #tpu.memory_space<smem>>
    %178 = vector.broadcast %177 : f32 to vector<8x128xf32>
    %179 = arith.mulf %178, %0 : vector<8x128xf32>
    %180 = arith.addf %176, %179 : vector<8x128xf32>
    %c4 = arith.constant 4 : index
    %181 = memref.load %arg1[%c4] : memref<8xf32, #tpu.memory_space<smem>>
    %c0_35 = arith.constant 0 : index
    %c0_36 = arith.constant 0 : index
    %c0_37 = arith.constant 0 : index
    %182 = vector.load %arg5[%c0_35, %c0_36, %c0_37] : memref<9x8x1xf32, #tpu.memory_space<vmem>>, vector<9x8x1xf32>
    %c0_38 = arith.constant 0 : index
    %c0_39 = arith.constant 0 : index
    %183 = vector.load %arg6[%c0_38, %c0_39] : memref<8x8xf32, #tpu.memory_space<vmem>>, vector<8x8xf32>
    %c0_40 = arith.constant 0 : index
    %c0_41 = arith.constant 0 : index
    %c0_42 = arith.constant 0 : index
    %184 = vector.load %arg7[%c0_40, %c0_41, %c0_42] : memref<9x8x1xf32, #tpu.memory_space<vmem>>, vector<9x8x1xf32>
    %c0_43 = arith.constant 0 : index
    %c0_44 = arith.constant 0 : index
    %185 = vector.load %arg8[%c0_43, %c0_44] : memref<8x8xf32, #tpu.memory_space<vmem>>, vector<8x8xf32>
    %c9_i32_45 = arith.constant 9 : i32
    %186 = tpu.dynamic_rotate %4 by %c9_i32_45 dim 1 : vector<8x128xf32>, i32 -> vector<8x128xf32>
    %187 = vector.extract_strided_slice %1 {offsets = [3, 0, 0], sizes = [1, 1, 128], strides = [1, 1, 1]} : vector<9x1x128xf32> to vector<1x1x128xf32>
    %188 = vector.shape_cast %187 : vector<1x1x128xf32> to vector<1x128xf32>
    %189 = vector.extract_strided_slice %2 {offsets = [3, 0, 0], sizes = [1, 1, 128], strides = [1, 1, 1]} : vector<9x1x128xf32> to vector<1x1x128xf32>
    %190 = vector.shape_cast %189 : vector<1x1x128xf32> to vector<1x128xf32>
    %191 = arith.mulf %188, %190 : vector<1x128xf32>
    %192 = vector.broadcast %191 : vector<1x128xf32> to vector<8x128xf32>
    %193 = arith.mulf %186, %192 : vector<8x128xf32>
    %194 = vector.extract_strided_slice %182 {offsets = [0, 0, 0], sizes = [1, 8, 1], strides = [1, 1, 1]} : vector<9x8x1xf32> to vector<1x8x1xf32>
    %195 = vector.shape_cast %194 : vector<1x8x1xf32> to vector<8x1xf32>
    %196 = vector.broadcast %195 : vector<8x1xf32> to vector<8x128xf32>
    %197 = arith.mulf %193, %196 : vector<8x128xf32>
    %c8_i32_46 = arith.constant 8 : i32
    %198 = tpu.dynamic_rotate %4 by %c8_i32_46 dim 1 : vector<8x128xf32>, i32 -> vector<8x128xf32>
    %199 = vector.extract_strided_slice %1 {offsets = [3, 0, 0], sizes = [1, 1, 128], strides = [1, 1, 1]} : vector<9x1x128xf32> to vector<1x1x128xf32>
    %200 = vector.shape_cast %199 : vector<1x1x128xf32> to vector<1x128xf32>
    %201 = vector.broadcast %200 : vector<1x128xf32> to vector<8x128xf32>
    %202 = arith.mulf %198, %201 : vector<8x128xf32>
    %203 = vector.extract_strided_slice %182 {offsets = [1, 0, 0], sizes = [1, 8, 1], strides = [1, 1, 1]} : vector<9x8x1xf32> to vector<1x8x1xf32>
    %204 = vector.shape_cast %203 : vector<1x8x1xf32> to vector<8x1xf32>
    %205 = vector.broadcast %204 : vector<8x1xf32> to vector<8x128xf32>
    %206 = arith.mulf %202, %205 : vector<8x128xf32>
    %207 = arith.addf %197, %206 : vector<8x128xf32>
    %c7_i32_47 = arith.constant 7 : i32
    %208 = tpu.dynamic_rotate %4 by %c7_i32_47 dim 1 : vector<8x128xf32>, i32 -> vector<8x128xf32>
    %209 = vector.extract_strided_slice %1 {offsets = [3, 0, 0], sizes = [1, 1, 128], strides = [1, 1, 1]} : vector<9x1x128xf32> to vector<1x1x128xf32>
    %210 = vector.shape_cast %209 : vector<1x1x128xf32> to vector<1x128xf32>
    %211 = vector.extract_strided_slice %2 {offsets = [5, 0, 0], sizes = [1, 1, 128], strides = [1, 1, 1]} : vector<9x1x128xf32> to vector<1x1x128xf32>
    %212 = vector.shape_cast %211 : vector<1x1x128xf32> to vector<1x128xf32>
    %213 = arith.mulf %210, %212 : vector<1x128xf32>
    %214 = vector.broadcast %213 : vector<1x128xf32> to vector<8x128xf32>
    %215 = arith.mulf %208, %214 : vector<8x128xf32>
    %216 = vector.extract_strided_slice %182 {offsets = [2, 0, 0], sizes = [1, 8, 1], strides = [1, 1, 1]} : vector<9x8x1xf32> to vector<1x8x1xf32>
    %217 = vector.shape_cast %216 : vector<1x8x1xf32> to vector<8x1xf32>
    %218 = vector.broadcast %217 : vector<8x1xf32> to vector<8x128xf32>
    %219 = arith.mulf %215, %218 : vector<8x128xf32>
    %220 = arith.addf %207, %219 : vector<8x128xf32>
    %c1_i32_48 = arith.constant 1 : i32
    %221 = tpu.dynamic_rotate %4 by %c1_i32_48 dim 1 : vector<8x128xf32>, i32 -> vector<8x128xf32>
    %222 = vector.extract_strided_slice %2 {offsets = [3, 0, 0], sizes = [1, 1, 128], strides = [1, 1, 1]} : vector<9x1x128xf32> to vector<1x1x128xf32>
    %223 = vector.shape_cast %222 : vector<1x1x128xf32> to vector<1x128xf32>
    %224 = vector.broadcast %223 : vector<1x128xf32> to vector<8x128xf32>
    %225 = arith.mulf %221, %224 : vector<8x128xf32>
    %226 = vector.extract_strided_slice %182 {offsets = [3, 0, 0], sizes = [1, 8, 1], strides = [1, 1, 1]} : vector<9x8x1xf32> to vector<1x8x1xf32>
    %227 = vector.shape_cast %226 : vector<1x8x1xf32> to vector<8x1xf32>
    %228 = vector.broadcast %227 : vector<8x1xf32> to vector<8x128xf32>
    %229 = arith.mulf %225, %228 : vector<8x128xf32>
    %230 = arith.addf %220, %229 : vector<8x128xf32>
    %231 = vector.extract_strided_slice %182 {offsets = [4, 0, 0], sizes = [1, 8, 1], strides = [1, 1, 1]} : vector<9x8x1xf32> to vector<1x8x1xf32>
    %232 = vector.shape_cast %231 : vector<1x8x1xf32> to vector<8x1xf32>
    %233 = vector.broadcast %232 : vector<8x1xf32> to vector<8x128xf32>
    %234 = arith.mulf %4, %233 : vector<8x128xf32>
    %235 = arith.addf %230, %234 : vector<8x128xf32>
    %c127_i32_49 = arith.constant 127 : i32
    %236 = tpu.dynamic_rotate %4 by %c127_i32_49 dim 1 : vector<8x128xf32>, i32 -> vector<8x128xf32>
    %237 = vector.extract_strided_slice %2 {offsets = [5, 0, 0], sizes = [1, 1, 128], strides = [1, 1, 1]} : vector<9x1x128xf32> to vector<1x1x128xf32>
    %238 = vector.shape_cast %237 : vector<1x1x128xf32> to vector<1x128xf32>
    %239 = vector.broadcast %238 : vector<1x128xf32> to vector<8x128xf32>
    %240 = arith.mulf %236, %239 : vector<8x128xf32>
    %241 = vector.extract_strided_slice %182 {offsets = [5, 0, 0], sizes = [1, 8, 1], strides = [1, 1, 1]} : vector<9x8x1xf32> to vector<1x8x1xf32>
    %242 = vector.shape_cast %241 : vector<1x8x1xf32> to vector<8x1xf32>
    %243 = vector.broadcast %242 : vector<8x1xf32> to vector<8x128xf32>
    %244 = arith.mulf %240, %243 : vector<8x128xf32>
    %245 = arith.addf %235, %244 : vector<8x128xf32>
    %c121_i32_50 = arith.constant 121 : i32
    %246 = tpu.dynamic_rotate %4 by %c121_i32_50 dim 1 : vector<8x128xf32>, i32 -> vector<8x128xf32>
    %247 = vector.extract_strided_slice %1 {offsets = [5, 0, 0], sizes = [1, 1, 128], strides = [1, 1, 1]} : vector<9x1x128xf32> to vector<1x1x128xf32>
    %248 = vector.shape_cast %247 : vector<1x1x128xf32> to vector<1x128xf32>
    %249 = vector.extract_strided_slice %2 {offsets = [3, 0, 0], sizes = [1, 1, 128], strides = [1, 1, 1]} : vector<9x1x128xf32> to vector<1x1x128xf32>
    %250 = vector.shape_cast %249 : vector<1x1x128xf32> to vector<1x128xf32>
    %251 = arith.mulf %248, %250 : vector<1x128xf32>
    %252 = vector.broadcast %251 : vector<1x128xf32> to vector<8x128xf32>
    %253 = arith.mulf %246, %252 : vector<8x128xf32>
    %254 = vector.extract_strided_slice %182 {offsets = [6, 0, 0], sizes = [1, 8, 1], strides = [1, 1, 1]} : vector<9x8x1xf32> to vector<1x8x1xf32>
    %255 = vector.shape_cast %254 : vector<1x8x1xf32> to vector<8x1xf32>
    %256 = vector.broadcast %255 : vector<8x1xf32> to vector<8x128xf32>
    %257 = arith.mulf %253, %256 : vector<8x128xf32>
    %258 = arith.addf %245, %257 : vector<8x128xf32>
    %c120_i32_51 = arith.constant 120 : i32
    %259 = tpu.dynamic_rotate %4 by %c120_i32_51 dim 1 : vector<8x128xf32>, i32 -> vector<8x128xf32>
    %260 = vector.extract_strided_slice %1 {offsets = [5, 0, 0], sizes = [1, 1, 128], strides = [1, 1, 1]} : vector<9x1x128xf32> to vector<1x1x128xf32>
    %261 = vector.shape_cast %260 : vector<1x1x128xf32> to vector<1x128xf32>
    %262 = vector.broadcast %261 : vector<1x128xf32> to vector<8x128xf32>
    %263 = arith.mulf %259, %262 : vector<8x128xf32>
    %264 = vector.extract_strided_slice %182 {offsets = [7, 0, 0], sizes = [1, 8, 1], strides = [1, 1, 1]} : vector<9x8x1xf32> to vector<1x8x1xf32>
    %265 = vector.shape_cast %264 : vector<1x8x1xf32> to vector<8x1xf32>
    %266 = vector.broadcast %265 : vector<8x1xf32> to vector<8x128xf32>
    %267 = arith.mulf %263, %266 : vector<8x128xf32>
    %268 = arith.addf %258, %267 : vector<8x128xf32>
    %c119_i32_52 = arith.constant 119 : i32
    %269 = tpu.dynamic_rotate %4 by %c119_i32_52 dim 1 : vector<8x128xf32>, i32 -> vector<8x128xf32>
    %270 = vector.extract_strided_slice %1 {offsets = [5, 0, 0], sizes = [1, 1, 128], strides = [1, 1, 1]} : vector<9x1x128xf32> to vector<1x1x128xf32>
    %271 = vector.shape_cast %270 : vector<1x1x128xf32> to vector<1x128xf32>
    %272 = vector.extract_strided_slice %2 {offsets = [5, 0, 0], sizes = [1, 1, 128], strides = [1, 1, 1]} : vector<9x1x128xf32> to vector<1x1x128xf32>
    %273 = vector.shape_cast %272 : vector<1x1x128xf32> to vector<1x128xf32>
    %274 = arith.mulf %271, %273 : vector<1x128xf32>
    %275 = vector.broadcast %274 : vector<1x128xf32> to vector<8x128xf32>
    %276 = arith.mulf %269, %275 : vector<8x128xf32>
    %277 = vector.extract_strided_slice %182 {offsets = [8, 0, 0], sizes = [1, 8, 1], strides = [1, 1, 1]} : vector<9x8x1xf32> to vector<1x8x1xf32>
    %278 = vector.shape_cast %277 : vector<1x8x1xf32> to vector<8x1xf32>
    %279 = vector.broadcast %278 : vector<8x1xf32> to vector<8x128xf32>
    %280 = arith.mulf %276, %279 : vector<8x128xf32>
    %281 = arith.addf %268, %280 : vector<8x128xf32>
    %cst_53 = arith.constant dense<0.000000e+00> : vector<8x128xf32>
    %282 = tpu.matmul %183, %281, %cst_53 {dimension_numbers = #tpu.dot_dimension_numbers<[1], [0], [0], [1], [0, 0, 1, 1], [], []>} : vector<8x8xf32>, vector<8x128xf32>, vector<8x128xf32> -> vector<8x128xf32>
    %cst_54 = arith.constant dense<0.000000e+00> : vector<8xf32>
    %283 = vector.multi_reduction <add>, %282, %cst_54 [1] : vector<8x128xf32> to vector<8xf32>
    %284 = vector.shape_cast %283 : vector<8xf32> to vector<8x1xf32>
    %cst_55 = arith.constant 1.280000e+02 : f32
    %285 = vector.broadcast %cst_55 : f32 to vector<8x1xf32>
    %286 = arith.divf %284, %285 : vector<8x1xf32>
    %287 = vector.broadcast %286 : vector<8x1xf32> to vector<8x128xf32>
    %288 = arith.subf %282, %287 : vector<8x128xf32>
    %289 = arith.mulf %288, %288 : vector<8x128xf32>
    %cst_56 = arith.constant dense<0.000000e+00> : vector<8xf32>
    %290 = vector.multi_reduction <add>, %289, %cst_56 [1] : vector<8x128xf32> to vector<8xf32>
    %291 = vector.shape_cast %290 : vector<8xf32> to vector<8x1xf32>
    %cst_57 = arith.constant 1.280000e+02 : f32
    %292 = vector.broadcast %cst_57 : f32 to vector<8x1xf32>
    %293 = arith.divf %291, %292 : vector<8x1xf32>
    %294 = vector.broadcast %286 : vector<8x1xf32> to vector<8x128xf32>
    %295 = arith.subf %282, %294 : vector<8x128xf32>
    %cst_58 = arith.constant 9.99999974E-6 : f32
    %296 = vector.broadcast %cst_58 : f32 to vector<8x1xf32>
    %297 = arith.addf %293, %296 : vector<8x1xf32>
    %298 = math.rsqrt %297 : vector<8x1xf32>
    %299 = vector.broadcast %298 : vector<8x1xf32> to vector<8x128xf32>
    %300 = arith.mulf %295, %299 : vector<8x128xf32>
    %cst_59 = arith.constant 0.000000e+00 : f32
    %301 = vector.broadcast %cst_59 : f32 to vector<8x128xf32>
    %302 = arith.maximumf %300, %301 : vector<8x128xf32>
    %c9_i32_60 = arith.constant 9 : i32
    %303 = tpu.dynamic_rotate %302 by %c9_i32_60 dim 1 : vector<8x128xf32>, i32 -> vector<8x128xf32>
    %304 = vector.extract_strided_slice %1 {offsets = [3, 0, 0], sizes = [1, 1, 128], strides = [1, 1, 1]} : vector<9x1x128xf32> to vector<1x1x128xf32>
    %305 = vector.shape_cast %304 : vector<1x1x128xf32> to vector<1x128xf32>
    %306 = vector.extract_strided_slice %2 {offsets = [3, 0, 0], sizes = [1, 1, 128], strides = [1, 1, 1]} : vector<9x1x128xf32> to vector<1x1x128xf32>
    %307 = vector.shape_cast %306 : vector<1x1x128xf32> to vector<1x128xf32>
    %308 = arith.mulf %305, %307 : vector<1x128xf32>
    %309 = vector.broadcast %308 : vector<1x128xf32> to vector<8x128xf32>
    %310 = arith.mulf %303, %309 : vector<8x128xf32>
    %311 = vector.extract_strided_slice %184 {offsets = [0, 0, 0], sizes = [1, 8, 1], strides = [1, 1, 1]} : vector<9x8x1xf32> to vector<1x8x1xf32>
    %312 = vector.shape_cast %311 : vector<1x8x1xf32> to vector<8x1xf32>
    %313 = vector.broadcast %312 : vector<8x1xf32> to vector<8x128xf32>
    %314 = arith.mulf %310, %313 : vector<8x128xf32>
    %c8_i32_61 = arith.constant 8 : i32
    %315 = tpu.dynamic_rotate %302 by %c8_i32_61 dim 1 : vector<8x128xf32>, i32 -> vector<8x128xf32>
    %316 = vector.extract_strided_slice %1 {offsets = [3, 0, 0], sizes = [1, 1, 128], strides = [1, 1, 1]} : vector<9x1x128xf32> to vector<1x1x128xf32>
    %317 = vector.shape_cast %316 : vector<1x1x128xf32> to vector<1x128xf32>
    %318 = vector.broadcast %317 : vector<1x128xf32> to vector<8x128xf32>
    %319 = arith.mulf %315, %318 : vector<8x128xf32>
    %320 = vector.extract_strided_slice %184 {offsets = [1, 0, 0], sizes = [1, 8, 1], strides = [1, 1, 1]} : vector<9x8x1xf32> to vector<1x8x1xf32>
    %321 = vector.shape_cast %320 : vector<1x8x1xf32> to vector<8x1xf32>
    %322 = vector.broadcast %321 : vector<8x1xf32> to vector<8x128xf32>
    %323 = arith.mulf %319, %322 : vector<8x128xf32>
    %324 = arith.addf %314, %323 : vector<8x128xf32>
    %c7_i32_62 = arith.constant 7 : i32
    %325 = tpu.dynamic_rotate %302 by %c7_i32_62 dim 1 : vector<8x128xf32>, i32 -> vector<8x128xf32>
    %326 = vector.extract_strided_slice %1 {offsets = [3, 0, 0], sizes = [1, 1, 128], strides = [1, 1, 1]} : vector<9x1x128xf32> to vector<1x1x128xf32>
    %327 = vector.shape_cast %326 : vector<1x1x128xf32> to vector<1x128xf32>
    %328 = vector.extract_strided_slice %2 {offsets = [5, 0, 0], sizes = [1, 1, 128], strides = [1, 1, 1]} : vector<9x1x128xf32> to vector<1x1x128xf32>
    %329 = vector.shape_cast %328 : vector<1x1x128xf32> to vector<1x128xf32>
    %330 = arith.mulf %327, %329 : vector<1x128xf32>
    %331 = vector.broadcast %330 : vector<1x128xf32> to vector<8x128xf32>
    %332 = arith.mulf %325, %331 : vector<8x128xf32>
    %333 = vector.extract_strided_slice %184 {offsets = [2, 0, 0], sizes = [1, 8, 1], strides = [1, 1, 1]} : vector<9x8x1xf32> to vector<1x8x1xf32>
    %334 = vector.shape_cast %333 : vector<1x8x1xf32> to vector<8x1xf32>
    %335 = vector.broadcast %334 : vector<8x1xf32> to vector<8x128xf32>
    %336 = arith.mulf %332, %335 : vector<8x128xf32>
    %337 = arith.addf %324, %336 : vector<8x128xf32>
    %c1_i32_63 = arith.constant 1 : i32
    %338 = tpu.dynamic_rotate %302 by %c1_i32_63 dim 1 : vector<8x128xf32>, i32 -> vector<8x128xf32>
    %339 = vector.extract_strided_slice %2 {offsets = [3, 0, 0], sizes = [1, 1, 128], strides = [1, 1, 1]} : vector<9x1x128xf32> to vector<1x1x128xf32>
    %340 = vector.shape_cast %339 : vector<1x1x128xf32> to vector<1x128xf32>
    %341 = vector.broadcast %340 : vector<1x128xf32> to vector<8x128xf32>
    %342 = arith.mulf %338, %341 : vector<8x128xf32>
    %343 = vector.extract_strided_slice %184 {offsets = [3, 0, 0], sizes = [1, 8, 1], strides = [1, 1, 1]} : vector<9x8x1xf32> to vector<1x8x1xf32>
    %344 = vector.shape_cast %343 : vector<1x8x1xf32> to vector<8x1xf32>
    %345 = vector.broadcast %344 : vector<8x1xf32> to vector<8x128xf32>
    %346 = arith.mulf %342, %345 : vector<8x128xf32>
    %347 = arith.addf %337, %346 : vector<8x128xf32>
    %348 = vector.extract_strided_slice %184 {offsets = [4, 0, 0], sizes = [1, 8, 1], strides = [1, 1, 1]} : vector<9x8x1xf32> to vector<1x8x1xf32>
    %349 = vector.shape_cast %348 : vector<1x8x1xf32> to vector<8x1xf32>
    %350 = vector.broadcast %349 : vector<8x1xf32> to vector<8x128xf32>
    %351 = arith.mulf %302, %350 : vector<8x128xf32>
    %352 = arith.addf %347, %351 : vector<8x128xf32>
    %c127_i32_64 = arith.constant 127 : i32
    %353 = tpu.dynamic_rotate %302 by %c127_i32_64 dim 1 : vector<8x128xf32>, i32 -> vector<8x128xf32>
    %354 = vector.extract_strided_slice %2 {offsets = [5, 0, 0], sizes = [1, 1, 128], strides = [1, 1, 1]} : vector<9x1x128xf32> to vector<1x1x128xf32>
    %355 = vector.shape_cast %354 : vector<1x1x128xf32> to vector<1x128xf32>
    %356 = vector.broadcast %355 : vector<1x128xf32> to vector<8x128xf32>
    %357 = arith.mulf %353, %356 : vector<8x128xf32>
    %358 = vector.extract_strided_slice %184 {offsets = [5, 0, 0], sizes = [1, 8, 1], strides = [1, 1, 1]} : vector<9x8x1xf32> to vector<1x8x1xf32>
    %359 = vector.shape_cast %358 : vector<1x8x1xf32> to vector<8x1xf32>
    %360 = vector.broadcast %359 : vector<8x1xf32> to vector<8x128xf32>
    %361 = arith.mulf %357, %360 : vector<8x128xf32>
    %362 = arith.addf %352, %361 : vector<8x128xf32>
    %c121_i32_65 = arith.constant 121 : i32
    %363 = tpu.dynamic_rotate %302 by %c121_i32_65 dim 1 : vector<8x128xf32>, i32 -> vector<8x128xf32>
    %364 = vector.extract_strided_slice %1 {offsets = [5, 0, 0], sizes = [1, 1, 128], strides = [1, 1, 1]} : vector<9x1x128xf32> to vector<1x1x128xf32>
    %365 = vector.shape_cast %364 : vector<1x1x128xf32> to vector<1x128xf32>
    %366 = vector.extract_strided_slice %2 {offsets = [3, 0, 0], sizes = [1, 1, 128], strides = [1, 1, 1]} : vector<9x1x128xf32> to vector<1x1x128xf32>
    %367 = vector.shape_cast %366 : vector<1x1x128xf32> to vector<1x128xf32>
    %368 = arith.mulf %365, %367 : vector<1x128xf32>
    %369 = vector.broadcast %368 : vector<1x128xf32> to vector<8x128xf32>
    %370 = arith.mulf %363, %369 : vector<8x128xf32>
    %371 = vector.extract_strided_slice %184 {offsets = [6, 0, 0], sizes = [1, 8, 1], strides = [1, 1, 1]} : vector<9x8x1xf32> to vector<1x8x1xf32>
    %372 = vector.shape_cast %371 : vector<1x8x1xf32> to vector<8x1xf32>
    %373 = vector.broadcast %372 : vector<8x1xf32> to vector<8x128xf32>
    %374 = arith.mulf %370, %373 : vector<8x128xf32>
    %375 = arith.addf %362, %374 : vector<8x128xf32>
    %c120_i32_66 = arith.constant 120 : i32
    %376 = tpu.dynamic_rotate %302 by %c120_i32_66 dim 1 : vector<8x128xf32>, i32 -> vector<8x128xf32>
    %377 = vector.extract_strided_slice %1 {offsets = [5, 0, 0], sizes = [1, 1, 128], strides = [1, 1, 1]} : vector<9x1x128xf32> to vector<1x1x128xf32>
    %378 = vector.shape_cast %377 : vector<1x1x128xf32> to vector<1x128xf32>
    %379 = vector.broadcast %378 : vector<1x128xf32> to vector<8x128xf32>
    %380 = arith.mulf %376, %379 : vector<8x128xf32>
    %381 = vector.extract_strided_slice %184 {offsets = [7, 0, 0], sizes = [1, 8, 1], strides = [1, 1, 1]} : vector<9x8x1xf32> to vector<1x8x1xf32>
    %382 = vector.shape_cast %381 : vector<1x8x1xf32> to vector<8x1xf32>
    %383 = vector.broadcast %382 : vector<8x1xf32> to vector<8x128xf32>
    %384 = arith.mulf %380, %383 : vector<8x128xf32>
    %385 = arith.addf %375, %384 : vector<8x128xf32>
    %c119_i32_67 = arith.constant 119 : i32
    %386 = tpu.dynamic_rotate %302 by %c119_i32_67 dim 1 : vector<8x128xf32>, i32 -> vector<8x128xf32>
    %387 = vector.extract_strided_slice %1 {offsets = [5, 0, 0], sizes = [1, 1, 128], strides = [1, 1, 1]} : vector<9x1x128xf32> to vector<1x1x128xf32>
    %388 = vector.shape_cast %387 : vector<1x1x128xf32> to vector<1x128xf32>
    %389 = vector.extract_strided_slice %2 {offsets = [5, 0, 0], sizes = [1, 1, 128], strides = [1, 1, 1]} : vector<9x1x128xf32> to vector<1x1x128xf32>
    %390 = vector.shape_cast %389 : vector<1x1x128xf32> to vector<1x128xf32>
    %391 = arith.mulf %388, %390 : vector<1x128xf32>
    %392 = vector.broadcast %391 : vector<1x128xf32> to vector<8x128xf32>
    %393 = arith.mulf %386, %392 : vector<8x128xf32>
    %394 = vector.extract_strided_slice %184 {offsets = [8, 0, 0], sizes = [1, 8, 1], strides = [1, 1, 1]} : vector<9x8x1xf32> to vector<1x8x1xf32>
    %395 = vector.shape_cast %394 : vector<1x8x1xf32> to vector<8x1xf32>
    %396 = vector.broadcast %395 : vector<8x1xf32> to vector<8x128xf32>
    %397 = arith.mulf %393, %396 : vector<8x128xf32>
    %398 = arith.addf %385, %397 : vector<8x128xf32>
    %cst_68 = arith.constant dense<0.000000e+00> : vector<8x128xf32>
    %399 = tpu.matmul %185, %398, %cst_68 {dimension_numbers = #tpu.dot_dimension_numbers<[1], [0], [0], [1], [0, 0, 1, 1], [], []>} : vector<8x8xf32>, vector<8x128xf32>, vector<8x128xf32> -> vector<8x128xf32>
    %cst_69 = arith.constant dense<0.000000e+00> : vector<8xf32>
    %400 = vector.multi_reduction <add>, %399, %cst_69 [1] : vector<8x128xf32> to vector<8xf32>
    %401 = vector.shape_cast %400 : vector<8xf32> to vector<8x1xf32>
    %cst_70 = arith.constant 1.280000e+02 : f32
    %402 = vector.broadcast %cst_70 : f32 to vector<8x1xf32>
    %403 = arith.divf %401, %402 : vector<8x1xf32>
    %404 = vector.broadcast %403 : vector<8x1xf32> to vector<8x128xf32>
    %405 = arith.subf %399, %404 : vector<8x128xf32>
    %406 = arith.mulf %405, %405 : vector<8x128xf32>
    %cst_71 = arith.constant dense<0.000000e+00> : vector<8xf32>
    %407 = vector.multi_reduction <add>, %406, %cst_71 [1] : vector<8x128xf32> to vector<8xf32>
    %408 = vector.shape_cast %407 : vector<8xf32> to vector<8x1xf32>
    %cst_72 = arith.constant 1.280000e+02 : f32
    %409 = vector.broadcast %cst_72 : f32 to vector<8x1xf32>
    %410 = arith.divf %408, %409 : vector<8x1xf32>
    %411 = vector.broadcast %403 : vector<8x1xf32> to vector<8x128xf32>
    %412 = arith.subf %399, %411 : vector<8x128xf32>
    %cst_73 = arith.constant 9.99999974E-6 : f32
    %413 = vector.broadcast %cst_73 : f32 to vector<8x1xf32>
    %414 = arith.addf %410, %413 : vector<8x1xf32>
    %415 = math.rsqrt %414 : vector<8x1xf32>
    %416 = vector.broadcast %415 : vector<8x1xf32> to vector<8x128xf32>
    %417 = arith.mulf %412, %416 : vector<8x128xf32>
    %418 = vector.broadcast %181 : f32 to vector<8x128xf32>
    %419 = arith.mulf %418, %417 : vector<8x128xf32>
    %420 = arith.addf %180, %419 : vector<8x128xf32>
    %c5 = arith.constant 5 : index
    %421 = memref.load %arg1[%c5] : memref<8xf32, #tpu.memory_space<smem>>
    %c0_74 = arith.constant 0 : index
    %c0_75 = arith.constant 0 : index
    %c0_76 = arith.constant 0 : index
    %422 = vector.load %arg9[%c0_74, %c0_75, %c0_76] : memref<25x8x1xf32, #tpu.memory_space<vmem>>, vector<25x8x1xf32>
    %c0_77 = arith.constant 0 : index
    %c0_78 = arith.constant 0 : index
    %423 = vector.load %arg10[%c0_77, %c0_78] : memref<8x8xf32, #tpu.memory_space<vmem>>, vector<8x8xf32>
    %c0_79 = arith.constant 0 : index
    %c0_80 = arith.constant 0 : index
    %c0_81 = arith.constant 0 : index
    %424 = vector.load %arg11[%c0_79, %c0_80, %c0_81] : memref<25x8x1xf32, #tpu.memory_space<vmem>>, vector<25x8x1xf32>
    %c0_82 = arith.constant 0 : index
    %c0_83 = arith.constant 0 : index
    %425 = vector.load %arg12[%c0_82, %c0_83] : memref<8x8xf32, #tpu.memory_space<vmem>>, vector<8x8xf32>
    %c18_i32 = arith.constant 18 : i32
    %426 = tpu.dynamic_rotate %4 by %c18_i32 dim 1 : vector<8x128xf32>, i32 -> vector<8x128xf32>
    %427 = vector.extract_strided_slice %1 {offsets = [2, 0, 0], sizes = [1, 1, 128], strides = [1, 1, 1]} : vector<9x1x128xf32> to vector<1x1x128xf32>
    %428 = vector.shape_cast %427 : vector<1x1x128xf32> to vector<1x128xf32>
    %429 = vector.extract_strided_slice %2 {offsets = [2, 0, 0], sizes = [1, 1, 128], strides = [1, 1, 1]} : vector<9x1x128xf32> to vector<1x1x128xf32>
    %430 = vector.shape_cast %429 : vector<1x1x128xf32> to vector<1x128xf32>
    %431 = arith.mulf %428, %430 : vector<1x128xf32>
    %432 = vector.broadcast %431 : vector<1x128xf32> to vector<8x128xf32>
    %433 = arith.mulf %426, %432 : vector<8x128xf32>
    %434 = vector.extract_strided_slice %422 {offsets = [0, 0, 0], sizes = [1, 8, 1], strides = [1, 1, 1]} : vector<25x8x1xf32> to vector<1x8x1xf32>
    %435 = vector.shape_cast %434 : vector<1x8x1xf32> to vector<8x1xf32>
    %436 = vector.broadcast %435 : vector<8x1xf32> to vector<8x128xf32>
    %437 = arith.mulf %433, %436 : vector<8x128xf32>
    %c17_i32 = arith.constant 17 : i32
    %438 = tpu.dynamic_rotate %4 by %c17_i32 dim 1 : vector<8x128xf32>, i32 -> vector<8x128xf32>
    %439 = vector.extract_strided_slice %1 {offsets = [2, 0, 0], sizes = [1, 1, 128], strides = [1, 1, 1]} : vector<9x1x128xf32> to vector<1x1x128xf32>
    %440 = vector.shape_cast %439 : vector<1x1x128xf32> to vector<1x128xf32>
    %441 = vector.extract_strided_slice %2 {offsets = [3, 0, 0], sizes = [1, 1, 128], strides = [1, 1, 1]} : vector<9x1x128xf32> to vector<1x1x128xf32>
    %442 = vector.shape_cast %441 : vector<1x1x128xf32> to vector<1x128xf32>
    %443 = arith.mulf %440, %442 : vector<1x128xf32>
    %444 = vector.broadcast %443 : vector<1x128xf32> to vector<8x128xf32>
    %445 = arith.mulf %438, %444 : vector<8x128xf32>
    %446 = vector.extract_strided_slice %422 {offsets = [1, 0, 0], sizes = [1, 8, 1], strides = [1, 1, 1]} : vector<25x8x1xf32> to vector<1x8x1xf32>
    %447 = vector.shape_cast %446 : vector<1x8x1xf32> to vector<8x1xf32>
    %448 = vector.broadcast %447 : vector<8x1xf32> to vector<8x128xf32>
    %449 = arith.mulf %445, %448 : vector<8x128xf32>
    %450 = arith.addf %437, %449 : vector<8x128xf32>
    %c16_i32 = arith.constant 16 : i32
    %451 = tpu.dynamic_rotate %4 by %c16_i32 dim 1 : vector<8x128xf32>, i32 -> vector<8x128xf32>
    %452 = vector.extract_strided_slice %1 {offsets = [2, 0, 0], sizes = [1, 1, 128], strides = [1, 1, 1]} : vector<9x1x128xf32> to vector<1x1x128xf32>
    %453 = vector.shape_cast %452 : vector<1x1x128xf32> to vector<1x128xf32>
    %454 = vector.broadcast %453 : vector<1x128xf32> to vector<8x128xf32>
    %455 = arith.mulf %451, %454 : vector<8x128xf32>
    %456 = vector.extract_strided_slice %422 {offsets = [2, 0, 0], sizes = [1, 8, 1], strides = [1, 1, 1]} : vector<25x8x1xf32> to vector<1x8x1xf32>
    %457 = vector.shape_cast %456 : vector<1x8x1xf32> to vector<8x1xf32>
    %458 = vector.broadcast %457 : vector<8x1xf32> to vector<8x128xf32>
    %459 = arith.mulf %455, %458 : vector<8x128xf32>
    %460 = arith.addf %450, %459 : vector<8x128xf32>
    %c15_i32 = arith.constant 15 : i32
    %461 = tpu.dynamic_rotate %4 by %c15_i32 dim 1 : vector<8x128xf32>, i32 -> vector<8x128xf32>
    %462 = vector.extract_strided_slice %1 {offsets = [2, 0, 0], sizes = [1, 1, 128], strides = [1, 1, 1]} : vector<9x1x128xf32> to vector<1x1x128xf32>
    %463 = vector.shape_cast %462 : vector<1x1x128xf32> to vector<1x128xf32>
    %464 = vector.extract_strided_slice %2 {offsets = [5, 0, 0], sizes = [1, 1, 128], strides = [1, 1, 1]} : vector<9x1x128xf32> to vector<1x1x128xf32>
    %465 = vector.shape_cast %464 : vector<1x1x128xf32> to vector<1x128xf32>
    %466 = arith.mulf %463, %465 : vector<1x128xf32>
    %467 = vector.broadcast %466 : vector<1x128xf32> to vector<8x128xf32>
    %468 = arith.mulf %461, %467 : vector<8x128xf32>
    %469 = vector.extract_strided_slice %422 {offsets = [3, 0, 0], sizes = [1, 8, 1], strides = [1, 1, 1]} : vector<25x8x1xf32> to vector<1x8x1xf32>
    %470 = vector.shape_cast %469 : vector<1x8x1xf32> to vector<8x1xf32>
    %471 = vector.broadcast %470 : vector<8x1xf32> to vector<8x128xf32>
    %472 = arith.mulf %468, %471 : vector<8x128xf32>
    %473 = arith.addf %460, %472 : vector<8x128xf32>
    %c14_i32 = arith.constant 14 : i32
    %474 = tpu.dynamic_rotate %4 by %c14_i32 dim 1 : vector<8x128xf32>, i32 -> vector<8x128xf32>
    %475 = vector.extract_strided_slice %1 {offsets = [2, 0, 0], sizes = [1, 1, 128], strides = [1, 1, 1]} : vector<9x1x128xf32> to vector<1x1x128xf32>
    %476 = vector.shape_cast %475 : vector<1x1x128xf32> to vector<1x128xf32>
    %477 = vector.extract_strided_slice %2 {offsets = [6, 0, 0], sizes = [1, 1, 128], strides = [1, 1, 1]} : vector<9x1x128xf32> to vector<1x1x128xf32>
    %478 = vector.shape_cast %477 : vector<1x1x128xf32> to vector<1x128xf32>
    %479 = arith.mulf %476, %478 : vector<1x128xf32>
    %480 = vector.broadcast %479 : vector<1x128xf32> to vector<8x128xf32>
    %481 = arith.mulf %474, %480 : vector<8x128xf32>
    %482 = vector.extract_strided_slice %422 {offsets = [4, 0, 0], sizes = [1, 8, 1], strides = [1, 1, 1]} : vector<25x8x1xf32> to vector<1x8x1xf32>
    %483 = vector.shape_cast %482 : vector<1x8x1xf32> to vector<8x1xf32>
    %484 = vector.broadcast %483 : vector<8x1xf32> to vector<8x128xf32>
    %485 = arith.mulf %481, %484 : vector<8x128xf32>
    %486 = arith.addf %473, %485 : vector<8x128xf32>
    %c10_i32 = arith.constant 10 : i32
    %487 = tpu.dynamic_rotate %4 by %c10_i32 dim 1 : vector<8x128xf32>, i32 -> vector<8x128xf32>
    %488 = vector.extract_strided_slice %1 {offsets = [3, 0, 0], sizes = [1, 1, 128], strides = [1, 1, 1]} : vector<9x1x128xf32> to vector<1x1x128xf32>
    %489 = vector.shape_cast %488 : vector<1x1x128xf32> to vector<1x128xf32>
    %490 = vector.extract_strided_slice %2 {offsets = [2, 0, 0], sizes = [1, 1, 128], strides = [1, 1, 1]} : vector<9x1x128xf32> to vector<1x1x128xf32>
    %491 = vector.shape_cast %490 : vector<1x1x128xf32> to vector<1x128xf32>
    %492 = arith.mulf %489, %491 : vector<1x128xf32>
    %493 = vector.broadcast %492 : vector<1x128xf32> to vector<8x128xf32>
    %494 = arith.mulf %487, %493 : vector<8x128xf32>
    %495 = vector.extract_strided_slice %422 {offsets = [5, 0, 0], sizes = [1, 8, 1], strides = [1, 1, 1]} : vector<25x8x1xf32> to vector<1x8x1xf32>
    %496 = vector.shape_cast %495 : vector<1x8x1xf32> to vector<8x1xf32>
    %497 = vector.broadcast %496 : vector<8x1xf32> to vector<8x128xf32>
    %498 = arith.mulf %494, %497 : vector<8x128xf32>
    %499 = arith.addf %486, %498 : vector<8x128xf32>
    %500 = vector.extract_strided_slice %422 {offsets = [6, 0, 0], sizes = [1, 8, 1], strides = [1, 1, 1]} : vector<25x8x1xf32> to vector<1x8x1xf32>
    %501 = vector.shape_cast %500 : vector<1x8x1xf32> to vector<8x1xf32>
    %502 = vector.broadcast %501 : vector<8x1xf32> to vector<8x128xf32>
    %503 = arith.mulf %193, %502 : vector<8x128xf32>
    %504 = arith.addf %499, %503 : vector<8x128xf32>
    %505 = vector.extract_strided_slice %422 {offsets = [7, 0, 0], sizes = [1, 8, 1], strides = [1, 1, 1]} : vector<25x8x1xf32> to vector<1x8x1xf32>
    %506 = vector.shape_cast %505 : vector<1x8x1xf32> to vector<8x1xf32>
    %507 = vector.broadcast %506 : vector<8x1xf32> to vector<8x128xf32>
    %508 = arith.mulf %202, %507 : vector<8x128xf32>
    %509 = arith.addf %504, %508 : vector<8x128xf32>
    %510 = vector.extract_strided_slice %422 {offsets = [8, 0, 0], sizes = [1, 8, 1], strides = [1, 1, 1]} : vector<25x8x1xf32> to vector<1x8x1xf32>
    %511 = vector.shape_cast %510 : vector<1x8x1xf32> to vector<8x1xf32>
    %512 = vector.broadcast %511 : vector<8x1xf32> to vector<8x128xf32>
    %513 = arith.mulf %215, %512 : vector<8x128xf32>
    %514 = arith.addf %509, %513 : vector<8x128xf32>
    %c6_i32 = arith.constant 6 : i32
    %515 = tpu.dynamic_rotate %4 by %c6_i32 dim 1 : vector<8x128xf32>, i32 -> vector<8x128xf32>
    %516 = vector.extract_strided_slice %1 {offsets = [3, 0, 0], sizes = [1, 1, 128], strides = [1, 1, 1]} : vector<9x1x128xf32> to vector<1x1x128xf32>
    %517 = vector.shape_cast %516 : vector<1x1x128xf32> to vector<1x128xf32>
    %518 = vector.extract_strided_slice %2 {offsets = [6, 0, 0], sizes = [1, 1, 128], strides = [1, 1, 1]} : vector<9x1x128xf32> to vector<1x1x128xf32>
    %519 = vector.shape_cast %518 : vector<1x1x128xf32> to vector<1x128xf32>
    %520 = arith.mulf %517, %519 : vector<1x128xf32>
    %521 = vector.broadcast %520 : vector<1x128xf32> to vector<8x128xf32>
    %522 = arith.mulf %515, %521 : vector<8x128xf32>
    %523 = vector.extract_strided_slice %422 {offsets = [9, 0, 0], sizes = [1, 8, 1], strides = [1, 1, 1]} : vector<25x8x1xf32> to vector<1x8x1xf32>
    %524 = vector.shape_cast %523 : vector<1x8x1xf32> to vector<8x1xf32>
    %525 = vector.broadcast %524 : vector<8x1xf32> to vector<8x128xf32>
    %526 = arith.mulf %522, %525 : vector<8x128xf32>
    %527 = arith.addf %514, %526 : vector<8x128xf32>
    %c2_i32 = arith.constant 2 : i32
    %528 = tpu.dynamic_rotate %4 by %c2_i32 dim 1 : vector<8x128xf32>, i32 -> vector<8x128xf32>
    %529 = vector.extract_strided_slice %2 {offsets = [2, 0, 0], sizes = [1, 1, 128], strides = [1, 1, 1]} : vector<9x1x128xf32> to vector<1x1x128xf32>
    %530 = vector.shape_cast %529 : vector<1x1x128xf32> to vector<1x128xf32>
    %531 = vector.broadcast %530 : vector<1x128xf32> to vector<8x128xf32>
    %532 = arith.mulf %528, %531 : vector<8x128xf32>
    %533 = vector.extract_strided_slice %422 {offsets = [10, 0, 0], sizes = [1, 8, 1], strides = [1, 1, 1]} : vector<25x8x1xf32> to vector<1x8x1xf32>
    %534 = vector.shape_cast %533 : vector<1x8x1xf32> to vector<8x1xf32>
    %535 = vector.broadcast %534 : vector<8x1xf32> to vector<8x128xf32>
    %536 = arith.mulf %532, %535 : vector<8x128xf32>
    %537 = arith.addf %527, %536 : vector<8x128xf32>
    %538 = vector.extract_strided_slice %422 {offsets = [11, 0, 0], sizes = [1, 8, 1], strides = [1, 1, 1]} : vector<25x8x1xf32> to vector<1x8x1xf32>
    %539 = vector.shape_cast %538 : vector<1x8x1xf32> to vector<8x1xf32>
    %540 = vector.broadcast %539 : vector<8x1xf32> to vector<8x128xf32>
    %541 = arith.mulf %225, %540 : vector<8x128xf32>
    %542 = arith.addf %537, %541 : vector<8x128xf32>
    %543 = vector.extract_strided_slice %422 {offsets = [12, 0, 0], sizes = [1, 8, 1], strides = [1, 1, 1]} : vector<25x8x1xf32> to vector<1x8x1xf32>
    %544 = vector.shape_cast %543 : vector<1x8x1xf32> to vector<8x1xf32>
    %545 = vector.broadcast %544 : vector<8x1xf32> to vector<8x128xf32>
    %546 = arith.mulf %4, %545 : vector<8x128xf32>
    %547 = arith.addf %542, %546 : vector<8x128xf32>
    %548 = vector.extract_strided_slice %422 {offsets = [13, 0, 0], sizes = [1, 8, 1], strides = [1, 1, 1]} : vector<25x8x1xf32> to vector<1x8x1xf32>
    %549 = vector.shape_cast %548 : vector<1x8x1xf32> to vector<8x1xf32>
    %550 = vector.broadcast %549 : vector<8x1xf32> to vector<8x128xf32>
    %551 = arith.mulf %240, %550 : vector<8x128xf32>
    %552 = arith.addf %547, %551 : vector<8x128xf32>
    %c126_i32 = arith.constant 126 : i32
    %553 = tpu.dynamic_rotate %4 by %c126_i32 dim 1 : vector<8x128xf32>, i32 -> vector<8x128xf32>
    %554 = vector.extract_strided_slice %2 {offsets = [6, 0, 0], sizes = [1, 1, 128], strides = [1, 1, 1]} : vector<9x1x128xf32> to vector<1x1x128xf32>
    %555 = vector.shape_cast %554 : vector<1x1x128xf32> to vector<1x128xf32>
    %556 = vector.broadcast %555 : vector<1x128xf32> to vector<8x128xf32>
    %557 = arith.mulf %553, %556 : vector<8x128xf32>
    %558 = vector.extract_strided_slice %422 {offsets = [14, 0, 0], sizes = [1, 8, 1], strides = [1, 1, 1]} : vector<25x8x1xf32> to vector<1x8x1xf32>
    %559 = vector.shape_cast %558 : vector<1x8x1xf32> to vector<8x1xf32>
    %560 = vector.broadcast %559 : vector<8x1xf32> to vector<8x128xf32>
    %561 = arith.mulf %557, %560 : vector<8x128xf32>
    %562 = arith.addf %552, %561 : vector<8x128xf32>
    %c122_i32 = arith.constant 122 : i32
    %563 = tpu.dynamic_rotate %4 by %c122_i32 dim 1 : vector<8x128xf32>, i32 -> vector<8x128xf32>
    %564 = vector.extract_strided_slice %1 {offsets = [5, 0, 0], sizes = [1, 1, 128], strides = [1, 1, 1]} : vector<9x1x128xf32> to vector<1x1x128xf32>
    %565 = vector.shape_cast %564 : vector<1x1x128xf32> to vector<1x128xf32>
    %566 = vector.extract_strided_slice %2 {offsets = [2, 0, 0], sizes = [1, 1, 128], strides = [1, 1, 1]} : vector<9x1x128xf32> to vector<1x1x128xf32>
    %567 = vector.shape_cast %566 : vector<1x1x128xf32> to vector<1x128xf32>
    %568 = arith.mulf %565, %567 : vector<1x128xf32>
    %569 = vector.broadcast %568 : vector<1x128xf32> to vector<8x128xf32>
    %570 = arith.mulf %563, %569 : vector<8x128xf32>
    %571 = vector.extract_strided_slice %422 {offsets = [15, 0, 0], sizes = [1, 8, 1], strides = [1, 1, 1]} : vector<25x8x1xf32> to vector<1x8x1xf32>
    %572 = vector.shape_cast %571 : vector<1x8x1xf32> to vector<8x1xf32>
    %573 = vector.broadcast %572 : vector<8x1xf32> to vector<8x128xf32>
    %574 = arith.mulf %570, %573 : vector<8x128xf32>
    %575 = arith.addf %562, %574 : vector<8x128xf32>
    %576 = vector.extract_strided_slice %422 {offsets = [16, 0, 0], sizes = [1, 8, 1], strides = [1, 1, 1]} : vector<25x8x1xf32> to vector<1x8x1xf32>
    %577 = vector.shape_cast %576 : vector<1x8x1xf32> to vector<8x1xf32>
    %578 = vector.broadcast %577 : vector<8x1xf32> to vector<8x128xf32>
    %579 = arith.mulf %253, %578 : vector<8x128xf32>
    %580 = arith.addf %575, %579 : vector<8x128xf32>
    %581 = vector.extract_strided_slice %422 {offsets = [17, 0, 0], sizes = [1, 8, 1], strides = [1, 1, 1]} : vector<25x8x1xf32> to vector<1x8x1xf32>
    %582 = vector.shape_cast %581 : vector<1x8x1xf32> to vector<8x1xf32>
    %583 = vector.broadcast %582 : vector<8x1xf32> to vector<8x128xf32>
    %584 = arith.mulf %263, %583 : vector<8x128xf32>
    %585 = arith.addf %580, %584 : vector<8x128xf32>
    %586 = vector.extract_strided_slice %422 {offsets = [18, 0, 0], sizes = [1, 8, 1], strides = [1, 1, 1]} : vector<25x8x1xf32> to vector<1x8x1xf32>
    %587 = vector.shape_cast %586 : vector<1x8x1xf32> to vector<8x1xf32>
    %588 = vector.broadcast %587 : vector<8x1xf32> to vector<8x128xf32>
    %589 = arith.mulf %276, %588 : vector<8x128xf32>
    %590 = arith.addf %585, %589 : vector<8x128xf32>
    %c118_i32 = arith.constant 118 : i32
    %591 = tpu.dynamic_rotate %4 by %c118_i32 dim 1 : vector<8x128xf32>, i32 -> vector<8x128xf32>
    %592 = vector.extract_strided_slice %1 {offsets = [5, 0, 0], sizes = [1, 1, 128], strides = [1, 1, 1]} : vector<9x1x128xf32> to vector<1x1x128xf32>
    %593 = vector.shape_cast %592 : vector<1x1x128xf32> to vector<1x128xf32>
    %594 = vector.extract_strided_slice %2 {offsets = [6, 0, 0], sizes = [1, 1, 128], strides = [1, 1, 1]} : vector<9x1x128xf32> to vector<1x1x128xf32>
    %595 = vector.shape_cast %594 : vector<1x1x128xf32> to vector<1x128xf32>
    %596 = arith.mulf %593, %595 : vector<1x128xf32>
    %597 = vector.broadcast %596 : vector<1x128xf32> to vector<8x128xf32>
    %598 = arith.mulf %591, %597 : vector<8x128xf32>
    %599 = vector.extract_strided_slice %422 {offsets = [19, 0, 0], sizes = [1, 8, 1], strides = [1, 1, 1]} : vector<25x8x1xf32> to vector<1x8x1xf32>
    %600 = vector.shape_cast %599 : vector<1x8x1xf32> to vector<8x1xf32>
    %601 = vector.broadcast %600 : vector<8x1xf32> to vector<8x128xf32>
    %602 = arith.mulf %598, %601 : vector<8x128xf32>
    %603 = arith.addf %590, %602 : vector<8x128xf32>
    %c114_i32 = arith.constant 114 : i32
    %604 = tpu.dynamic_rotate %4 by %c114_i32 dim 1 : vector<8x128xf32>, i32 -> vector<8x128xf32>
    %605 = vector.extract_strided_slice %1 {offsets = [6, 0, 0], sizes = [1, 1, 128], strides = [1, 1, 1]} : vector<9x1x128xf32> to vector<1x1x128xf32>
    %606 = vector.shape_cast %605 : vector<1x1x128xf32> to vector<1x128xf32>
    %607 = vector.extract_strided_slice %2 {offsets = [2, 0, 0], sizes = [1, 1, 128], strides = [1, 1, 1]} : vector<9x1x128xf32> to vector<1x1x128xf32>
    %608 = vector.shape_cast %607 : vector<1x1x128xf32> to vector<1x128xf32>
    %609 = arith.mulf %606, %608 : vector<1x128xf32>
    %610 = vector.broadcast %609 : vector<1x128xf32> to vector<8x128xf32>
    %611 = arith.mulf %604, %610 : vector<8x128xf32>
    %612 = vector.extract_strided_slice %422 {offsets = [20, 0, 0], sizes = [1, 8, 1], strides = [1, 1, 1]} : vector<25x8x1xf32> to vector<1x8x1xf32>
    %613 = vector.shape_cast %612 : vector<1x8x1xf32> to vector<8x1xf32>
    %614 = vector.broadcast %613 : vector<8x1xf32> to vector<8x128xf32>
    %615 = arith.mulf %611, %614 : vector<8x128xf32>
    %616 = arith.addf %603, %615 : vector<8x128xf32>
    %c113_i32 = arith.constant 113 : i32
    %617 = tpu.dynamic_rotate %4 by %c113_i32 dim 1 : vector<8x128xf32>, i32 -> vector<8x128xf32>
    %618 = vector.extract_strided_slice %1 {offsets = [6, 0, 0], sizes = [1, 1, 128], strides = [1, 1, 1]} : vector<9x1x128xf32> to vector<1x1x128xf32>
    %619 = vector.shape_cast %618 : vector<1x1x128xf32> to vector<1x128xf32>
    %620 = vector.extract_strided_slice %2 {offsets = [3, 0, 0], sizes = [1, 1, 128], strides = [1, 1, 1]} : vector<9x1x128xf32> to vector<1x1x128xf32>
    %621 = vector.shape_cast %620 : vector<1x1x128xf32> to vector<1x128xf32>
    %622 = arith.mulf %619, %621 : vector<1x128xf32>
    %623 = vector.broadcast %622 : vector<1x128xf32> to vector<8x128xf32>
    %624 = arith.mulf %617, %623 : vector<8x128xf32>
    %625 = vector.extract_strided_slice %422 {offsets = [21, 0, 0], sizes = [1, 8, 1], strides = [1, 1, 1]} : vector<25x8x1xf32> to vector<1x8x1xf32>
    %626 = vector.shape_cast %625 : vector<1x8x1xf32> to vector<8x1xf32>
    %627 = vector.broadcast %626 : vector<8x1xf32> to vector<8x128xf32>
    %628 = arith.mulf %624, %627 : vector<8x128xf32>
    %629 = arith.addf %616, %628 : vector<8x128xf32>
    %c112_i32 = arith.constant 112 : i32
    %630 = tpu.dynamic_rotate %4 by %c112_i32 dim 1 : vector<8x128xf32>, i32 -> vector<8x128xf32>
    %631 = vector.extract_strided_slice %1 {offsets = [6, 0, 0], sizes = [1, 1, 128], strides = [1, 1, 1]} : vector<9x1x128xf32> to vector<1x1x128xf32>
    %632 = vector.shape_cast %631 : vector<1x1x128xf32> to vector<1x128xf32>
    %633 = vector.broadcast %632 : vector<1x128xf32> to vector<8x128xf32>
    %634 = arith.mulf %630, %633 : vector<8x128xf32>
    %635 = vector.extract_strided_slice %422 {offsets = [22, 0, 0], sizes = [1, 8, 1], strides = [1, 1, 1]} : vector<25x8x1xf32> to vector<1x8x1xf32>
    %636 = vector.shape_cast %635 : vector<1x8x1xf32> to vector<8x1xf32>
    %637 = vector.broadcast %636 : vector<8x1xf32> to vector<8x128xf32>
    %638 = arith.mulf %634, %637 : vector<8x128xf32>
    %639 = arith.addf %629, %638 : vector<8x128xf32>
    %c111_i32 = arith.constant 111 : i32
    %640 = tpu.dynamic_rotate %4 by %c111_i32 dim 1 : vector<8x128xf32>, i32 -> vector<8x128xf32>
    %641 = vector.extract_strided_slice %1 {offsets = [6, 0, 0], sizes = [1, 1, 128], strides = [1, 1, 1]} : vector<9x1x128xf32> to vector<1x1x128xf32>
    %642 = vector.shape_cast %641 : vector<1x1x128xf32> to vector<1x128xf32>
    %643 = vector.extract_strided_slice %2 {offsets = [5, 0, 0], sizes = [1, 1, 128], strides = [1, 1, 1]} : vector<9x1x128xf32> to vector<1x1x128xf32>
    %644 = vector.shape_cast %643 : vector<1x1x128xf32> to vector<1x128xf32>
    %645 = arith.mulf %642, %644 : vector<1x128xf32>
    %646 = vector.broadcast %645 : vector<1x128xf32> to vector<8x128xf32>
    %647 = arith.mulf %640, %646 : vector<8x128xf32>
    %648 = vector.extract_strided_slice %422 {offsets = [23, 0, 0], sizes = [1, 8, 1], strides = [1, 1, 1]} : vector<25x8x1xf32> to vector<1x8x1xf32>
    %649 = vector.shape_cast %648 : vector<1x8x1xf32> to vector<8x1xf32>
    %650 = vector.broadcast %649 : vector<8x1xf32> to vector<8x128xf32>
    %651 = arith.mulf %647, %650 : vector<8x128xf32>
    %652 = arith.addf %639, %651 : vector<8x128xf32>
    %c110_i32 = arith.constant 110 : i32
    %653 = tpu.dynamic_rotate %4 by %c110_i32 dim 1 : vector<8x128xf32>, i32 -> vector<8x128xf32>
    %654 = vector.extract_strided_slice %1 {offsets = [6, 0, 0], sizes = [1, 1, 128], strides = [1, 1, 1]} : vector<9x1x128xf32> to vector<1x1x128xf32>
    %655 = vector.shape_cast %654 : vector<1x1x128xf32> to vector<1x128xf32>
    %656 = vector.extract_strided_slice %2 {offsets = [6, 0, 0], sizes = [1, 1, 128], strides = [1, 1, 1]} : vector<9x1x128xf32> to vector<1x1x128xf32>
    %657 = vector.shape_cast %656 : vector<1x1x128xf32> to vector<1x128xf32>
    %658 = arith.mulf %655, %657 : vector<1x128xf32>
    %659 = vector.broadcast %658 : vector<1x128xf32> to vector<8x128xf32>
    %660 = arith.mulf %653, %659 : vector<8x128xf32>
    %661 = vector.extract_strided_slice %422 {offsets = [24, 0, 0], sizes = [1, 8, 1], strides = [1, 1, 1]} : vector<25x8x1xf32> to vector<1x8x1xf32>
    %662 = vector.shape_cast %661 : vector<1x8x1xf32> to vector<8x1xf32>
    %663 = vector.broadcast %662 : vector<8x1xf32> to vector<8x128xf32>
    %664 = arith.mulf %660, %663 : vector<8x128xf32>
    %665 = arith.addf %652, %664 : vector<8x128xf32>
    %cst_84 = arith.constant dense<0.000000e+00> : vector<8x128xf32>
    %666 = tpu.matmul %423, %665, %cst_84 {dimension_numbers = #tpu.dot_dimension_numbers<[1], [0], [0], [1], [0, 0, 1, 1], [], []>} : vector<8x8xf32>, vector<8x128xf32>, vector<8x128xf32> -> vector<8x128xf32>
    %cst_85 = arith.constant dense<0.000000e+00> : vector<8xf32>
    %667 = vector.multi_reduction <add>, %666, %cst_85 [1] : vector<8x128xf32> to vector<8xf32>
    %668 = vector.shape_cast %667 : vector<8xf32> to vector<8x1xf32>
    %cst_86 = arith.constant 1.280000e+02 : f32
    %669 = vector.broadcast %cst_86 : f32 to vector<8x1xf32>
    %670 = arith.divf %668, %669 : vector<8x1xf32>
    %671 = vector.broadcast %670 : vector<8x1xf32> to vector<8x128xf32>
    %672 = arith.subf %666, %671 : vector<8x128xf32>
    %673 = arith.mulf %672, %672 : vector<8x128xf32>
    %cst_87 = arith.constant dense<0.000000e+00> : vector<8xf32>
    %674 = vector.multi_reduction <add>, %673, %cst_87 [1] : vector<8x128xf32> to vector<8xf32>
    %675 = vector.shape_cast %674 : vector<8xf32> to vector<8x1xf32>
    %cst_88 = arith.constant 1.280000e+02 : f32
    %676 = vector.broadcast %cst_88 : f32 to vector<8x1xf32>
    %677 = arith.divf %675, %676 : vector<8x1xf32>
    %678 = vector.broadcast %670 : vector<8x1xf32> to vector<8x128xf32>
    %679 = arith.subf %666, %678 : vector<8x128xf32>
    %cst_89 = arith.constant 9.99999974E-6 : f32
    %680 = vector.broadcast %cst_89 : f32 to vector<8x1xf32>
    %681 = arith.addf %677, %680 : vector<8x1xf32>
    %682 = math.rsqrt %681 : vector<8x1xf32>
    %683 = vector.broadcast %682 : vector<8x1xf32> to vector<8x128xf32>
    %684 = arith.mulf %679, %683 : vector<8x128xf32>
    %cst_90 = arith.constant 0.000000e+00 : f32
    %685 = vector.broadcast %cst_90 : f32 to vector<8x128xf32>
    %686 = arith.maximumf %684, %685 : vector<8x128xf32>
    %c18_i32_91 = arith.constant 18 : i32
    %687 = tpu.dynamic_rotate %686 by %c18_i32_91 dim 1 : vector<8x128xf32>, i32 -> vector<8x128xf32>
    %688 = vector.extract_strided_slice %1 {offsets = [2, 0, 0], sizes = [1, 1, 128], strides = [1, 1, 1]} : vector<9x1x128xf32> to vector<1x1x128xf32>
    %689 = vector.shape_cast %688 : vector<1x1x128xf32> to vector<1x128xf32>
    %690 = vector.extract_strided_slice %2 {offsets = [2, 0, 0], sizes = [1, 1, 128], strides = [1, 1, 1]} : vector<9x1x128xf32> to vector<1x1x128xf32>
    %691 = vector.shape_cast %690 : vector<1x1x128xf32> to vector<1x128xf32>
    %692 = arith.mulf %689, %691 : vector<1x128xf32>
    %693 = vector.broadcast %692 : vector<1x128xf32> to vector<8x128xf32>
    %694 = arith.mulf %687, %693 : vector<8x128xf32>
    %695 = vector.extract_strided_slice %424 {offsets = [0, 0, 0], sizes = [1, 8, 1], strides = [1, 1, 1]} : vector<25x8x1xf32> to vector<1x8x1xf32>
    %696 = vector.shape_cast %695 : vector<1x8x1xf32> to vector<8x1xf32>
    %697 = vector.broadcast %696 : vector<8x1xf32> to vector<8x128xf32>
    %698 = arith.mulf %694, %697 : vector<8x128xf32>
    %c17_i32_92 = arith.constant 17 : i32
    %699 = tpu.dynamic_rotate %686 by %c17_i32_92 dim 1 : vector<8x128xf32>, i32 -> vector<8x128xf32>
    %700 = vector.extract_strided_slice %1 {offsets = [2, 0, 0], sizes = [1, 1, 128], strides = [1, 1, 1]} : vector<9x1x128xf32> to vector<1x1x128xf32>
    %701 = vector.shape_cast %700 : vector<1x1x128xf32> to vector<1x128xf32>
    %702 = vector.extract_strided_slice %2 {offsets = [3, 0, 0], sizes = [1, 1, 128], strides = [1, 1, 1]} : vector<9x1x128xf32> to vector<1x1x128xf32>
    %703 = vector.shape_cast %702 : vector<1x1x128xf32> to vector<1x128xf32>
    %704 = arith.mulf %701, %703 : vector<1x128xf32>
    %705 = vector.broadcast %704 : vector<1x128xf32> to vector<8x128xf32>
    %706 = arith.mulf %699, %705 : vector<8x128xf32>
    %707 = vector.extract_strided_slice %424 {offsets = [1, 0, 0], sizes = [1, 8, 1], strides = [1, 1, 1]} : vector<25x8x1xf32> to vector<1x8x1xf32>
    %708 = vector.shape_cast %707 : vector<1x8x1xf32> to vector<8x1xf32>
    %709 = vector.broadcast %708 : vector<8x1xf32> to vector<8x128xf32>
    %710 = arith.mulf %706, %709 : vector<8x128xf32>
    %711 = arith.addf %698, %710 : vector<8x128xf32>
    %c16_i32_93 = arith.constant 16 : i32
    %712 = tpu.dynamic_rotate %686 by %c16_i32_93 dim 1 : vector<8x128xf32>, i32 -> vector<8x128xf32>
    %713 = vector.extract_strided_slice %1 {offsets = [2, 0, 0], sizes = [1, 1, 128], strides = [1, 1, 1]} : vector<9x1x128xf32> to vector<1x1x128xf32>
    %714 = vector.shape_cast %713 : vector<1x1x128xf32> to vector<1x128xf32>
    %715 = vector.broadcast %714 : vector<1x128xf32> to vector<8x128xf32>
    %716 = arith.mulf %712, %715 : vector<8x128xf32>
    %717 = vector.extract_strided_slice %424 {offsets = [2, 0, 0], sizes = [1, 8, 1], strides = [1, 1, 1]} : vector<25x8x1xf32> to vector<1x8x1xf32>
    %718 = vector.shape_cast %717 : vector<1x8x1xf32> to vector<8x1xf32>
    %719 = vector.broadcast %718 : vector<8x1xf32> to vector<8x128xf32>
    %720 = arith.mulf %716, %719 : vector<8x128xf32>
    %721 = arith.addf %711, %720 : vector<8x128xf32>
    %c15_i32_94 = arith.constant 15 : i32
    %722 = tpu.dynamic_rotate %686 by %c15_i32_94 dim 1 : vector<8x128xf32>, i32 -> vector<8x128xf32>
    %723 = vector.extract_strided_slice %1 {offsets = [2, 0, 0], sizes = [1, 1, 128], strides = [1, 1, 1]} : vector<9x1x128xf32> to vector<1x1x128xf32>
    %724 = vector.shape_cast %723 : vector<1x1x128xf32> to vector<1x128xf32>
    %725 = vector.extract_strided_slice %2 {offsets = [5, 0, 0], sizes = [1, 1, 128], strides = [1, 1, 1]} : vector<9x1x128xf32> to vector<1x1x128xf32>
    %726 = vector.shape_cast %725 : vector<1x1x128xf32> to vector<1x128xf32>
    %727 = arith.mulf %724, %726 : vector<1x128xf32>
    %728 = vector.broadcast %727 : vector<1x128xf32> to vector<8x128xf32>
    %729 = arith.mulf %722, %728 : vector<8x128xf32>
    %730 = vector.extract_strided_slice %424 {offsets = [3, 0, 0], sizes = [1, 8, 1], strides = [1, 1, 1]} : vector<25x8x1xf32> to vector<1x8x1xf32>
    %731 = vector.shape_cast %730 : vector<1x8x1xf32> to vector<8x1xf32>
    %732 = vector.broadcast %731 : vector<8x1xf32> to vector<8x128xf32>
    %733 = arith.mulf %729, %732 : vector<8x128xf32>
    %734 = arith.addf %721, %733 : vector<8x128xf32>
    %c14_i32_95 = arith.constant 14 : i32
    %735 = tpu.dynamic_rotate %686 by %c14_i32_95 dim 1 : vector<8x128xf32>, i32 -> vector<8x128xf32>
    %736 = vector.extract_strided_slice %1 {offsets = [2, 0, 0], sizes = [1, 1, 128], strides = [1, 1, 1]} : vector<9x1x128xf32> to vector<1x1x128xf32>
    %737 = vector.shape_cast %736 : vector<1x1x128xf32> to vector<1x128xf32>
    %738 = vector.extract_strided_slice %2 {offsets = [6, 0, 0], sizes = [1, 1, 128], strides = [1, 1, 1]} : vector<9x1x128xf32> to vector<1x1x128xf32>
    %739 = vector.shape_cast %738 : vector<1x1x128xf32> to vector<1x128xf32>
    %740 = arith.mulf %737, %739 : vector<1x128xf32>
    %741 = vector.broadcast %740 : vector<1x128xf32> to vector<8x128xf32>
    %742 = arith.mulf %735, %741 : vector<8x128xf32>
    %743 = vector.extract_strided_slice %424 {offsets = [4, 0, 0], sizes = [1, 8, 1], strides = [1, 1, 1]} : vector<25x8x1xf32> to vector<1x8x1xf32>
    %744 = vector.shape_cast %743 : vector<1x8x1xf32> to vector<8x1xf32>
    %745 = vector.broadcast %744 : vector<8x1xf32> to vector<8x128xf32>
    %746 = arith.mulf %742, %745 : vector<8x128xf32>
    %747 = arith.addf %734, %746 : vector<8x128xf32>
    %c10_i32_96 = arith.constant 10 : i32
    %748 = tpu.dynamic_rotate %686 by %c10_i32_96 dim 1 : vector<8x128xf32>, i32 -> vector<8x128xf32>
    %749 = vector.extract_strided_slice %1 {offsets = [3, 0, 0], sizes = [1, 1, 128], strides = [1, 1, 1]} : vector<9x1x128xf32> to vector<1x1x128xf32>
    %750 = vector.shape_cast %749 : vector<1x1x128xf32> to vector<1x128xf32>
    %751 = vector.extract_strided_slice %2 {offsets = [2, 0, 0], sizes = [1, 1, 128], strides = [1, 1, 1]} : vector<9x1x128xf32> to vector<1x1x128xf32>
    %752 = vector.shape_cast %751 : vector<1x1x128xf32> to vector<1x128xf32>
    %753 = arith.mulf %750, %752 : vector<1x128xf32>
    %754 = vector.broadcast %753 : vector<1x128xf32> to vector<8x128xf32>
    %755 = arith.mulf %748, %754 : vector<8x128xf32>
    %756 = vector.extract_strided_slice %424 {offsets = [5, 0, 0], sizes = [1, 8, 1], strides = [1, 1, 1]} : vector<25x8x1xf32> to vector<1x8x1xf32>
    %757 = vector.shape_cast %756 : vector<1x8x1xf32> to vector<8x1xf32>
    %758 = vector.broadcast %757 : vector<8x1xf32> to vector<8x128xf32>
    %759 = arith.mulf %755, %758 : vector<8x128xf32>
    %760 = arith.addf %747, %759 : vector<8x128xf32>
    %c9_i32_97 = arith.constant 9 : i32
    %761 = tpu.dynamic_rotate %686 by %c9_i32_97 dim 1 : vector<8x128xf32>, i32 -> vector<8x128xf32>
    %762 = vector.extract_strided_slice %1 {offsets = [3, 0, 0], sizes = [1, 1, 128], strides = [1, 1, 1]} : vector<9x1x128xf32> to vector<1x1x128xf32>
    %763 = vector.shape_cast %762 : vector<1x1x128xf32> to vector<1x128xf32>
    %764 = vector.extract_strided_slice %2 {offsets = [3, 0, 0], sizes = [1, 1, 128], strides = [1, 1, 1]} : vector<9x1x128xf32> to vector<1x1x128xf32>
    %765 = vector.shape_cast %764 : vector<1x1x128xf32> to vector<1x128xf32>
    %766 = arith.mulf %763, %765 : vector<1x128xf32>
    %767 = vector.broadcast %766 : vector<1x128xf32> to vector<8x128xf32>
    %768 = arith.mulf %761, %767 : vector<8x128xf32>
    %769 = vector.extract_strided_slice %424 {offsets = [6, 0, 0], sizes = [1, 8, 1], strides = [1, 1, 1]} : vector<25x8x1xf32> to vector<1x8x1xf32>
    %770 = vector.shape_cast %769 : vector<1x8x1xf32> to vector<8x1xf32>
    %771 = vector.broadcast %770 : vector<8x1xf32> to vector<8x128xf32>
    %772 = arith.mulf %768, %771 : vector<8x128xf32>
    %773 = arith.addf %760, %772 : vector<8x128xf32>
    %c8_i32_98 = arith.constant 8 : i32
    %774 = tpu.dynamic_rotate %686 by %c8_i32_98 dim 1 : vector<8x128xf32>, i32 -> vector<8x128xf32>
    %775 = vector.extract_strided_slice %1 {offsets = [3, 0, 0], sizes = [1, 1, 128], strides = [1, 1, 1]} : vector<9x1x128xf32> to vector<1x1x128xf32>
    %776 = vector.shape_cast %775 : vector<1x1x128xf32> to vector<1x128xf32>
    %777 = vector.broadcast %776 : vector<1x128xf32> to vector<8x128xf32>
    %778 = arith.mulf %774, %777 : vector<8x128xf32>
    %779 = vector.extract_strided_slice %424 {offsets = [7, 0, 0], sizes = [1, 8, 1], strides = [1, 1, 1]} : vector<25x8x1xf32> to vector<1x8x1xf32>
    %780 = vector.shape_cast %779 : vector<1x8x1xf32> to vector<8x1xf32>
    %781 = vector.broadcast %780 : vector<8x1xf32> to vector<8x128xf32>
    %782 = arith.mulf %778, %781 : vector<8x128xf32>
    %783 = arith.addf %773, %782 : vector<8x128xf32>
    %c7_i32_99 = arith.constant 7 : i32
    %784 = tpu.dynamic_rotate %686 by %c7_i32_99 dim 1 : vector<8x128xf32>, i32 -> vector<8x128xf32>
    %785 = vector.extract_strided_slice %1 {offsets = [3, 0, 0], sizes = [1, 1, 128], strides = [1, 1, 1]} : vector<9x1x128xf32> to vector<1x1x128xf32>
    %786 = vector.shape_cast %785 : vector<1x1x128xf32> to vector<1x128xf32>
    %787 = vector.extract_strided_slice %2 {offsets = [5, 0, 0], sizes = [1, 1, 128], strides = [1, 1, 1]} : vector<9x1x128xf32> to vector<1x1x128xf32>
    %788 = vector.shape_cast %787 : vector<1x1x128xf32> to vector<1x128xf32>
    %789 = arith.mulf %786, %788 : vector<1x128xf32>
    %790 = vector.broadcast %789 : vector<1x128xf32> to vector<8x128xf32>
    %791 = arith.mulf %784, %790 : vector<8x128xf32>
    %792 = vector.extract_strided_slice %424 {offsets = [8, 0, 0], sizes = [1, 8, 1], strides = [1, 1, 1]} : vector<25x8x1xf32> to vector<1x8x1xf32>
    %793 = vector.shape_cast %792 : vector<1x8x1xf32> to vector<8x1xf32>
    %794 = vector.broadcast %793 : vector<8x1xf32> to vector<8x128xf32>
    %795 = arith.mulf %791, %794 : vector<8x128xf32>
    %796 = arith.addf %783, %795 : vector<8x128xf32>
    %c6_i32_100 = arith.constant 6 : i32
    %797 = tpu.dynamic_rotate %686 by %c6_i32_100 dim 1 : vector<8x128xf32>, i32 -> vector<8x128xf32>
    %798 = vector.extract_strided_slice %1 {offsets = [3, 0, 0], sizes = [1, 1, 128], strides = [1, 1, 1]} : vector<9x1x128xf32> to vector<1x1x128xf32>
    %799 = vector.shape_cast %798 : vector<1x1x128xf32> to vector<1x128xf32>
    %800 = vector.extract_strided_slice %2 {offsets = [6, 0, 0], sizes = [1, 1, 128], strides = [1, 1, 1]} : vector<9x1x128xf32> to vector<1x1x128xf32>
    %801 = vector.shape_cast %800 : vector<1x1x128xf32> to vector<1x128xf32>
    %802 = arith.mulf %799, %801 : vector<1x128xf32>
    %803 = vector.broadcast %802 : vector<1x128xf32> to vector<8x128xf32>
    %804 = arith.mulf %797, %803 : vector<8x128xf32>
    %805 = vector.extract_strided_slice %424 {offsets = [9, 0, 0], sizes = [1, 8, 1], strides = [1, 1, 1]} : vector<25x8x1xf32> to vector<1x8x1xf32>
    %806 = vector.shape_cast %805 : vector<1x8x1xf32> to vector<8x1xf32>
    %807 = vector.broadcast %806 : vector<8x1xf32> to vector<8x128xf32>
    %808 = arith.mulf %804, %807 : vector<8x128xf32>
    %809 = arith.addf %796, %808 : vector<8x128xf32>
    %c2_i32_101 = arith.constant 2 : i32
    %810 = tpu.dynamic_rotate %686 by %c2_i32_101 dim 1 : vector<8x128xf32>, i32 -> vector<8x128xf32>
    %811 = vector.extract_strided_slice %2 {offsets = [2, 0, 0], sizes = [1, 1, 128], strides = [1, 1, 1]} : vector<9x1x128xf32> to vector<1x1x128xf32>
    %812 = vector.shape_cast %811 : vector<1x1x128xf32> to vector<1x128xf32>
    %813 = vector.broadcast %812 : vector<1x128xf32> to vector<8x128xf32>
    %814 = arith.mulf %810, %813 : vector<8x128xf32>
    %815 = vector.extract_strided_slice %424 {offsets = [10, 0, 0], sizes = [1, 8, 1], strides = [1, 1, 1]} : vector<25x8x1xf32> to vector<1x8x1xf32>
    %816 = vector.shape_cast %815 : vector<1x8x1xf32> to vector<8x1xf32>
    %817 = vector.broadcast %816 : vector<8x1xf32> to vector<8x128xf32>
    %818 = arith.mulf %814, %817 : vector<8x128xf32>
    %819 = arith.addf %809, %818 : vector<8x128xf32>
    %c1_i32_102 = arith.constant 1 : i32
    %820 = tpu.dynamic_rotate %686 by %c1_i32_102 dim 1 : vector<8x128xf32>, i32 -> vector<8x128xf32>
    %821 = vector.extract_strided_slice %2 {offsets = [3, 0, 0], sizes = [1, 1, 128], strides = [1, 1, 1]} : vector<9x1x128xf32> to vector<1x1x128xf32>
    %822 = vector.shape_cast %821 : vector<1x1x128xf32> to vector<1x128xf32>
    %823 = vector.broadcast %822 : vector<1x128xf32> to vector<8x128xf32>
    %824 = arith.mulf %820, %823 : vector<8x128xf32>
    %825 = vector.extract_strided_slice %424 {offsets = [11, 0, 0], sizes = [1, 8, 1], strides = [1, 1, 1]} : vector<25x8x1xf32> to vector<1x8x1xf32>
    %826 = vector.shape_cast %825 : vector<1x8x1xf32> to vector<8x1xf32>
    %827 = vector.broadcast %826 : vector<8x1xf32> to vector<8x128xf32>
    %828 = arith.mulf %824, %827 : vector<8x128xf32>
    %829 = arith.addf %819, %828 : vector<8x128xf32>
    %830 = vector.extract_strided_slice %424 {offsets = [12, 0, 0], sizes = [1, 8, 1], strides = [1, 1, 1]} : vector<25x8x1xf32> to vector<1x8x1xf32>
    %831 = vector.shape_cast %830 : vector<1x8x1xf32> to vector<8x1xf32>
    %832 = vector.broadcast %831 : vector<8x1xf32> to vector<8x128xf32>
    %833 = arith.mulf %686, %832 : vector<8x128xf32>
    %834 = arith.addf %829, %833 : vector<8x128xf32>
    %c127_i32_103 = arith.constant 127 : i32
    %835 = tpu.dynamic_rotate %686 by %c127_i32_103 dim 1 : vector<8x128xf32>, i32 -> vector<8x128xf32>
    %836 = vector.extract_strided_slice %2 {offsets = [5, 0, 0], sizes = [1, 1, 128], strides = [1, 1, 1]} : vector<9x1x128xf32> to vector<1x1x128xf32>
    %837 = vector.shape_cast %836 : vector<1x1x128xf32> to vector<1x128xf32>
    %838 = vector.broadcast %837 : vector<1x128xf32> to vector<8x128xf32>
    %839 = arith.mulf %835, %838 : vector<8x128xf32>
    %840 = vector.extract_strided_slice %424 {offsets = [13, 0, 0], sizes = [1, 8, 1], strides = [1, 1, 1]} : vector<25x8x1xf32> to vector<1x8x1xf32>
    %841 = vector.shape_cast %840 : vector<1x8x1xf32> to vector<8x1xf32>
    %842 = vector.broadcast %841 : vector<8x1xf32> to vector<8x128xf32>
    %843 = arith.mulf %839, %842 : vector<8x128xf32>
    %844 = arith.addf %834, %843 : vector<8x128xf32>
    %c126_i32_104 = arith.constant 126 : i32
    %845 = tpu.dynamic_rotate %686 by %c126_i32_104 dim 1 : vector<8x128xf32>, i32 -> vector<8x128xf32>
    %846 = vector.extract_strided_slice %2 {offsets = [6, 0, 0], sizes = [1, 1, 128], strides = [1, 1, 1]} : vector<9x1x128xf32> to vector<1x1x128xf32>
    %847 = vector.shape_cast %846 : vector<1x1x128xf32> to vector<1x128xf32>
    %848 = vector.broadcast %847 : vector<1x128xf32> to vector<8x128xf32>
    %849 = arith.mulf %845, %848 : vector<8x128xf32>
    %850 = vector.extract_strided_slice %424 {offsets = [14, 0, 0], sizes = [1, 8, 1], strides = [1, 1, 1]} : vector<25x8x1xf32> to vector<1x8x1xf32>
    %851 = vector.shape_cast %850 : vector<1x8x1xf32> to vector<8x1xf32>
    %852 = vector.broadcast %851 : vector<8x1xf32> to vector<8x128xf32>
    %853 = arith.mulf %849, %852 : vector<8x128xf32>
    %854 = arith.addf %844, %853 : vector<8x128xf32>
    %c122_i32_105 = arith.constant 122 : i32
    %855 = tpu.dynamic_rotate %686 by %c122_i32_105 dim 1 : vector<8x128xf32>, i32 -> vector<8x128xf32>
    %856 = vector.extract_strided_slice %1 {offsets = [5, 0, 0], sizes = [1, 1, 128], strides = [1, 1, 1]} : vector<9x1x128xf32> to vector<1x1x128xf32>
    %857 = vector.shape_cast %856 : vector<1x1x128xf32> to vector<1x128xf32>
    %858 = vector.extract_strided_slice %2 {offsets = [2, 0, 0], sizes = [1, 1, 128], strides = [1, 1, 1]} : vector<9x1x128xf32> to vector<1x1x128xf32>
    %859 = vector.shape_cast %858 : vector<1x1x128xf32> to vector<1x128xf32>
    %860 = arith.mulf %857, %859 : vector<1x128xf32>
    %861 = vector.broadcast %860 : vector<1x128xf32> to vector<8x128xf32>
    %862 = arith.mulf %855, %861 : vector<8x128xf32>
    %863 = vector.extract_strided_slice %424 {offsets = [15, 0, 0], sizes = [1, 8, 1], strides = [1, 1, 1]} : vector<25x8x1xf32> to vector<1x8x1xf32>
    %864 = vector.shape_cast %863 : vector<1x8x1xf32> to vector<8x1xf32>
    %865 = vector.broadcast %864 : vector<8x1xf32> to vector<8x128xf32>
    %866 = arith.mulf %862, %865 : vector<8x128xf32>
    %867 = arith.addf %854, %866 : vector<8x128xf32>
    %c121_i32_106 = arith.constant 121 : i32
    %868 = tpu.dynamic_rotate %686 by %c121_i32_106 dim 1 : vector<8x128xf32>, i32 -> vector<8x128xf32>
    %869 = vector.extract_strided_slice %1 {offsets = [5, 0, 0], sizes = [1, 1, 128], strides = [1, 1, 1]} : vector<9x1x128xf32> to vector<1x1x128xf32>
    %870 = vector.shape_cast %869 : vector<1x1x128xf32> to vector<1x128xf32>
    %871 = vector.extract_strided_slice %2 {offsets = [3, 0, 0], sizes = [1, 1, 128], strides = [1, 1, 1]} : vector<9x1x128xf32> to vector<1x1x128xf32>
    %872 = vector.shape_cast %871 : vector<1x1x128xf32> to vector<1x128xf32>
    %873 = arith.mulf %870, %872 : vector<1x128xf32>
    %874 = vector.broadcast %873 : vector<1x128xf32> to vector<8x128xf32>
    %875 = arith.mulf %868, %874 : vector<8x128xf32>
    %876 = vector.extract_strided_slice %424 {offsets = [16, 0, 0], sizes = [1, 8, 1], strides = [1, 1, 1]} : vector<25x8x1xf32> to vector<1x8x1xf32>
    %877 = vector.shape_cast %876 : vector<1x8x1xf32> to vector<8x1xf32>
    %878 = vector.broadcast %877 : vector<8x1xf32> to vector<8x128xf32>
    %879 = arith.mulf %875, %878 : vector<8x128xf32>
    %880 = arith.addf %867, %879 : vector<8x128xf32>
    %c120_i32_107 = arith.constant 120 : i32
    %881 = tpu.dynamic_rotate %686 by %c120_i32_107 dim 1 : vector<8x128xf32>, i32 -> vector<8x128xf32>
    %882 = vector.extract_strided_slice %1 {offsets = [5, 0, 0], sizes = [1, 1, 128], strides = [1, 1, 1]} : vector<9x1x128xf32> to vector<1x1x128xf32>
    %883 = vector.shape_cast %882 : vector<1x1x128xf32> to vector<1x128xf32>
    %884 = vector.broadcast %883 : vector<1x128xf32> to vector<8x128xf32>
    %885 = arith.mulf %881, %884 : vector<8x128xf32>
    %886 = vector.extract_strided_slice %424 {offsets = [17, 0, 0], sizes = [1, 8, 1], strides = [1, 1, 1]} : vector<25x8x1xf32> to vector<1x8x1xf32>
    %887 = vector.shape_cast %886 : vector<1x8x1xf32> to vector<8x1xf32>
    %888 = vector.broadcast %887 : vector<8x1xf32> to vector<8x128xf32>
    %889 = arith.mulf %885, %888 : vector<8x128xf32>
    %890 = arith.addf %880, %889 : vector<8x128xf32>
    %c119_i32_108 = arith.constant 119 : i32
    %891 = tpu.dynamic_rotate %686 by %c119_i32_108 dim 1 : vector<8x128xf32>, i32 -> vector<8x128xf32>
    %892 = vector.extract_strided_slice %1 {offsets = [5, 0, 0], sizes = [1, 1, 128], strides = [1, 1, 1]} : vector<9x1x128xf32> to vector<1x1x128xf32>
    %893 = vector.shape_cast %892 : vector<1x1x128xf32> to vector<1x128xf32>
    %894 = vector.extract_strided_slice %2 {offsets = [5, 0, 0], sizes = [1, 1, 128], strides = [1, 1, 1]} : vector<9x1x128xf32> to vector<1x1x128xf32>
    %895 = vector.shape_cast %894 : vector<1x1x128xf32> to vector<1x128xf32>
    %896 = arith.mulf %893, %895 : vector<1x128xf32>
    %897 = vector.broadcast %896 : vector<1x128xf32> to vector<8x128xf32>
    %898 = arith.mulf %891, %897 : vector<8x128xf32>
    %899 = vector.extract_strided_slice %424 {offsets = [18, 0, 0], sizes = [1, 8, 1], strides = [1, 1, 1]} : vector<25x8x1xf32> to vector<1x8x1xf32>
    %900 = vector.shape_cast %899 : vector<1x8x1xf32> to vector<8x1xf32>
    %901 = vector.broadcast %900 : vector<8x1xf32> to vector<8x128xf32>
    %902 = arith.mulf %898, %901 : vector<8x128xf32>
    %903 = arith.addf %890, %902 : vector<8x128xf32>
    %c118_i32_109 = arith.constant 118 : i32
    %904 = tpu.dynamic_rotate %686 by %c118_i32_109 dim 1 : vector<8x128xf32>, i32 -> vector<8x128xf32>
    %905 = vector.extract_strided_slice %1 {offsets = [5, 0, 0], sizes = [1, 1, 128], strides = [1, 1, 1]} : vector<9x1x128xf32> to vector<1x1x128xf32>
    %906 = vector.shape_cast %905 : vector<1x1x128xf32> to vector<1x128xf32>
    %907 = vector.extract_strided_slice %2 {offsets = [6, 0, 0], sizes = [1, 1, 128], strides = [1, 1, 1]} : vector<9x1x128xf32> to vector<1x1x128xf32>
    %908 = vector.shape_cast %907 : vector<1x1x128xf32> to vector<1x128xf32>
    %909 = arith.mulf %906, %908 : vector<1x128xf32>
    %910 = vector.broadcast %909 : vector<1x128xf32> to vector<8x128xf32>
    %911 = arith.mulf %904, %910 : vector<8x128xf32>
    %912 = vector.extract_strided_slice %424 {offsets = [19, 0, 0], sizes = [1, 8, 1], strides = [1, 1, 1]} : vector<25x8x1xf32> to vector<1x8x1xf32>
    %913 = vector.shape_cast %912 : vector<1x8x1xf32> to vector<8x1xf32>
    %914 = vector.broadcast %913 : vector<8x1xf32> to vector<8x128xf32>
    %915 = arith.mulf %911, %914 : vector<8x128xf32>
    %916 = arith.addf %903, %915 : vector<8x128xf32>
    %c114_i32_110 = arith.constant 114 : i32
    %917 = tpu.dynamic_rotate %686 by %c114_i32_110 dim 1 : vector<8x128xf32>, i32 -> vector<8x128xf32>
    %918 = vector.extract_strided_slice %1 {offsets = [6, 0, 0], sizes = [1, 1, 128], strides = [1, 1, 1]} : vector<9x1x128xf32> to vector<1x1x128xf32>
    %919 = vector.shape_cast %918 : vector<1x1x128xf32> to vector<1x128xf32>
    %920 = vector.extract_strided_slice %2 {offsets = [2, 0, 0], sizes = [1, 1, 128], strides = [1, 1, 1]} : vector<9x1x128xf32> to vector<1x1x128xf32>
    %921 = vector.shape_cast %920 : vector<1x1x128xf32> to vector<1x128xf32>
    %922 = arith.mulf %919, %921 : vector<1x128xf32>
    %923 = vector.broadcast %922 : vector<1x128xf32> to vector<8x128xf32>
    %924 = arith.mulf %917, %923 : vector<8x128xf32>
    %925 = vector.extract_strided_slice %424 {offsets = [20, 0, 0], sizes = [1, 8, 1], strides = [1, 1, 1]} : vector<25x8x1xf32> to vector<1x8x1xf32>
    %926 = vector.shape_cast %925 : vector<1x8x1xf32> to vector<8x1xf32>
    %927 = vector.broadcast %926 : vector<8x1xf32> to vector<8x128xf32>
    %928 = arith.mulf %924, %927 : vector<8x128xf32>
    %929 = arith.addf %916, %928 : vector<8x128xf32>
    %c113_i32_111 = arith.constant 113 : i32
    %930 = tpu.dynamic_rotate %686 by %c113_i32_111 dim 1 : vector<8x128xf32>, i32 -> vector<8x128xf32>
    %931 = vector.extract_strided_slice %1 {offsets = [6, 0, 0], sizes = [1, 1, 128], strides = [1, 1, 1]} : vector<9x1x128xf32> to vector<1x1x128xf32>
    %932 = vector.shape_cast %931 : vector<1x1x128xf32> to vector<1x128xf32>
    %933 = vector.extract_strided_slice %2 {offsets = [3, 0, 0], sizes = [1, 1, 128], strides = [1, 1, 1]} : vector<9x1x128xf32> to vector<1x1x128xf32>
    %934 = vector.shape_cast %933 : vector<1x1x128xf32> to vector<1x128xf32>
    %935 = arith.mulf %932, %934 : vector<1x128xf32>
    %936 = vector.broadcast %935 : vector<1x128xf32> to vector<8x128xf32>
    %937 = arith.mulf %930, %936 : vector<8x128xf32>
    %938 = vector.extract_strided_slice %424 {offsets = [21, 0, 0], sizes = [1, 8, 1], strides = [1, 1, 1]} : vector<25x8x1xf32> to vector<1x8x1xf32>
    %939 = vector.shape_cast %938 : vector<1x8x1xf32> to vector<8x1xf32>
    %940 = vector.broadcast %939 : vector<8x1xf32> to vector<8x128xf32>
    %941 = arith.mulf %937, %940 : vector<8x128xf32>
    %942 = arith.addf %929, %941 : vector<8x128xf32>
    %c112_i32_112 = arith.constant 112 : i32
    %943 = tpu.dynamic_rotate %686 by %c112_i32_112 dim 1 : vector<8x128xf32>, i32 -> vector<8x128xf32>
    %944 = vector.extract_strided_slice %1 {offsets = [6, 0, 0], sizes = [1, 1, 128], strides = [1, 1, 1]} : vector<9x1x128xf32> to vector<1x1x128xf32>
    %945 = vector.shape_cast %944 : vector<1x1x128xf32> to vector<1x128xf32>
    %946 = vector.broadcast %945 : vector<1x128xf32> to vector<8x128xf32>
    %947 = arith.mulf %943, %946 : vector<8x128xf32>
    %948 = vector.extract_strided_slice %424 {offsets = [22, 0, 0], sizes = [1, 8, 1], strides = [1, 1, 1]} : vector<25x8x1xf32> to vector<1x8x1xf32>
    %949 = vector.shape_cast %948 : vector<1x8x1xf32> to vector<8x1xf32>
    %950 = vector.broadcast %949 : vector<8x1xf32> to vector<8x128xf32>
    %951 = arith.mulf %947, %950 : vector<8x128xf32>
    %952 = arith.addf %942, %951 : vector<8x128xf32>
    %c111_i32_113 = arith.constant 111 : i32
    %953 = tpu.dynamic_rotate %686 by %c111_i32_113 dim 1 : vector<8x128xf32>, i32 -> vector<8x128xf32>
    %954 = vector.extract_strided_slice %1 {offsets = [6, 0, 0], sizes = [1, 1, 128], strides = [1, 1, 1]} : vector<9x1x128xf32> to vector<1x1x128xf32>
    %955 = vector.shape_cast %954 : vector<1x1x128xf32> to vector<1x128xf32>
    %956 = vector.extract_strided_slice %2 {offsets = [5, 0, 0], sizes = [1, 1, 128], strides = [1, 1, 1]} : vector<9x1x128xf32> to vector<1x1x128xf32>
    %957 = vector.shape_cast %956 : vector<1x1x128xf32> to vector<1x128xf32>
    %958 = arith.mulf %955, %957 : vector<1x128xf32>
    %959 = vector.broadcast %958 : vector<1x128xf32> to vector<8x128xf32>
    %960 = arith.mulf %953, %959 : vector<8x128xf32>
    %961 = vector.extract_strided_slice %424 {offsets = [23, 0, 0], sizes = [1, 8, 1], strides = [1, 1, 1]} : vector<25x8x1xf32> to vector<1x8x1xf32>
    %962 = vector.shape_cast %961 : vector<1x8x1xf32> to vector<8x1xf32>
    %963 = vector.broadcast %962 : vector<8x1xf32> to vector<8x128xf32>
    %964 = arith.mulf %960, %963 : vector<8x128xf32>
    %965 = arith.addf %952, %964 : vector<8x128xf32>
    %c110_i32_114 = arith.constant 110 : i32
    %966 = tpu.dynamic_rotate %686 by %c110_i32_114 dim 1 : vector<8x128xf32>, i32 -> vector<8x128xf32>
    %967 = vector.extract_strided_slice %1 {offsets = [6, 0, 0], sizes = [1, 1, 128], strides = [1, 1, 1]} : vector<9x1x128xf32> to vector<1x1x128xf32>
    %968 = vector.shape_cast %967 : vector<1x1x128xf32> to vector<1x128xf32>
    %969 = vector.extract_strided_slice %2 {offsets = [6, 0, 0], sizes = [1, 1, 128], strides = [1, 1, 1]} : vector<9x1x128xf32> to vector<1x1x128xf32>
    %970 = vector.shape_cast %969 : vector<1x1x128xf32> to vector<1x128xf32>
    %971 = arith.mulf %968, %970 : vector<1x128xf32>
    %972 = vector.broadcast %971 : vector<1x128xf32> to vector<8x128xf32>
    %973 = arith.mulf %966, %972 : vector<8x128xf32>
    %974 = vector.extract_strided_slice %424 {offsets = [24, 0, 0], sizes = [1, 8, 1], strides = [1, 1, 1]} : vector<25x8x1xf32> to vector<1x8x1xf32>
    %975 = vector.shape_cast %974 : vector<1x8x1xf32> to vector<8x1xf32>
    %976 = vector.broadcast %975 : vector<8x1xf32> to vector<8x128xf32>
    %977 = arith.mulf %973, %976 : vector<8x128xf32>
    %978 = arith.addf %965, %977 : vector<8x128xf32>
    %cst_115 = arith.constant dense<0.000000e+00> : vector<8x128xf32>
    %979 = tpu.matmul %425, %978, %cst_115 {dimension_numbers = #tpu.dot_dimension_numbers<[1], [0], [0], [1], [0, 0, 1, 1], [], []>} : vector<8x8xf32>, vector<8x128xf32>, vector<8x128xf32> -> vector<8x128xf32>
    %cst_116 = arith.constant dense<0.000000e+00> : vector<8xf32>
    %980 = vector.multi_reduction <add>, %979, %cst_116 [1] : vector<8x128xf32> to vector<8xf32>
    %981 = vector.shape_cast %980 : vector<8xf32> to vector<8x1xf32>
    %cst_117 = arith.constant 1.280000e+02 : f32
    %982 = vector.broadcast %cst_117 : f32 to vector<8x1xf32>
    %983 = arith.divf %981, %982 : vector<8x1xf32>
    %984 = vector.broadcast %983 : vector<8x1xf32> to vector<8x128xf32>
    %985 = arith.subf %979, %984 : vector<8x128xf32>
    %986 = arith.mulf %985, %985 : vector<8x128xf32>
    %cst_118 = arith.constant dense<0.000000e+00> : vector<8xf32>
    %987 = vector.multi_reduction <add>, %986, %cst_118 [1] : vector<8x128xf32> to vector<8xf32>
    %988 = vector.shape_cast %987 : vector<8xf32> to vector<8x1xf32>
    %cst_119 = arith.constant 1.280000e+02 : f32
    %989 = vector.broadcast %cst_119 : f32 to vector<8x1xf32>
    %990 = arith.divf %988, %989 : vector<8x1xf32>
    %991 = vector.broadcast %983 : vector<8x1xf32> to vector<8x128xf32>
    %992 = arith.subf %979, %991 : vector<8x128xf32>
    %cst_120 = arith.constant 9.99999974E-6 : f32
    %993 = vector.broadcast %cst_120 : f32 to vector<8x1xf32>
    %994 = arith.addf %990, %993 : vector<8x1xf32>
    %995 = math.rsqrt %994 : vector<8x1xf32>
    %996 = vector.broadcast %995 : vector<8x1xf32> to vector<8x128xf32>
    %997 = arith.mulf %992, %996 : vector<8x128xf32>
    %998 = vector.broadcast %421 : f32 to vector<8x128xf32>
    %999 = arith.mulf %998, %997 : vector<8x128xf32>
    %1000 = arith.addf %420, %999 : vector<8x128xf32>
    %c6 = arith.constant 6 : index
    %1001 = memref.load %arg1[%c6] : memref<8xf32, #tpu.memory_space<smem>>
    %c0_121 = arith.constant 0 : index
    %c0_122 = arith.constant 0 : index
    %c0_123 = arith.constant 0 : index
    %1002 = vector.load %arg13[%c0_121, %c0_122, %c0_123] : memref<9x8x1xf32, #tpu.memory_space<vmem>>, vector<9x8x1xf32>
    %c0_124 = arith.constant 0 : index
    %c0_125 = arith.constant 0 : index
    %1003 = vector.load %arg14[%c0_124, %c0_125] : memref<8x8xf32, #tpu.memory_space<vmem>>, vector<8x8xf32>
    %1004 = vector.extract_strided_slice %1002 {offsets = [0, 0, 0], sizes = [1, 8, 1], strides = [1, 1, 1]} : vector<9x8x1xf32> to vector<1x8x1xf32>
    %1005 = vector.shape_cast %1004 : vector<1x8x1xf32> to vector<8x1xf32>
    %1006 = vector.broadcast %1005 : vector<8x1xf32> to vector<8x128xf32>
    %1007 = arith.mulf %433, %1006 : vector<8x128xf32>
    %1008 = vector.extract_strided_slice %1002 {offsets = [1, 0, 0], sizes = [1, 8, 1], strides = [1, 1, 1]} : vector<9x8x1xf32> to vector<1x8x1xf32>
    %1009 = vector.shape_cast %1008 : vector<1x8x1xf32> to vector<8x1xf32>
    %1010 = vector.broadcast %1009 : vector<8x1xf32> to vector<8x128xf32>
    %1011 = arith.mulf %455, %1010 : vector<8x128xf32>
    %1012 = arith.addf %1007, %1011 : vector<8x128xf32>
    %1013 = vector.extract_strided_slice %1002 {offsets = [2, 0, 0], sizes = [1, 8, 1], strides = [1, 1, 1]} : vector<9x8x1xf32> to vector<1x8x1xf32>
    %1014 = vector.shape_cast %1013 : vector<1x8x1xf32> to vector<8x1xf32>
    %1015 = vector.broadcast %1014 : vector<8x1xf32> to vector<8x128xf32>
    %1016 = arith.mulf %481, %1015 : vector<8x128xf32>
    %1017 = arith.addf %1012, %1016 : vector<8x128xf32>
    %1018 = vector.extract_strided_slice %1002 {offsets = [3, 0, 0], sizes = [1, 8, 1], strides = [1, 1, 1]} : vector<9x8x1xf32> to vector<1x8x1xf32>
    %1019 = vector.shape_cast %1018 : vector<1x8x1xf32> to vector<8x1xf32>
    %1020 = vector.broadcast %1019 : vector<8x1xf32> to vector<8x128xf32>
    %1021 = arith.mulf %532, %1020 : vector<8x128xf32>
    %1022 = arith.addf %1017, %1021 : vector<8x128xf32>
    %1023 = vector.extract_strided_slice %1002 {offsets = [4, 0, 0], sizes = [1, 8, 1], strides = [1, 1, 1]} : vector<9x8x1xf32> to vector<1x8x1xf32>
    %1024 = vector.shape_cast %1023 : vector<1x8x1xf32> to vector<8x1xf32>
    %1025 = vector.broadcast %1024 : vector<8x1xf32> to vector<8x128xf32>
    %1026 = arith.mulf %4, %1025 : vector<8x128xf32>
    %1027 = arith.addf %1022, %1026 : vector<8x128xf32>
    %1028 = vector.extract_strided_slice %1002 {offsets = [5, 0, 0], sizes = [1, 8, 1], strides = [1, 1, 1]} : vector<9x8x1xf32> to vector<1x8x1xf32>
    %1029 = vector.shape_cast %1028 : vector<1x8x1xf32> to vector<8x1xf32>
    %1030 = vector.broadcast %1029 : vector<8x1xf32> to vector<8x128xf32>
    %1031 = arith.mulf %557, %1030 : vector<8x128xf32>
    %1032 = arith.addf %1027, %1031 : vector<8x128xf32>
    %1033 = vector.extract_strided_slice %1002 {offsets = [6, 0, 0], sizes = [1, 8, 1], strides = [1, 1, 1]} : vector<9x8x1xf32> to vector<1x8x1xf32>
    %1034 = vector.shape_cast %1033 : vector<1x8x1xf32> to vector<8x1xf32>
    %1035 = vector.broadcast %1034 : vector<8x1xf32> to vector<8x128xf32>
    %1036 = arith.mulf %611, %1035 : vector<8x128xf32>
    %1037 = arith.addf %1032, %1036 : vector<8x128xf32>
    %1038 = vector.extract_strided_slice %1002 {offsets = [7, 0, 0], sizes = [1, 8, 1], strides = [1, 1, 1]} : vector<9x8x1xf32> to vector<1x8x1xf32>
    %1039 = vector.shape_cast %1038 : vector<1x8x1xf32> to vector<8x1xf32>
    %1040 = vector.broadcast %1039 : vector<8x1xf32> to vector<8x128xf32>
    %1041 = arith.mulf %634, %1040 : vector<8x128xf32>
    %1042 = arith.addf %1037, %1041 : vector<8x128xf32>
    %1043 = vector.extract_strided_slice %1002 {offsets = [8, 0, 0], sizes = [1, 8, 1], strides = [1, 1, 1]} : vector<9x8x1xf32> to vector<1x8x1xf32>
    %1044 = vector.shape_cast %1043 : vector<1x8x1xf32> to vector<8x1xf32>
    %1045 = vector.broadcast %1044 : vector<8x1xf32> to vector<8x128xf32>
    %1046 = arith.mulf %660, %1045 : vector<8x128xf32>
    %1047 = arith.addf %1042, %1046 : vector<8x128xf32>
    %cst_126 = arith.constant dense<0.000000e+00> : vector<8x128xf32>
    %1048 = tpu.matmul %1003, %1047, %cst_126 {dimension_numbers = #tpu.dot_dimension_numbers<[1], [0], [0], [1], [0, 0, 1, 1], [], []>} : vector<8x8xf32>, vector<8x128xf32>, vector<8x128xf32> -> vector<8x128xf32>
    %cst_127 = arith.constant dense<0.000000e+00> : vector<8xf32>
    %1049 = vector.multi_reduction <add>, %1048, %cst_127 [1] : vector<8x128xf32> to vector<8xf32>
    %1050 = vector.shape_cast %1049 : vector<8xf32> to vector<8x1xf32>
    %cst_128 = arith.constant 1.280000e+02 : f32
    %1051 = vector.broadcast %cst_128 : f32 to vector<8x1xf32>
    %1052 = arith.divf %1050, %1051 : vector<8x1xf32>
    %1053 = vector.broadcast %1052 : vector<8x1xf32> to vector<8x128xf32>
    %1054 = arith.subf %1048, %1053 : vector<8x128xf32>
    %1055 = arith.mulf %1054, %1054 : vector<8x128xf32>
    %cst_129 = arith.constant dense<0.000000e+00> : vector<8xf32>
    %1056 = vector.multi_reduction <add>, %1055, %cst_129 [1] : vector<8x128xf32> to vector<8xf32>
    %1057 = vector.shape_cast %1056 : vector<8xf32> to vector<8x1xf32>
    %cst_130 = arith.constant 1.280000e+02 : f32
    %1058 = vector.broadcast %cst_130 : f32 to vector<8x1xf32>
    %1059 = arith.divf %1057, %1058 : vector<8x1xf32>
    %1060 = vector.broadcast %1052 : vector<8x1xf32> to vector<8x128xf32>
    %1061 = arith.subf %1048, %1060 : vector<8x128xf32>
    %cst_131 = arith.constant 9.99999974E-6 : f32
    %1062 = vector.broadcast %cst_131 : f32 to vector<8x1xf32>
    %1063 = arith.addf %1059, %1062 : vector<8x1xf32>
    %1064 = math.rsqrt %1063 : vector<8x1xf32>
    %1065 = vector.broadcast %1064 : vector<8x1xf32> to vector<8x128xf32>
    %1066 = arith.mulf %1061, %1065 : vector<8x128xf32>
    %1067 = vector.broadcast %1001 : f32 to vector<8x128xf32>
    %1068 = arith.mulf %1067, %1066 : vector<8x128xf32>
    %1069 = arith.addf %1000, %1068 : vector<8x128xf32>
    %c7 = arith.constant 7 : index
    %1070 = memref.load %arg1[%c7] : memref<8xf32, #tpu.memory_space<smem>>
    %c0_132 = arith.constant 0 : index
    %c0_133 = arith.constant 0 : index
    %c0_134 = arith.constant 0 : index
    %1071 = vector.load %arg15[%c0_132, %c0_133, %c0_134] : memref<25x8x1xf32, #tpu.memory_space<vmem>>, vector<25x8x1xf32>
    %c0_135 = arith.constant 0 : index
    %c0_136 = arith.constant 0 : index
    %1072 = vector.load %arg16[%c0_135, %c0_136] : memref<8x8xf32, #tpu.memory_space<vmem>>, vector<8x8xf32>
    %c36_i32 = arith.constant 36 : i32
    %1073 = tpu.dynamic_rotate %4 by %c36_i32 dim 1 : vector<8x128xf32>, i32 -> vector<8x128xf32>
    %1074 = vector.extract_strided_slice %1 {offsets = [0, 0, 0], sizes = [1, 1, 128], strides = [1, 1, 1]} : vector<9x1x128xf32> to vector<1x1x128xf32>
    %1075 = vector.shape_cast %1074 : vector<1x1x128xf32> to vector<1x128xf32>
    %1076 = vector.extract_strided_slice %2 {offsets = [0, 0, 0], sizes = [1, 1, 128], strides = [1, 1, 1]} : vector<9x1x128xf32> to vector<1x1x128xf32>
    %1077 = vector.shape_cast %1076 : vector<1x1x128xf32> to vector<1x128xf32>
    %1078 = arith.mulf %1075, %1077 : vector<1x128xf32>
    %1079 = vector.broadcast %1078 : vector<1x128xf32> to vector<8x128xf32>
    %1080 = arith.mulf %1073, %1079 : vector<8x128xf32>
    %1081 = vector.extract_strided_slice %1071 {offsets = [0, 0, 0], sizes = [1, 8, 1], strides = [1, 1, 1]} : vector<25x8x1xf32> to vector<1x8x1xf32>
    %1082 = vector.shape_cast %1081 : vector<1x8x1xf32> to vector<8x1xf32>
    %1083 = vector.broadcast %1082 : vector<8x1xf32> to vector<8x128xf32>
    %1084 = arith.mulf %1080, %1083 : vector<8x128xf32>
    %c34_i32 = arith.constant 34 : i32
    %1085 = tpu.dynamic_rotate %4 by %c34_i32 dim 1 : vector<8x128xf32>, i32 -> vector<8x128xf32>
    %1086 = vector.extract_strided_slice %1 {offsets = [0, 0, 0], sizes = [1, 1, 128], strides = [1, 1, 1]} : vector<9x1x128xf32> to vector<1x1x128xf32>
    %1087 = vector.shape_cast %1086 : vector<1x1x128xf32> to vector<1x128xf32>
    %1088 = vector.extract_strided_slice %2 {offsets = [2, 0, 0], sizes = [1, 1, 128], strides = [1, 1, 1]} : vector<9x1x128xf32> to vector<1x1x128xf32>
    %1089 = vector.shape_cast %1088 : vector<1x1x128xf32> to vector<1x128xf32>
    %1090 = arith.mulf %1087, %1089 : vector<1x128xf32>
    %1091 = vector.broadcast %1090 : vector<1x128xf32> to vector<8x128xf32>
    %1092 = arith.mulf %1085, %1091 : vector<8x128xf32>
    %1093 = vector.extract_strided_slice %1071 {offsets = [1, 0, 0], sizes = [1, 8, 1], strides = [1, 1, 1]} : vector<25x8x1xf32> to vector<1x8x1xf32>
    %1094 = vector.shape_cast %1093 : vector<1x8x1xf32> to vector<8x1xf32>
    %1095 = vector.broadcast %1094 : vector<8x1xf32> to vector<8x128xf32>
    %1096 = arith.mulf %1092, %1095 : vector<8x128xf32>
    %1097 = arith.addf %1084, %1096 : vector<8x128xf32>
    %c32_i32 = arith.constant 32 : i32
    %1098 = tpu.dynamic_rotate %4 by %c32_i32 dim 1 : vector<8x128xf32>, i32 -> vector<8x128xf32>
    %1099 = vector.extract_strided_slice %1 {offsets = [0, 0, 0], sizes = [1, 1, 128], strides = [1, 1, 1]} : vector<9x1x128xf32> to vector<1x1x128xf32>
    %1100 = vector.shape_cast %1099 : vector<1x1x128xf32> to vector<1x128xf32>
    %1101 = vector.broadcast %1100 : vector<1x128xf32> to vector<8x128xf32>
    %1102 = arith.mulf %1098, %1101 : vector<8x128xf32>
    %1103 = vector.extract_strided_slice %1071 {offsets = [2, 0, 0], sizes = [1, 8, 1], strides = [1, 1, 1]} : vector<25x8x1xf32> to vector<1x8x1xf32>
    %1104 = vector.shape_cast %1103 : vector<1x8x1xf32> to vector<8x1xf32>
    %1105 = vector.broadcast %1104 : vector<8x1xf32> to vector<8x128xf32>
    %1106 = arith.mulf %1102, %1105 : vector<8x128xf32>
    %1107 = arith.addf %1097, %1106 : vector<8x128xf32>
    %c30_i32 = arith.constant 30 : i32
    %1108 = tpu.dynamic_rotate %4 by %c30_i32 dim 1 : vector<8x128xf32>, i32 -> vector<8x128xf32>
    %1109 = vector.extract_strided_slice %1 {offsets = [0, 0, 0], sizes = [1, 1, 128], strides = [1, 1, 1]} : vector<9x1x128xf32> to vector<1x1x128xf32>
    %1110 = vector.shape_cast %1109 : vector<1x1x128xf32> to vector<1x128xf32>
    %1111 = vector.extract_strided_slice %2 {offsets = [6, 0, 0], sizes = [1, 1, 128], strides = [1, 1, 1]} : vector<9x1x128xf32> to vector<1x1x128xf32>
    %1112 = vector.shape_cast %1111 : vector<1x1x128xf32> to vector<1x128xf32>
    %1113 = arith.mulf %1110, %1112 : vector<1x128xf32>
    %1114 = vector.broadcast %1113 : vector<1x128xf32> to vector<8x128xf32>
    %1115 = arith.mulf %1108, %1114 : vector<8x128xf32>
    %1116 = vector.extract_strided_slice %1071 {offsets = [3, 0, 0], sizes = [1, 8, 1], strides = [1, 1, 1]} : vector<25x8x1xf32> to vector<1x8x1xf32>
    %1117 = vector.shape_cast %1116 : vector<1x8x1xf32> to vector<8x1xf32>
    %1118 = vector.broadcast %1117 : vector<8x1xf32> to vector<8x128xf32>
    %1119 = arith.mulf %1115, %1118 : vector<8x128xf32>
    %1120 = arith.addf %1107, %1119 : vector<8x128xf32>
    %c28_i32 = arith.constant 28 : i32
    %1121 = tpu.dynamic_rotate %4 by %c28_i32 dim 1 : vector<8x128xf32>, i32 -> vector<8x128xf32>
    %1122 = vector.extract_strided_slice %1 {offsets = [0, 0, 0], sizes = [1, 1, 128], strides = [1, 1, 1]} : vector<9x1x128xf32> to vector<1x1x128xf32>
    %1123 = vector.shape_cast %1122 : vector<1x1x128xf32> to vector<1x128xf32>
    %1124 = vector.extract_strided_slice %2 {offsets = [8, 0, 0], sizes = [1, 1, 128], strides = [1, 1, 1]} : vector<9x1x128xf32> to vector<1x1x128xf32>
    %1125 = vector.shape_cast %1124 : vector<1x1x128xf32> to vector<1x128xf32>
    %1126 = arith.mulf %1123, %1125 : vector<1x128xf32>
    %1127 = vector.broadcast %1126 : vector<1x128xf32> to vector<8x128xf32>
    %1128 = arith.mulf %1121, %1127 : vector<8x128xf32>
    %1129 = vector.extract_strided_slice %1071 {offsets = [4, 0, 0], sizes = [1, 8, 1], strides = [1, 1, 1]} : vector<25x8x1xf32> to vector<1x8x1xf32>
    %1130 = vector.shape_cast %1129 : vector<1x8x1xf32> to vector<8x1xf32>
    %1131 = vector.broadcast %1130 : vector<8x1xf32> to vector<8x128xf32>
    %1132 = arith.mulf %1128, %1131 : vector<8x128xf32>
    %1133 = arith.addf %1120, %1132 : vector<8x128xf32>
    %c20_i32 = arith.constant 20 : i32
    %1134 = tpu.dynamic_rotate %4 by %c20_i32 dim 1 : vector<8x128xf32>, i32 -> vector<8x128xf32>
    %1135 = vector.extract_strided_slice %1 {offsets = [2, 0, 0], sizes = [1, 1, 128], strides = [1, 1, 1]} : vector<9x1x128xf32> to vector<1x1x128xf32>
    %1136 = vector.shape_cast %1135 : vector<1x1x128xf32> to vector<1x128xf32>
    %1137 = vector.extract_strided_slice %2 {offsets = [0, 0, 0], sizes = [1, 1, 128], strides = [1, 1, 1]} : vector<9x1x128xf32> to vector<1x1x128xf32>
    %1138 = vector.shape_cast %1137 : vector<1x1x128xf32> to vector<1x128xf32>
    %1139 = arith.mulf %1136, %1138 : vector<1x128xf32>
    %1140 = vector.broadcast %1139 : vector<1x128xf32> to vector<8x128xf32>
    %1141 = arith.mulf %1134, %1140 : vector<8x128xf32>
    %1142 = vector.extract_strided_slice %1071 {offsets = [5, 0, 0], sizes = [1, 8, 1], strides = [1, 1, 1]} : vector<25x8x1xf32> to vector<1x8x1xf32>
    %1143 = vector.shape_cast %1142 : vector<1x8x1xf32> to vector<8x1xf32>
    %1144 = vector.broadcast %1143 : vector<8x1xf32> to vector<8x128xf32>
    %1145 = arith.mulf %1141, %1144 : vector<8x128xf32>
    %1146 = arith.addf %1133, %1145 : vector<8x128xf32>
    %1147 = vector.extract_strided_slice %1071 {offsets = [6, 0, 0], sizes = [1, 8, 1], strides = [1, 1, 1]} : vector<25x8x1xf32> to vector<1x8x1xf32>
    %1148 = vector.shape_cast %1147 : vector<1x8x1xf32> to vector<8x1xf32>
    %1149 = vector.broadcast %1148 : vector<8x1xf32> to vector<8x128xf32>
    %1150 = arith.mulf %433, %1149 : vector<8x128xf32>
    %1151 = arith.addf %1146, %1150 : vector<8x128xf32>
    %1152 = vector.extract_strided_slice %1071 {offsets = [7, 0, 0], sizes = [1, 8, 1], strides = [1, 1, 1]} : vector<25x8x1xf32> to vector<1x8x1xf32>
    %1153 = vector.shape_cast %1152 : vector<1x8x1xf32> to vector<8x1xf32>
    %1154 = vector.broadcast %1153 : vector<8x1xf32> to vector<8x128xf32>
    %1155 = arith.mulf %455, %1154 : vector<8x128xf32>
    %1156 = arith.addf %1151, %1155 : vector<8x128xf32>
    %1157 = vector.extract_strided_slice %1071 {offsets = [8, 0, 0], sizes = [1, 8, 1], strides = [1, 1, 1]} : vector<25x8x1xf32> to vector<1x8x1xf32>
    %1158 = vector.shape_cast %1157 : vector<1x8x1xf32> to vector<8x1xf32>
    %1159 = vector.broadcast %1158 : vector<8x1xf32> to vector<8x128xf32>
    %1160 = arith.mulf %481, %1159 : vector<8x128xf32>
    %1161 = arith.addf %1156, %1160 : vector<8x128xf32>
    %c12_i32 = arith.constant 12 : i32
    %1162 = tpu.dynamic_rotate %4 by %c12_i32 dim 1 : vector<8x128xf32>, i32 -> vector<8x128xf32>
    %1163 = vector.extract_strided_slice %1 {offsets = [2, 0, 0], sizes = [1, 1, 128], strides = [1, 1, 1]} : vector<9x1x128xf32> to vector<1x1x128xf32>
    %1164 = vector.shape_cast %1163 : vector<1x1x128xf32> to vector<1x128xf32>
    %1165 = vector.extract_strided_slice %2 {offsets = [8, 0, 0], sizes = [1, 1, 128], strides = [1, 1, 1]} : vector<9x1x128xf32> to vector<1x1x128xf32>
    %1166 = vector.shape_cast %1165 : vector<1x1x128xf32> to vector<1x128xf32>
    %1167 = arith.mulf %1164, %1166 : vector<1x128xf32>
    %1168 = vector.broadcast %1167 : vector<1x128xf32> to vector<8x128xf32>
    %1169 = arith.mulf %1162, %1168 : vector<8x128xf32>
    %1170 = vector.extract_strided_slice %1071 {offsets = [9, 0, 0], sizes = [1, 8, 1], strides = [1, 1, 1]} : vector<25x8x1xf32> to vector<1x8x1xf32>
    %1171 = vector.shape_cast %1170 : vector<1x8x1xf32> to vector<8x1xf32>
    %1172 = vector.broadcast %1171 : vector<8x1xf32> to vector<8x128xf32>
    %1173 = arith.mulf %1169, %1172 : vector<8x128xf32>
    %1174 = arith.addf %1161, %1173 : vector<8x128xf32>
    %c4_i32 = arith.constant 4 : i32
    %1175 = tpu.dynamic_rotate %4 by %c4_i32 dim 1 : vector<8x128xf32>, i32 -> vector<8x128xf32>
    %1176 = vector.extract_strided_slice %2 {offsets = [0, 0, 0], sizes = [1, 1, 128], strides = [1, 1, 1]} : vector<9x1x128xf32> to vector<1x1x128xf32>
    %1177 = vector.shape_cast %1176 : vector<1x1x128xf32> to vector<1x128xf32>
    %1178 = vector.broadcast %1177 : vector<1x128xf32> to vector<8x128xf32>
    %1179 = arith.mulf %1175, %1178 : vector<8x128xf32>
    %1180 = vector.extract_strided_slice %1071 {offsets = [10, 0, 0], sizes = [1, 8, 1], strides = [1, 1, 1]} : vector<25x8x1xf32> to vector<1x8x1xf32>
    %1181 = vector.shape_cast %1180 : vector<1x8x1xf32> to vector<8x1xf32>
    %1182 = vector.broadcast %1181 : vector<8x1xf32> to vector<8x128xf32>
    %1183 = arith.mulf %1179, %1182 : vector<8x128xf32>
    %1184 = arith.addf %1174, %1183 : vector<8x128xf32>
    %1185 = vector.extract_strided_slice %1071 {offsets = [11, 0, 0], sizes = [1, 8, 1], strides = [1, 1, 1]} : vector<25x8x1xf32> to vector<1x8x1xf32>
    %1186 = vector.shape_cast %1185 : vector<1x8x1xf32> to vector<8x1xf32>
    %1187 = vector.broadcast %1186 : vector<8x1xf32> to vector<8x128xf32>
    %1188 = arith.mulf %532, %1187 : vector<8x128xf32>
    %1189 = arith.addf %1184, %1188 : vector<8x128xf32>
    %1190 = vector.extract_strided_slice %1071 {offsets = [12, 0, 0], sizes = [1, 8, 1], strides = [1, 1, 1]} : vector<25x8x1xf32> to vector<1x8x1xf32>
    %1191 = vector.shape_cast %1190 : vector<1x8x1xf32> to vector<8x1xf32>
    %1192 = vector.broadcast %1191 : vector<8x1xf32> to vector<8x128xf32>
    %1193 = arith.mulf %4, %1192 : vector<8x128xf32>
    %1194 = arith.addf %1189, %1193 : vector<8x128xf32>
    %1195 = vector.extract_strided_slice %1071 {offsets = [13, 0, 0], sizes = [1, 8, 1], strides = [1, 1, 1]} : vector<25x8x1xf32> to vector<1x8x1xf32>
    %1196 = vector.shape_cast %1195 : vector<1x8x1xf32> to vector<8x1xf32>
    %1197 = vector.broadcast %1196 : vector<8x1xf32> to vector<8x128xf32>
    %1198 = arith.mulf %557, %1197 : vector<8x128xf32>
    %1199 = arith.addf %1194, %1198 : vector<8x128xf32>
    %c124_i32 = arith.constant 124 : i32
    %1200 = tpu.dynamic_rotate %4 by %c124_i32 dim 1 : vector<8x128xf32>, i32 -> vector<8x128xf32>
    %1201 = vector.extract_strided_slice %2 {offsets = [8, 0, 0], sizes = [1, 1, 128], strides = [1, 1, 1]} : vector<9x1x128xf32> to vector<1x1x128xf32>
    %1202 = vector.shape_cast %1201 : vector<1x1x128xf32> to vector<1x128xf32>
    %1203 = vector.broadcast %1202 : vector<1x128xf32> to vector<8x128xf32>
    %1204 = arith.mulf %1200, %1203 : vector<8x128xf32>
    %1205 = vector.extract_strided_slice %1071 {offsets = [14, 0, 0], sizes = [1, 8, 1], strides = [1, 1, 1]} : vector<25x8x1xf32> to vector<1x8x1xf32>
    %1206 = vector.shape_cast %1205 : vector<1x8x1xf32> to vector<8x1xf32>
    %1207 = vector.broadcast %1206 : vector<8x1xf32> to vector<8x128xf32>
    %1208 = arith.mulf %1204, %1207 : vector<8x128xf32>
    %1209 = arith.addf %1199, %1208 : vector<8x128xf32>
    %c116_i32 = arith.constant 116 : i32
    %1210 = tpu.dynamic_rotate %4 by %c116_i32 dim 1 : vector<8x128xf32>, i32 -> vector<8x128xf32>
    %1211 = vector.extract_strided_slice %1 {offsets = [6, 0, 0], sizes = [1, 1, 128], strides = [1, 1, 1]} : vector<9x1x128xf32> to vector<1x1x128xf32>
    %1212 = vector.shape_cast %1211 : vector<1x1x128xf32> to vector<1x128xf32>
    %1213 = vector.extract_strided_slice %2 {offsets = [0, 0, 0], sizes = [1, 1, 128], strides = [1, 1, 1]} : vector<9x1x128xf32> to vector<1x1x128xf32>
    %1214 = vector.shape_cast %1213 : vector<1x1x128xf32> to vector<1x128xf32>
    %1215 = arith.mulf %1212, %1214 : vector<1x128xf32>
    %1216 = vector.broadcast %1215 : vector<1x128xf32> to vector<8x128xf32>
    %1217 = arith.mulf %1210, %1216 : vector<8x128xf32>
    %1218 = vector.extract_strided_slice %1071 {offsets = [15, 0, 0], sizes = [1, 8, 1], strides = [1, 1, 1]} : vector<25x8x1xf32> to vector<1x8x1xf32>
    %1219 = vector.shape_cast %1218 : vector<1x8x1xf32> to vector<8x1xf32>
    %1220 = vector.broadcast %1219 : vector<8x1xf32> to vector<8x128xf32>
    %1221 = arith.mulf %1217, %1220 : vector<8x128xf32>
    %1222 = arith.addf %1209, %1221 : vector<8x128xf32>
    %1223 = vector.extract_strided_slice %1071 {offsets = [16, 0, 0], sizes = [1, 8, 1], strides = [1, 1, 1]} : vector<25x8x1xf32> to vector<1x8x1xf32>
    %1224 = vector.shape_cast %1223 : vector<1x8x1xf32> to vector<8x1xf32>
    %1225 = vector.broadcast %1224 : vector<8x1xf32> to vector<8x128xf32>
    %1226 = arith.mulf %611, %1225 : vector<8x128xf32>
    %1227 = arith.addf %1222, %1226 : vector<8x128xf32>
    %1228 = vector.extract_strided_slice %1071 {offsets = [17, 0, 0], sizes = [1, 8, 1], strides = [1, 1, 1]} : vector<25x8x1xf32> to vector<1x8x1xf32>
    %1229 = vector.shape_cast %1228 : vector<1x8x1xf32> to vector<8x1xf32>
    %1230 = vector.broadcast %1229 : vector<8x1xf32> to vector<8x128xf32>
    %1231 = arith.mulf %634, %1230 : vector<8x128xf32>
    %1232 = arith.addf %1227, %1231 : vector<8x128xf32>
    %1233 = vector.extract_strided_slice %1071 {offsets = [18, 0, 0], sizes = [1, 8, 1], strides = [1, 1, 1]} : vector<25x8x1xf32> to vector<1x8x1xf32>
    %1234 = vector.shape_cast %1233 : vector<1x8x1xf32> to vector<8x1xf32>
    %1235 = vector.broadcast %1234 : vector<8x1xf32> to vector<8x128xf32>
    %1236 = arith.mulf %660, %1235 : vector<8x128xf32>
    %1237 = arith.addf %1232, %1236 : vector<8x128xf32>
    %c108_i32 = arith.constant 108 : i32
    %1238 = tpu.dynamic_rotate %4 by %c108_i32 dim 1 : vector<8x128xf32>, i32 -> vector<8x128xf32>
    %1239 = vector.extract_strided_slice %1 {offsets = [6, 0, 0], sizes = [1, 1, 128], strides = [1, 1, 1]} : vector<9x1x128xf32> to vector<1x1x128xf32>
    %1240 = vector.shape_cast %1239 : vector<1x1x128xf32> to vector<1x128xf32>
    %1241 = vector.extract_strided_slice %2 {offsets = [8, 0, 0], sizes = [1, 1, 128], strides = [1, 1, 1]} : vector<9x1x128xf32> to vector<1x1x128xf32>
    %1242 = vector.shape_cast %1241 : vector<1x1x128xf32> to vector<1x128xf32>
    %1243 = arith.mulf %1240, %1242 : vector<1x128xf32>
    %1244 = vector.broadcast %1243 : vector<1x128xf32> to vector<8x128xf32>
    %1245 = arith.mulf %1238, %1244 : vector<8x128xf32>
    %1246 = vector.extract_strided_slice %1071 {offsets = [19, 0, 0], sizes = [1, 8, 1], strides = [1, 1, 1]} : vector<25x8x1xf32> to vector<1x8x1xf32>
    %1247 = vector.shape_cast %1246 : vector<1x8x1xf32> to vector<8x1xf32>
    %1248 = vector.broadcast %1247 : vector<8x1xf32> to vector<8x128xf32>
    %1249 = arith.mulf %1245, %1248 : vector<8x128xf32>
    %1250 = arith.addf %1237, %1249 : vector<8x128xf32>
    %c100_i32 = arith.constant 100 : i32
    %1251 = tpu.dynamic_rotate %4 by %c100_i32 dim 1 : vector<8x128xf32>, i32 -> vector<8x128xf32>
    %1252 = vector.extract_strided_slice %1 {offsets = [8, 0, 0], sizes = [1, 1, 128], strides = [1, 1, 1]} : vector<9x1x128xf32> to vector<1x1x128xf32>
    %1253 = vector.shape_cast %1252 : vector<1x1x128xf32> to vector<1x128xf32>
    %1254 = vector.extract_strided_slice %2 {offsets = [0, 0, 0], sizes = [1, 1, 128], strides = [1, 1, 1]} : vector<9x1x128xf32> to vector<1x1x128xf32>
    %1255 = vector.shape_cast %1254 : vector<1x1x128xf32> to vector<1x128xf32>
    %1256 = arith.mulf %1253, %1255 : vector<1x128xf32>
    %1257 = vector.broadcast %1256 : vector<1x128xf32> to vector<8x128xf32>
    %1258 = arith.mulf %1251, %1257 : vector<8x128xf32>
    %1259 = vector.extract_strided_slice %1071 {offsets = [20, 0, 0], sizes = [1, 8, 1], strides = [1, 1, 1]} : vector<25x8x1xf32> to vector<1x8x1xf32>
    %1260 = vector.shape_cast %1259 : vector<1x8x1xf32> to vector<8x1xf32>
    %1261 = vector.broadcast %1260 : vector<8x1xf32> to vector<8x128xf32>
    %1262 = arith.mulf %1258, %1261 : vector<8x128xf32>
    %1263 = arith.addf %1250, %1262 : vector<8x128xf32>
    %c98_i32 = arith.constant 98 : i32
    %1264 = tpu.dynamic_rotate %4 by %c98_i32 dim 1 : vector<8x128xf32>, i32 -> vector<8x128xf32>
    %1265 = vector.extract_strided_slice %1 {offsets = [8, 0, 0], sizes = [1, 1, 128], strides = [1, 1, 1]} : vector<9x1x128xf32> to vector<1x1x128xf32>
    %1266 = vector.shape_cast %1265 : vector<1x1x128xf32> to vector<1x128xf32>
    %1267 = vector.extract_strided_slice %2 {offsets = [2, 0, 0], sizes = [1, 1, 128], strides = [1, 1, 1]} : vector<9x1x128xf32> to vector<1x1x128xf32>
    %1268 = vector.shape_cast %1267 : vector<1x1x128xf32> to vector<1x128xf32>
    %1269 = arith.mulf %1266, %1268 : vector<1x128xf32>
    %1270 = vector.broadcast %1269 : vector<1x128xf32> to vector<8x128xf32>
    %1271 = arith.mulf %1264, %1270 : vector<8x128xf32>
    %1272 = vector.extract_strided_slice %1071 {offsets = [21, 0, 0], sizes = [1, 8, 1], strides = [1, 1, 1]} : vector<25x8x1xf32> to vector<1x8x1xf32>
    %1273 = vector.shape_cast %1272 : vector<1x8x1xf32> to vector<8x1xf32>
    %1274 = vector.broadcast %1273 : vector<8x1xf32> to vector<8x128xf32>
    %1275 = arith.mulf %1271, %1274 : vector<8x128xf32>
    %1276 = arith.addf %1263, %1275 : vector<8x128xf32>
    %c96_i32 = arith.constant 96 : i32
    %1277 = tpu.dynamic_rotate %4 by %c96_i32 dim 1 : vector<8x128xf32>, i32 -> vector<8x128xf32>
    %1278 = vector.extract_strided_slice %1 {offsets = [8, 0, 0], sizes = [1, 1, 128], strides = [1, 1, 1]} : vector<9x1x128xf32> to vector<1x1x128xf32>
    %1279 = vector.shape_cast %1278 : vector<1x1x128xf32> to vector<1x128xf32>
    %1280 = vector.broadcast %1279 : vector<1x128xf32> to vector<8x128xf32>
    %1281 = arith.mulf %1277, %1280 : vector<8x128xf32>
    %1282 = vector.extract_strided_slice %1071 {offsets = [22, 0, 0], sizes = [1, 8, 1], strides = [1, 1, 1]} : vector<25x8x1xf32> to vector<1x8x1xf32>
    %1283 = vector.shape_cast %1282 : vector<1x8x1xf32> to vector<8x1xf32>
    %1284 = vector.broadcast %1283 : vector<8x1xf32> to vector<8x128xf32>
    %1285 = arith.mulf %1281, %1284 : vector<8x128xf32>
    %1286 = arith.addf %1276, %1285 : vector<8x128xf32>
    %c94_i32 = arith.constant 94 : i32
    %1287 = tpu.dynamic_rotate %4 by %c94_i32 dim 1 : vector<8x128xf32>, i32 -> vector<8x128xf32>
    %1288 = vector.extract_strided_slice %1 {offsets = [8, 0, 0], sizes = [1, 1, 128], strides = [1, 1, 1]} : vector<9x1x128xf32> to vector<1x1x128xf32>
    %1289 = vector.shape_cast %1288 : vector<1x1x128xf32> to vector<1x128xf32>
    %1290 = vector.extract_strided_slice %2 {offsets = [6, 0, 0], sizes = [1, 1, 128], strides = [1, 1, 1]} : vector<9x1x128xf32> to vector<1x1x128xf32>
    %1291 = vector.shape_cast %1290 : vector<1x1x128xf32> to vector<1x128xf32>
    %1292 = arith.mulf %1289, %1291 : vector<1x128xf32>
    %1293 = vector.broadcast %1292 : vector<1x128xf32> to vector<8x128xf32>
    %1294 = arith.mulf %1287, %1293 : vector<8x128xf32>
    %1295 = vector.extract_strided_slice %1071 {offsets = [23, 0, 0], sizes = [1, 8, 1], strides = [1, 1, 1]} : vector<25x8x1xf32> to vector<1x8x1xf32>
    %1296 = vector.shape_cast %1295 : vector<1x8x1xf32> to vector<8x1xf32>
    %1297 = vector.broadcast %1296 : vector<8x1xf32> to vector<8x128xf32>
    %1298 = arith.mulf %1294, %1297 : vector<8x128xf32>
    %1299 = arith.addf %1286, %1298 : vector<8x128xf32>
    %c92_i32 = arith.constant 92 : i32
    %1300 = tpu.dynamic_rotate %4 by %c92_i32 dim 1 : vector<8x128xf32>, i32 -> vector<8x128xf32>
    %1301 = vector.extract_strided_slice %1 {offsets = [8, 0, 0], sizes = [1, 1, 128], strides = [1, 1, 1]} : vector<9x1x128xf32> to vector<1x1x128xf32>
    %1302 = vector.shape_cast %1301 : vector<1x1x128xf32> to vector<1x128xf32>
    %1303 = vector.extract_strided_slice %2 {offsets = [8, 0, 0], sizes = [1, 1, 128], strides = [1, 1, 1]} : vector<9x1x128xf32> to vector<1x1x128xf32>
    %1304 = vector.shape_cast %1303 : vector<1x1x128xf32> to vector<1x128xf32>
    %1305 = arith.mulf %1302, %1304 : vector<1x128xf32>
    %1306 = vector.broadcast %1305 : vector<1x128xf32> to vector<8x128xf32>
    %1307 = arith.mulf %1300, %1306 : vector<8x128xf32>
    %1308 = vector.extract_strided_slice %1071 {offsets = [24, 0, 0], sizes = [1, 8, 1], strides = [1, 1, 1]} : vector<25x8x1xf32> to vector<1x8x1xf32>
    %1309 = vector.shape_cast %1308 : vector<1x8x1xf32> to vector<8x1xf32>
    %1310 = vector.broadcast %1309 : vector<8x1xf32> to vector<8x128xf32>
    %1311 = arith.mulf %1307, %1310 : vector<8x128xf32>
    %1312 = arith.addf %1299, %1311 : vector<8x128xf32>
    %cst_137 = arith.constant dense<0.000000e+00> : vector<8x128xf32>
    %1313 = tpu.matmul %1072, %1312, %cst_137 {dimension_numbers = #tpu.dot_dimension_numbers<[1], [0], [0], [1], [0, 0, 1, 1], [], []>} : vector<8x8xf32>, vector<8x128xf32>, vector<8x128xf32> -> vector<8x128xf32>
    %cst_138 = arith.constant dense<0.000000e+00> : vector<8xf32>
    %1314 = vector.multi_reduction <add>, %1313, %cst_138 [1] : vector<8x128xf32> to vector<8xf32>
    %1315 = vector.shape_cast %1314 : vector<8xf32> to vector<8x1xf32>
    %cst_139 = arith.constant 1.280000e+02 : f32
    %1316 = vector.broadcast %cst_139 : f32 to vector<8x1xf32>
    %1317 = arith.divf %1315, %1316 : vector<8x1xf32>
    %1318 = vector.broadcast %1317 : vector<8x1xf32> to vector<8x128xf32>
    %1319 = arith.subf %1313, %1318 : vector<8x128xf32>
    %1320 = arith.mulf %1319, %1319 : vector<8x128xf32>
    %cst_140 = arith.constant dense<0.000000e+00> : vector<8xf32>
    %1321 = vector.multi_reduction <add>, %1320, %cst_140 [1] : vector<8x128xf32> to vector<8xf32>
    %1322 = vector.shape_cast %1321 : vector<8xf32> to vector<8x1xf32>
    %cst_141 = arith.constant 1.280000e+02 : f32
    %1323 = vector.broadcast %cst_141 : f32 to vector<8x1xf32>
    %1324 = arith.divf %1322, %1323 : vector<8x1xf32>
    %1325 = vector.broadcast %1317 : vector<8x1xf32> to vector<8x128xf32>
    %1326 = arith.subf %1313, %1325 : vector<8x128xf32>
    %cst_142 = arith.constant 9.99999974E-6 : f32
    %1327 = vector.broadcast %cst_142 : f32 to vector<8x1xf32>
    %1328 = arith.addf %1324, %1327 : vector<8x1xf32>
    %1329 = math.rsqrt %1328 : vector<8x1xf32>
    %1330 = vector.broadcast %1329 : vector<8x1xf32> to vector<8x128xf32>
    %1331 = arith.mulf %1326, %1330 : vector<8x128xf32>
    %1332 = vector.broadcast %1070 : f32 to vector<8x128xf32>
    %1333 = arith.mulf %1332, %1331 : vector<8x128xf32>
    %1334 = arith.addf %1069, %1333 : vector<8x128xf32>
    %c0_143 = arith.constant 0 : index
    %c0_144 = arith.constant 0 : index
    %1335 = vector.load %arg17[%c0_143, %c0_144] : memref<8x128xf32, #tpu.memory_space<vmem>>, vector<8x128xf32>
    tpu.vector_store %arg17[%c0_143, %c0_144], %1334 {strides = array<i32>} : memref<8x128xf32, #tpu.memory_space<vmem>>, vector<8x128xf32>,
    return
  }
  func.func @transform_0(%arg0: i32) -> i32 {
    %c0_i32 = arith.constant 0 : i32
    %c0_i32_0 = arith.constant 0 : i32
    return %c0_i32 : i32
  }
  func.func @transform_1(%arg0: i32) -> (i32, i32, i32) {
    %c0_i32 = arith.constant 0 : i32
    %c0_i32_0 = arith.constant 0 : i32
    %c0_i32_1 = arith.constant 0 : i32
    %c0_i32_2 = arith.constant 0 : i32
    return %c0_i32, %c0_i32_0, %c0_i32_1 : i32, i32, i32
  }
  func.func @transform_2(%arg0: i32) -> (i32, i32, i32) {
    %c0_i32 = arith.constant 0 : i32
    %c0_i32_0 = arith.constant 0 : i32
    %c0_i32_1 = arith.constant 0 : i32
    %c0_i32_2 = arith.constant 0 : i32
    return %c0_i32, %c0_i32_0, %c0_i32_1 : i32, i32, i32
  }
  func.func @transform_3(%arg0: i32) -> (i32, i32) {
    %c0_i32 = arith.constant 0 : i32
    %c0_i32_0 = arith.constant 0 : i32
    %c0_i32_1 = arith.constant 0 : i32
    return %c0_i32, %c0_i32_0 : i32, i32
  }
  func.func @transform_4(%arg0: i32) -> (i32, i32, i32) {
    %c0_i32 = arith.constant 0 : i32
    %c0_i32_0 = arith.constant 0 : i32
    %c0_i32_1 = arith.constant 0 : i32
    %c0_i32_2 = arith.constant 0 : i32
    return %c0_i32, %c0_i32_0, %c0_i32_1 : i32, i32, i32
  }
  func.func @transform_5(%arg0: i32) -> (i32, i32) {
    %c0_i32 = arith.constant 0 : i32
    %c0_i32_0 = arith.constant 0 : i32
    %c0_i32_1 = arith.constant 0 : i32
    return %c0_i32, %c0_i32_0 : i32, i32
  }
  func.func @transform_6(%arg0: i32) -> (i32, i32, i32) {
    %c0_i32 = arith.constant 0 : i32
    %c0_i32_0 = arith.constant 0 : i32
    %c0_i32_1 = arith.constant 0 : i32
    %c0_i32_2 = arith.constant 0 : i32
    return %c0_i32, %c0_i32_0, %c0_i32_1 : i32, i32, i32
  }
  func.func @transform_7(%arg0: i32) -> (i32, i32) {
    %c0_i32 = arith.constant 0 : i32
    %c0_i32_0 = arith.constant 0 : i32
    %c0_i32_1 = arith.constant 0 : i32
    return %c0_i32, %c0_i32_0 : i32, i32
  }
  func.func @transform_8(%arg0: i32) -> (i32, i32, i32) {
    %c0_i32 = arith.constant 0 : i32
    %c0_i32_0 = arith.constant 0 : i32
    %c0_i32_1 = arith.constant 0 : i32
    %c0_i32_2 = arith.constant 0 : i32
    return %c0_i32, %c0_i32_0, %c0_i32_1 : i32, i32, i32
  }
  func.func @transform_9(%arg0: i32) -> (i32, i32) {
    %c0_i32 = arith.constant 0 : i32
    %c0_i32_0 = arith.constant 0 : i32
    %c0_i32_1 = arith.constant 0 : i32
    return %c0_i32, %c0_i32_0 : i32, i32
  }
  func.func @transform_10(%arg0: i32) -> (i32, i32, i32) {
    %c0_i32 = arith.constant 0 : i32
    %c0_i32_0 = arith.constant 0 : i32
    %c0_i32_1 = arith.constant 0 : i32
    %c0_i32_2 = arith.constant 0 : i32
    return %c0_i32, %c0_i32_0, %c0_i32_1 : i32, i32, i32
  }
  func.func @transform_11(%arg0: i32) -> (i32, i32) {
    %c0_i32 = arith.constant 0 : i32
    %c0_i32_0 = arith.constant 0 : i32
    %c0_i32_1 = arith.constant 0 : i32
    return %c0_i32, %c0_i32_0 : i32, i32
  }
  func.func @transform_12(%arg0: i32) -> (i32, i32, i32) {
    %c0_i32 = arith.constant 0 : i32
    %c0_i32_0 = arith.constant 0 : i32
    %c0_i32_1 = arith.constant 0 : i32
    %c0_i32_2 = arith.constant 0 : i32
    return %c0_i32, %c0_i32_0, %c0_i32_1 : i32, i32, i32
  }
  func.func @transform_13(%arg0: i32) -> (i32, i32) {
    %c0_i32 = arith.constant 0 : i32
    %c0_i32_0 = arith.constant 0 : i32
    %c0_i32_1 = arith.constant 0 : i32
    return %c0_i32, %c0_i32_0 : i32, i32
  }
  func.func @transform_14(%arg0: i32) -> (i32, i32, i32) {
    %c0_i32 = arith.constant 0 : i32
    %c0_i32_0 = arith.constant 0 : i32
    %c0_i32_1 = arith.constant 0 : i32
    %c0_i32_2 = arith.constant 0 : i32
    return %c0_i32, %c0_i32_0, %c0_i32_1 : i32, i32, i32
  }
  func.func @transform_15(%arg0: i32) -> (i32, i32) {
    %c0_i32 = arith.constant 0 : i32
    %c0_i32_0 = arith.constant 0 : i32
    %c0_i32_1 = arith.constant 0 : i32
    return %c0_i32, %c0_i32_0 : i32, i32
  }
  func.func @transform_16(%arg0: i32) -> (i32, i32) {
    %c0_i32 = arith.constant 0 : i32
    %c0_i32_0 = arith.constant 0 : i32
    %c0_i32_1 = arith.constant 0 : i32
    return %c0_i32, %c0_i32_0 : i32, i32
  }
}

module attributes {stable_mosaic.version = 11 : i64} {
  func.func @_edge_kernel(%arg0: i32, %arg1: memref<8xf32, #tpu.memory_space<smem>>, %arg2: memref<9x1x128xf32, #tpu.memory_space<vmem>>, %arg3: memref<9x1x128xf32, #tpu.memory_space<vmem>>, %arg4: memref<8x128xf32, #tpu.memory_space<vmem>>, %arg5: memref<9x8x1xf32, #tpu.memory_space<vmem>>, %arg6: memref<8x8xf32, #tpu.memory_space<vmem>>, %arg7: memref<9x8x1xf32, #tpu.memory_space<vmem>>, %arg8: memref<8x8xf32, #tpu.memory_space<vmem>>, %arg9: memref<25x8x1xf32, #tpu.memory_space<vmem>>, %arg10: memref<8x8xf32, #tpu.memory_space<vmem>>, %arg11: memref<25x8x1xf32, #tpu.memory_space<vmem>>, %arg12: memref<8x8xf32, #tpu.memory_space<vmem>>, %arg13: memref<9x8x1xf32, #tpu.memory_space<vmem>>, %arg14: memref<8x8xf32, #tpu.memory_space<vmem>>, %arg15: memref<25x8x1xf32, #tpu.memory_space<vmem>>, %arg16: memref<8x8xf32, #tpu.memory_space<vmem>>, %arg17: memref<8x128xf32, #tpu.memory_space<vmem>>, %arg18: memref<8x128xf32, #tpu.memory_space<vmem>>) attributes {dimension_semantics = [#tpu.dimension_semantics<arbitrary>], iteration_bounds = array<i64: 1>, scalar_prefetch = 0 : i64, scratch_operands = 0 : i64, tpu.core_type = #tpu.core_type<tc>, window_params = [{transform_indices = @transform_0, window_bounds = array<i64: 8>}, {pipeline_mode = #tpu.pipeline_mode<synchronous>, transform_indices = @transform_1, window_bounds = array<i64: 9, 1, 128>}, {pipeline_mode = #tpu.pipeline_mode<synchronous>, transform_indices = @transform_2, window_bounds = array<i64: 9, 1, 128>}, {pipeline_mode = #tpu.pipeline_mode<synchronous>, transform_indices = @transform_3, window_bounds = array<i64: 8, 128>}, {pipeline_mode = #tpu.pipeline_mode<synchronous>, transform_indices = @transform_4, window_bounds = array<i64: 9, 8, 1>}, {pipeline_mode = #tpu.pipeline_mode<synchronous>, transform_indices = @transform_5, window_bounds = array<i64: 8, 8>}, {pipeline_mode = #tpu.pipeline_mode<synchronous>, transform_indices = @transform_6, window_bounds = array<i64: 9, 8, 1>}, {pipeline_mode = #tpu.pipeline_mode<synchronous>, transform_indices = @transform_7, window_bounds = array<i64: 8, 8>}, {pipeline_mode = #tpu.pipeline_mode<synchronous>, transform_indices = @transform_8, window_bounds = array<i64: 25, 8, 1>}, {pipeline_mode = #tpu.pipeline_mode<synchronous>, transform_indices = @transform_9, window_bounds = array<i64: 8, 8>}, {pipeline_mode = #tpu.pipeline_mode<synchronous>, transform_indices = @transform_10, window_bounds = array<i64: 25, 8, 1>}, {pipeline_mode = #tpu.pipeline_mode<synchronous>, transform_indices = @transform_11, window_bounds = array<i64: 8, 8>}, {pipeline_mode = #tpu.pipeline_mode<synchronous>, transform_indices = @transform_12, window_bounds = array<i64: 9, 8, 1>}, {pipeline_mode = #tpu.pipeline_mode<synchronous>, transform_indices = @transform_13, window_bounds = array<i64: 8, 8>}, {pipeline_mode = #tpu.pipeline_mode<synchronous>, transform_indices = @transform_14, window_bounds = array<i64: 25, 8, 1>}, {pipeline_mode = #tpu.pipeline_mode<synchronous>, transform_indices = @transform_15, window_bounds = array<i64: 8, 8>}, {pipeline_mode = #tpu.pipeline_mode<synchronous>, transform_indices = @transform_16, window_bounds = array<i64: 8, 128>}, {pipeline_mode = #tpu.pipeline_mode<synchronous>, transform_indices = @transform_17, window_bounds = array<i64: 8, 128>}]} {
    %c0 = arith.constant 0 : index
    %c0_0 = arith.constant 0 : index
    %0 = vector.load %arg4[%c0, %c0_0] : memref<8x128xf32, #tpu.memory_space<vmem>>, vector<8x128xf32>
    %c0_1 = arith.constant 0 : index
    %c0_2 = arith.constant 0 : index
    %c0_3 = arith.constant 0 : index
    %1 = vector.load %arg2[%c0_1, %c0_2, %c0_3] : memref<9x1x128xf32, #tpu.memory_space<vmem>>, vector<9x1x128xf32>
    %c0_4 = arith.constant 0 : index
    %c0_5 = arith.constant 0 : index
    %c0_6 = arith.constant 0 : index
    %2 = vector.load %arg3[%c0_4, %c0_5, %c0_6] : memref<9x1x128xf32, #tpu.memory_space<vmem>>, vector<9x1x128xf32>
    %cst = arith.constant 0.000000e+00 : f32
    %3 = vector.broadcast %cst : f32 to vector<8x128xf32>
    %4 = arith.maximumf %0, %3 : vector<8x128xf32>
    %c1 = arith.constant 1 : index
    %5 = memref.load %arg1[%c1] : memref<8xf32, #tpu.memory_space<smem>>
    %c9_i32 = arith.constant 9 : i32
    %6 = tpu.dynamic_rotate %0 by %c9_i32 dim 1 : vector<8x128xf32>, i32 -> vector<8x128xf32>
    %7 = vector.extract_strided_slice %1 {offsets = [3, 0, 0], sizes = [1, 1, 128], strides = [1, 1, 1]} : vector<9x1x128xf32> to vector<1x1x128xf32>
    %8 = vector.shape_cast %7 : vector<1x1x128xf32> to vector<1x128xf32>
    %9 = vector.extract_strided_slice %2 {offsets = [3, 0, 0], sizes = [1, 1, 128], strides = [1, 1, 1]} : vector<9x1x128xf32> to vector<1x1x128xf32>
    %10 = vector.shape_cast %9 : vector<1x1x128xf32> to vector<1x128xf32>
    %11 = arith.mulf %8, %10 : vector<1x128xf32>
    %12 = vector.broadcast %11 : vector<1x128xf32> to vector<8x128xf32>
    %13 = arith.mulf %6, %12 : vector<8x128xf32>
    %cst_7 = arith.constant 1.000000e+00 : f32
    %14 = vector.broadcast %cst_7 : f32 to vector<1x128xf32>
    %15 = arith.subf %11, %14 : vector<1x128xf32>
    %cst_8 = arith.constant 1.000000e+30 : f32
    %16 = vector.broadcast %cst_8 : f32 to vector<1x128xf32>
    %17 = arith.mulf %15, %16 : vector<1x128xf32>
    %18 = vector.broadcast %17 : vector<1x128xf32> to vector<8x128xf32>
    %19 = arith.addf %13, %18 : vector<8x128xf32>
    %c8_i32 = arith.constant 8 : i32
    %20 = tpu.dynamic_rotate %0 by %c8_i32 dim 1 : vector<8x128xf32>, i32 -> vector<8x128xf32>
    %21 = vector.extract_strided_slice %1 {offsets = [3, 0, 0], sizes = [1, 1, 128], strides = [1, 1, 1]} : vector<9x1x128xf32> to vector<1x1x128xf32>
    %22 = vector.shape_cast %21 : vector<1x1x128xf32> to vector<1x128xf32>
    %23 = vector.broadcast %22 : vector<1x128xf32> to vector<8x128xf32>
    %24 = arith.mulf %20, %23 : vector<8x128xf32>
    %cst_9 = arith.constant 1.000000e+00 : f32
    %25 = vector.broadcast %cst_9 : f32 to vector<1x128xf32>
    %26 = arith.subf %22, %25 : vector<1x128xf32>
    %cst_10 = arith.constant 1.000000e+30 : f32
    %27 = vector.broadcast %cst_10 : f32 to vector<1x128xf32>
    %28 = arith.mulf %26, %27 : vector<1x128xf32>
    %29 = vector.broadcast %28 : vector<1x128xf32> to vector<8x128xf32>
    %30 = arith.addf %24, %29 : vector<8x128xf32>
    %31 = arith.maximumf %19, %30 : vector<8x128xf32>
    %c7_i32 = arith.constant 7 : i32
    %32 = tpu.dynamic_rotate %0 by %c7_i32 dim 1 : vector<8x128xf32>, i32 -> vector<8x128xf32>
    %33 = vector.extract_strided_slice %1 {offsets = [3, 0, 0], sizes = [1, 1, 128], strides = [1, 1, 1]} : vector<9x1x128xf32> to vector<1x1x128xf32>
    %34 = vector.shape_cast %33 : vector<1x1x128xf32> to vector<1x128xf32>
    %35 = vector.extract_strided_slice %2 {offsets = [5, 0, 0], sizes = [1, 1, 128], strides = [1, 1, 1]} : vector<9x1x128xf32> to vector<1x1x128xf32>
    %36 = vector.shape_cast %35 : vector<1x1x128xf32> to vector<1x128xf32>
    %37 = arith.mulf %34, %36 : vector<1x128xf32>
    %38 = vector.broadcast %37 : vector<1x128xf32> to vector<8x128xf32>
    %39 = arith.mulf %32, %38 : vector<8x128xf32>
    %cst_11 = arith.constant 1.000000e+00 : f32
    %40 = vector.broadcast %cst_11 : f32 to vector<1x128xf32>
    %41 = arith.subf %37, %40 : vector<1x128xf32>
    %cst_12 = arith.constant 1.000000e+30 : f32
    %42 = vector.broadcast %cst_12 : f32 to vector<1x128xf32>
    %43 = arith.mulf %41, %42 : vector<1x128xf32>
    %44 = vector.broadcast %43 : vector<1x128xf32> to vector<8x128xf32>
    %45 = arith.addf %39, %44 : vector<8x128xf32>
    %46 = arith.maximumf %31, %45 : vector<8x128xf32>
    %c1_i32 = arith.constant 1 : i32
    %47 = tpu.dynamic_rotate %0 by %c1_i32 dim 1 : vector<8x128xf32>, i32 -> vector<8x128xf32>
    %48 = vector.extract_strided_slice %2 {offsets = [3, 0, 0], sizes = [1, 1, 128], strides = [1, 1, 1]} : vector<9x1x128xf32> to vector<1x1x128xf32>
    %49 = vector.shape_cast %48 : vector<1x1x128xf32> to vector<1x128xf32>
    %50 = vector.broadcast %49 : vector<1x128xf32> to vector<8x128xf32>
    %51 = arith.mulf %47, %50 : vector<8x128xf32>
    %cst_13 = arith.constant 1.000000e+00 : f32
    %52 = vector.broadcast %cst_13 : f32 to vector<1x128xf32>
    %53 = arith.subf %49, %52 : vector<1x128xf32>
    %cst_14 = arith.constant 1.000000e+30 : f32
    %54 = vector.broadcast %cst_14 : f32 to vector<1x128xf32>
    %55 = arith.mulf %53, %54 : vector<1x128xf32>
    %56 = vector.broadcast %55 : vector<1x128xf32> to vector<8x128xf32>
    %57 = arith.addf %51, %56 : vector<8x128xf32>
    %58 = arith.maximumf %46, %57 : vector<8x128xf32>
    %59 = arith.maximumf %58, %0 : vector<8x128xf32>
    %c127_i32 = arith.constant 127 : i32
    %60 = tpu.dynamic_rotate %0 by %c127_i32 dim 1 : vector<8x128xf32>, i32 -> vector<8x128xf32>
    %61 = vector.extract_strided_slice %2 {offsets = [5, 0, 0], sizes = [1, 1, 128], strides = [1, 1, 1]} : vector<9x1x128xf32> to vector<1x1x128xf32>
    %62 = vector.shape_cast %61 : vector<1x1x128xf32> to vector<1x128xf32>
    %63 = vector.broadcast %62 : vector<1x128xf32> to vector<8x128xf32>
    %64 = arith.mulf %60, %63 : vector<8x128xf32>
    %cst_15 = arith.constant 1.000000e+00 : f32
    %65 = vector.broadcast %cst_15 : f32 to vector<1x128xf32>
    %66 = arith.subf %62, %65 : vector<1x128xf32>
    %cst_16 = arith.constant 1.000000e+30 : f32
    %67 = vector.broadcast %cst_16 : f32 to vector<1x128xf32>
    %68 = arith.mulf %66, %67 : vector<1x128xf32>
    %69 = vector.broadcast %68 : vector<1x128xf32> to vector<8x128xf32>
    %70 = arith.addf %64, %69 : vector<8x128xf32>
    %71 = arith.maximumf %59, %70 : vector<8x128xf32>
    %c121_i32 = arith.constant 121 : i32
    %72 = tpu.dynamic_rotate %0 by %c121_i32 dim 1 : vector<8x128xf32>, i32 -> vector<8x128xf32>
    %73 = vector.extract_strided_slice %1 {offsets = [5, 0, 0], sizes = [1, 1, 128], strides = [1, 1, 1]} : vector<9x1x128xf32> to vector<1x1x128xf32>
    %74 = vector.shape_cast %73 : vector<1x1x128xf32> to vector<1x128xf32>
    %75 = vector.extract_strided_slice %2 {offsets = [3, 0, 0], sizes = [1, 1, 128], strides = [1, 1, 1]} : vector<9x1x128xf32> to vector<1x1x128xf32>
    %76 = vector.shape_cast %75 : vector<1x1x128xf32> to vector<1x128xf32>
    %77 = arith.mulf %74, %76 : vector<1x128xf32>
    %78 = vector.broadcast %77 : vector<1x128xf32> to vector<8x128xf32>
    %79 = arith.mulf %72, %78 : vector<8x128xf32>
    %cst_17 = arith.constant 1.000000e+00 : f32
    %80 = vector.broadcast %cst_17 : f32 to vector<1x128xf32>
    %81 = arith.subf %77, %80 : vector<1x128xf32>
    %cst_18 = arith.constant 1.000000e+30 : f32
    %82 = vector.broadcast %cst_18 : f32 to vector<1x128xf32>
    %83 = arith.mulf %81, %82 : vector<1x128xf32>
    %84 = vector.broadcast %83 : vector<1x128xf32> to vector<8x128xf32>
    %85 = arith.addf %79, %84 : vector<8x128xf32>
    %86 = arith.maximumf %71, %85 : vector<8x128xf32>
    %c120_i32 = arith.constant 120 : i32
    %87 = tpu.dynamic_rotate %0 by %c120_i32 dim 1 : vector<8x128xf32>, i32 -> vector<8x128xf32>
    %88 = vector.extract_strided_slice %1 {offsets = [5, 0, 0], sizes = [1, 1, 128], strides = [1, 1, 1]} : vector<9x1x128xf32> to vector<1x1x128xf32>
    %89 = vector.shape_cast %88 : vector<1x1x128xf32> to vector<1x128xf32>
    %90 = vector.broadcast %89 : vector<1x128xf32> to vector<8x128xf32>
    %91 = arith.mulf %87, %90 : vector<8x128xf32>
    %cst_19 = arith.constant 1.000000e+00 : f32
    %92 = vector.broadcast %cst_19 : f32 to vector<1x128xf32>
    %93 = arith.subf %89, %92 : vector<1x128xf32>
    %cst_20 = arith.constant 1.000000e+30 : f32
    %94 = vector.broadcast %cst_20 : f32 to vector<1x128xf32>
    %95 = arith.mulf %93, %94 : vector<1x128xf32>
    %96 = vector.broadcast %95 : vector<1x128xf32> to vector<8x128xf32>
    %97 = arith.addf %91, %96 : vector<8x128xf32>
    %98 = arith.maximumf %86, %97 : vector<8x128xf32>
    %c119_i32 = arith.constant 119 : i32
    %99 = tpu.dynamic_rotate %0 by %c119_i32 dim 1 : vector<8x128xf32>, i32 -> vector<8x128xf32>
    %100 = vector.extract_strided_slice %1 {offsets = [5, 0, 0], sizes = [1, 1, 128], strides = [1, 1, 1]} : vector<9x1x128xf32> to vector<1x1x128xf32>
    %101 = vector.shape_cast %100 : vector<1x1x128xf32> to vector<1x128xf32>
    %102 = vector.extract_strided_slice %2 {offsets = [5, 0, 0], sizes = [1, 1, 128], strides = [1, 1, 1]} : vector<9x1x128xf32> to vector<1x1x128xf32>
    %103 = vector.shape_cast %102 : vector<1x1x128xf32> to vector<1x128xf32>
    %104 = arith.mulf %101, %103 : vector<1x128xf32>
    %105 = vector.broadcast %104 : vector<1x128xf32> to vector<8x128xf32>
    %106 = arith.mulf %99, %105 : vector<8x128xf32>
    %cst_21 = arith.constant 1.000000e+00 : f32
    %107 = vector.broadcast %cst_21 : f32 to vector<1x128xf32>
    %108 = arith.subf %104, %107 : vector<1x128xf32>
    %cst_22 = arith.constant 1.000000e+30 : f32
    %109 = vector.broadcast %cst_22 : f32 to vector<1x128xf32>
    %110 = arith.mulf %108, %109 : vector<1x128xf32>
    %111 = vector.broadcast %110 : vector<1x128xf32> to vector<8x128xf32>
    %112 = arith.addf %106, %111 : vector<8x128xf32>
    %113 = arith.maximumf %98, %112 : vector<8x128xf32>
    %cst_23 = arith.constant dense<0.000000e+00> : vector<8xf32>
    %114 = vector.multi_reduction <add>, %113, %cst_23 [1] : vector<8x128xf32> to vector<8xf32>
    %115 = vector.shape_cast %114 : vector<8xf32> to vector<8x1xf32>
    %cst_24 = arith.constant 1.280000e+02 : f32
    %116 = vector.broadcast %cst_24 : f32 to vector<8x1xf32>
    %117 = arith.divf %115, %116 : vector<8x1xf32>
    %118 = vector.broadcast %117 : vector<8x1xf32> to vector<8x128xf32>
    %119 = arith.subf %113, %118 : vector<8x128xf32>
    %120 = arith.mulf %119, %119 : vector<8x128xf32>
    %cst_25 = arith.constant dense<0.000000e+00> : vector<8xf32>
    %121 = vector.multi_reduction <add>, %120, %cst_25 [1] : vector<8x128xf32> to vector<8xf32>
    %122 = vector.shape_cast %121 : vector<8xf32> to vector<8x1xf32>
    %cst_26 = arith.constant 1.280000e+02 : f32
    %123 = vector.broadcast %cst_26 : f32 to vector<8x1xf32>
    %124 = arith.divf %122, %123 : vector<8x1xf32>
    %125 = vector.broadcast %117 : vector<8x1xf32> to vector<8x128xf32>
    %126 = arith.subf %113, %125 : vector<8x128xf32>
    %cst_27 = arith.constant 9.99999974E-6 : f32
    %127 = vector.broadcast %cst_27 : f32 to vector<8x1xf32>
    %128 = arith.addf %124, %127 : vector<8x1xf32>
    %129 = math.rsqrt %128 : vector<8x1xf32>
    %130 = vector.broadcast %129 : vector<8x1xf32> to vector<8x128xf32>
    %131 = arith.mulf %126, %130 : vector<8x128xf32>
    %132 = vector.broadcast %5 : f32 to vector<8x128xf32>
    %133 = arith.mulf %132, %131 : vector<8x128xf32>
    %c2 = arith.constant 2 : index
    %134 = memref.load %arg1[%c2] : memref<8xf32, #tpu.memory_space<smem>>
    %135 = arith.addf %13, %24 : vector<8x128xf32>
    %136 = arith.addf %11, %22 : vector<1x128xf32>
    %137 = arith.addf %135, %39 : vector<8x128xf32>
    %138 = arith.addf %136, %37 : vector<1x128xf32>
    %139 = arith.addf %137, %51 : vector<8x128xf32>
    %140 = arith.addf %138, %49 : vector<1x128xf32>
    %141 = arith.addf %139, %0 : vector<8x128xf32>
    %cst_28 = arith.constant 1.000000e+00 : f32
    %142 = vector.broadcast %cst_28 : f32 to vector<1x128xf32>
    %143 = arith.addf %140, %142 : vector<1x128xf32>
    %144 = arith.addf %141, %64 : vector<8x128xf32>
    %145 = arith.addf %143, %62 : vector<1x128xf32>
    %146 = arith.addf %144, %79 : vector<8x128xf32>
    %147 = arith.addf %145, %77 : vector<1x128xf32>
    %148 = arith.addf %146, %91 : vector<8x128xf32>
    %149 = arith.addf %147, %89 : vector<1x128xf32>
    %150 = arith.addf %148, %106 : vector<8x128xf32>
    %151 = arith.addf %149, %104 : vector<1x128xf32>
    %cst_29 = arith.constant 1.000000e+00 : f32
    %152 = vector.broadcast %cst_29 : f32 to vector<1x128xf32>
    %153 = arith.divf %152, %151 : vector<1x128xf32>
    %154 = vector.broadcast %153 : vector<1x128xf32> to vector<8x128xf32>
    %155 = arith.mulf %150, %154 : vector<8x128xf32>
    %cst_30 = arith.constant dense<0.000000e+00> : vector<8xf32>
    %156 = vector.multi_reduction <add>, %155, %cst_30 [1] : vector<8x128xf32> to vector<8xf32>
    %157 = vector.shape_cast %156 : vector<8xf32> to vector<8x1xf32>
    %cst_31 = arith.constant 1.280000e+02 : f32
    %158 = vector.broadcast %cst_31 : f32 to vector<8x1xf32>
    %159 = arith.divf %157, %158 : vector<8x1xf32>
    %160 = vector.broadcast %159 : vector<8x1xf32> to vector<8x128xf32>
    %161 = arith.subf %155, %160 : vector<8x128xf32>
    %162 = arith.mulf %161, %161 : vector<8x128xf32>
    %cst_32 = arith.constant dense<0.000000e+00> : vector<8xf32>
    %163 = vector.multi_reduction <add>, %162, %cst_32 [1] : vector<8x128xf32> to vector<8xf32>
    %164 = vector.shape_cast %163 : vector<8xf32> to vector<8x1xf32>
    %cst_33 = arith.constant 1.280000e+02 : f32
    %165 = vector.broadcast %cst_33 : f32 to vector<8x1xf32>
    %166 = arith.divf %164, %165 : vector<8x1xf32>
    %167 = vector.broadcast %159 : vector<8x1xf32> to vector<8x128xf32>
    %168 = arith.subf %155, %167 : vector<8x128xf32>
    %cst_34 = arith.constant 9.99999974E-6 : f32
    %169 = vector.broadcast %cst_34 : f32 to vector<8x1xf32>
    %170 = arith.addf %166, %169 : vector<8x1xf32>
    %171 = math.rsqrt %170 : vector<8x1xf32>
    %172 = vector.broadcast %171 : vector<8x1xf32> to vector<8x128xf32>
    %173 = arith.mulf %168, %172 : vector<8x128xf32>
    %174 = vector.broadcast %134 : f32 to vector<8x128xf32>
    %175 = arith.mulf %174, %173 : vector<8x128xf32>
    %176 = arith.addf %133, %175 : vector<8x128xf32>
    %c3 = arith.constant 3 : index
    %177 = memref.load %arg1[%c3] : memref<8xf32, #tpu.memory_space<smem>>
    %178 = vector.broadcast %177 : f32 to vector<8x128xf32>
    %179 = arith.mulf %178, %0 : vector<8x128xf32>
    %180 = arith.addf %176, %179 : vector<8x128xf32>
    %c4 = arith.constant 4 : index
    %181 = memref.load %arg1[%c4] : memref<8xf32, #tpu.memory_space<smem>>
    %c0_35 = arith.constant 0 : index
    %c0_36 = arith.constant 0 : index
    %c0_37 = arith.constant 0 : index
    %182 = vector.load %arg5[%c0_35, %c0_36, %c0_37] : memref<9x8x1xf32, #tpu.memory_space<vmem>>, vector<9x8x1xf32>
    %c0_38 = arith.constant 0 : index
    %c0_39 = arith.constant 0 : index
    %183 = vector.load %arg6[%c0_38, %c0_39] : memref<8x8xf32, #tpu.memory_space<vmem>>, vector<8x8xf32>
    %c0_40 = arith.constant 0 : index
    %c0_41 = arith.constant 0 : index
    %c0_42 = arith.constant 0 : index
    %184 = vector.load %arg7[%c0_40, %c0_41, %c0_42] : memref<9x8x1xf32, #tpu.memory_space<vmem>>, vector<9x8x1xf32>
    %c0_43 = arith.constant 0 : index
    %c0_44 = arith.constant 0 : index
    %185 = vector.load %arg8[%c0_43, %c0_44] : memref<8x8xf32, #tpu.memory_space<vmem>>, vector<8x8xf32>
    %c9_i32_45 = arith.constant 9 : i32
    %186 = tpu.dynamic_rotate %4 by %c9_i32_45 dim 1 : vector<8x128xf32>, i32 -> vector<8x128xf32>
    %187 = vector.extract_strided_slice %1 {offsets = [3, 0, 0], sizes = [1, 1, 128], strides = [1, 1, 1]} : vector<9x1x128xf32> to vector<1x1x128xf32>
    %188 = vector.shape_cast %187 : vector<1x1x128xf32> to vector<1x128xf32>
    %189 = vector.extract_strided_slice %2 {offsets = [3, 0, 0], sizes = [1, 1, 128], strides = [1, 1, 1]} : vector<9x1x128xf32> to vector<1x1x128xf32>
    %190 = vector.shape_cast %189 : vector<1x1x128xf32> to vector<1x128xf32>
    %191 = arith.mulf %188, %190 : vector<1x128xf32>
    %192 = vector.broadcast %191 : vector<1x128xf32> to vector<8x128xf32>
    %193 = arith.mulf %186, %192 : vector<8x128xf32>
    %194 = vector.extract_strided_slice %182 {offsets = [0, 0, 0], sizes = [1, 8, 1], strides = [1, 1, 1]} : vector<9x8x1xf32> to vector<1x8x1xf32>
    %195 = vector.shape_cast %194 : vector<1x8x1xf32> to vector<8x1xf32>
    %196 = vector.broadcast %195 : vector<8x1xf32> to vector<8x128xf32>
    %197 = arith.mulf %193, %196 : vector<8x128xf32>
    %c8_i32_46 = arith.constant 8 : i32
    %198 = tpu.dynamic_rotate %4 by %c8_i32_46 dim 1 : vector<8x128xf32>, i32 -> vector<8x128xf32>
    %199 = vector.extract_strided_slice %1 {offsets = [3, 0, 0], sizes = [1, 1, 128], strides = [1, 1, 1]} : vector<9x1x128xf32> to vector<1x1x128xf32>
    %200 = vector.shape_cast %199 : vector<1x1x128xf32> to vector<1x128xf32>
    %201 = vector.broadcast %200 : vector<1x128xf32> to vector<8x128xf32>
    %202 = arith.mulf %198, %201 : vector<8x128xf32>
    %203 = vector.extract_strided_slice %182 {offsets = [1, 0, 0], sizes = [1, 8, 1], strides = [1, 1, 1]} : vector<9x8x1xf32> to vector<1x8x1xf32>
    %204 = vector.shape_cast %203 : vector<1x8x1xf32> to vector<8x1xf32>
    %205 = vector.broadcast %204 : vector<8x1xf32> to vector<8x128xf32>
    %206 = arith.mulf %202, %205 : vector<8x128xf32>
    %207 = arith.addf %197, %206 : vector<8x128xf32>
    %c7_i32_47 = arith.constant 7 : i32
    %208 = tpu.dynamic_rotate %4 by %c7_i32_47 dim 1 : vector<8x128xf32>, i32 -> vector<8x128xf32>
    %209 = vector.extract_strided_slice %1 {offsets = [3, 0, 0], sizes = [1, 1, 128], strides = [1, 1, 1]} : vector<9x1x128xf32> to vector<1x1x128xf32>
    %210 = vector.shape_cast %209 : vector<1x1x128xf32> to vector<1x128xf32>
    %211 = vector.extract_strided_slice %2 {offsets = [5, 0, 0], sizes = [1, 1, 128], strides = [1, 1, 1]} : vector<9x1x128xf32> to vector<1x1x128xf32>
    %212 = vector.shape_cast %211 : vector<1x1x128xf32> to vector<1x128xf32>
    %213 = arith.mulf %210, %212 : vector<1x128xf32>
    %214 = vector.broadcast %213 : vector<1x128xf32> to vector<8x128xf32>
    %215 = arith.mulf %208, %214 : vector<8x128xf32>
    %216 = vector.extract_strided_slice %182 {offsets = [2, 0, 0], sizes = [1, 8, 1], strides = [1, 1, 1]} : vector<9x8x1xf32> to vector<1x8x1xf32>
    %217 = vector.shape_cast %216 : vector<1x8x1xf32> to vector<8x1xf32>
    %218 = vector.broadcast %217 : vector<8x1xf32> to vector<8x128xf32>
    %219 = arith.mulf %215, %218 : vector<8x128xf32>
    %220 = arith.addf %207, %219 : vector<8x128xf32>
    %c1_i32_48 = arith.constant 1 : i32
    %221 = tpu.dynamic_rotate %4 by %c1_i32_48 dim 1 : vector<8x128xf32>, i32 -> vector<8x128xf32>
    %222 = vector.extract_strided_slice %2 {offsets = [3, 0, 0], sizes = [1, 1, 128], strides = [1, 1, 1]} : vector<9x1x128xf32> to vector<1x1x128xf32>
    %223 = vector.shape_cast %222 : vector<1x1x128xf32> to vector<1x128xf32>
    %224 = vector.broadcast %223 : vector<1x128xf32> to vector<8x128xf32>
    %225 = arith.mulf %221, %224 : vector<8x128xf32>
    %226 = vector.extract_strided_slice %182 {offsets = [3, 0, 0], sizes = [1, 8, 1], strides = [1, 1, 1]} : vector<9x8x1xf32> to vector<1x8x1xf32>
    %227 = vector.shape_cast %226 : vector<1x8x1xf32> to vector<8x1xf32>
    %228 = vector.broadcast %227 : vector<8x1xf32> to vector<8x128xf32>
    %229 = arith.mulf %225, %228 : vector<8x128xf32>
    %230 = arith.addf %220, %229 : vector<8x128xf32>
    %231 = vector.extract_strided_slice %182 {offsets = [4, 0, 0], sizes = [1, 8, 1], strides = [1, 1, 1]} : vector<9x8x1xf32> to vector<1x8x1xf32>
    %232 = vector.shape_cast %231 : vector<1x8x1xf32> to vector<8x1xf32>
    %233 = vector.broadcast %232 : vector<8x1xf32> to vector<8x128xf32>
    %234 = arith.mulf %4, %233 : vector<8x128xf32>
    %235 = arith.addf %230, %234 : vector<8x128xf32>
    %c127_i32_49 = arith.constant 127 : i32
    %236 = tpu.dynamic_rotate %4 by %c127_i32_49 dim 1 : vector<8x128xf32>, i32 -> vector<8x128xf32>
    %237 = vector.extract_strided_slice %2 {offsets = [5, 0, 0], sizes = [1, 1, 128], strides = [1, 1, 1]} : vector<9x1x128xf32> to vector<1x1x128xf32>
    %238 = vector.shape_cast %237 : vector<1x1x128xf32> to vector<1x128xf32>
    %239 = vector.broadcast %238 : vector<1x128xf32> to vector<8x128xf32>
    %240 = arith.mulf %236, %239 : vector<8x128xf32>
    %241 = vector.extract_strided_slice %182 {offsets = [5, 0, 0], sizes = [1, 8, 1], strides = [1, 1, 1]} : vector<9x8x1xf32> to vector<1x8x1xf32>
    %242 = vector.shape_cast %241 : vector<1x8x1xf32> to vector<8x1xf32>
    %243 = vector.broadcast %242 : vector<8x1xf32> to vector<8x128xf32>
    %244 = arith.mulf %240, %243 : vector<8x128xf32>
    %245 = arith.addf %235, %244 : vector<8x128xf32>
    %c121_i32_50 = arith.constant 121 : i32
    %246 = tpu.dynamic_rotate %4 by %c121_i32_50 dim 1 : vector<8x128xf32>, i32 -> vector<8x128xf32>
    %247 = vector.extract_strided_slice %1 {offsets = [5, 0, 0], sizes = [1, 1, 128], strides = [1, 1, 1]} : vector<9x1x128xf32> to vector<1x1x128xf32>
    %248 = vector.shape_cast %247 : vector<1x1x128xf32> to vector<1x128xf32>
    %249 = vector.extract_strided_slice %2 {offsets = [3, 0, 0], sizes = [1, 1, 128], strides = [1, 1, 1]} : vector<9x1x128xf32> to vector<1x1x128xf32>
    %250 = vector.shape_cast %249 : vector<1x1x128xf32> to vector<1x128xf32>
    %251 = arith.mulf %248, %250 : vector<1x128xf32>
    %252 = vector.broadcast %251 : vector<1x128xf32> to vector<8x128xf32>
    %253 = arith.mulf %246, %252 : vector<8x128xf32>
    %254 = vector.extract_strided_slice %182 {offsets = [6, 0, 0], sizes = [1, 8, 1], strides = [1, 1, 1]} : vector<9x8x1xf32> to vector<1x8x1xf32>
    %255 = vector.shape_cast %254 : vector<1x8x1xf32> to vector<8x1xf32>
    %256 = vector.broadcast %255 : vector<8x1xf32> to vector<8x128xf32>
    %257 = arith.mulf %253, %256 : vector<8x128xf32>
    %258 = arith.addf %245, %257 : vector<8x128xf32>
    %c120_i32_51 = arith.constant 120 : i32
    %259 = tpu.dynamic_rotate %4 by %c120_i32_51 dim 1 : vector<8x128xf32>, i32 -> vector<8x128xf32>
    %260 = vector.extract_strided_slice %1 {offsets = [5, 0, 0], sizes = [1, 1, 128], strides = [1, 1, 1]} : vector<9x1x128xf32> to vector<1x1x128xf32>
    %261 = vector.shape_cast %260 : vector<1x1x128xf32> to vector<1x128xf32>
    %262 = vector.broadcast %261 : vector<1x128xf32> to vector<8x128xf32>
    %263 = arith.mulf %259, %262 : vector<8x128xf32>
    %264 = vector.extract_strided_slice %182 {offsets = [7, 0, 0], sizes = [1, 8, 1], strides = [1, 1, 1]} : vector<9x8x1xf32> to vector<1x8x1xf32>
    %265 = vector.shape_cast %264 : vector<1x8x1xf32> to vector<8x1xf32>
    %266 = vector.broadcast %265 : vector<8x1xf32> to vector<8x128xf32>
    %267 = arith.mulf %263, %266 : vector<8x128xf32>
    %268 = arith.addf %258, %267 : vector<8x128xf32>
    %c119_i32_52 = arith.constant 119 : i32
    %269 = tpu.dynamic_rotate %4 by %c119_i32_52 dim 1 : vector<8x128xf32>, i32 -> vector<8x128xf32>
    %270 = vector.extract_strided_slice %1 {offsets = [5, 0, 0], sizes = [1, 1, 128], strides = [1, 1, 1]} : vector<9x1x128xf32> to vector<1x1x128xf32>
    %271 = vector.shape_cast %270 : vector<1x1x128xf32> to vector<1x128xf32>
    %272 = vector.extract_strided_slice %2 {offsets = [5, 0, 0], sizes = [1, 1, 128], strides = [1, 1, 1]} : vector<9x1x128xf32> to vector<1x1x128xf32>
    %273 = vector.shape_cast %272 : vector<1x1x128xf32> to vector<1x128xf32>
    %274 = arith.mulf %271, %273 : vector<1x128xf32>
    %275 = vector.broadcast %274 : vector<1x128xf32> to vector<8x128xf32>
    %276 = arith.mulf %269, %275 : vector<8x128xf32>
    %277 = vector.extract_strided_slice %182 {offsets = [8, 0, 0], sizes = [1, 8, 1], strides = [1, 1, 1]} : vector<9x8x1xf32> to vector<1x8x1xf32>
    %278 = vector.shape_cast %277 : vector<1x8x1xf32> to vector<8x1xf32>
    %279 = vector.broadcast %278 : vector<8x1xf32> to vector<8x128xf32>
    %280 = arith.mulf %276, %279 : vector<8x128xf32>
    %281 = arith.addf %268, %280 : vector<8x128xf32>
    %cst_53 = arith.constant dense<0.000000e+00> : vector<8x128xf32>
    %282 = tpu.matmul %183, %281, %cst_53 {dimension_numbers = #tpu.dot_dimension_numbers<[1], [0], [0], [1], [0, 0, 1, 1], [], []>} : vector<8x8xf32>, vector<8x128xf32>, vector<8x128xf32> -> vector<8x128xf32>
    %cst_54 = arith.constant dense<0.000000e+00> : vector<8xf32>
    %283 = vector.multi_reduction <add>, %282, %cst_54 [1] : vector<8x128xf32> to vector<8xf32>
    %284 = vector.shape_cast %283 : vector<8xf32> to vector<8x1xf32>
    %cst_55 = arith.constant 1.280000e+02 : f32
    %285 = vector.broadcast %cst_55 : f32 to vector<8x1xf32>
    %286 = arith.divf %284, %285 : vector<8x1xf32>
    %287 = vector.broadcast %286 : vector<8x1xf32> to vector<8x128xf32>
    %288 = arith.subf %282, %287 : vector<8x128xf32>
    %289 = arith.mulf %288, %288 : vector<8x128xf32>
    %cst_56 = arith.constant dense<0.000000e+00> : vector<8xf32>
    %290 = vector.multi_reduction <add>, %289, %cst_56 [1] : vector<8x128xf32> to vector<8xf32>
    %291 = vector.shape_cast %290 : vector<8xf32> to vector<8x1xf32>
    %cst_57 = arith.constant 1.280000e+02 : f32
    %292 = vector.broadcast %cst_57 : f32 to vector<8x1xf32>
    %293 = arith.divf %291, %292 : vector<8x1xf32>
    %294 = vector.broadcast %286 : vector<8x1xf32> to vector<8x128xf32>
    %295 = arith.subf %282, %294 : vector<8x128xf32>
    %cst_58 = arith.constant 9.99999974E-6 : f32
    %296 = vector.broadcast %cst_58 : f32 to vector<8x1xf32>
    %297 = arith.addf %293, %296 : vector<8x1xf32>
    %298 = math.rsqrt %297 : vector<8x1xf32>
    %299 = vector.broadcast %298 : vector<8x1xf32> to vector<8x128xf32>
    %300 = arith.mulf %295, %299 : vector<8x128xf32>
    %cst_59 = arith.constant 0.000000e+00 : f32
    %301 = vector.broadcast %cst_59 : f32 to vector<8x128xf32>
    %302 = arith.maximumf %300, %301 : vector<8x128xf32>
    %c9_i32_60 = arith.constant 9 : i32
    %303 = tpu.dynamic_rotate %302 by %c9_i32_60 dim 1 : vector<8x128xf32>, i32 -> vector<8x128xf32>
    %304 = vector.extract_strided_slice %1 {offsets = [3, 0, 0], sizes = [1, 1, 128], strides = [1, 1, 1]} : vector<9x1x128xf32> to vector<1x1x128xf32>
    %305 = vector.shape_cast %304 : vector<1x1x128xf32> to vector<1x128xf32>
    %306 = vector.extract_strided_slice %2 {offsets = [3, 0, 0], sizes = [1, 1, 128], strides = [1, 1, 1]} : vector<9x1x128xf32> to vector<1x1x128xf32>
    %307 = vector.shape_cast %306 : vector<1x1x128xf32> to vector<1x128xf32>
    %308 = arith.mulf %305, %307 : vector<1x128xf32>
    %309 = vector.broadcast %308 : vector<1x128xf32> to vector<8x128xf32>
    %310 = arith.mulf %303, %309 : vector<8x128xf32>
    %311 = vector.extract_strided_slice %184 {offsets = [0, 0, 0], sizes = [1, 8, 1], strides = [1, 1, 1]} : vector<9x8x1xf32> to vector<1x8x1xf32>
    %312 = vector.shape_cast %311 : vector<1x8x1xf32> to vector<8x1xf32>
    %313 = vector.broadcast %312 : vector<8x1xf32> to vector<8x128xf32>
    %314 = arith.mulf %310, %313 : vector<8x128xf32>
    %c8_i32_61 = arith.constant 8 : i32
    %315 = tpu.dynamic_rotate %302 by %c8_i32_61 dim 1 : vector<8x128xf32>, i32 -> vector<8x128xf32>
    %316 = vector.extract_strided_slice %1 {offsets = [3, 0, 0], sizes = [1, 1, 128], strides = [1, 1, 1]} : vector<9x1x128xf32> to vector<1x1x128xf32>
    %317 = vector.shape_cast %316 : vector<1x1x128xf32> to vector<1x128xf32>
    %318 = vector.broadcast %317 : vector<1x128xf32> to vector<8x128xf32>
    %319 = arith.mulf %315, %318 : vector<8x128xf32>
    %320 = vector.extract_strided_slice %184 {offsets = [1, 0, 0], sizes = [1, 8, 1], strides = [1, 1, 1]} : vector<9x8x1xf32> to vector<1x8x1xf32>
    %321 = vector.shape_cast %320 : vector<1x8x1xf32> to vector<8x1xf32>
    %322 = vector.broadcast %321 : vector<8x1xf32> to vector<8x128xf32>
    %323 = arith.mulf %319, %322 : vector<8x128xf32>
    %324 = arith.addf %314, %323 : vector<8x128xf32>
    %c7_i32_62 = arith.constant 7 : i32
    %325 = tpu.dynamic_rotate %302 by %c7_i32_62 dim 1 : vector<8x128xf32>, i32 -> vector<8x128xf32>
    %326 = vector.extract_strided_slice %1 {offsets = [3, 0, 0], sizes = [1, 1, 128], strides = [1, 1, 1]} : vector<9x1x128xf32> to vector<1x1x128xf32>
    %327 = vector.shape_cast %326 : vector<1x1x128xf32> to vector<1x128xf32>
    %328 = vector.extract_strided_slice %2 {offsets = [5, 0, 0], sizes = [1, 1, 128], strides = [1, 1, 1]} : vector<9x1x128xf32> to vector<1x1x128xf32>
    %329 = vector.shape_cast %328 : vector<1x1x128xf32> to vector<1x128xf32>
    %330 = arith.mulf %327, %329 : vector<1x128xf32>
    %331 = vector.broadcast %330 : vector<1x128xf32> to vector<8x128xf32>
    %332 = arith.mulf %325, %331 : vector<8x128xf32>
    %333 = vector.extract_strided_slice %184 {offsets = [2, 0, 0], sizes = [1, 8, 1], strides = [1, 1, 1]} : vector<9x8x1xf32> to vector<1x8x1xf32>
    %334 = vector.shape_cast %333 : vector<1x8x1xf32> to vector<8x1xf32>
    %335 = vector.broadcast %334 : vector<8x1xf32> to vector<8x128xf32>
    %336 = arith.mulf %332, %335 : vector<8x128xf32>
    %337 = arith.addf %324, %336 : vector<8x128xf32>
    %c1_i32_63 = arith.constant 1 : i32
    %338 = tpu.dynamic_rotate %302 by %c1_i32_63 dim 1 : vector<8x128xf32>, i32 -> vector<8x128xf32>
    %339 = vector.extract_strided_slice %2 {offsets = [3, 0, 0], sizes = [1, 1, 128], strides = [1, 1, 1]} : vector<9x1x128xf32> to vector<1x1x128xf32>
    %340 = vector.shape_cast %339 : vector<1x1x128xf32> to vector<1x128xf32>
    %341 = vector.broadcast %340 : vector<1x128xf32> to vector<8x128xf32>
    %342 = arith.mulf %338, %341 : vector<8x128xf32>
    %343 = vector.extract_strided_slice %184 {offsets = [3, 0, 0], sizes = [1, 8, 1], strides = [1, 1, 1]} : vector<9x8x1xf32> to vector<1x8x1xf32>
    %344 = vector.shape_cast %343 : vector<1x8x1xf32> to vector<8x1xf32>
    %345 = vector.broadcast %344 : vector<8x1xf32> to vector<8x128xf32>
    %346 = arith.mulf %342, %345 : vector<8x128xf32>
    %347 = arith.addf %337, %346 : vector<8x128xf32>
    %348 = vector.extract_strided_slice %184 {offsets = [4, 0, 0], sizes = [1, 8, 1], strides = [1, 1, 1]} : vector<9x8x1xf32> to vector<1x8x1xf32>
    %349 = vector.shape_cast %348 : vector<1x8x1xf32> to vector<8x1xf32>
    %350 = vector.broadcast %349 : vector<8x1xf32> to vector<8x128xf32>
    %351 = arith.mulf %302, %350 : vector<8x128xf32>
    %352 = arith.addf %347, %351 : vector<8x128xf32>
    %c127_i32_64 = arith.constant 127 : i32
    %353 = tpu.dynamic_rotate %302 by %c127_i32_64 dim 1 : vector<8x128xf32>, i32 -> vector<8x128xf32>
    %354 = vector.extract_strided_slice %2 {offsets = [5, 0, 0], sizes = [1, 1, 128], strides = [1, 1, 1]} : vector<9x1x128xf32> to vector<1x1x128xf32>
    %355 = vector.shape_cast %354 : vector<1x1x128xf32> to vector<1x128xf32>
    %356 = vector.broadcast %355 : vector<1x128xf32> to vector<8x128xf32>
    %357 = arith.mulf %353, %356 : vector<8x128xf32>
    %358 = vector.extract_strided_slice %184 {offsets = [5, 0, 0], sizes = [1, 8, 1], strides = [1, 1, 1]} : vector<9x8x1xf32> to vector<1x8x1xf32>
    %359 = vector.shape_cast %358 : vector<1x8x1xf32> to vector<8x1xf32>
    %360 = vector.broadcast %359 : vector<8x1xf32> to vector<8x128xf32>
    %361 = arith.mulf %357, %360 : vector<8x128xf32>
    %362 = arith.addf %352, %361 : vector<8x128xf32>
    %c121_i32_65 = arith.constant 121 : i32
    %363 = tpu.dynamic_rotate %302 by %c121_i32_65 dim 1 : vector<8x128xf32>, i32 -> vector<8x128xf32>
    %364 = vector.extract_strided_slice %1 {offsets = [5, 0, 0], sizes = [1, 1, 128], strides = [1, 1, 1]} : vector<9x1x128xf32> to vector<1x1x128xf32>
    %365 = vector.shape_cast %364 : vector<1x1x128xf32> to vector<1x128xf32>
    %366 = vector.extract_strided_slice %2 {offsets = [3, 0, 0], sizes = [1, 1, 128], strides = [1, 1, 1]} : vector<9x1x128xf32> to vector<1x1x128xf32>
    %367 = vector.shape_cast %366 : vector<1x1x128xf32> to vector<1x128xf32>
    %368 = arith.mulf %365, %367 : vector<1x128xf32>
    %369 = vector.broadcast %368 : vector<1x128xf32> to vector<8x128xf32>
    %370 = arith.mulf %363, %369 : vector<8x128xf32>
    %371 = vector.extract_strided_slice %184 {offsets = [6, 0, 0], sizes = [1, 8, 1], strides = [1, 1, 1]} : vector<9x8x1xf32> to vector<1x8x1xf32>
    %372 = vector.shape_cast %371 : vector<1x8x1xf32> to vector<8x1xf32>
    %373 = vector.broadcast %372 : vector<8x1xf32> to vector<8x128xf32>
    %374 = arith.mulf %370, %373 : vector<8x128xf32>
    %375 = arith.addf %362, %374 : vector<8x128xf32>
    %c120_i32_66 = arith.constant 120 : i32
    %376 = tpu.dynamic_rotate %302 by %c120_i32_66 dim 1 : vector<8x128xf32>, i32 -> vector<8x128xf32>
    %377 = vector.extract_strided_slice %1 {offsets = [5, 0, 0], sizes = [1, 1, 128], strides = [1, 1, 1]} : vector<9x1x128xf32> to vector<1x1x128xf32>
    %378 = vector.shape_cast %377 : vector<1x1x128xf32> to vector<1x128xf32>
    %379 = vector.broadcast %378 : vector<1x128xf32> to vector<8x128xf32>
    %380 = arith.mulf %376, %379 : vector<8x128xf32>
    %381 = vector.extract_strided_slice %184 {offsets = [7, 0, 0], sizes = [1, 8, 1], strides = [1, 1, 1]} : vector<9x8x1xf32> to vector<1x8x1xf32>
    %382 = vector.shape_cast %381 : vector<1x8x1xf32> to vector<8x1xf32>
    %383 = vector.broadcast %382 : vector<8x1xf32> to vector<8x128xf32>
    %384 = arith.mulf %380, %383 : vector<8x128xf32>
    %385 = arith.addf %375, %384 : vector<8x128xf32>
    %c119_i32_67 = arith.constant 119 : i32
    %386 = tpu.dynamic_rotate %302 by %c119_i32_67 dim 1 : vector<8x128xf32>, i32 -> vector<8x128xf32>
    %387 = vector.extract_strided_slice %1 {offsets = [5, 0, 0], sizes = [1, 1, 128], strides = [1, 1, 1]} : vector<9x1x128xf32> to vector<1x1x128xf32>
    %388 = vector.shape_cast %387 : vector<1x1x128xf32> to vector<1x128xf32>
    %389 = vector.extract_strided_slice %2 {offsets = [5, 0, 0], sizes = [1, 1, 128], strides = [1, 1, 1]} : vector<9x1x128xf32> to vector<1x1x128xf32>
    %390 = vector.shape_cast %389 : vector<1x1x128xf32> to vector<1x128xf32>
    %391 = arith.mulf %388, %390 : vector<1x128xf32>
    %392 = vector.broadcast %391 : vector<1x128xf32> to vector<8x128xf32>
    %393 = arith.mulf %386, %392 : vector<8x128xf32>
    %394 = vector.extract_strided_slice %184 {offsets = [8, 0, 0], sizes = [1, 8, 1], strides = [1, 1, 1]} : vector<9x8x1xf32> to vector<1x8x1xf32>
    %395 = vector.shape_cast %394 : vector<1x8x1xf32> to vector<8x1xf32>
    %396 = vector.broadcast %395 : vector<8x1xf32> to vector<8x128xf32>
    %397 = arith.mulf %393, %396 : vector<8x128xf32>
    %398 = arith.addf %385, %397 : vector<8x128xf32>
    %cst_68 = arith.constant dense<0.000000e+00> : vector<8x128xf32>
    %399 = tpu.matmul %185, %398, %cst_68 {dimension_numbers = #tpu.dot_dimension_numbers<[1], [0], [0], [1], [0, 0, 1, 1], [], []>} : vector<8x8xf32>, vector<8x128xf32>, vector<8x128xf32> -> vector<8x128xf32>
    %cst_69 = arith.constant dense<0.000000e+00> : vector<8xf32>
    %400 = vector.multi_reduction <add>, %399, %cst_69 [1] : vector<8x128xf32> to vector<8xf32>
    %401 = vector.shape_cast %400 : vector<8xf32> to vector<8x1xf32>
    %cst_70 = arith.constant 1.280000e+02 : f32
    %402 = vector.broadcast %cst_70 : f32 to vector<8x1xf32>
    %403 = arith.divf %401, %402 : vector<8x1xf32>
    %404 = vector.broadcast %403 : vector<8x1xf32> to vector<8x128xf32>
    %405 = arith.subf %399, %404 : vector<8x128xf32>
    %406 = arith.mulf %405, %405 : vector<8x128xf32>
    %cst_71 = arith.constant dense<0.000000e+00> : vector<8xf32>
    %407 = vector.multi_reduction <add>, %406, %cst_71 [1] : vector<8x128xf32> to vector<8xf32>
    %408 = vector.shape_cast %407 : vector<8xf32> to vector<8x1xf32>
    %cst_72 = arith.constant 1.280000e+02 : f32
    %409 = vector.broadcast %cst_72 : f32 to vector<8x1xf32>
    %410 = arith.divf %408, %409 : vector<8x1xf32>
    %411 = vector.broadcast %403 : vector<8x1xf32> to vector<8x128xf32>
    %412 = arith.subf %399, %411 : vector<8x128xf32>
    %cst_73 = arith.constant 9.99999974E-6 : f32
    %413 = vector.broadcast %cst_73 : f32 to vector<8x1xf32>
    %414 = arith.addf %410, %413 : vector<8x1xf32>
    %415 = math.rsqrt %414 : vector<8x1xf32>
    %416 = vector.broadcast %415 : vector<8x1xf32> to vector<8x128xf32>
    %417 = arith.mulf %412, %416 : vector<8x128xf32>
    %418 = vector.broadcast %181 : f32 to vector<8x128xf32>
    %419 = arith.mulf %418, %417 : vector<8x128xf32>
    %420 = arith.addf %180, %419 : vector<8x128xf32>
    %c5 = arith.constant 5 : index
    %421 = memref.load %arg1[%c5] : memref<8xf32, #tpu.memory_space<smem>>
    %c0_74 = arith.constant 0 : index
    %c0_75 = arith.constant 0 : index
    %c0_76 = arith.constant 0 : index
    %422 = vector.load %arg9[%c0_74, %c0_75, %c0_76] : memref<25x8x1xf32, #tpu.memory_space<vmem>>, vector<25x8x1xf32>
    %c0_77 = arith.constant 0 : index
    %c0_78 = arith.constant 0 : index
    %423 = vector.load %arg10[%c0_77, %c0_78] : memref<8x8xf32, #tpu.memory_space<vmem>>, vector<8x8xf32>
    %c0_79 = arith.constant 0 : index
    %c0_80 = arith.constant 0 : index
    %c0_81 = arith.constant 0 : index
    %424 = vector.load %arg11[%c0_79, %c0_80, %c0_81] : memref<25x8x1xf32, #tpu.memory_space<vmem>>, vector<25x8x1xf32>
    %c0_82 = arith.constant 0 : index
    %c0_83 = arith.constant 0 : index
    %425 = vector.load %arg12[%c0_82, %c0_83] : memref<8x8xf32, #tpu.memory_space<vmem>>, vector<8x8xf32>
    %c18_i32 = arith.constant 18 : i32
    %426 = tpu.dynamic_rotate %4 by %c18_i32 dim 1 : vector<8x128xf32>, i32 -> vector<8x128xf32>
    %427 = vector.extract_strided_slice %1 {offsets = [2, 0, 0], sizes = [1, 1, 128], strides = [1, 1, 1]} : vector<9x1x128xf32> to vector<1x1x128xf32>
    %428 = vector.shape_cast %427 : vector<1x1x128xf32> to vector<1x128xf32>
    %429 = vector.extract_strided_slice %2 {offsets = [2, 0, 0], sizes = [1, 1, 128], strides = [1, 1, 1]} : vector<9x1x128xf32> to vector<1x1x128xf32>
    %430 = vector.shape_cast %429 : vector<1x1x128xf32> to vector<1x128xf32>
    %431 = arith.mulf %428, %430 : vector<1x128xf32>
    %432 = vector.broadcast %431 : vector<1x128xf32> to vector<8x128xf32>
    %433 = arith.mulf %426, %432 : vector<8x128xf32>
    %434 = vector.extract_strided_slice %422 {offsets = [0, 0, 0], sizes = [1, 8, 1], strides = [1, 1, 1]} : vector<25x8x1xf32> to vector<1x8x1xf32>
    %435 = vector.shape_cast %434 : vector<1x8x1xf32> to vector<8x1xf32>
    %436 = vector.broadcast %435 : vector<8x1xf32> to vector<8x128xf32>
    %437 = arith.mulf %433, %436 : vector<8x128xf32>
    %c17_i32 = arith.constant 17 : i32
    %438 = tpu.dynamic_rotate %4 by %c17_i32 dim 1 : vector<8x128xf32>, i32 -> vector<8x128xf32>
    %439 = vector.extract_strided_slice %1 {offsets = [2, 0, 0], sizes = [1, 1, 128], strides = [1, 1, 1]} : vector<9x1x128xf32> to vector<1x1x128xf32>
    %440 = vector.shape_cast %439 : vector<1x1x128xf32> to vector<1x128xf32>
    %441 = vector.extract_strided_slice %2 {offsets = [3, 0, 0], sizes = [1, 1, 128], strides = [1, 1, 1]} : vector<9x1x128xf32> to vector<1x1x128xf32>
    %442 = vector.shape_cast %441 : vector<1x1x128xf32> to vector<1x128xf32>
    %443 = arith.mulf %440, %442 : vector<1x128xf32>
    %444 = vector.broadcast %443 : vector<1x128xf32> to vector<8x128xf32>
    %445 = arith.mulf %438, %444 : vector<8x128xf32>
    %446 = vector.extract_strided_slice %422 {offsets = [1, 0, 0], sizes = [1, 8, 1], strides = [1, 1, 1]} : vector<25x8x1xf32> to vector<1x8x1xf32>
    %447 = vector.shape_cast %446 : vector<1x8x1xf32> to vector<8x1xf32>
    %448 = vector.broadcast %447 : vector<8x1xf32> to vector<8x128xf32>
    %449 = arith.mulf %445, %448 : vector<8x128xf32>
    %450 = arith.addf %437, %449 : vector<8x128xf32>
    %c16_i32 = arith.constant 16 : i32
    %451 = tpu.dynamic_rotate %4 by %c16_i32 dim 1 : vector<8x128xf32>, i32 -> vector<8x128xf32>
    %452 = vector.extract_strided_slice %1 {offsets = [2, 0, 0], sizes = [1, 1, 128], strides = [1, 1, 1]} : vector<9x1x128xf32> to vector<1x1x128xf32>
    %453 = vector.shape_cast %452 : vector<1x1x128xf32> to vector<1x128xf32>
    %454 = vector.broadcast %453 : vector<1x128xf32> to vector<8x128xf32>
    %455 = arith.mulf %451, %454 : vector<8x128xf32>
    %456 = vector.extract_strided_slice %422 {offsets = [2, 0, 0], sizes = [1, 8, 1], strides = [1, 1, 1]} : vector<25x8x1xf32> to vector<1x8x1xf32>
    %457 = vector.shape_cast %456 : vector<1x8x1xf32> to vector<8x1xf32>
    %458 = vector.broadcast %457 : vector<8x1xf32> to vector<8x128xf32>
    %459 = arith.mulf %455, %458 : vector<8x128xf32>
    %460 = arith.addf %450, %459 : vector<8x128xf32>
    %c15_i32 = arith.constant 15 : i32
    %461 = tpu.dynamic_rotate %4 by %c15_i32 dim 1 : vector<8x128xf32>, i32 -> vector<8x128xf32>
    %462 = vector.extract_strided_slice %1 {offsets = [2, 0, 0], sizes = [1, 1, 128], strides = [1, 1, 1]} : vector<9x1x128xf32> to vector<1x1x128xf32>
    %463 = vector.shape_cast %462 : vector<1x1x128xf32> to vector<1x128xf32>
    %464 = vector.extract_strided_slice %2 {offsets = [5, 0, 0], sizes = [1, 1, 128], strides = [1, 1, 1]} : vector<9x1x128xf32> to vector<1x1x128xf32>
    %465 = vector.shape_cast %464 : vector<1x1x128xf32> to vector<1x128xf32>
    %466 = arith.mulf %463, %465 : vector<1x128xf32>
    %467 = vector.broadcast %466 : vector<1x128xf32> to vector<8x128xf32>
    %468 = arith.mulf %461, %467 : vector<8x128xf32>
    %469 = vector.extract_strided_slice %422 {offsets = [3, 0, 0], sizes = [1, 8, 1], strides = [1, 1, 1]} : vector<25x8x1xf32> to vector<1x8x1xf32>
    %470 = vector.shape_cast %469 : vector<1x8x1xf32> to vector<8x1xf32>
    %471 = vector.broadcast %470 : vector<8x1xf32> to vector<8x128xf32>
    %472 = arith.mulf %468, %471 : vector<8x128xf32>
    %473 = arith.addf %460, %472 : vector<8x128xf32>
    %c14_i32 = arith.constant 14 : i32
    %474 = tpu.dynamic_rotate %4 by %c14_i32 dim 1 : vector<8x128xf32>, i32 -> vector<8x128xf32>
    %475 = vector.extract_strided_slice %1 {offsets = [2, 0, 0], sizes = [1, 1, 128], strides = [1, 1, 1]} : vector<9x1x128xf32> to vector<1x1x128xf32>
    %476 = vector.shape_cast %475 : vector<1x1x128xf32> to vector<1x128xf32>
    %477 = vector.extract_strided_slice %2 {offsets = [6, 0, 0], sizes = [1, 1, 128], strides = [1, 1, 1]} : vector<9x1x128xf32> to vector<1x1x128xf32>
    %478 = vector.shape_cast %477 : vector<1x1x128xf32> to vector<1x128xf32>
    %479 = arith.mulf %476, %478 : vector<1x128xf32>
    %480 = vector.broadcast %479 : vector<1x128xf32> to vector<8x128xf32>
    %481 = arith.mulf %474, %480 : vector<8x128xf32>
    %482 = vector.extract_strided_slice %422 {offsets = [4, 0, 0], sizes = [1, 8, 1], strides = [1, 1, 1]} : vector<25x8x1xf32> to vector<1x8x1xf32>
    %483 = vector.shape_cast %482 : vector<1x8x1xf32> to vector<8x1xf32>
    %484 = vector.broadcast %483 : vector<8x1xf32> to vector<8x128xf32>
    %485 = arith.mulf %481, %484 : vector<8x128xf32>
    %486 = arith.addf %473, %485 : vector<8x128xf32>
    %c10_i32 = arith.constant 10 : i32
    %487 = tpu.dynamic_rotate %4 by %c10_i32 dim 1 : vector<8x128xf32>, i32 -> vector<8x128xf32>
    %488 = vector.extract_strided_slice %1 {offsets = [3, 0, 0], sizes = [1, 1, 128], strides = [1, 1, 1]} : vector<9x1x128xf32> to vector<1x1x128xf32>
    %489 = vector.shape_cast %488 : vector<1x1x128xf32> to vector<1x128xf32>
    %490 = vector.extract_strided_slice %2 {offsets = [2, 0, 0], sizes = [1, 1, 128], strides = [1, 1, 1]} : vector<9x1x128xf32> to vector<1x1x128xf32>
    %491 = vector.shape_cast %490 : vector<1x1x128xf32> to vector<1x128xf32>
    %492 = arith.mulf %489, %491 : vector<1x128xf32>
    %493 = vector.broadcast %492 : vector<1x128xf32> to vector<8x128xf32>
    %494 = arith.mulf %487, %493 : vector<8x128xf32>
    %495 = vector.extract_strided_slice %422 {offsets = [5, 0, 0], sizes = [1, 8, 1], strides = [1, 1, 1]} : vector<25x8x1xf32> to vector<1x8x1xf32>
    %496 = vector.shape_cast %495 : vector<1x8x1xf32> to vector<8x1xf32>
    %497 = vector.broadcast %496 : vector<8x1xf32> to vector<8x128xf32>
    %498 = arith.mulf %494, %497 : vector<8x128xf32>
    %499 = arith.addf %486, %498 : vector<8x128xf32>
    %500 = vector.extract_strided_slice %422 {offsets = [6, 0, 0], sizes = [1, 8, 1], strides = [1, 1, 1]} : vector<25x8x1xf32> to vector<1x8x1xf32>
    %501 = vector.shape_cast %500 : vector<1x8x1xf32> to vector<8x1xf32>
    %502 = vector.broadcast %501 : vector<8x1xf32> to vector<8x128xf32>
    %503 = arith.mulf %193, %502 : vector<8x128xf32>
    %504 = arith.addf %499, %503 : vector<8x128xf32>
    %505 = vector.extract_strided_slice %422 {offsets = [7, 0, 0], sizes = [1, 8, 1], strides = [1, 1, 1]} : vector<25x8x1xf32> to vector<1x8x1xf32>
    %506 = vector.shape_cast %505 : vector<1x8x1xf32> to vector<8x1xf32>
    %507 = vector.broadcast %506 : vector<8x1xf32> to vector<8x128xf32>
    %508 = arith.mulf %202, %507 : vector<8x128xf32>
    %509 = arith.addf %504, %508 : vector<8x128xf32>
    %510 = vector.extract_strided_slice %422 {offsets = [8, 0, 0], sizes = [1, 8, 1], strides = [1, 1, 1]} : vector<25x8x1xf32> to vector<1x8x1xf32>
    %511 = vector.shape_cast %510 : vector<1x8x1xf32> to vector<8x1xf32>
    %512 = vector.broadcast %511 : vector<8x1xf32> to vector<8x128xf32>
    %513 = arith.mulf %215, %512 : vector<8x128xf32>
    %514 = arith.addf %509, %513 : vector<8x128xf32>
    %c6_i32 = arith.constant 6 : i32
    %515 = tpu.dynamic_rotate %4 by %c6_i32 dim 1 : vector<8x128xf32>, i32 -> vector<8x128xf32>
    %516 = vector.extract_strided_slice %1 {offsets = [3, 0, 0], sizes = [1, 1, 128], strides = [1, 1, 1]} : vector<9x1x128xf32> to vector<1x1x128xf32>
    %517 = vector.shape_cast %516 : vector<1x1x128xf32> to vector<1x128xf32>
    %518 = vector.extract_strided_slice %2 {offsets = [6, 0, 0], sizes = [1, 1, 128], strides = [1, 1, 1]} : vector<9x1x128xf32> to vector<1x1x128xf32>
    %519 = vector.shape_cast %518 : vector<1x1x128xf32> to vector<1x128xf32>
    %520 = arith.mulf %517, %519 : vector<1x128xf32>
    %521 = vector.broadcast %520 : vector<1x128xf32> to vector<8x128xf32>
    %522 = arith.mulf %515, %521 : vector<8x128xf32>
    %523 = vector.extract_strided_slice %422 {offsets = [9, 0, 0], sizes = [1, 8, 1], strides = [1, 1, 1]} : vector<25x8x1xf32> to vector<1x8x1xf32>
    %524 = vector.shape_cast %523 : vector<1x8x1xf32> to vector<8x1xf32>
    %525 = vector.broadcast %524 : vector<8x1xf32> to vector<8x128xf32>
    %526 = arith.mulf %522, %525 : vector<8x128xf32>
    %527 = arith.addf %514, %526 : vector<8x128xf32>
    %c2_i32 = arith.constant 2 : i32
    %528 = tpu.dynamic_rotate %4 by %c2_i32 dim 1 : vector<8x128xf32>, i32 -> vector<8x128xf32>
    %529 = vector.extract_strided_slice %2 {offsets = [2, 0, 0], sizes = [1, 1, 128], strides = [1, 1, 1]} : vector<9x1x128xf32> to vector<1x1x128xf32>
    %530 = vector.shape_cast %529 : vector<1x1x128xf32> to vector<1x128xf32>
    %531 = vector.broadcast %530 : vector<1x128xf32> to vector<8x128xf32>
    %532 = arith.mulf %528, %531 : vector<8x128xf32>
    %533 = vector.extract_strided_slice %422 {offsets = [10, 0, 0], sizes = [1, 8, 1], strides = [1, 1, 1]} : vector<25x8x1xf32> to vector<1x8x1xf32>
    %534 = vector.shape_cast %533 : vector<1x8x1xf32> to vector<8x1xf32>
    %535 = vector.broadcast %534 : vector<8x1xf32> to vector<8x128xf32>
    %536 = arith.mulf %532, %535 : vector<8x128xf32>
    %537 = arith.addf %527, %536 : vector<8x128xf32>
    %538 = vector.extract_strided_slice %422 {offsets = [11, 0, 0], sizes = [1, 8, 1], strides = [1, 1, 1]} : vector<25x8x1xf32> to vector<1x8x1xf32>
    %539 = vector.shape_cast %538 : vector<1x8x1xf32> to vector<8x1xf32>
    %540 = vector.broadcast %539 : vector<8x1xf32> to vector<8x128xf32>
    %541 = arith.mulf %225, %540 : vector<8x128xf32>
    %542 = arith.addf %537, %541 : vector<8x128xf32>
    %543 = vector.extract_strided_slice %422 {offsets = [12, 0, 0], sizes = [1, 8, 1], strides = [1, 1, 1]} : vector<25x8x1xf32> to vector<1x8x1xf32>
    %544 = vector.shape_cast %543 : vector<1x8x1xf32> to vector<8x1xf32>
    %545 = vector.broadcast %544 : vector<8x1xf32> to vector<8x128xf32>
    %546 = arith.mulf %4, %545 : vector<8x128xf32>
    %547 = arith.addf %542, %546 : vector<8x128xf32>
    %548 = vector.extract_strided_slice %422 {offsets = [13, 0, 0], sizes = [1, 8, 1], strides = [1, 1, 1]} : vector<25x8x1xf32> to vector<1x8x1xf32>
    %549 = vector.shape_cast %548 : vector<1x8x1xf32> to vector<8x1xf32>
    %550 = vector.broadcast %549 : vector<8x1xf32> to vector<8x128xf32>
    %551 = arith.mulf %240, %550 : vector<8x128xf32>
    %552 = arith.addf %547, %551 : vector<8x128xf32>
    %c126_i32 = arith.constant 126 : i32
    %553 = tpu.dynamic_rotate %4 by %c126_i32 dim 1 : vector<8x128xf32>, i32 -> vector<8x128xf32>
    %554 = vector.extract_strided_slice %2 {offsets = [6, 0, 0], sizes = [1, 1, 128], strides = [1, 1, 1]} : vector<9x1x128xf32> to vector<1x1x128xf32>
    %555 = vector.shape_cast %554 : vector<1x1x128xf32> to vector<1x128xf32>
    %556 = vector.broadcast %555 : vector<1x128xf32> to vector<8x128xf32>
    %557 = arith.mulf %553, %556 : vector<8x128xf32>
    %558 = vector.extract_strided_slice %422 {offsets = [14, 0, 0], sizes = [1, 8, 1], strides = [1, 1, 1]} : vector<25x8x1xf32> to vector<1x8x1xf32>
    %559 = vector.shape_cast %558 : vector<1x8x1xf32> to vector<8x1xf32>
    %560 = vector.broadcast %559 : vector<8x1xf32> to vector<8x128xf32>
    %561 = arith.mulf %557, %560 : vector<8x128xf32>
    %562 = arith.addf %552, %561 : vector<8x128xf32>
    %c122_i32 = arith.constant 122 : i32
    %563 = tpu.dynamic_rotate %4 by %c122_i32 dim 1 : vector<8x128xf32>, i32 -> vector<8x128xf32>
    %564 = vector.extract_strided_slice %1 {offsets = [5, 0, 0], sizes = [1, 1, 128], strides = [1, 1, 1]} : vector<9x1x128xf32> to vector<1x1x128xf32>
    %565 = vector.shape_cast %564 : vector<1x1x128xf32> to vector<1x128xf32>
    %566 = vector.extract_strided_slice %2 {offsets = [2, 0, 0], sizes = [1, 1, 128], strides = [1, 1, 1]} : vector<9x1x128xf32> to vector<1x1x128xf32>
    %567 = vector.shape_cast %566 : vector<1x1x128xf32> to vector<1x128xf32>
    %568 = arith.mulf %565, %567 : vector<1x128xf32>
    %569 = vector.broadcast %568 : vector<1x128xf32> to vector<8x128xf32>
    %570 = arith.mulf %563, %569 : vector<8x128xf32>
    %571 = vector.extract_strided_slice %422 {offsets = [15, 0, 0], sizes = [1, 8, 1], strides = [1, 1, 1]} : vector<25x8x1xf32> to vector<1x8x1xf32>
    %572 = vector.shape_cast %571 : vector<1x8x1xf32> to vector<8x1xf32>
    %573 = vector.broadcast %572 : vector<8x1xf32> to vector<8x128xf32>
    %574 = arith.mulf %570, %573 : vector<8x128xf32>
    %575 = arith.addf %562, %574 : vector<8x128xf32>
    %576 = vector.extract_strided_slice %422 {offsets = [16, 0, 0], sizes = [1, 8, 1], strides = [1, 1, 1]} : vector<25x8x1xf32> to vector<1x8x1xf32>
    %577 = vector.shape_cast %576 : vector<1x8x1xf32> to vector<8x1xf32>
    %578 = vector.broadcast %577 : vector<8x1xf32> to vector<8x128xf32>
    %579 = arith.mulf %253, %578 : vector<8x128xf32>
    %580 = arith.addf %575, %579 : vector<8x128xf32>
    %581 = vector.extract_strided_slice %422 {offsets = [17, 0, 0], sizes = [1, 8, 1], strides = [1, 1, 1]} : vector<25x8x1xf32> to vector<1x8x1xf32>
    %582 = vector.shape_cast %581 : vector<1x8x1xf32> to vector<8x1xf32>
    %583 = vector.broadcast %582 : vector<8x1xf32> to vector<8x128xf32>
    %584 = arith.mulf %263, %583 : vector<8x128xf32>
    %585 = arith.addf %580, %584 : vector<8x128xf32>
    %586 = vector.extract_strided_slice %422 {offsets = [18, 0, 0], sizes = [1, 8, 1], strides = [1, 1, 1]} : vector<25x8x1xf32> to vector<1x8x1xf32>
    %587 = vector.shape_cast %586 : vector<1x8x1xf32> to vector<8x1xf32>
    %588 = vector.broadcast %587 : vector<8x1xf32> to vector<8x128xf32>
    %589 = arith.mulf %276, %588 : vector<8x128xf32>
    %590 = arith.addf %585, %589 : vector<8x128xf32>
    %c118_i32 = arith.constant 118 : i32
    %591 = tpu.dynamic_rotate %4 by %c118_i32 dim 1 : vector<8x128xf32>, i32 -> vector<8x128xf32>
    %592 = vector.extract_strided_slice %1 {offsets = [5, 0, 0], sizes = [1, 1, 128], strides = [1, 1, 1]} : vector<9x1x128xf32> to vector<1x1x128xf32>
    %593 = vector.shape_cast %592 : vector<1x1x128xf32> to vector<1x128xf32>
    %594 = vector.extract_strided_slice %2 {offsets = [6, 0, 0], sizes = [1, 1, 128], strides = [1, 1, 1]} : vector<9x1x128xf32> to vector<1x1x128xf32>
    %595 = vector.shape_cast %594 : vector<1x1x128xf32> to vector<1x128xf32>
    %596 = arith.mulf %593, %595 : vector<1x128xf32>
    %597 = vector.broadcast %596 : vector<1x128xf32> to vector<8x128xf32>
    %598 = arith.mulf %591, %597 : vector<8x128xf32>
    %599 = vector.extract_strided_slice %422 {offsets = [19, 0, 0], sizes = [1, 8, 1], strides = [1, 1, 1]} : vector<25x8x1xf32> to vector<1x8x1xf32>
    %600 = vector.shape_cast %599 : vector<1x8x1xf32> to vector<8x1xf32>
    %601 = vector.broadcast %600 : vector<8x1xf32> to vector<8x128xf32>
    %602 = arith.mulf %598, %601 : vector<8x128xf32>
    %603 = arith.addf %590, %602 : vector<8x128xf32>
    %c114_i32 = arith.constant 114 : i32
    %604 = tpu.dynamic_rotate %4 by %c114_i32 dim 1 : vector<8x128xf32>, i32 -> vector<8x128xf32>
    %605 = vector.extract_strided_slice %1 {offsets = [6, 0, 0], sizes = [1, 1, 128], strides = [1, 1, 1]} : vector<9x1x128xf32> to vector<1x1x128xf32>
    %606 = vector.shape_cast %605 : vector<1x1x128xf32> to vector<1x128xf32>
    %607 = vector.extract_strided_slice %2 {offsets = [2, 0, 0], sizes = [1, 1, 128], strides = [1, 1, 1]} : vector<9x1x128xf32> to vector<1x1x128xf32>
    %608 = vector.shape_cast %607 : vector<1x1x128xf32> to vector<1x128xf32>
    %609 = arith.mulf %606, %608 : vector<1x128xf32>
    %610 = vector.broadcast %609 : vector<1x128xf32> to vector<8x128xf32>
    %611 = arith.mulf %604, %610 : vector<8x128xf32>
    %612 = vector.extract_strided_slice %422 {offsets = [20, 0, 0], sizes = [1, 8, 1], strides = [1, 1, 1]} : vector<25x8x1xf32> to vector<1x8x1xf32>
    %613 = vector.shape_cast %612 : vector<1x8x1xf32> to vector<8x1xf32>
    %614 = vector.broadcast %613 : vector<8x1xf32> to vector<8x128xf32>
    %615 = arith.mulf %611, %614 : vector<8x128xf32>
    %616 = arith.addf %603, %615 : vector<8x128xf32>
    %c113_i32 = arith.constant 113 : i32
    %617 = tpu.dynamic_rotate %4 by %c113_i32 dim 1 : vector<8x128xf32>, i32 -> vector<8x128xf32>
    %618 = vector.extract_strided_slice %1 {offsets = [6, 0, 0], sizes = [1, 1, 128], strides = [1, 1, 1]} : vector<9x1x128xf32> to vector<1x1x128xf32>
    %619 = vector.shape_cast %618 : vector<1x1x128xf32> to vector<1x128xf32>
    %620 = vector.extract_strided_slice %2 {offsets = [3, 0, 0], sizes = [1, 1, 128], strides = [1, 1, 1]} : vector<9x1x128xf32> to vector<1x1x128xf32>
    %621 = vector.shape_cast %620 : vector<1x1x128xf32> to vector<1x128xf32>
    %622 = arith.mulf %619, %621 : vector<1x128xf32>
    %623 = vector.broadcast %622 : vector<1x128xf32> to vector<8x128xf32>
    %624 = arith.mulf %617, %623 : vector<8x128xf32>
    %625 = vector.extract_strided_slice %422 {offsets = [21, 0, 0], sizes = [1, 8, 1], strides = [1, 1, 1]} : vector<25x8x1xf32> to vector<1x8x1xf32>
    %626 = vector.shape_cast %625 : vector<1x8x1xf32> to vector<8x1xf32>
    %627 = vector.broadcast %626 : vector<8x1xf32> to vector<8x128xf32>
    %628 = arith.mulf %624, %627 : vector<8x128xf32>
    %629 = arith.addf %616, %628 : vector<8x128xf32>
    %c112_i32 = arith.constant 112 : i32
    %630 = tpu.dynamic_rotate %4 by %c112_i32 dim 1 : vector<8x128xf32>, i32 -> vector<8x128xf32>
    %631 = vector.extract_strided_slice %1 {offsets = [6, 0, 0], sizes = [1, 1, 128], strides = [1, 1, 1]} : vector<9x1x128xf32> to vector<1x1x128xf32>
    %632 = vector.shape_cast %631 : vector<1x1x128xf32> to vector<1x128xf32>
    %633 = vector.broadcast %632 : vector<1x128xf32> to vector<8x128xf32>
    %634 = arith.mulf %630, %633 : vector<8x128xf32>
    %635 = vector.extract_strided_slice %422 {offsets = [22, 0, 0], sizes = [1, 8, 1], strides = [1, 1, 1]} : vector<25x8x1xf32> to vector<1x8x1xf32>
    %636 = vector.shape_cast %635 : vector<1x8x1xf32> to vector<8x1xf32>
    %637 = vector.broadcast %636 : vector<8x1xf32> to vector<8x128xf32>
    %638 = arith.mulf %634, %637 : vector<8x128xf32>
    %639 = arith.addf %629, %638 : vector<8x128xf32>
    %c111_i32 = arith.constant 111 : i32
    %640 = tpu.dynamic_rotate %4 by %c111_i32 dim 1 : vector<8x128xf32>, i32 -> vector<8x128xf32>
    %641 = vector.extract_strided_slice %1 {offsets = [6, 0, 0], sizes = [1, 1, 128], strides = [1, 1, 1]} : vector<9x1x128xf32> to vector<1x1x128xf32>
    %642 = vector.shape_cast %641 : vector<1x1x128xf32> to vector<1x128xf32>
    %643 = vector.extract_strided_slice %2 {offsets = [5, 0, 0], sizes = [1, 1, 128], strides = [1, 1, 1]} : vector<9x1x128xf32> to vector<1x1x128xf32>
    %644 = vector.shape_cast %643 : vector<1x1x128xf32> to vector<1x128xf32>
    %645 = arith.mulf %642, %644 : vector<1x128xf32>
    %646 = vector.broadcast %645 : vector<1x128xf32> to vector<8x128xf32>
    %647 = arith.mulf %640, %646 : vector<8x128xf32>
    %648 = vector.extract_strided_slice %422 {offsets = [23, 0, 0], sizes = [1, 8, 1], strides = [1, 1, 1]} : vector<25x8x1xf32> to vector<1x8x1xf32>
    %649 = vector.shape_cast %648 : vector<1x8x1xf32> to vector<8x1xf32>
    %650 = vector.broadcast %649 : vector<8x1xf32> to vector<8x128xf32>
    %651 = arith.mulf %647, %650 : vector<8x128xf32>
    %652 = arith.addf %639, %651 : vector<8x128xf32>
    %c110_i32 = arith.constant 110 : i32
    %653 = tpu.dynamic_rotate %4 by %c110_i32 dim 1 : vector<8x128xf32>, i32 -> vector<8x128xf32>
    %654 = vector.extract_strided_slice %1 {offsets = [6, 0, 0], sizes = [1, 1, 128], strides = [1, 1, 1]} : vector<9x1x128xf32> to vector<1x1x128xf32>
    %655 = vector.shape_cast %654 : vector<1x1x128xf32> to vector<1x128xf32>
    %656 = vector.extract_strided_slice %2 {offsets = [6, 0, 0], sizes = [1, 1, 128], strides = [1, 1, 1]} : vector<9x1x128xf32> to vector<1x1x128xf32>
    %657 = vector.shape_cast %656 : vector<1x1x128xf32> to vector<1x128xf32>
    %658 = arith.mulf %655, %657 : vector<1x128xf32>
    %659 = vector.broadcast %658 : vector<1x128xf32> to vector<8x128xf32>
    %660 = arith.mulf %653, %659 : vector<8x128xf32>
    %661 = vector.extract_strided_slice %422 {offsets = [24, 0, 0], sizes = [1, 8, 1], strides = [1, 1, 1]} : vector<25x8x1xf32> to vector<1x8x1xf32>
    %662 = vector.shape_cast %661 : vector<1x8x1xf32> to vector<8x1xf32>
    %663 = vector.broadcast %662 : vector<8x1xf32> to vector<8x128xf32>
    %664 = arith.mulf %660, %663 : vector<8x128xf32>
    %665 = arith.addf %652, %664 : vector<8x128xf32>
    %cst_84 = arith.constant dense<0.000000e+00> : vector<8x128xf32>
    %666 = tpu.matmul %423, %665, %cst_84 {dimension_numbers = #tpu.dot_dimension_numbers<[1], [0], [0], [1], [0, 0, 1, 1], [], []>} : vector<8x8xf32>, vector<8x128xf32>, vector<8x128xf32> -> vector<8x128xf32>
    %cst_85 = arith.constant dense<0.000000e+00> : vector<8xf32>
    %667 = vector.multi_reduction <add>, %666, %cst_85 [1] : vector<8x128xf32> to vector<8xf32>
    %668 = vector.shape_cast %667 : vector<8xf32> to vector<8x1xf32>
    %cst_86 = arith.constant 1.280000e+02 : f32
    %669 = vector.broadcast %cst_86 : f32 to vector<8x1xf32>
    %670 = arith.divf %668, %669 : vector<8x1xf32>
    %671 = vector.broadcast %670 : vector<8x1xf32> to vector<8x128xf32>
    %672 = arith.subf %666, %671 : vector<8x128xf32>
    %673 = arith.mulf %672, %672 : vector<8x128xf32>
    %cst_87 = arith.constant dense<0.000000e+00> : vector<8xf32>
    %674 = vector.multi_reduction <add>, %673, %cst_87 [1] : vector<8x128xf32> to vector<8xf32>
    %675 = vector.shape_cast %674 : vector<8xf32> to vector<8x1xf32>
    %cst_88 = arith.constant 1.280000e+02 : f32
    %676 = vector.broadcast %cst_88 : f32 to vector<8x1xf32>
    %677 = arith.divf %675, %676 : vector<8x1xf32>
    %678 = vector.broadcast %670 : vector<8x1xf32> to vector<8x128xf32>
    %679 = arith.subf %666, %678 : vector<8x128xf32>
    %cst_89 = arith.constant 9.99999974E-6 : f32
    %680 = vector.broadcast %cst_89 : f32 to vector<8x1xf32>
    %681 = arith.addf %677, %680 : vector<8x1xf32>
    %682 = math.rsqrt %681 : vector<8x1xf32>
    %683 = vector.broadcast %682 : vector<8x1xf32> to vector<8x128xf32>
    %684 = arith.mulf %679, %683 : vector<8x128xf32>
    %cst_90 = arith.constant 0.000000e+00 : f32
    %685 = vector.broadcast %cst_90 : f32 to vector<8x128xf32>
    %686 = arith.maximumf %684, %685 : vector<8x128xf32>
    %c18_i32_91 = arith.constant 18 : i32
    %687 = tpu.dynamic_rotate %686 by %c18_i32_91 dim 1 : vector<8x128xf32>, i32 -> vector<8x128xf32>
    %688 = vector.extract_strided_slice %1 {offsets = [2, 0, 0], sizes = [1, 1, 128], strides = [1, 1, 1]} : vector<9x1x128xf32> to vector<1x1x128xf32>
    %689 = vector.shape_cast %688 : vector<1x1x128xf32> to vector<1x128xf32>
    %690 = vector.extract_strided_slice %2 {offsets = [2, 0, 0], sizes = [1, 1, 128], strides = [1, 1, 1]} : vector<9x1x128xf32> to vector<1x1x128xf32>
    %691 = vector.shape_cast %690 : vector<1x1x128xf32> to vector<1x128xf32>
    %692 = arith.mulf %689, %691 : vector<1x128xf32>
    %693 = vector.broadcast %692 : vector<1x128xf32> to vector<8x128xf32>
    %694 = arith.mulf %687, %693 : vector<8x128xf32>
    %695 = vector.extract_strided_slice %424 {offsets = [0, 0, 0], sizes = [1, 8, 1], strides = [1, 1, 1]} : vector<25x8x1xf32> to vector<1x8x1xf32>
    %696 = vector.shape_cast %695 : vector<1x8x1xf32> to vector<8x1xf32>
    %697 = vector.broadcast %696 : vector<8x1xf32> to vector<8x128xf32>
    %698 = arith.mulf %694, %697 : vector<8x128xf32>
    %c17_i32_92 = arith.constant 17 : i32
    %699 = tpu.dynamic_rotate %686 by %c17_i32_92 dim 1 : vector<8x128xf32>, i32 -> vector<8x128xf32>
    %700 = vector.extract_strided_slice %1 {offsets = [2, 0, 0], sizes = [1, 1, 128], strides = [1, 1, 1]} : vector<9x1x128xf32> to vector<1x1x128xf32>
    %701 = vector.shape_cast %700 : vector<1x1x128xf32> to vector<1x128xf32>
    %702 = vector.extract_strided_slice %2 {offsets = [3, 0, 0], sizes = [1, 1, 128], strides = [1, 1, 1]} : vector<9x1x128xf32> to vector<1x1x128xf32>
    %703 = vector.shape_cast %702 : vector<1x1x128xf32> to vector<1x128xf32>
    %704 = arith.mulf %701, %703 : vector<1x128xf32>
    %705 = vector.broadcast %704 : vector<1x128xf32> to vector<8x128xf32>
    %706 = arith.mulf %699, %705 : vector<8x128xf32>
    %707 = vector.extract_strided_slice %424 {offsets = [1, 0, 0], sizes = [1, 8, 1], strides = [1, 1, 1]} : vector<25x8x1xf32> to vector<1x8x1xf32>
    %708 = vector.shape_cast %707 : vector<1x8x1xf32> to vector<8x1xf32>
    %709 = vector.broadcast %708 : vector<8x1xf32> to vector<8x128xf32>
    %710 = arith.mulf %706, %709 : vector<8x128xf32>
    %711 = arith.addf %698, %710 : vector<8x128xf32>
    %c16_i32_93 = arith.constant 16 : i32
    %712 = tpu.dynamic_rotate %686 by %c16_i32_93 dim 1 : vector<8x128xf32>, i32 -> vector<8x128xf32>
    %713 = vector.extract_strided_slice %1 {offsets = [2, 0, 0], sizes = [1, 1, 128], strides = [1, 1, 1]} : vector<9x1x128xf32> to vector<1x1x128xf32>
    %714 = vector.shape_cast %713 : vector<1x1x128xf32> to vector<1x128xf32>
    %715 = vector.broadcast %714 : vector<1x128xf32> to vector<8x128xf32>
    %716 = arith.mulf %712, %715 : vector<8x128xf32>
    %717 = vector.extract_strided_slice %424 {offsets = [2, 0, 0], sizes = [1, 8, 1], strides = [1, 1, 1]} : vector<25x8x1xf32> to vector<1x8x1xf32>
    %718 = vector.shape_cast %717 : vector<1x8x1xf32> to vector<8x1xf32>
    %719 = vector.broadcast %718 : vector<8x1xf32> to vector<8x128xf32>
    %720 = arith.mulf %716, %719 : vector<8x128xf32>
    %721 = arith.addf %711, %720 : vector<8x128xf32>
    %c15_i32_94 = arith.constant 15 : i32
    %722 = tpu.dynamic_rotate %686 by %c15_i32_94 dim 1 : vector<8x128xf32>, i32 -> vector<8x128xf32>
    %723 = vector.extract_strided_slice %1 {offsets = [2, 0, 0], sizes = [1, 1, 128], strides = [1, 1, 1]} : vector<9x1x128xf32> to vector<1x1x128xf32>
    %724 = vector.shape_cast %723 : vector<1x1x128xf32> to vector<1x128xf32>
    %725 = vector.extract_strided_slice %2 {offsets = [5, 0, 0], sizes = [1, 1, 128], strides = [1, 1, 1]} : vector<9x1x128xf32> to vector<1x1x128xf32>
    %726 = vector.shape_cast %725 : vector<1x1x128xf32> to vector<1x128xf32>
    %727 = arith.mulf %724, %726 : vector<1x128xf32>
    %728 = vector.broadcast %727 : vector<1x128xf32> to vector<8x128xf32>
    %729 = arith.mulf %722, %728 : vector<8x128xf32>
    %730 = vector.extract_strided_slice %424 {offsets = [3, 0, 0], sizes = [1, 8, 1], strides = [1, 1, 1]} : vector<25x8x1xf32> to vector<1x8x1xf32>
    %731 = vector.shape_cast %730 : vector<1x8x1xf32> to vector<8x1xf32>
    %732 = vector.broadcast %731 : vector<8x1xf32> to vector<8x128xf32>
    %733 = arith.mulf %729, %732 : vector<8x128xf32>
    %734 = arith.addf %721, %733 : vector<8x128xf32>
    %c14_i32_95 = arith.constant 14 : i32
    %735 = tpu.dynamic_rotate %686 by %c14_i32_95 dim 1 : vector<8x128xf32>, i32 -> vector<8x128xf32>
    %736 = vector.extract_strided_slice %1 {offsets = [2, 0, 0], sizes = [1, 1, 128], strides = [1, 1, 1]} : vector<9x1x128xf32> to vector<1x1x128xf32>
    %737 = vector.shape_cast %736 : vector<1x1x128xf32> to vector<1x128xf32>
    %738 = vector.extract_strided_slice %2 {offsets = [6, 0, 0], sizes = [1, 1, 128], strides = [1, 1, 1]} : vector<9x1x128xf32> to vector<1x1x128xf32>
    %739 = vector.shape_cast %738 : vector<1x1x128xf32> to vector<1x128xf32>
    %740 = arith.mulf %737, %739 : vector<1x128xf32>
    %741 = vector.broadcast %740 : vector<1x128xf32> to vector<8x128xf32>
    %742 = arith.mulf %735, %741 : vector<8x128xf32>
    %743 = vector.extract_strided_slice %424 {offsets = [4, 0, 0], sizes = [1, 8, 1], strides = [1, 1, 1]} : vector<25x8x1xf32> to vector<1x8x1xf32>
    %744 = vector.shape_cast %743 : vector<1x8x1xf32> to vector<8x1xf32>
    %745 = vector.broadcast %744 : vector<8x1xf32> to vector<8x128xf32>
    %746 = arith.mulf %742, %745 : vector<8x128xf32>
    %747 = arith.addf %734, %746 : vector<8x128xf32>
    %c10_i32_96 = arith.constant 10 : i32
    %748 = tpu.dynamic_rotate %686 by %c10_i32_96 dim 1 : vector<8x128xf32>, i32 -> vector<8x128xf32>
    %749 = vector.extract_strided_slice %1 {offsets = [3, 0, 0], sizes = [1, 1, 128], strides = [1, 1, 1]} : vector<9x1x128xf32> to vector<1x1x128xf32>
    %750 = vector.shape_cast %749 : vector<1x1x128xf32> to vector<1x128xf32>
    %751 = vector.extract_strided_slice %2 {offsets = [2, 0, 0], sizes = [1, 1, 128], strides = [1, 1, 1]} : vector<9x1x128xf32> to vector<1x1x128xf32>
    %752 = vector.shape_cast %751 : vector<1x1x128xf32> to vector<1x128xf32>
    %753 = arith.mulf %750, %752 : vector<1x128xf32>
    %754 = vector.broadcast %753 : vector<1x128xf32> to vector<8x128xf32>
    %755 = arith.mulf %748, %754 : vector<8x128xf32>
    %756 = vector.extract_strided_slice %424 {offsets = [5, 0, 0], sizes = [1, 8, 1], strides = [1, 1, 1]} : vector<25x8x1xf32> to vector<1x8x1xf32>
    %757 = vector.shape_cast %756 : vector<1x8x1xf32> to vector<8x1xf32>
    %758 = vector.broadcast %757 : vector<8x1xf32> to vector<8x128xf32>
    %759 = arith.mulf %755, %758 : vector<8x128xf32>
    %760 = arith.addf %747, %759 : vector<8x128xf32>
    %c9_i32_97 = arith.constant 9 : i32
    %761 = tpu.dynamic_rotate %686 by %c9_i32_97 dim 1 : vector<8x128xf32>, i32 -> vector<8x128xf32>
    %762 = vector.extract_strided_slice %1 {offsets = [3, 0, 0], sizes = [1, 1, 128], strides = [1, 1, 1]} : vector<9x1x128xf32> to vector<1x1x128xf32>
    %763 = vector.shape_cast %762 : vector<1x1x128xf32> to vector<1x128xf32>
    %764 = vector.extract_strided_slice %2 {offsets = [3, 0, 0], sizes = [1, 1, 128], strides = [1, 1, 1]} : vector<9x1x128xf32> to vector<1x1x128xf32>
    %765 = vector.shape_cast %764 : vector<1x1x128xf32> to vector<1x128xf32>
    %766 = arith.mulf %763, %765 : vector<1x128xf32>
    %767 = vector.broadcast %766 : vector<1x128xf32> to vector<8x128xf32>
    %768 = arith.mulf %761, %767 : vector<8x128xf32>
    %769 = vector.extract_strided_slice %424 {offsets = [6, 0, 0], sizes = [1, 8, 1], strides = [1, 1, 1]} : vector<25x8x1xf32> to vector<1x8x1xf32>
    %770 = vector.shape_cast %769 : vector<1x8x1xf32> to vector<8x1xf32>
    %771 = vector.broadcast %770 : vector<8x1xf32> to vector<8x128xf32>
    %772 = arith.mulf %768, %771 : vector<8x128xf32>
    %773 = arith.addf %760, %772 : vector<8x128xf32>
    %c8_i32_98 = arith.constant 8 : i32
    %774 = tpu.dynamic_rotate %686 by %c8_i32_98 dim 1 : vector<8x128xf32>, i32 -> vector<8x128xf32>
    %775 = vector.extract_strided_slice %1 {offsets = [3, 0, 0], sizes = [1, 1, 128], strides = [1, 1, 1]} : vector<9x1x128xf32> to vector<1x1x128xf32>
    %776 = vector.shape_cast %775 : vector<1x1x128xf32> to vector<1x128xf32>
    %777 = vector.broadcast %776 : vector<1x128xf32> to vector<8x128xf32>
    %778 = arith.mulf %774, %777 : vector<8x128xf32>
    %779 = vector.extract_strided_slice %424 {offsets = [7, 0, 0], sizes = [1, 8, 1], strides = [1, 1, 1]} : vector<25x8x1xf32> to vector<1x8x1xf32>
    %780 = vector.shape_cast %779 : vector<1x8x1xf32> to vector<8x1xf32>
    %781 = vector.broadcast %780 : vector<8x1xf32> to vector<8x128xf32>
    %782 = arith.mulf %778, %781 : vector<8x128xf32>
    %783 = arith.addf %773, %782 : vector<8x128xf32>
    %c7_i32_99 = arith.constant 7 : i32
    %784 = tpu.dynamic_rotate %686 by %c7_i32_99 dim 1 : vector<8x128xf32>, i32 -> vector<8x128xf32>
    %785 = vector.extract_strided_slice %1 {offsets = [3, 0, 0], sizes = [1, 1, 128], strides = [1, 1, 1]} : vector<9x1x128xf32> to vector<1x1x128xf32>
    %786 = vector.shape_cast %785 : vector<1x1x128xf32> to vector<1x128xf32>
    %787 = vector.extract_strided_slice %2 {offsets = [5, 0, 0], sizes = [1, 1, 128], strides = [1, 1, 1]} : vector<9x1x128xf32> to vector<1x1x128xf32>
    %788 = vector.shape_cast %787 : vector<1x1x128xf32> to vector<1x128xf32>
    %789 = arith.mulf %786, %788 : vector<1x128xf32>
    %790 = vector.broadcast %789 : vector<1x128xf32> to vector<8x128xf32>
    %791 = arith.mulf %784, %790 : vector<8x128xf32>
    %792 = vector.extract_strided_slice %424 {offsets = [8, 0, 0], sizes = [1, 8, 1], strides = [1, 1, 1]} : vector<25x8x1xf32> to vector<1x8x1xf32>
    %793 = vector.shape_cast %792 : vector<1x8x1xf32> to vector<8x1xf32>
    %794 = vector.broadcast %793 : vector<8x1xf32> to vector<8x128xf32>
    %795 = arith.mulf %791, %794 : vector<8x128xf32>
    %796 = arith.addf %783, %795 : vector<8x128xf32>
    %c6_i32_100 = arith.constant 6 : i32
    %797 = tpu.dynamic_rotate %686 by %c6_i32_100 dim 1 : vector<8x128xf32>, i32 -> vector<8x128xf32>
    %798 = vector.extract_strided_slice %1 {offsets = [3, 0, 0], sizes = [1, 1, 128], strides = [1, 1, 1]} : vector<9x1x128xf32> to vector<1x1x128xf32>
    %799 = vector.shape_cast %798 : vector<1x1x128xf32> to vector<1x128xf32>
    %800 = vector.extract_strided_slice %2 {offsets = [6, 0, 0], sizes = [1, 1, 128], strides = [1, 1, 1]} : vector<9x1x128xf32> to vector<1x1x128xf32>
    %801 = vector.shape_cast %800 : vector<1x1x128xf32> to vector<1x128xf32>
    %802 = arith.mulf %799, %801 : vector<1x128xf32>
    %803 = vector.broadcast %802 : vector<1x128xf32> to vector<8x128xf32>
    %804 = arith.mulf %797, %803 : vector<8x128xf32>
    %805 = vector.extract_strided_slice %424 {offsets = [9, 0, 0], sizes = [1, 8, 1], strides = [1, 1, 1]} : vector<25x8x1xf32> to vector<1x8x1xf32>
    %806 = vector.shape_cast %805 : vector<1x8x1xf32> to vector<8x1xf32>
    %807 = vector.broadcast %806 : vector<8x1xf32> to vector<8x128xf32>
    %808 = arith.mulf %804, %807 : vector<8x128xf32>
    %809 = arith.addf %796, %808 : vector<8x128xf32>
    %c2_i32_101 = arith.constant 2 : i32
    %810 = tpu.dynamic_rotate %686 by %c2_i32_101 dim 1 : vector<8x128xf32>, i32 -> vector<8x128xf32>
    %811 = vector.extract_strided_slice %2 {offsets = [2, 0, 0], sizes = [1, 1, 128], strides = [1, 1, 1]} : vector<9x1x128xf32> to vector<1x1x128xf32>
    %812 = vector.shape_cast %811 : vector<1x1x128xf32> to vector<1x128xf32>
    %813 = vector.broadcast %812 : vector<1x128xf32> to vector<8x128xf32>
    %814 = arith.mulf %810, %813 : vector<8x128xf32>
    %815 = vector.extract_strided_slice %424 {offsets = [10, 0, 0], sizes = [1, 8, 1], strides = [1, 1, 1]} : vector<25x8x1xf32> to vector<1x8x1xf32>
    %816 = vector.shape_cast %815 : vector<1x8x1xf32> to vector<8x1xf32>
    %817 = vector.broadcast %816 : vector<8x1xf32> to vector<8x128xf32>
    %818 = arith.mulf %814, %817 : vector<8x128xf32>
    %819 = arith.addf %809, %818 : vector<8x128xf32>
    %c1_i32_102 = arith.constant 1 : i32
    %820 = tpu.dynamic_rotate %686 by %c1_i32_102 dim 1 : vector<8x128xf32>, i32 -> vector<8x128xf32>
    %821 = vector.extract_strided_slice %2 {offsets = [3, 0, 0], sizes = [1, 1, 128], strides = [1, 1, 1]} : vector<9x1x128xf32> to vector<1x1x128xf32>
    %822 = vector.shape_cast %821 : vector<1x1x128xf32> to vector<1x128xf32>
    %823 = vector.broadcast %822 : vector<1x128xf32> to vector<8x128xf32>
    %824 = arith.mulf %820, %823 : vector<8x128xf32>
    %825 = vector.extract_strided_slice %424 {offsets = [11, 0, 0], sizes = [1, 8, 1], strides = [1, 1, 1]} : vector<25x8x1xf32> to vector<1x8x1xf32>
    %826 = vector.shape_cast %825 : vector<1x8x1xf32> to vector<8x1xf32>
    %827 = vector.broadcast %826 : vector<8x1xf32> to vector<8x128xf32>
    %828 = arith.mulf %824, %827 : vector<8x128xf32>
    %829 = arith.addf %819, %828 : vector<8x128xf32>
    %830 = vector.extract_strided_slice %424 {offsets = [12, 0, 0], sizes = [1, 8, 1], strides = [1, 1, 1]} : vector<25x8x1xf32> to vector<1x8x1xf32>
    %831 = vector.shape_cast %830 : vector<1x8x1xf32> to vector<8x1xf32>
    %832 = vector.broadcast %831 : vector<8x1xf32> to vector<8x128xf32>
    %833 = arith.mulf %686, %832 : vector<8x128xf32>
    %834 = arith.addf %829, %833 : vector<8x128xf32>
    %c127_i32_103 = arith.constant 127 : i32
    %835 = tpu.dynamic_rotate %686 by %c127_i32_103 dim 1 : vector<8x128xf32>, i32 -> vector<8x128xf32>
    %836 = vector.extract_strided_slice %2 {offsets = [5, 0, 0], sizes = [1, 1, 128], strides = [1, 1, 1]} : vector<9x1x128xf32> to vector<1x1x128xf32>
    %837 = vector.shape_cast %836 : vector<1x1x128xf32> to vector<1x128xf32>
    %838 = vector.broadcast %837 : vector<1x128xf32> to vector<8x128xf32>
    %839 = arith.mulf %835, %838 : vector<8x128xf32>
    %840 = vector.extract_strided_slice %424 {offsets = [13, 0, 0], sizes = [1, 8, 1], strides = [1, 1, 1]} : vector<25x8x1xf32> to vector<1x8x1xf32>
    %841 = vector.shape_cast %840 : vector<1x8x1xf32> to vector<8x1xf32>
    %842 = vector.broadcast %841 : vector<8x1xf32> to vector<8x128xf32>
    %843 = arith.mulf %839, %842 : vector<8x128xf32>
    %844 = arith.addf %834, %843 : vector<8x128xf32>
    %c126_i32_104 = arith.constant 126 : i32
    %845 = tpu.dynamic_rotate %686 by %c126_i32_104 dim 1 : vector<8x128xf32>, i32 -> vector<8x128xf32>
    %846 = vector.extract_strided_slice %2 {offsets = [6, 0, 0], sizes = [1, 1, 128], strides = [1, 1, 1]} : vector<9x1x128xf32> to vector<1x1x128xf32>
    %847 = vector.shape_cast %846 : vector<1x1x128xf32> to vector<1x128xf32>
    %848 = vector.broadcast %847 : vector<1x128xf32> to vector<8x128xf32>
    %849 = arith.mulf %845, %848 : vector<8x128xf32>
    %850 = vector.extract_strided_slice %424 {offsets = [14, 0, 0], sizes = [1, 8, 1], strides = [1, 1, 1]} : vector<25x8x1xf32> to vector<1x8x1xf32>
    %851 = vector.shape_cast %850 : vector<1x8x1xf32> to vector<8x1xf32>
    %852 = vector.broadcast %851 : vector<8x1xf32> to vector<8x128xf32>
    %853 = arith.mulf %849, %852 : vector<8x128xf32>
    %854 = arith.addf %844, %853 : vector<8x128xf32>
    %c122_i32_105 = arith.constant 122 : i32
    %855 = tpu.dynamic_rotate %686 by %c122_i32_105 dim 1 : vector<8x128xf32>, i32 -> vector<8x128xf32>
    %856 = vector.extract_strided_slice %1 {offsets = [5, 0, 0], sizes = [1, 1, 128], strides = [1, 1, 1]} : vector<9x1x128xf32> to vector<1x1x128xf32>
    %857 = vector.shape_cast %856 : vector<1x1x128xf32> to vector<1x128xf32>
    %858 = vector.extract_strided_slice %2 {offsets = [2, 0, 0], sizes = [1, 1, 128], strides = [1, 1, 1]} : vector<9x1x128xf32> to vector<1x1x128xf32>
    %859 = vector.shape_cast %858 : vector<1x1x128xf32> to vector<1x128xf32>
    %860 = arith.mulf %857, %859 : vector<1x128xf32>
    %861 = vector.broadcast %860 : vector<1x128xf32> to vector<8x128xf32>
    %862 = arith.mulf %855, %861 : vector<8x128xf32>
    %863 = vector.extract_strided_slice %424 {offsets = [15, 0, 0], sizes = [1, 8, 1], strides = [1, 1, 1]} : vector<25x8x1xf32> to vector<1x8x1xf32>
    %864 = vector.shape_cast %863 : vector<1x8x1xf32> to vector<8x1xf32>
    %865 = vector.broadcast %864 : vector<8x1xf32> to vector<8x128xf32>
    %866 = arith.mulf %862, %865 : vector<8x128xf32>
    %867 = arith.addf %854, %866 : vector<8x128xf32>
    %c121_i32_106 = arith.constant 121 : i32
    %868 = tpu.dynamic_rotate %686 by %c121_i32_106 dim 1 : vector<8x128xf32>, i32 -> vector<8x128xf32>
    %869 = vector.extract_strided_slice %1 {offsets = [5, 0, 0], sizes = [1, 1, 128], strides = [1, 1, 1]} : vector<9x1x128xf32> to vector<1x1x128xf32>
    %870 = vector.shape_cast %869 : vector<1x1x128xf32> to vector<1x128xf32>
    %871 = vector.extract_strided_slice %2 {offsets = [3, 0, 0], sizes = [1, 1, 128], strides = [1, 1, 1]} : vector<9x1x128xf32> to vector<1x1x128xf32>
    %872 = vector.shape_cast %871 : vector<1x1x128xf32> to vector<1x128xf32>
    %873 = arith.mulf %870, %872 : vector<1x128xf32>
    %874 = vector.broadcast %873 : vector<1x128xf32> to vector<8x128xf32>
    %875 = arith.mulf %868, %874 : vector<8x128xf32>
    %876 = vector.extract_strided_slice %424 {offsets = [16, 0, 0], sizes = [1, 8, 1], strides = [1, 1, 1]} : vector<25x8x1xf32> to vector<1x8x1xf32>
    %877 = vector.shape_cast %876 : vector<1x8x1xf32> to vector<8x1xf32>
    %878 = vector.broadcast %877 : vector<8x1xf32> to vector<8x128xf32>
    %879 = arith.mulf %875, %878 : vector<8x128xf32>
    %880 = arith.addf %867, %879 : vector<8x128xf32>
    %c120_i32_107 = arith.constant 120 : i32
    %881 = tpu.dynamic_rotate %686 by %c120_i32_107 dim 1 : vector<8x128xf32>, i32 -> vector<8x128xf32>
    %882 = vector.extract_strided_slice %1 {offsets = [5, 0, 0], sizes = [1, 1, 128], strides = [1, 1, 1]} : vector<9x1x128xf32> to vector<1x1x128xf32>
    %883 = vector.shape_cast %882 : vector<1x1x128xf32> to vector<1x128xf32>
    %884 = vector.broadcast %883 : vector<1x128xf32> to vector<8x128xf32>
    %885 = arith.mulf %881, %884 : vector<8x128xf32>
    %886 = vector.extract_strided_slice %424 {offsets = [17, 0, 0], sizes = [1, 8, 1], strides = [1, 1, 1]} : vector<25x8x1xf32> to vector<1x8x1xf32>
    %887 = vector.shape_cast %886 : vector<1x8x1xf32> to vector<8x1xf32>
    %888 = vector.broadcast %887 : vector<8x1xf32> to vector<8x128xf32>
    %889 = arith.mulf %885, %888 : vector<8x128xf32>
    %890 = arith.addf %880, %889 : vector<8x128xf32>
    %c119_i32_108 = arith.constant 119 : i32
    %891 = tpu.dynamic_rotate %686 by %c119_i32_108 dim 1 : vector<8x128xf32>, i32 -> vector<8x128xf32>
    %892 = vector.extract_strided_slice %1 {offsets = [5, 0, 0], sizes = [1, 1, 128], strides = [1, 1, 1]} : vector<9x1x128xf32> to vector<1x1x128xf32>
    %893 = vector.shape_cast %892 : vector<1x1x128xf32> to vector<1x128xf32>
    %894 = vector.extract_strided_slice %2 {offsets = [5, 0, 0], sizes = [1, 1, 128], strides = [1, 1, 1]} : vector<9x1x128xf32> to vector<1x1x128xf32>
    %895 = vector.shape_cast %894 : vector<1x1x128xf32> to vector<1x128xf32>
    %896 = arith.mulf %893, %895 : vector<1x128xf32>
    %897 = vector.broadcast %896 : vector<1x128xf32> to vector<8x128xf32>
    %898 = arith.mulf %891, %897 : vector<8x128xf32>
    %899 = vector.extract_strided_slice %424 {offsets = [18, 0, 0], sizes = [1, 8, 1], strides = [1, 1, 1]} : vector<25x8x1xf32> to vector<1x8x1xf32>
    %900 = vector.shape_cast %899 : vector<1x8x1xf32> to vector<8x1xf32>
    %901 = vector.broadcast %900 : vector<8x1xf32> to vector<8x128xf32>
    %902 = arith.mulf %898, %901 : vector<8x128xf32>
    %903 = arith.addf %890, %902 : vector<8x128xf32>
    %c118_i32_109 = arith.constant 118 : i32
    %904 = tpu.dynamic_rotate %686 by %c118_i32_109 dim 1 : vector<8x128xf32>, i32 -> vector<8x128xf32>
    %905 = vector.extract_strided_slice %1 {offsets = [5, 0, 0], sizes = [1, 1, 128], strides = [1, 1, 1]} : vector<9x1x128xf32> to vector<1x1x128xf32>
    %906 = vector.shape_cast %905 : vector<1x1x128xf32> to vector<1x128xf32>
    %907 = vector.extract_strided_slice %2 {offsets = [6, 0, 0], sizes = [1, 1, 128], strides = [1, 1, 1]} : vector<9x1x128xf32> to vector<1x1x128xf32>
    %908 = vector.shape_cast %907 : vector<1x1x128xf32> to vector<1x128xf32>
    %909 = arith.mulf %906, %908 : vector<1x128xf32>
    %910 = vector.broadcast %909 : vector<1x128xf32> to vector<8x128xf32>
    %911 = arith.mulf %904, %910 : vector<8x128xf32>
    %912 = vector.extract_strided_slice %424 {offsets = [19, 0, 0], sizes = [1, 8, 1], strides = [1, 1, 1]} : vector<25x8x1xf32> to vector<1x8x1xf32>
    %913 = vector.shape_cast %912 : vector<1x8x1xf32> to vector<8x1xf32>
    %914 = vector.broadcast %913 : vector<8x1xf32> to vector<8x128xf32>
    %915 = arith.mulf %911, %914 : vector<8x128xf32>
    %916 = arith.addf %903, %915 : vector<8x128xf32>
    %c114_i32_110 = arith.constant 114 : i32
    %917 = tpu.dynamic_rotate %686 by %c114_i32_110 dim 1 : vector<8x128xf32>, i32 -> vector<8x128xf32>
    %918 = vector.extract_strided_slice %1 {offsets = [6, 0, 0], sizes = [1, 1, 128], strides = [1, 1, 1]} : vector<9x1x128xf32> to vector<1x1x128xf32>
    %919 = vector.shape_cast %918 : vector<1x1x128xf32> to vector<1x128xf32>
    %920 = vector.extract_strided_slice %2 {offsets = [2, 0, 0], sizes = [1, 1, 128], strides = [1, 1, 1]} : vector<9x1x128xf32> to vector<1x1x128xf32>
    %921 = vector.shape_cast %920 : vector<1x1x128xf32> to vector<1x128xf32>
    %922 = arith.mulf %919, %921 : vector<1x128xf32>
    %923 = vector.broadcast %922 : vector<1x128xf32> to vector<8x128xf32>
    %924 = arith.mulf %917, %923 : vector<8x128xf32>
    %925 = vector.extract_strided_slice %424 {offsets = [20, 0, 0], sizes = [1, 8, 1], strides = [1, 1, 1]} : vector<25x8x1xf32> to vector<1x8x1xf32>
    %926 = vector.shape_cast %925 : vector<1x8x1xf32> to vector<8x1xf32>
    %927 = vector.broadcast %926 : vector<8x1xf32> to vector<8x128xf32>
    %928 = arith.mulf %924, %927 : vector<8x128xf32>
    %929 = arith.addf %916, %928 : vector<8x128xf32>
    %c113_i32_111 = arith.constant 113 : i32
    %930 = tpu.dynamic_rotate %686 by %c113_i32_111 dim 1 : vector<8x128xf32>, i32 -> vector<8x128xf32>
    %931 = vector.extract_strided_slice %1 {offsets = [6, 0, 0], sizes = [1, 1, 128], strides = [1, 1, 1]} : vector<9x1x128xf32> to vector<1x1x128xf32>
    %932 = vector.shape_cast %931 : vector<1x1x128xf32> to vector<1x128xf32>
    %933 = vector.extract_strided_slice %2 {offsets = [3, 0, 0], sizes = [1, 1, 128], strides = [1, 1, 1]} : vector<9x1x128xf32> to vector<1x1x128xf32>
    %934 = vector.shape_cast %933 : vector<1x1x128xf32> to vector<1x128xf32>
    %935 = arith.mulf %932, %934 : vector<1x128xf32>
    %936 = vector.broadcast %935 : vector<1x128xf32> to vector<8x128xf32>
    %937 = arith.mulf %930, %936 : vector<8x128xf32>
    %938 = vector.extract_strided_slice %424 {offsets = [21, 0, 0], sizes = [1, 8, 1], strides = [1, 1, 1]} : vector<25x8x1xf32> to vector<1x8x1xf32>
    %939 = vector.shape_cast %938 : vector<1x8x1xf32> to vector<8x1xf32>
    %940 = vector.broadcast %939 : vector<8x1xf32> to vector<8x128xf32>
    %941 = arith.mulf %937, %940 : vector<8x128xf32>
    %942 = arith.addf %929, %941 : vector<8x128xf32>
    %c112_i32_112 = arith.constant 112 : i32
    %943 = tpu.dynamic_rotate %686 by %c112_i32_112 dim 1 : vector<8x128xf32>, i32 -> vector<8x128xf32>
    %944 = vector.extract_strided_slice %1 {offsets = [6, 0, 0], sizes = [1, 1, 128], strides = [1, 1, 1]} : vector<9x1x128xf32> to vector<1x1x128xf32>
    %945 = vector.shape_cast %944 : vector<1x1x128xf32> to vector<1x128xf32>
    %946 = vector.broadcast %945 : vector<1x128xf32> to vector<8x128xf32>
    %947 = arith.mulf %943, %946 : vector<8x128xf32>
    %948 = vector.extract_strided_slice %424 {offsets = [22, 0, 0], sizes = [1, 8, 1], strides = [1, 1, 1]} : vector<25x8x1xf32> to vector<1x8x1xf32>
    %949 = vector.shape_cast %948 : vector<1x8x1xf32> to vector<8x1xf32>
    %950 = vector.broadcast %949 : vector<8x1xf32> to vector<8x128xf32>
    %951 = arith.mulf %947, %950 : vector<8x128xf32>
    %952 = arith.addf %942, %951 : vector<8x128xf32>
    %c111_i32_113 = arith.constant 111 : i32
    %953 = tpu.dynamic_rotate %686 by %c111_i32_113 dim 1 : vector<8x128xf32>, i32 -> vector<8x128xf32>
    %954 = vector.extract_strided_slice %1 {offsets = [6, 0, 0], sizes = [1, 1, 128], strides = [1, 1, 1]} : vector<9x1x128xf32> to vector<1x1x128xf32>
    %955 = vector.shape_cast %954 : vector<1x1x128xf32> to vector<1x128xf32>
    %956 = vector.extract_strided_slice %2 {offsets = [5, 0, 0], sizes = [1, 1, 128], strides = [1, 1, 1]} : vector<9x1x128xf32> to vector<1x1x128xf32>
    %957 = vector.shape_cast %956 : vector<1x1x128xf32> to vector<1x128xf32>
    %958 = arith.mulf %955, %957 : vector<1x128xf32>
    %959 = vector.broadcast %958 : vector<1x128xf32> to vector<8x128xf32>
    %960 = arith.mulf %953, %959 : vector<8x128xf32>
    %961 = vector.extract_strided_slice %424 {offsets = [23, 0, 0], sizes = [1, 8, 1], strides = [1, 1, 1]} : vector<25x8x1xf32> to vector<1x8x1xf32>
    %962 = vector.shape_cast %961 : vector<1x8x1xf32> to vector<8x1xf32>
    %963 = vector.broadcast %962 : vector<8x1xf32> to vector<8x128xf32>
    %964 = arith.mulf %960, %963 : vector<8x128xf32>
    %965 = arith.addf %952, %964 : vector<8x128xf32>
    %c110_i32_114 = arith.constant 110 : i32
    %966 = tpu.dynamic_rotate %686 by %c110_i32_114 dim 1 : vector<8x128xf32>, i32 -> vector<8x128xf32>
    %967 = vector.extract_strided_slice %1 {offsets = [6, 0, 0], sizes = [1, 1, 128], strides = [1, 1, 1]} : vector<9x1x128xf32> to vector<1x1x128xf32>
    %968 = vector.shape_cast %967 : vector<1x1x128xf32> to vector<1x128xf32>
    %969 = vector.extract_strided_slice %2 {offsets = [6, 0, 0], sizes = [1, 1, 128], strides = [1, 1, 1]} : vector<9x1x128xf32> to vector<1x1x128xf32>
    %970 = vector.shape_cast %969 : vector<1x1x128xf32> to vector<1x128xf32>
    %971 = arith.mulf %968, %970 : vector<1x128xf32>
    %972 = vector.broadcast %971 : vector<1x128xf32> to vector<8x128xf32>
    %973 = arith.mulf %966, %972 : vector<8x128xf32>
    %974 = vector.extract_strided_slice %424 {offsets = [24, 0, 0], sizes = [1, 8, 1], strides = [1, 1, 1]} : vector<25x8x1xf32> to vector<1x8x1xf32>
    %975 = vector.shape_cast %974 : vector<1x8x1xf32> to vector<8x1xf32>
    %976 = vector.broadcast %975 : vector<8x1xf32> to vector<8x128xf32>
    %977 = arith.mulf %973, %976 : vector<8x128xf32>
    %978 = arith.addf %965, %977 : vector<8x128xf32>
    %cst_115 = arith.constant dense<0.000000e+00> : vector<8x128xf32>
    %979 = tpu.matmul %425, %978, %cst_115 {dimension_numbers = #tpu.dot_dimension_numbers<[1], [0], [0], [1], [0, 0, 1, 1], [], []>} : vector<8x8xf32>, vector<8x128xf32>, vector<8x128xf32> -> vector<8x128xf32>
    %cst_116 = arith.constant dense<0.000000e+00> : vector<8xf32>
    %980 = vector.multi_reduction <add>, %979, %cst_116 [1] : vector<8x128xf32> to vector<8xf32>
    %981 = vector.shape_cast %980 : vector<8xf32> to vector<8x1xf32>
    %cst_117 = arith.constant 1.280000e+02 : f32
    %982 = vector.broadcast %cst_117 : f32 to vector<8x1xf32>
    %983 = arith.divf %981, %982 : vector<8x1xf32>
    %984 = vector.broadcast %983 : vector<8x1xf32> to vector<8x128xf32>
    %985 = arith.subf %979, %984 : vector<8x128xf32>
    %986 = arith.mulf %985, %985 : vector<8x128xf32>
    %cst_118 = arith.constant dense<0.000000e+00> : vector<8xf32>
    %987 = vector.multi_reduction <add>, %986, %cst_118 [1] : vector<8x128xf32> to vector<8xf32>
    %988 = vector.shape_cast %987 : vector<8xf32> to vector<8x1xf32>
    %cst_119 = arith.constant 1.280000e+02 : f32
    %989 = vector.broadcast %cst_119 : f32 to vector<8x1xf32>
    %990 = arith.divf %988, %989 : vector<8x1xf32>
    %991 = vector.broadcast %983 : vector<8x1xf32> to vector<8x128xf32>
    %992 = arith.subf %979, %991 : vector<8x128xf32>
    %cst_120 = arith.constant 9.99999974E-6 : f32
    %993 = vector.broadcast %cst_120 : f32 to vector<8x1xf32>
    %994 = arith.addf %990, %993 : vector<8x1xf32>
    %995 = math.rsqrt %994 : vector<8x1xf32>
    %996 = vector.broadcast %995 : vector<8x1xf32> to vector<8x128xf32>
    %997 = arith.mulf %992, %996 : vector<8x128xf32>
    %998 = vector.broadcast %421 : f32 to vector<8x128xf32>
    %999 = arith.mulf %998, %997 : vector<8x128xf32>
    %1000 = arith.addf %420, %999 : vector<8x128xf32>
    %c6 = arith.constant 6 : index
    %1001 = memref.load %arg1[%c6] : memref<8xf32, #tpu.memory_space<smem>>
    %c0_121 = arith.constant 0 : index
    %c0_122 = arith.constant 0 : index
    %c0_123 = arith.constant 0 : index
    %1002 = vector.load %arg13[%c0_121, %c0_122, %c0_123] : memref<9x8x1xf32, #tpu.memory_space<vmem>>, vector<9x8x1xf32>
    %c0_124 = arith.constant 0 : index
    %c0_125 = arith.constant 0 : index
    %1003 = vector.load %arg14[%c0_124, %c0_125] : memref<8x8xf32, #tpu.memory_space<vmem>>, vector<8x8xf32>
    %1004 = vector.extract_strided_slice %1002 {offsets = [0, 0, 0], sizes = [1, 8, 1], strides = [1, 1, 1]} : vector<9x8x1xf32> to vector<1x8x1xf32>
    %1005 = vector.shape_cast %1004 : vector<1x8x1xf32> to vector<8x1xf32>
    %1006 = vector.broadcast %1005 : vector<8x1xf32> to vector<8x128xf32>
    %1007 = arith.mulf %433, %1006 : vector<8x128xf32>
    %1008 = vector.extract_strided_slice %1002 {offsets = [1, 0, 0], sizes = [1, 8, 1], strides = [1, 1, 1]} : vector<9x8x1xf32> to vector<1x8x1xf32>
    %1009 = vector.shape_cast %1008 : vector<1x8x1xf32> to vector<8x1xf32>
    %1010 = vector.broadcast %1009 : vector<8x1xf32> to vector<8x128xf32>
    %1011 = arith.mulf %455, %1010 : vector<8x128xf32>
    %1012 = arith.addf %1007, %1011 : vector<8x128xf32>
    %1013 = vector.extract_strided_slice %1002 {offsets = [2, 0, 0], sizes = [1, 8, 1], strides = [1, 1, 1]} : vector<9x8x1xf32> to vector<1x8x1xf32>
    %1014 = vector.shape_cast %1013 : vector<1x8x1xf32> to vector<8x1xf32>
    %1015 = vector.broadcast %1014 : vector<8x1xf32> to vector<8x128xf32>
    %1016 = arith.mulf %481, %1015 : vector<8x128xf32>
    %1017 = arith.addf %1012, %1016 : vector<8x128xf32>
    %1018 = vector.extract_strided_slice %1002 {offsets = [3, 0, 0], sizes = [1, 8, 1], strides = [1, 1, 1]} : vector<9x8x1xf32> to vector<1x8x1xf32>
    %1019 = vector.shape_cast %1018 : vector<1x8x1xf32> to vector<8x1xf32>
    %1020 = vector.broadcast %1019 : vector<8x1xf32> to vector<8x128xf32>
    %1021 = arith.mulf %532, %1020 : vector<8x128xf32>
    %1022 = arith.addf %1017, %1021 : vector<8x128xf32>
    %1023 = vector.extract_strided_slice %1002 {offsets = [4, 0, 0], sizes = [1, 8, 1], strides = [1, 1, 1]} : vector<9x8x1xf32> to vector<1x8x1xf32>
    %1024 = vector.shape_cast %1023 : vector<1x8x1xf32> to vector<8x1xf32>
    %1025 = vector.broadcast %1024 : vector<8x1xf32> to vector<8x128xf32>
    %1026 = arith.mulf %4, %1025 : vector<8x128xf32>
    %1027 = arith.addf %1022, %1026 : vector<8x128xf32>
    %1028 = vector.extract_strided_slice %1002 {offsets = [5, 0, 0], sizes = [1, 8, 1], strides = [1, 1, 1]} : vector<9x8x1xf32> to vector<1x8x1xf32>
    %1029 = vector.shape_cast %1028 : vector<1x8x1xf32> to vector<8x1xf32>
    %1030 = vector.broadcast %1029 : vector<8x1xf32> to vector<8x128xf32>
    %1031 = arith.mulf %557, %1030 : vector<8x128xf32>
    %1032 = arith.addf %1027, %1031 : vector<8x128xf32>
    %1033 = vector.extract_strided_slice %1002 {offsets = [6, 0, 0], sizes = [1, 8, 1], strides = [1, 1, 1]} : vector<9x8x1xf32> to vector<1x8x1xf32>
    %1034 = vector.shape_cast %1033 : vector<1x8x1xf32> to vector<8x1xf32>
    %1035 = vector.broadcast %1034 : vector<8x1xf32> to vector<8x128xf32>
    %1036 = arith.mulf %611, %1035 : vector<8x128xf32>
    %1037 = arith.addf %1032, %1036 : vector<8x128xf32>
    %1038 = vector.extract_strided_slice %1002 {offsets = [7, 0, 0], sizes = [1, 8, 1], strides = [1, 1, 1]} : vector<9x8x1xf32> to vector<1x8x1xf32>
    %1039 = vector.shape_cast %1038 : vector<1x8x1xf32> to vector<8x1xf32>
    %1040 = vector.broadcast %1039 : vector<8x1xf32> to vector<8x128xf32>
    %1041 = arith.mulf %634, %1040 : vector<8x128xf32>
    %1042 = arith.addf %1037, %1041 : vector<8x128xf32>
    %1043 = vector.extract_strided_slice %1002 {offsets = [8, 0, 0], sizes = [1, 8, 1], strides = [1, 1, 1]} : vector<9x8x1xf32> to vector<1x8x1xf32>
    %1044 = vector.shape_cast %1043 : vector<1x8x1xf32> to vector<8x1xf32>
    %1045 = vector.broadcast %1044 : vector<8x1xf32> to vector<8x128xf32>
    %1046 = arith.mulf %660, %1045 : vector<8x128xf32>
    %1047 = arith.addf %1042, %1046 : vector<8x128xf32>
    %cst_126 = arith.constant dense<0.000000e+00> : vector<8x128xf32>
    %1048 = tpu.matmul %1003, %1047, %cst_126 {dimension_numbers = #tpu.dot_dimension_numbers<[1], [0], [0], [1], [0, 0, 1, 1], [], []>} : vector<8x8xf32>, vector<8x128xf32>, vector<8x128xf32> -> vector<8x128xf32>
    %cst_127 = arith.constant dense<0.000000e+00> : vector<8xf32>
    %1049 = vector.multi_reduction <add>, %1048, %cst_127 [1] : vector<8x128xf32> to vector<8xf32>
    %1050 = vector.shape_cast %1049 : vector<8xf32> to vector<8x1xf32>
    %cst_128 = arith.constant 1.280000e+02 : f32
    %1051 = vector.broadcast %cst_128 : f32 to vector<8x1xf32>
    %1052 = arith.divf %1050, %1051 : vector<8x1xf32>
    %1053 = vector.broadcast %1052 : vector<8x1xf32> to vector<8x128xf32>
    %1054 = arith.subf %1048, %1053 : vector<8x128xf32>
    %1055 = arith.mulf %1054, %1054 : vector<8x128xf32>
    %cst_129 = arith.constant dense<0.000000e+00> : vector<8xf32>
    %1056 = vector.multi_reduction <add>, %1055, %cst_129 [1] : vector<8x128xf32> to vector<8xf32>
    %1057 = vector.shape_cast %1056 : vector<8xf32> to vector<8x1xf32>
    %cst_130 = arith.constant 1.280000e+02 : f32
    %1058 = vector.broadcast %cst_130 : f32 to vector<8x1xf32>
    %1059 = arith.divf %1057, %1058 : vector<8x1xf32>
    %1060 = vector.broadcast %1052 : vector<8x1xf32> to vector<8x128xf32>
    %1061 = arith.subf %1048, %1060 : vector<8x128xf32>
    %cst_131 = arith.constant 9.99999974E-6 : f32
    %1062 = vector.broadcast %cst_131 : f32 to vector<8x1xf32>
    %1063 = arith.addf %1059, %1062 : vector<8x1xf32>
    %1064 = math.rsqrt %1063 : vector<8x1xf32>
    %1065 = vector.broadcast %1064 : vector<8x1xf32> to vector<8x128xf32>
    %1066 = arith.mulf %1061, %1065 : vector<8x128xf32>
    %1067 = vector.broadcast %1001 : f32 to vector<8x128xf32>
    %1068 = arith.mulf %1067, %1066 : vector<8x128xf32>
    %1069 = arith.addf %1000, %1068 : vector<8x128xf32>
    %c7 = arith.constant 7 : index
    %1070 = memref.load %arg1[%c7] : memref<8xf32, #tpu.memory_space<smem>>
    %c0_132 = arith.constant 0 : index
    %c0_133 = arith.constant 0 : index
    %c0_134 = arith.constant 0 : index
    %1071 = vector.load %arg15[%c0_132, %c0_133, %c0_134] : memref<25x8x1xf32, #tpu.memory_space<vmem>>, vector<25x8x1xf32>
    %c0_135 = arith.constant 0 : index
    %c0_136 = arith.constant 0 : index
    %1072 = vector.load %arg16[%c0_135, %c0_136] : memref<8x8xf32, #tpu.memory_space<vmem>>, vector<8x8xf32>
    %c36_i32 = arith.constant 36 : i32
    %1073 = tpu.dynamic_rotate %4 by %c36_i32 dim 1 : vector<8x128xf32>, i32 -> vector<8x128xf32>
    %1074 = vector.extract_strided_slice %1 {offsets = [0, 0, 0], sizes = [1, 1, 128], strides = [1, 1, 1]} : vector<9x1x128xf32> to vector<1x1x128xf32>
    %1075 = vector.shape_cast %1074 : vector<1x1x128xf32> to vector<1x128xf32>
    %1076 = vector.extract_strided_slice %2 {offsets = [0, 0, 0], sizes = [1, 1, 128], strides = [1, 1, 1]} : vector<9x1x128xf32> to vector<1x1x128xf32>
    %1077 = vector.shape_cast %1076 : vector<1x1x128xf32> to vector<1x128xf32>
    %1078 = arith.mulf %1075, %1077 : vector<1x128xf32>
    %1079 = vector.broadcast %1078 : vector<1x128xf32> to vector<8x128xf32>
    %1080 = arith.mulf %1073, %1079 : vector<8x128xf32>
    %1081 = vector.extract_strided_slice %1071 {offsets = [0, 0, 0], sizes = [1, 8, 1], strides = [1, 1, 1]} : vector<25x8x1xf32> to vector<1x8x1xf32>
    %1082 = vector.shape_cast %1081 : vector<1x8x1xf32> to vector<8x1xf32>
    %1083 = vector.broadcast %1082 : vector<8x1xf32> to vector<8x128xf32>
    %1084 = arith.mulf %1080, %1083 : vector<8x128xf32>
    %c34_i32 = arith.constant 34 : i32
    %1085 = tpu.dynamic_rotate %4 by %c34_i32 dim 1 : vector<8x128xf32>, i32 -> vector<8x128xf32>
    %1086 = vector.extract_strided_slice %1 {offsets = [0, 0, 0], sizes = [1, 1, 128], strides = [1, 1, 1]} : vector<9x1x128xf32> to vector<1x1x128xf32>
    %1087 = vector.shape_cast %1086 : vector<1x1x128xf32> to vector<1x128xf32>
    %1088 = vector.extract_strided_slice %2 {offsets = [2, 0, 0], sizes = [1, 1, 128], strides = [1, 1, 1]} : vector<9x1x128xf32> to vector<1x1x128xf32>
    %1089 = vector.shape_cast %1088 : vector<1x1x128xf32> to vector<1x128xf32>
    %1090 = arith.mulf %1087, %1089 : vector<1x128xf32>
    %1091 = vector.broadcast %1090 : vector<1x128xf32> to vector<8x128xf32>
    %1092 = arith.mulf %1085, %1091 : vector<8x128xf32>
    %1093 = vector.extract_strided_slice %1071 {offsets = [1, 0, 0], sizes = [1, 8, 1], strides = [1, 1, 1]} : vector<25x8x1xf32> to vector<1x8x1xf32>
    %1094 = vector.shape_cast %1093 : vector<1x8x1xf32> to vector<8x1xf32>
    %1095 = vector.broadcast %1094 : vector<8x1xf32> to vector<8x128xf32>
    %1096 = arith.mulf %1092, %1095 : vector<8x128xf32>
    %1097 = arith.addf %1084, %1096 : vector<8x128xf32>
    %c32_i32 = arith.constant 32 : i32
    %1098 = tpu.dynamic_rotate %4 by %c32_i32 dim 1 : vector<8x128xf32>, i32 -> vector<8x128xf32>
    %1099 = vector.extract_strided_slice %1 {offsets = [0, 0, 0], sizes = [1, 1, 128], strides = [1, 1, 1]} : vector<9x1x128xf32> to vector<1x1x128xf32>
    %1100 = vector.shape_cast %1099 : vector<1x1x128xf32> to vector<1x128xf32>
    %1101 = vector.broadcast %1100 : vector<1x128xf32> to vector<8x128xf32>
    %1102 = arith.mulf %1098, %1101 : vector<8x128xf32>
    %1103 = vector.extract_strided_slice %1071 {offsets = [2, 0, 0], sizes = [1, 8, 1], strides = [1, 1, 1]} : vector<25x8x1xf32> to vector<1x8x1xf32>
    %1104 = vector.shape_cast %1103 : vector<1x8x1xf32> to vector<8x1xf32>
    %1105 = vector.broadcast %1104 : vector<8x1xf32> to vector<8x128xf32>
    %1106 = arith.mulf %1102, %1105 : vector<8x128xf32>
    %1107 = arith.addf %1097, %1106 : vector<8x128xf32>
    %c30_i32 = arith.constant 30 : i32
    %1108 = tpu.dynamic_rotate %4 by %c30_i32 dim 1 : vector<8x128xf32>, i32 -> vector<8x128xf32>
    %1109 = vector.extract_strided_slice %1 {offsets = [0, 0, 0], sizes = [1, 1, 128], strides = [1, 1, 1]} : vector<9x1x128xf32> to vector<1x1x128xf32>
    %1110 = vector.shape_cast %1109 : vector<1x1x128xf32> to vector<1x128xf32>
    %1111 = vector.extract_strided_slice %2 {offsets = [6, 0, 0], sizes = [1, 1, 128], strides = [1, 1, 1]} : vector<9x1x128xf32> to vector<1x1x128xf32>
    %1112 = vector.shape_cast %1111 : vector<1x1x128xf32> to vector<1x128xf32>
    %1113 = arith.mulf %1110, %1112 : vector<1x128xf32>
    %1114 = vector.broadcast %1113 : vector<1x128xf32> to vector<8x128xf32>
    %1115 = arith.mulf %1108, %1114 : vector<8x128xf32>
    %1116 = vector.extract_strided_slice %1071 {offsets = [3, 0, 0], sizes = [1, 8, 1], strides = [1, 1, 1]} : vector<25x8x1xf32> to vector<1x8x1xf32>
    %1117 = vector.shape_cast %1116 : vector<1x8x1xf32> to vector<8x1xf32>
    %1118 = vector.broadcast %1117 : vector<8x1xf32> to vector<8x128xf32>
    %1119 = arith.mulf %1115, %1118 : vector<8x128xf32>
    %1120 = arith.addf %1107, %1119 : vector<8x128xf32>
    %c28_i32 = arith.constant 28 : i32
    %1121 = tpu.dynamic_rotate %4 by %c28_i32 dim 1 : vector<8x128xf32>, i32 -> vector<8x128xf32>
    %1122 = vector.extract_strided_slice %1 {offsets = [0, 0, 0], sizes = [1, 1, 128], strides = [1, 1, 1]} : vector<9x1x128xf32> to vector<1x1x128xf32>
    %1123 = vector.shape_cast %1122 : vector<1x1x128xf32> to vector<1x128xf32>
    %1124 = vector.extract_strided_slice %2 {offsets = [8, 0, 0], sizes = [1, 1, 128], strides = [1, 1, 1]} : vector<9x1x128xf32> to vector<1x1x128xf32>
    %1125 = vector.shape_cast %1124 : vector<1x1x128xf32> to vector<1x128xf32>
    %1126 = arith.mulf %1123, %1125 : vector<1x128xf32>
    %1127 = vector.broadcast %1126 : vector<1x128xf32> to vector<8x128xf32>
    %1128 = arith.mulf %1121, %1127 : vector<8x128xf32>
    %1129 = vector.extract_strided_slice %1071 {offsets = [4, 0, 0], sizes = [1, 8, 1], strides = [1, 1, 1]} : vector<25x8x1xf32> to vector<1x8x1xf32>
    %1130 = vector.shape_cast %1129 : vector<1x8x1xf32> to vector<8x1xf32>
    %1131 = vector.broadcast %1130 : vector<8x1xf32> to vector<8x128xf32>
    %1132 = arith.mulf %1128, %1131 : vector<8x128xf32>
    %1133 = arith.addf %1120, %1132 : vector<8x128xf32>
    %c20_i32 = arith.constant 20 : i32
    %1134 = tpu.dynamic_rotate %4 by %c20_i32 dim 1 : vector<8x128xf32>, i32 -> vector<8x128xf32>
    %1135 = vector.extract_strided_slice %1 {offsets = [2, 0, 0], sizes = [1, 1, 128], strides = [1, 1, 1]} : vector<9x1x128xf32> to vector<1x1x128xf32>
    %1136 = vector.shape_cast %1135 : vector<1x1x128xf32> to vector<1x128xf32>
    %1137 = vector.extract_strided_slice %2 {offsets = [0, 0, 0], sizes = [1, 1, 128], strides = [1, 1, 1]} : vector<9x1x128xf32> to vector<1x1x128xf32>
    %1138 = vector.shape_cast %1137 : vector<1x1x128xf32> to vector<1x128xf32>
    %1139 = arith.mulf %1136, %1138 : vector<1x128xf32>
    %1140 = vector.broadcast %1139 : vector<1x128xf32> to vector<8x128xf32>
    %1141 = arith.mulf %1134, %1140 : vector<8x128xf32>
    %1142 = vector.extract_strided_slice %1071 {offsets = [5, 0, 0], sizes = [1, 8, 1], strides = [1, 1, 1]} : vector<25x8x1xf32> to vector<1x8x1xf32>
    %1143 = vector.shape_cast %1142 : vector<1x8x1xf32> to vector<8x1xf32>
    %1144 = vector.broadcast %1143 : vector<8x1xf32> to vector<8x128xf32>
    %1145 = arith.mulf %1141, %1144 : vector<8x128xf32>
    %1146 = arith.addf %1133, %1145 : vector<8x128xf32>
    %1147 = vector.extract_strided_slice %1071 {offsets = [6, 0, 0], sizes = [1, 8, 1], strides = [1, 1, 1]} : vector<25x8x1xf32> to vector<1x8x1xf32>
    %1148 = vector.shape_cast %1147 : vector<1x8x1xf32> to vector<8x1xf32>
    %1149 = vector.broadcast %1148 : vector<8x1xf32> to vector<8x128xf32>
    %1150 = arith.mulf %433, %1149 : vector<8x128xf32>
    %1151 = arith.addf %1146, %1150 : vector<8x128xf32>
    %1152 = vector.extract_strided_slice %1071 {offsets = [7, 0, 0], sizes = [1, 8, 1], strides = [1, 1, 1]} : vector<25x8x1xf32> to vector<1x8x1xf32>
    %1153 = vector.shape_cast %1152 : vector<1x8x1xf32> to vector<8x1xf32>
    %1154 = vector.broadcast %1153 : vector<8x1xf32> to vector<8x128xf32>
    %1155 = arith.mulf %455, %1154 : vector<8x128xf32>
    %1156 = arith.addf %1151, %1155 : vector<8x128xf32>
    %1157 = vector.extract_strided_slice %1071 {offsets = [8, 0, 0], sizes = [1, 8, 1], strides = [1, 1, 1]} : vector<25x8x1xf32> to vector<1x8x1xf32>
    %1158 = vector.shape_cast %1157 : vector<1x8x1xf32> to vector<8x1xf32>
    %1159 = vector.broadcast %1158 : vector<8x1xf32> to vector<8x128xf32>
    %1160 = arith.mulf %481, %1159 : vector<8x128xf32>
    %1161 = arith.addf %1156, %1160 : vector<8x128xf32>
    %c12_i32 = arith.constant 12 : i32
    %1162 = tpu.dynamic_rotate %4 by %c12_i32 dim 1 : vector<8x128xf32>, i32 -> vector<8x128xf32>
    %1163 = vector.extract_strided_slice %1 {offsets = [2, 0, 0], sizes = [1, 1, 128], strides = [1, 1, 1]} : vector<9x1x128xf32> to vector<1x1x128xf32>
    %1164 = vector.shape_cast %1163 : vector<1x1x128xf32> to vector<1x128xf32>
    %1165 = vector.extract_strided_slice %2 {offsets = [8, 0, 0], sizes = [1, 1, 128], strides = [1, 1, 1]} : vector<9x1x128xf32> to vector<1x1x128xf32>
    %1166 = vector.shape_cast %1165 : vector<1x1x128xf32> to vector<1x128xf32>
    %1167 = arith.mulf %1164, %1166 : vector<1x128xf32>
    %1168 = vector.broadcast %1167 : vector<1x128xf32> to vector<8x128xf32>
    %1169 = arith.mulf %1162, %1168 : vector<8x128xf32>
    %1170 = vector.extract_strided_slice %1071 {offsets = [9, 0, 0], sizes = [1, 8, 1], strides = [1, 1, 1]} : vector<25x8x1xf32> to vector<1x8x1xf32>
    %1171 = vector.shape_cast %1170 : vector<1x8x1xf32> to vector<8x1xf32>
    %1172 = vector.broadcast %1171 : vector<8x1xf32> to vector<8x128xf32>
    %1173 = arith.mulf %1169, %1172 : vector<8x128xf32>
    %1174 = arith.addf %1161, %1173 : vector<8x128xf32>
    %c4_i32 = arith.constant 4 : i32
    %1175 = tpu.dynamic_rotate %4 by %c4_i32 dim 1 : vector<8x128xf32>, i32 -> vector<8x128xf32>
    %1176 = vector.extract_strided_slice %2 {offsets = [0, 0, 0], sizes = [1, 1, 128], strides = [1, 1, 1]} : vector<9x1x128xf32> to vector<1x1x128xf32>
    %1177 = vector.shape_cast %1176 : vector<1x1x128xf32> to vector<1x128xf32>
    %1178 = vector.broadcast %1177 : vector<1x128xf32> to vector<8x128xf32>
    %1179 = arith.mulf %1175, %1178 : vector<8x128xf32>
    %1180 = vector.extract_strided_slice %1071 {offsets = [10, 0, 0], sizes = [1, 8, 1], strides = [1, 1, 1]} : vector<25x8x1xf32> to vector<1x8x1xf32>
    %1181 = vector.shape_cast %1180 : vector<1x8x1xf32> to vector<8x1xf32>
    %1182 = vector.broadcast %1181 : vector<8x1xf32> to vector<8x128xf32>
    %1183 = arith.mulf %1179, %1182 : vector<8x128xf32>
    %1184 = arith.addf %1174, %1183 : vector<8x128xf32>
    %1185 = vector.extract_strided_slice %1071 {offsets = [11, 0, 0], sizes = [1, 8, 1], strides = [1, 1, 1]} : vector<25x8x1xf32> to vector<1x8x1xf32>
    %1186 = vector.shape_cast %1185 : vector<1x8x1xf32> to vector<8x1xf32>
    %1187 = vector.broadcast %1186 : vector<8x1xf32> to vector<8x128xf32>
    %1188 = arith.mulf %532, %1187 : vector<8x128xf32>
    %1189 = arith.addf %1184, %1188 : vector<8x128xf32>
    %1190 = vector.extract_strided_slice %1071 {offsets = [12, 0, 0], sizes = [1, 8, 1], strides = [1, 1, 1]} : vector<25x8x1xf32> to vector<1x8x1xf32>
    %1191 = vector.shape_cast %1190 : vector<1x8x1xf32> to vector<8x1xf32>
    %1192 = vector.broadcast %1191 : vector<8x1xf32> to vector<8x128xf32>
    %1193 = arith.mulf %4, %1192 : vector<8x128xf32>
    %1194 = arith.addf %1189, %1193 : vector<8x128xf32>
    %1195 = vector.extract_strided_slice %1071 {offsets = [13, 0, 0], sizes = [1, 8, 1], strides = [1, 1, 1]} : vector<25x8x1xf32> to vector<1x8x1xf32>
    %1196 = vector.shape_cast %1195 : vector<1x8x1xf32> to vector<8x1xf32>
    %1197 = vector.broadcast %1196 : vector<8x1xf32> to vector<8x128xf32>
    %1198 = arith.mulf %557, %1197 : vector<8x128xf32>
    %1199 = arith.addf %1194, %1198 : vector<8x128xf32>
    %c124_i32 = arith.constant 124 : i32
    %1200 = tpu.dynamic_rotate %4 by %c124_i32 dim 1 : vector<8x128xf32>, i32 -> vector<8x128xf32>
    %1201 = vector.extract_strided_slice %2 {offsets = [8, 0, 0], sizes = [1, 1, 128], strides = [1, 1, 1]} : vector<9x1x128xf32> to vector<1x1x128xf32>
    %1202 = vector.shape_cast %1201 : vector<1x1x128xf32> to vector<1x128xf32>
    %1203 = vector.broadcast %1202 : vector<1x128xf32> to vector<8x128xf32>
    %1204 = arith.mulf %1200, %1203 : vector<8x128xf32>
    %1205 = vector.extract_strided_slice %1071 {offsets = [14, 0, 0], sizes = [1, 8, 1], strides = [1, 1, 1]} : vector<25x8x1xf32> to vector<1x8x1xf32>
    %1206 = vector.shape_cast %1205 : vector<1x8x1xf32> to vector<8x1xf32>
    %1207 = vector.broadcast %1206 : vector<8x1xf32> to vector<8x128xf32>
    %1208 = arith.mulf %1204, %1207 : vector<8x128xf32>
    %1209 = arith.addf %1199, %1208 : vector<8x128xf32>
    %c116_i32 = arith.constant 116 : i32
    %1210 = tpu.dynamic_rotate %4 by %c116_i32 dim 1 : vector<8x128xf32>, i32 -> vector<8x128xf32>
    %1211 = vector.extract_strided_slice %1 {offsets = [6, 0, 0], sizes = [1, 1, 128], strides = [1, 1, 1]} : vector<9x1x128xf32> to vector<1x1x128xf32>
    %1212 = vector.shape_cast %1211 : vector<1x1x128xf32> to vector<1x128xf32>
    %1213 = vector.extract_strided_slice %2 {offsets = [0, 0, 0], sizes = [1, 1, 128], strides = [1, 1, 1]} : vector<9x1x128xf32> to vector<1x1x128xf32>
    %1214 = vector.shape_cast %1213 : vector<1x1x128xf32> to vector<1x128xf32>
    %1215 = arith.mulf %1212, %1214 : vector<1x128xf32>
    %1216 = vector.broadcast %1215 : vector<1x128xf32> to vector<8x128xf32>
    %1217 = arith.mulf %1210, %1216 : vector<8x128xf32>
    %1218 = vector.extract_strided_slice %1071 {offsets = [15, 0, 0], sizes = [1, 8, 1], strides = [1, 1, 1]} : vector<25x8x1xf32> to vector<1x8x1xf32>
    %1219 = vector.shape_cast %1218 : vector<1x8x1xf32> to vector<8x1xf32>
    %1220 = vector.broadcast %1219 : vector<8x1xf32> to vector<8x128xf32>
    %1221 = arith.mulf %1217, %1220 : vector<8x128xf32>
    %1222 = arith.addf %1209, %1221 : vector<8x128xf32>
    %1223 = vector.extract_strided_slice %1071 {offsets = [16, 0, 0], sizes = [1, 8, 1], strides = [1, 1, 1]} : vector<25x8x1xf32> to vector<1x8x1xf32>
    %1224 = vector.shape_cast %1223 : vector<1x8x1xf32> to vector<8x1xf32>
    %1225 = vector.broadcast %1224 : vector<8x1xf32> to vector<8x128xf32>
    %1226 = arith.mulf %611, %1225 : vector<8x128xf32>
    %1227 = arith.addf %1222, %1226 : vector<8x128xf32>
    %1228 = vector.extract_strided_slice %1071 {offsets = [17, 0, 0], sizes = [1, 8, 1], strides = [1, 1, 1]} : vector<25x8x1xf32> to vector<1x8x1xf32>
    %1229 = vector.shape_cast %1228 : vector<1x8x1xf32> to vector<8x1xf32>
    %1230 = vector.broadcast %1229 : vector<8x1xf32> to vector<8x128xf32>
    %1231 = arith.mulf %634, %1230 : vector<8x128xf32>
    %1232 = arith.addf %1227, %1231 : vector<8x128xf32>
    %1233 = vector.extract_strided_slice %1071 {offsets = [18, 0, 0], sizes = [1, 8, 1], strides = [1, 1, 1]} : vector<25x8x1xf32> to vector<1x8x1xf32>
    %1234 = vector.shape_cast %1233 : vector<1x8x1xf32> to vector<8x1xf32>
    %1235 = vector.broadcast %1234 : vector<8x1xf32> to vector<8x128xf32>
    %1236 = arith.mulf %660, %1235 : vector<8x128xf32>
    %1237 = arith.addf %1232, %1236 : vector<8x128xf32>
    %c108_i32 = arith.constant 108 : i32
    %1238 = tpu.dynamic_rotate %4 by %c108_i32 dim 1 : vector<8x128xf32>, i32 -> vector<8x128xf32>
    %1239 = vector.extract_strided_slice %1 {offsets = [6, 0, 0], sizes = [1, 1, 128], strides = [1, 1, 1]} : vector<9x1x128xf32> to vector<1x1x128xf32>
    %1240 = vector.shape_cast %1239 : vector<1x1x128xf32> to vector<1x128xf32>
    %1241 = vector.extract_strided_slice %2 {offsets = [8, 0, 0], sizes = [1, 1, 128], strides = [1, 1, 1]} : vector<9x1x128xf32> to vector<1x1x128xf32>
    %1242 = vector.shape_cast %1241 : vector<1x1x128xf32> to vector<1x128xf32>
    %1243 = arith.mulf %1240, %1242 : vector<1x128xf32>
    %1244 = vector.broadcast %1243 : vector<1x128xf32> to vector<8x128xf32>
    %1245 = arith.mulf %1238, %1244 : vector<8x128xf32>
    %1246 = vector.extract_strided_slice %1071 {offsets = [19, 0, 0], sizes = [1, 8, 1], strides = [1, 1, 1]} : vector<25x8x1xf32> to vector<1x8x1xf32>
    %1247 = vector.shape_cast %1246 : vector<1x8x1xf32> to vector<8x1xf32>
    %1248 = vector.broadcast %1247 : vector<8x1xf32> to vector<8x128xf32>
    %1249 = arith.mulf %1245, %1248 : vector<8x128xf32>
    %1250 = arith.addf %1237, %1249 : vector<8x128xf32>
    %c100_i32 = arith.constant 100 : i32
    %1251 = tpu.dynamic_rotate %4 by %c100_i32 dim 1 : vector<8x128xf32>, i32 -> vector<8x128xf32>
    %1252 = vector.extract_strided_slice %1 {offsets = [8, 0, 0], sizes = [1, 1, 128], strides = [1, 1, 1]} : vector<9x1x128xf32> to vector<1x1x128xf32>
    %1253 = vector.shape_cast %1252 : vector<1x1x128xf32> to vector<1x128xf32>
    %1254 = vector.extract_strided_slice %2 {offsets = [0, 0, 0], sizes = [1, 1, 128], strides = [1, 1, 1]} : vector<9x1x128xf32> to vector<1x1x128xf32>
    %1255 = vector.shape_cast %1254 : vector<1x1x128xf32> to vector<1x128xf32>
    %1256 = arith.mulf %1253, %1255 : vector<1x128xf32>
    %1257 = vector.broadcast %1256 : vector<1x128xf32> to vector<8x128xf32>
    %1258 = arith.mulf %1251, %1257 : vector<8x128xf32>
    %1259 = vector.extract_strided_slice %1071 {offsets = [20, 0, 0], sizes = [1, 8, 1], strides = [1, 1, 1]} : vector<25x8x1xf32> to vector<1x8x1xf32>
    %1260 = vector.shape_cast %1259 : vector<1x8x1xf32> to vector<8x1xf32>
    %1261 = vector.broadcast %1260 : vector<8x1xf32> to vector<8x128xf32>
    %1262 = arith.mulf %1258, %1261 : vector<8x128xf32>
    %1263 = arith.addf %1250, %1262 : vector<8x128xf32>
    %c98_i32 = arith.constant 98 : i32
    %1264 = tpu.dynamic_rotate %4 by %c98_i32 dim 1 : vector<8x128xf32>, i32 -> vector<8x128xf32>
    %1265 = vector.extract_strided_slice %1 {offsets = [8, 0, 0], sizes = [1, 1, 128], strides = [1, 1, 1]} : vector<9x1x128xf32> to vector<1x1x128xf32>
    %1266 = vector.shape_cast %1265 : vector<1x1x128xf32> to vector<1x128xf32>
    %1267 = vector.extract_strided_slice %2 {offsets = [2, 0, 0], sizes = [1, 1, 128], strides = [1, 1, 1]} : vector<9x1x128xf32> to vector<1x1x128xf32>
    %1268 = vector.shape_cast %1267 : vector<1x1x128xf32> to vector<1x128xf32>
    %1269 = arith.mulf %1266, %1268 : vector<1x128xf32>
    %1270 = vector.broadcast %1269 : vector<1x128xf32> to vector<8x128xf32>
    %1271 = arith.mulf %1264, %1270 : vector<8x128xf32>
    %1272 = vector.extract_strided_slice %1071 {offsets = [21, 0, 0], sizes = [1, 8, 1], strides = [1, 1, 1]} : vector<25x8x1xf32> to vector<1x8x1xf32>
    %1273 = vector.shape_cast %1272 : vector<1x8x1xf32> to vector<8x1xf32>
    %1274 = vector.broadcast %1273 : vector<8x1xf32> to vector<8x128xf32>
    %1275 = arith.mulf %1271, %1274 : vector<8x128xf32>
    %1276 = arith.addf %1263, %1275 : vector<8x128xf32>
    %c96_i32 = arith.constant 96 : i32
    %1277 = tpu.dynamic_rotate %4 by %c96_i32 dim 1 : vector<8x128xf32>, i32 -> vector<8x128xf32>
    %1278 = vector.extract_strided_slice %1 {offsets = [8, 0, 0], sizes = [1, 1, 128], strides = [1, 1, 1]} : vector<9x1x128xf32> to vector<1x1x128xf32>
    %1279 = vector.shape_cast %1278 : vector<1x1x128xf32> to vector<1x128xf32>
    %1280 = vector.broadcast %1279 : vector<1x128xf32> to vector<8x128xf32>
    %1281 = arith.mulf %1277, %1280 : vector<8x128xf32>
    %1282 = vector.extract_strided_slice %1071 {offsets = [22, 0, 0], sizes = [1, 8, 1], strides = [1, 1, 1]} : vector<25x8x1xf32> to vector<1x8x1xf32>
    %1283 = vector.shape_cast %1282 : vector<1x8x1xf32> to vector<8x1xf32>
    %1284 = vector.broadcast %1283 : vector<8x1xf32> to vector<8x128xf32>
    %1285 = arith.mulf %1281, %1284 : vector<8x128xf32>
    %1286 = arith.addf %1276, %1285 : vector<8x128xf32>
    %c94_i32 = arith.constant 94 : i32
    %1287 = tpu.dynamic_rotate %4 by %c94_i32 dim 1 : vector<8x128xf32>, i32 -> vector<8x128xf32>
    %1288 = vector.extract_strided_slice %1 {offsets = [8, 0, 0], sizes = [1, 1, 128], strides = [1, 1, 1]} : vector<9x1x128xf32> to vector<1x1x128xf32>
    %1289 = vector.shape_cast %1288 : vector<1x1x128xf32> to vector<1x128xf32>
    %1290 = vector.extract_strided_slice %2 {offsets = [6, 0, 0], sizes = [1, 1, 128], strides = [1, 1, 1]} : vector<9x1x128xf32> to vector<1x1x128xf32>
    %1291 = vector.shape_cast %1290 : vector<1x1x128xf32> to vector<1x128xf32>
    %1292 = arith.mulf %1289, %1291 : vector<1x128xf32>
    %1293 = vector.broadcast %1292 : vector<1x128xf32> to vector<8x128xf32>
    %1294 = arith.mulf %1287, %1293 : vector<8x128xf32>
    %1295 = vector.extract_strided_slice %1071 {offsets = [23, 0, 0], sizes = [1, 8, 1], strides = [1, 1, 1]} : vector<25x8x1xf32> to vector<1x8x1xf32>
    %1296 = vector.shape_cast %1295 : vector<1x8x1xf32> to vector<8x1xf32>
    %1297 = vector.broadcast %1296 : vector<8x1xf32> to vector<8x128xf32>
    %1298 = arith.mulf %1294, %1297 : vector<8x128xf32>
    %1299 = arith.addf %1286, %1298 : vector<8x128xf32>
    %c92_i32 = arith.constant 92 : i32
    %1300 = tpu.dynamic_rotate %4 by %c92_i32 dim 1 : vector<8x128xf32>, i32 -> vector<8x128xf32>
    %1301 = vector.extract_strided_slice %1 {offsets = [8, 0, 0], sizes = [1, 1, 128], strides = [1, 1, 1]} : vector<9x1x128xf32> to vector<1x1x128xf32>
    %1302 = vector.shape_cast %1301 : vector<1x1x128xf32> to vector<1x128xf32>
    %1303 = vector.extract_strided_slice %2 {offsets = [8, 0, 0], sizes = [1, 1, 128], strides = [1, 1, 1]} : vector<9x1x128xf32> to vector<1x1x128xf32>
    %1304 = vector.shape_cast %1303 : vector<1x1x128xf32> to vector<1x128xf32>
    %1305 = arith.mulf %1302, %1304 : vector<1x128xf32>
    %1306 = vector.broadcast %1305 : vector<1x128xf32> to vector<8x128xf32>
    %1307 = arith.mulf %1300, %1306 : vector<8x128xf32>
    %1308 = vector.extract_strided_slice %1071 {offsets = [24, 0, 0], sizes = [1, 8, 1], strides = [1, 1, 1]} : vector<25x8x1xf32> to vector<1x8x1xf32>
    %1309 = vector.shape_cast %1308 : vector<1x8x1xf32> to vector<8x1xf32>
    %1310 = vector.broadcast %1309 : vector<8x1xf32> to vector<8x128xf32>
    %1311 = arith.mulf %1307, %1310 : vector<8x128xf32>
    %1312 = arith.addf %1299, %1311 : vector<8x128xf32>
    %cst_137 = arith.constant dense<0.000000e+00> : vector<8x128xf32>
    %1313 = tpu.matmul %1072, %1312, %cst_137 {dimension_numbers = #tpu.dot_dimension_numbers<[1], [0], [0], [1], [0, 0, 1, 1], [], []>} : vector<8x8xf32>, vector<8x128xf32>, vector<8x128xf32> -> vector<8x128xf32>
    %cst_138 = arith.constant dense<0.000000e+00> : vector<8xf32>
    %1314 = vector.multi_reduction <add>, %1313, %cst_138 [1] : vector<8x128xf32> to vector<8xf32>
    %1315 = vector.shape_cast %1314 : vector<8xf32> to vector<8x1xf32>
    %cst_139 = arith.constant 1.280000e+02 : f32
    %1316 = vector.broadcast %cst_139 : f32 to vector<8x1xf32>
    %1317 = arith.divf %1315, %1316 : vector<8x1xf32>
    %1318 = vector.broadcast %1317 : vector<8x1xf32> to vector<8x128xf32>
    %1319 = arith.subf %1313, %1318 : vector<8x128xf32>
    %1320 = arith.mulf %1319, %1319 : vector<8x128xf32>
    %cst_140 = arith.constant dense<0.000000e+00> : vector<8xf32>
    %1321 = vector.multi_reduction <add>, %1320, %cst_140 [1] : vector<8x128xf32> to vector<8xf32>
    %1322 = vector.shape_cast %1321 : vector<8xf32> to vector<8x1xf32>
    %cst_141 = arith.constant 1.280000e+02 : f32
    %1323 = vector.broadcast %cst_141 : f32 to vector<8x1xf32>
    %1324 = arith.divf %1322, %1323 : vector<8x1xf32>
    %1325 = vector.broadcast %1317 : vector<8x1xf32> to vector<8x128xf32>
    %1326 = arith.subf %1313, %1325 : vector<8x128xf32>
    %cst_142 = arith.constant 9.99999974E-6 : f32
    %1327 = vector.broadcast %cst_142 : f32 to vector<8x1xf32>
    %1328 = arith.addf %1324, %1327 : vector<8x1xf32>
    %1329 = math.rsqrt %1328 : vector<8x1xf32>
    %1330 = vector.broadcast %1329 : vector<8x1xf32> to vector<8x128xf32>
    %1331 = arith.mulf %1326, %1330 : vector<8x128xf32>
    %1332 = vector.broadcast %1070 : f32 to vector<8x128xf32>
    %1333 = arith.mulf %1332, %1331 : vector<8x128xf32>
    %1334 = arith.addf %1069, %1333 : vector<8x128xf32>
    %c0_143 = arith.constant 0 : index
    %c0_144 = arith.constant 0 : index
    %1335 = vector.load %arg17[%c0_143, %c0_144] : memref<8x128xf32, #tpu.memory_space<vmem>>, vector<8x128xf32>
    %1336 = arith.addf %1334, %1335 : vector<8x128xf32>
    %c0_145 = arith.constant 0 : index
    %c0_146 = arith.constant 0 : index
    %1337 = vector.load %arg18[%c0_145, %c0_146] : memref<8x128xf32, #tpu.memory_space<vmem>>, vector<8x128xf32>
    tpu.vector_store %arg18[%c0_145, %c0_146], %1336 {strides = array<i32>} : memref<8x128xf32, #tpu.memory_space<vmem>>, vector<8x128xf32>,
    return
  }
  func.func @transform_0(%arg0: i32) -> i32 {
    %c0_i32 = arith.constant 0 : i32
    %c0_i32_0 = arith.constant 0 : i32
    return %c0_i32 : i32
  }
  func.func @transform_1(%arg0: i32) -> (i32, i32, i32) {
    %c0_i32 = arith.constant 0 : i32
    %c0_i32_0 = arith.constant 0 : i32
    %c0_i32_1 = arith.constant 0 : i32
    %c0_i32_2 = arith.constant 0 : i32
    return %c0_i32, %c0_i32_0, %c0_i32_1 : i32, i32, i32
  }
  func.func @transform_2(%arg0: i32) -> (i32, i32, i32) {
    %c0_i32 = arith.constant 0 : i32
    %c0_i32_0 = arith.constant 0 : i32
    %c0_i32_1 = arith.constant 0 : i32
    %c0_i32_2 = arith.constant 0 : i32
    return %c0_i32, %c0_i32_0, %c0_i32_1 : i32, i32, i32
  }
  func.func @transform_3(%arg0: i32) -> (i32, i32) {
    %c0_i32 = arith.constant 0 : i32
    %c0_i32_0 = arith.constant 0 : i32
    %c0_i32_1 = arith.constant 0 : i32
    return %c0_i32, %c0_i32_0 : i32, i32
  }
  func.func @transform_4(%arg0: i32) -> (i32, i32, i32) {
    %c0_i32 = arith.constant 0 : i32
    %c0_i32_0 = arith.constant 0 : i32
    %c0_i32_1 = arith.constant 0 : i32
    %c0_i32_2 = arith.constant 0 : i32
    return %c0_i32, %c0_i32_0, %c0_i32_1 : i32, i32, i32
  }
  func.func @transform_5(%arg0: i32) -> (i32, i32) {
    %c0_i32 = arith.constant 0 : i32
    %c0_i32_0 = arith.constant 0 : i32
    %c0_i32_1 = arith.constant 0 : i32
    return %c0_i32, %c0_i32_0 : i32, i32
  }
  func.func @transform_6(%arg0: i32) -> (i32, i32, i32) {
    %c0_i32 = arith.constant 0 : i32
    %c0_i32_0 = arith.constant 0 : i32
    %c0_i32_1 = arith.constant 0 : i32
    %c0_i32_2 = arith.constant 0 : i32
    return %c0_i32, %c0_i32_0, %c0_i32_1 : i32, i32, i32
  }
  func.func @transform_7(%arg0: i32) -> (i32, i32) {
    %c0_i32 = arith.constant 0 : i32
    %c0_i32_0 = arith.constant 0 : i32
    %c0_i32_1 = arith.constant 0 : i32
    return %c0_i32, %c0_i32_0 : i32, i32
  }
  func.func @transform_8(%arg0: i32) -> (i32, i32, i32) {
    %c0_i32 = arith.constant 0 : i32
    %c0_i32_0 = arith.constant 0 : i32
    %c0_i32_1 = arith.constant 0 : i32
    %c0_i32_2 = arith.constant 0 : i32
    return %c0_i32, %c0_i32_0, %c0_i32_1 : i32, i32, i32
  }
  func.func @transform_9(%arg0: i32) -> (i32, i32) {
    %c0_i32 = arith.constant 0 : i32
    %c0_i32_0 = arith.constant 0 : i32
    %c0_i32_1 = arith.constant 0 : i32
    return %c0_i32, %c0_i32_0 : i32, i32
  }
  func.func @transform_10(%arg0: i32) -> (i32, i32, i32) {
    %c0_i32 = arith.constant 0 : i32
    %c0_i32_0 = arith.constant 0 : i32
    %c0_i32_1 = arith.constant 0 : i32
    %c0_i32_2 = arith.constant 0 : i32
    return %c0_i32, %c0_i32_0, %c0_i32_1 : i32, i32, i32
  }
  func.func @transform_11(%arg0: i32) -> (i32, i32) {
    %c0_i32 = arith.constant 0 : i32
    %c0_i32_0 = arith.constant 0 : i32
    %c0_i32_1 = arith.constant 0 : i32
    return %c0_i32, %c0_i32_0 : i32, i32
  }
  func.func @transform_12(%arg0: i32) -> (i32, i32, i32) {
    %c0_i32 = arith.constant 0 : i32
    %c0_i32_0 = arith.constant 0 : i32
    %c0_i32_1 = arith.constant 0 : i32
    %c0_i32_2 = arith.constant 0 : i32
    return %c0_i32, %c0_i32_0, %c0_i32_1 : i32, i32, i32
  }
  func.func @transform_13(%arg0: i32) -> (i32, i32) {
    %c0_i32 = arith.constant 0 : i32
    %c0_i32_0 = arith.constant 0 : i32
    %c0_i32_1 = arith.constant 0 : i32
    return %c0_i32, %c0_i32_0 : i32, i32
  }
  func.func @transform_14(%arg0: i32) -> (i32, i32, i32) {
    %c0_i32 = arith.constant 0 : i32
    %c0_i32_0 = arith.constant 0 : i32
    %c0_i32_1 = arith.constant 0 : i32
    %c0_i32_2 = arith.constant 0 : i32
    return %c0_i32, %c0_i32_0, %c0_i32_1 : i32, i32, i32
  }
  func.func @transform_15(%arg0: i32) -> (i32, i32) {
    %c0_i32 = arith.constant 0 : i32
    %c0_i32_0 = arith.constant 0 : i32
    %c0_i32_1 = arith.constant 0 : i32
    return %c0_i32, %c0_i32_0 : i32, i32
  }
  func.func @transform_16(%arg0: i32) -> (i32, i32) {
    %c0_i32 = arith.constant 0 : i32
    %c0_i32_0 = arith.constant 0 : i32
    %c0_i32_1 = arith.constant 0 : i32
    return %c0_i32, %c0_i32_0 : i32, i32
  }
  func.func @transform_17(%arg0: i32) -> (i32, i32) {
    %c0_i32 = arith.constant 0 : i32
    %c0_i32_0 = arith.constant 0 : i32
    %c0_i32_1 = arith.constant 0 : i32
    return %c0_i32, %c0_i32_0 : i32, i32
  }
}

</mosaic_0001>

<llo_original>
// kernel: cell_forward.6
$region0: #{cell_forward.6}
  #allocation0 [shape = 'u32[]', space=smem, size = 0x4, offset = 0x4, fixed_abs, tag = 'smem constant byte address 0x4 - core index']
  #allocation1 [shape = 'u32[72,128]{1,0:T(1,128)}', space=vmem, size = 0x9000, scoped, tag = 'internal scratch']
  %s0 = inlined_call_operand.vmem [shape: f32[8,128], index: 0, kind: input, shape index: {}]
  %s1 = inlined_call_operand.vmem [shape: f32[8,8], index: 1, kind: input, shape index: {}]
  %s2 = inlined_call_operand.vmem [shape: f32[8,128], index: 2, kind: input, shape index: {}]
  %s3 = inlined_call_operand.vmem [shape: f32[8,8], index: 3, kind: input, shape index: {}]
  %s4 = inlined_call_operand.vmem [shape: f32[8,128], index: 4, kind: output, shape index: {0}]
  %s5 = inlined_call_operand.vmem [shape: f32[8,128], index: 5, kind: output, shape index: {1}]
  %6 = xla_tuple %s4, %s5
  %s7 = sld [smem:[#allocation0]]
  $region34: #{cell_forward.6} parent=0
    _
  %s9 = ssub.s32 1, %s7
  %s10 = scalar_select 0, %s9, %s7
  // Predicated region
  $region2: #{cell_forward.6} parent=0 // pred_check
    _
  $region3: #{cell_forward.6} parent=0 // pred_check_branch
    %12 = sbr.rel (0) target = $region5
  $region4: #{cell_forward.6} parent=0 // pred_region
    _
  $region5: #{cell_forward.6} parent=0 // pred_fallthru
    _
  // Predicated region
  $region6: #{cell_forward.6} parent=0 // pred_check
    _
  $region7: #{cell_forward.6} parent=0 // pred_check_branch
    %14 = sbr.rel (0) target = $region9
  $region8: #{cell_forward.6} parent=0 // pred_region
    _
  $region9: #{cell_forward.6} parent=0 // pred_fallthru
    _
  // Predicated region
  $region10: #{cell_forward.6} parent=0 // pred_check
    _
  $region11: #{cell_forward.6} parent=0 // pred_check_branch
    %16 = sbr.rel (0) target = $region13
  $region12: #{cell_forward.6} parent=0 // pred_region
    _
  $region13: #{cell_forward.6} parent=0 // pred_fallthru
    _
  // Predicated region
  $region14: #{cell_forward.6} parent=0 // pred_check
    _
  $region15: #{cell_forward.6} parent=0 // pred_check_branch
    %18 = sbr.rel (0) target = $region17
  $region16: #{cell_forward.6} parent=0 // pred_region
    _
  $region17: #{cell_forward.6} parent=0 // pred_fallthru
    _
  %v19 = vld [vmem:[%s1] sm:$0xff]
  %v20 = vld [vmem:[%s0] sm:$0xff]
  %v21 = vmax.f32 %v20, 0.0
  %vm22 = vcmask 64512
  %v24 = vsel %vm22, %v19, 0
  %26 = vmatpush.msra.mxu0 0.0
  %27 = vmatpush.msra.mxu0 0.0
  %28 = vmatpush.msra.mxu0 0.0
  %29 = vmatpush.msra.mxu0 0.0
  %30 = vmatpush.msra.mxu0 0.0
  %31 = vmatpush.msra.mxu0 0.0
  %32 = vmatpush.msra.mxu0 0.0
  %33 = vmatpush.msra.mxu0 0.0
  %34 = vmatpush.msra.mxu0 0.0
  %35 = vmatpush.msra.mxu0 0.0
  %36 = vmatpush.msra.mxu0 0.0
  %37 = vmatpush.msra.mxu0 0.0
  %38 = vmatpush.msra.mxu0 0.0
  %39 = vmatpush.msra.mxu0 0.0
  %40 = vmatpush.msra.mxu0 0.0
  %41 = vmatpush.msra.mxu0 %v21
  %42 = vmatmul.f32.gmra.mxu0 %v24
  %v43 = vpop.f32.mrf.mxu0
  %v44 = vadd.f32 0.0, %v43
  %45 = vdwg.mxu0
  %46 = vadd.xlane.f32.xlu0 %v44
  %v47 = vpop.xlane.xlu0 %46
  %v48 = vrcp.pop 128.0
  %v49 = vmul.f32 128.0, %v48
  %v50 = vsub.f32 1.0, %v49
  %v51 = vmul.f32 %v48, %v50
  %v52 = vadd.f32 %v48, %v51
  %vm53 = vweird.f32 %v48
  %v54 = vsel %vm53, %v48, %v52
  %v55 = vmul.f32 %v47, %v54
  %v56 = vsub.f32 %v44, %v55
  %v57 = vmul.f32 %v56, %v56
  %58 = vadd.xlane.f32.xlu0 %v57
  %v59 = vpop.xlane.xlu0 %58
  %v60 = vmul.f32 %v59, %v54
  %v61 = vadd.f32 %v60, 1e-05
  %v62 = vrsqrt.pop %v61
  %v63 = vmul.f32 %v62, %v61
  %v64 = vmul.f32 %v63, %v62
  %v65 = vmul.f32 0.5, %v64
  %v66 = vsub.f32 1.5, %v65
  %v67 = vmul.f32 %v62, %v66
  %vm68 = vweird.f32 %v61
  %vm69 = vweird.f32 %v62
  %vm70 = vmor %vm68, %vm69
  %v71 = vsel %vm70, %v62, %v67
  %v72 = vmul.f32 %v56, %v71
  %73 = vst [vmem:[%s4] sm:$0xff] %v72
  %v74 = vld [vmem:[%s3] sm:$0xff]
  %v75 = vld [vmem:[%s2] sm:$0xff]
  %v76 = vmax.f32 %v75, 0.0
  %v78 = vsel %vm22, %v74, 0
  %80 = vmatpush.msra.mxu0 0.0
  %81 = vmatpush.msra.mxu0 0.0
  %82 = vmatpush.msra.mxu0 0.0
  %83 = vmatpush.msra.mxu0 0.0
  %84 = vmatpush.msra.mxu0 0.0
  %85 = vmatpush.msra.mxu0 0.0
  %86 = vmatpush.msra.mxu0 0.0
  %87 = vmatpush.msra.mxu0 0.0
  %88 = vmatpush.msra.mxu0 0.0
  %89 = vmatpush.msra.mxu0 0.0
  %90 = vmatpush.msra.mxu0 0.0
  %91 = vmatpush.msra.mxu0 0.0
  %92 = vmatpush.msra.mxu0 0.0
  %93 = vmatpush.msra.mxu0 0.0
  %94 = vmatpush.msra.mxu0 0.0
  %95 = vmatpush.msra.mxu0 %v76
  %96 = vmatmul.f32.gmra.mxu0 %v78
  %v97 = vpop.f32.mrf.mxu0
  %v98 = vadd.f32 0.0, %v97
  %99 = vdwg.mxu0
  %100 = vadd.xlane.f32.xlu0 %v98
  %v101 = vpop.xlane.xlu0 %100
  %v102 = vmul.f32 %v101, %v54
  %v103 = vsub.f32 %v98, %v102
  %v104 = vmul.f32 %v103, %v103
  %105 = vadd.xlane.f32.xlu0 %v104
  %v106 = vpop.xlane.xlu0 %105
  %v107 = vmul.f32 %v106, %v54
  %v108 = vadd.f32 %v107, 1e-05
  %v109 = vrsqrt.pop %v108
  %v110 = vmul.f32 %v109, %v108
  %v111 = vmul.f32 %v110, %v109
  %v112 = vmul.f32 0.5, %v111
  %v113 = vsub.f32 1.5, %v112
  %v114 = vmul.f32 %v109, %v113
  %vm115 = vweird.f32 %v108
  %vm116 = vweird.f32 %v109
  %vm117 = vmor %vm115, %vm116
  %v118 = vsel %vm117, %v109, %v114
  %v119 = vmul.f32 %v103, %v118
  %120 = vst [vmem:[%s5] sm:$0xff] %v119
  // Predicated region
  $region18: #{cell_forward.6} parent=0 // pred_check
    _
  $region19: #{cell_forward.6} parent=0 // pred_check_branch
    %122 = sbr.rel (0) target = $region21
  $region20: #{cell_forward.6} parent=0 // pred_region
    _
  $region21: #{cell_forward.6} parent=0 // pred_fallthru
    _
  // Predicated region
  $region22: #{cell_forward.6} parent=0 // pred_check
    _
  $region23: #{cell_forward.6} parent=0 // pred_check_branch
    %124 = sbr.rel (0) target = $region25
  $region24: #{cell_forward.6} parent=0 // pred_region
    _
  $region25: #{cell_forward.6} parent=0 // pred_fallthru
    _
  // Predicated region
  $region26: #{cell_forward.6} parent=0 // pred_check
    _
  $region27: #{cell_forward.6} parent=0 // pred_check_branch
    %126 = sbr.rel (0) target = $region29
  $region28: #{cell_forward.6} parent=0 // pred_region
    _
  $region29: #{cell_forward.6} parent=0 // pred_fallthru
    _
  // Predicated region
  $region30: #{cell_forward.6} parent=0 // pred_check
    _
  $region31: #{cell_forward.6} parent=0 // pred_check_branch
    %128 = sbr.rel (0) target = $region33
  $region32: #{cell_forward.6} parent=0 // pred_region
    _
  $region33: #{cell_forward.6} parent=0 // pred_fallthru
    _

// kernel: cell_forward.7
$region0: #{cell_forward.7}
  #allocation0 [shape = 'u32[]', space=smem, size = 0x4, offset = 0x4, fixed_abs, tag = 'smem constant byte address 0x4 - core index']
  #allocation1 [shape = 'u32[72,128]{1,0:T(1,128)}', space=vmem, size = 0x9000, scoped, tag = 'internal scratch']
  %s0 = inlined_call_operand.vmem [shape: f32[8], index: 0, kind: input, shape index: {}]
  %s1 = inlined_call_operand.vmem [shape: f32[9,1,128], index: 1, kind: input, shape index: {}]
  %s2 = inlined_call_operand.vmem [shape: f32[9,1,128], index: 2, kind: input, shape index: {}]
  %s3 = inlined_call_operand.vmem [shape: f32[8,128], index: 3, kind: input, shape index: {}]
  %s4 = inlined_call_operand.vmem [shape: f32[9,8,1], index: 4, kind: input, shape index: {}]
  %s5 = inlined_call_operand.vmem [shape: f32[8,8], index: 5, kind: input, shape index: {}]
  %s6 = inlined_call_operand.vmem [shape: f32[9,8,1], index: 6, kind: input, shape index: {}]
  %s7 = inlined_call_operand.vmem [shape: f32[8,8], index: 7, kind: input, shape index: {}]
  %s8 = inlined_call_operand.vmem [shape: f32[25,8,1], index: 8, kind: input, shape index: {}]
  %s9 = inlined_call_operand.vmem [shape: f32[8,8], index: 9, kind: input, shape index: {}]
  %s10 = inlined_call_operand.vmem [shape: f32[25,8,1], index: 10, kind: input, shape index: {}]
  %s11 = inlined_call_operand.vmem [shape: f32[8,8], index: 11, kind: input, shape index: {}]
  %s12 = inlined_call_operand.vmem [shape: f32[9,8,1], index: 12, kind: input, shape index: {}]
  %s13 = inlined_call_operand.vmem [shape: f32[8,8], index: 13, kind: input, shape index: {}]
  %s14 = inlined_call_operand.vmem [shape: f32[25,8,1], index: 14, kind: input, shape index: {}]
  %s15 = inlined_call_operand.vmem [shape: f32[8,8], index: 15, kind: input, shape index: {}]
  %s16 = inlined_call_operand.vmem [shape: f32[8,128], index: 16, kind: output, shape index: {}]
  %s17 = sld [smem:[#allocation0]]
  $region78: #{cell_forward.7} parent=0
    _
  %s19 = ssub.s32 1, %s17
  %s20 = scalar_select 0, %s19, %s17
  $region1: #{cell_forward.7} parent=0
    #allocation2 [shape = 'u8[512]{0}', space=smem, size = 0x200, scoped, tag = 'input window, operand 0, single buffered']
    #allocation3 [shape = 's32[1]{0}', space=sflag, size = 0x4, scoped, tag = 'scoped memory for cell_forward.7']
    %21 = vsyncpa [#allocation3], 0
    // Predicated region
    $region2: #{cell_forward.7} parent=1 // pred_check
      _
    $region3: #{cell_forward.7} parent=1 // pred_check_branch
      %23 = sbr.rel (0) target = $region5
    $region4: #{cell_forward.7} parent=1 // pred_region
      %25 = vsyncadd [#allocation3], 0
      %s27 = sshll.u32 %s0, 4
      %s28 = int_to_ptr.vmem [resolvable:$true] %s27
      %30 = dma.vmem_to_smem %s28, 16, [#allocation2], [#allocation3]
    $region5: #{cell_forward.7} parent=1 // pred_fallthru
      _
    // Predicated region
    $region6: #{cell_forward.7} parent=1 // pred_check
      _
    $region7: #{cell_forward.7} parent=1 // pred_check_branch
      %32 = sbr.rel (0) target = $region9
    $region8: #{cell_forward.7} parent=1 // pred_region
      _
    $region9: #{cell_forward.7} parent=1 // pred_fallthru
      _
    // Predicated region
    $region10: #{cell_forward.7} parent=1 // pred_check
      _
    $region11: #{cell_forward.7} parent=1 // pred_check_branch
      %34 = sbr.rel (0) target = $region13
    $region12: #{cell_forward.7} parent=1 // pred_region
      _
    $region13: #{cell_forward.7} parent=1 // pred_fallthru
      _
    // Predicated region
    $region14: #{cell_forward.7} parent=1 // pred_check
      _
    $region15: #{cell_forward.7} parent=1 // pred_check_branch
      %36 = sbr.rel (0) target = $region17
    $region16: #{cell_forward.7} parent=1 // pred_region
      _
    $region17: #{cell_forward.7} parent=1 // pred_fallthru
      _
    // Predicated region
    $region18: #{cell_forward.7} parent=1 // pred_check
      _
    $region19: #{cell_forward.7} parent=1 // pred_check_branch
      %38 = sbr.rel (0) target = $region21
    $region20: #{cell_forward.7} parent=1 // pred_region
      _
    $region21: #{cell_forward.7} parent=1 // pred_fallthru
      _
    // Predicated region
    $region22: #{cell_forward.7} parent=1 // pred_check
      _
    $region23: #{cell_forward.7} parent=1 // pred_check_branch
      %40 = sbr.rel (0) target = $region25
    $region24: #{cell_forward.7} parent=1 // pred_region
      _
    $region25: #{cell_forward.7} parent=1 // pred_fallthru
      _
    // Predicated region
    $region26: #{cell_forward.7} parent=1 // pred_check
      _
    $region27: #{cell_forward.7} parent=1 // pred_check_branch
      %42 = sbr.rel (0) target = $region29
    $region28: #{cell_forward.7} parent=1 // pred_region
      _
    $region29: #{cell_forward.7} parent=1 // pred_fallthru
      _
    // Predicated region
    $region30: #{cell_forward.7} parent=1 // pred_check
      _
    $region31: #{cell_forward.7} parent=1 // pred_check_branch
      %44 = sbr.rel (0) target = $region33
    $region32: #{cell_forward.7} parent=1 // pred_region
      _
    $region33: #{cell_forward.7} parent=1 // pred_fallthru
      _
    // Predicated region
    $region34: #{cell_forward.7} parent=1 // pred_check
      _
    $region35: #{cell_forward.7} parent=1 // pred_check_branch
      %46 = sbr.rel (0) target = $region37
    $region36: #{cell_forward.7} parent=1 // pred_region
      _
    $region37: #{cell_forward.7} parent=1 // pred_fallthru
      _
    // Predicated region
    $region38: #{cell_forward.7} parent=1 // pred_check
      _
    $region39: #{cell_forward.7} parent=1 // pred_check_branch
      %48 = sbr.rel (0) target = $region41
    $region40: #{cell_forward.7} parent=1 // pred_region
      _
    $region41: #{cell_forward.7} parent=1 // pred_fallthru
      _
    // Predicated region
    $region42: #{cell_forward.7} parent=1 // pred_check
      _
    $region43: #{cell_forward.7} parent=1 // pred_check_branch
      %50 = sbr.rel (0) target = $region45
    $region44: #{cell_forward.7} parent=1 // pred_region
      _
    $region45: #{cell_forward.7} parent=1 // pred_fallthru
      _
    // Predicated region
    $region46: #{cell_forward.7} parent=1 // pred_check
      _
    $region47: #{cell_forward.7} parent=1 // pred_check_branch
      %52 = sbr.rel (0) target = $region49
    $region48: #{cell_forward.7} parent=1 // pred_region
      _
    $region49: #{cell_forward.7} parent=1 // pred_fallthru
      _
    // Predicated region
    $region50: #{cell_forward.7} parent=1 // pred_check
      _
    $region51: #{cell_forward.7} parent=1 // pred_check_branch
      %54 = sbr.rel (0) target = $region53
    $region52: #{cell_forward.7} parent=1 // pred_region
      _
    $region53: #{cell_forward.7} parent=1 // pred_fallthru
      _
    // Predicated region
    $region54: #{cell_forward.7} parent=1 // pred_check
      _
    $region55: #{cell_forward.7} parent=1 // pred_check_branch
      %56 = sbr.rel (0) target = $region57
    $region56: #{cell_forward.7} parent=1 // pred_region
      _
    $region57: #{cell_forward.7} parent=1 // pred_fallthru
      _
    // Predicated region
    $region58: #{cell_forward.7} parent=1 // pred_check
      _
    $region59: #{cell_forward.7} parent=1 // pred_check_branch
      %58 = sbr.rel (0) target = $region61
    $region60: #{cell_forward.7} parent=1 // pred_region
      _
    $region61: #{cell_forward.7} parent=1 // pred_fallthru
      _
    // Predicated region
    $region62: #{cell_forward.7} parent=1 // pred_check
      _
    $region63: #{cell_forward.7} parent=1 // pred_check_branch
      %60 = sbr.rel (0) target = $region65
    $region64: #{cell_forward.7} parent=1 // pred_region
      _
    $region65: #{cell_forward.7} parent=1 // pred_fallthru
      _
    // Predicated region
    $region66: #{cell_forward.7} parent=1 // pred_check
      _
    $region67: #{cell_forward.7} parent=1 // pred_check_branch
      %62 = sbr.rel (0) target = $region69
    $region68: #{cell_forward.7} parent=1 // pred_region
      %64 = dma.done [#allocation3], 16
    $region69: #{cell_forward.7} parent=1 // pred_fallthru
      _
    %65 = sfence
    %v66 = vld [vmem:[%s3] sm:$0xff]
    %v67 = vld [vmem:[%s1] sm:$0x1]
    %v68 = vld [vmem:[%s1 + $0x2] sm:$0x1]
    %v69 = vld [vmem:[%s1 + $0x3] sm:$0x1]
    %v70 = vld [vmem:[%s1 + $0x5] sm:$0x1]
    %v71 = vld [vmem:[%s1 + $0x6] sm:$0x1]
    %v72 = vld [vmem:[%s1 + $0x8] sm:$0x1]
    %v73 = vld [vmem:[%s2] sm:$0x1]
    %v74 = vld [vmem:[%s2 + $0x2] sm:$0x1]
    %v75 = vld [vmem:[%s2 + $0x3] sm:$0x1]
    %v76 = vld [vmem:[%s2 + $0x5] sm:$0x1]
    %v77 = vld [vmem:[%s2 + $0x6] sm:$0x1]
    %v78 = vld [vmem:[%s2 + $0x8] sm:$0x1]
    %v79 = vmax.f32 %v66, 0.0
    %s80 = sld [smem:[#allocation2 + $0x1]]
    %81 = vrot.lane.b32.xlu0 %v66, 9
    %v82 = vpop.permute.xlu0 %81
    %v83 = vmul.f32 %v69, %v75
    %v85 = vperm.slane %v83, 0
    %v87 = vmul.f32 %v82, %v85
    %v88 = vsub.f32 %v83, 1.0
    %v89 = vmul.f32 %v88, 1e+30
    %v91 = vperm.slane %v89, 0
    %v93 = vadd.f32 %v87, %v91
    %94 = vrot.lane.b32.xlu0 %v66, 8
    %v95 = vpop.permute.xlu0 %94
    %v97 = vperm.slane %v69, 0
    %v99 = vmul.f32 %v95, %v97
    %v100 = vsub.f32 %v69, 1.0
    %v101 = vmul.f32 %v100, 1e+30
    %v103 = vperm.slane %v101, 0
    %v105 = vadd.f32 %v99, %v103
    %v106 = vmax.f32 %v93, %v105
    %107 = vrot.lane.b32.xlu0 %v66, 7
    %v108 = vpop.permute.xlu0 %107
    %v109 = vmul.f32 %v69, %v76
    %v111 = vperm.slane %v109, 0
    %v113 = vmul.f32 %v108, %v111
    %v114 = vsub.f32 %v109, 1.0
    %v115 = vmul.f32 %v114, 1e+30
    %v117 = vperm.slane %v115, 0
    %v119 = vadd.f32 %v113, %v117
    %v120 = vmax.f32 %v106, %v119
    %121 = vrot.lane.b32.xlu0 %v66, 1
    %v122 = vpop.permute.xlu0 %121
    %v124 = vperm.slane %v75, 0
    %v126 = vmul.f32 %v122, %v124
    %v127 = vsub.f32 %v75, 1.0
    %v128 = vmul.f32 %v127, 1e+30
    %v130 = vperm.slane %v128, 0
    %v132 = vadd.f32 %v126, %v130
    %v133 = vmax.f32 %v120, %v132
    %v134 = vmax.f32 %v133, %v66
    %135 = vrot.lane.b32.xlu0 %v66, 127
    %v136 = vpop.permute.xlu0 %135
    %v138 = vperm.slane %v76, 0
    %v140 = vmul.f32 %v136, %v138
    %v141 = vsub.f32 %v76, 1.0
    %v142 = vmul.f32 %v141, 1e+30
    %v144 = vperm.slane %v142, 0
    %v146 = vadd.f32 %v140, %v144
    %v147 = vmax.f32 %v134, %v146
    %148 = vrot.lane.b32.xlu0 %v66, 121
    %v149 = vpop.permute.xlu0 %148
    %v150 = vmul.f32 %v70, %v75
    %v152 = vperm.slane %v150, 0
    %v154 = vmul.f32 %v149, %v152
    %v155 = vsub.f32 %v150, 1.0
    %v156 = vmul.f32 %v155, 1e+30
    %v158 = vperm.slane %v156, 0
    %v160 = vadd.f32 %v154, %v158
    %v161 = vmax.f32 %v147, %v160
    %162 = vrot.lane.b32.xlu0 %v66, 120
    %v163 = vpop.permute.xlu0 %162
    %v165 = vperm.slane %v70, 0
    %v167 = vmul.f32 %v163, %v165
    %v168 = vsub.f32 %v70, 1.0
    %v169 = vmul.f32 %v168, 1e+30
    %v171 = vperm.slane %v169, 0
    %v173 = vadd.f32 %v167, %v171
    %v174 = vmax.f32 %v161, %v173
    %175 = vrot.lane.b32.xlu0 %v66, 119
    %v176 = vpop.permute.xlu0 %175
    %v177 = vmul.f32 %v70, %v76
    %v179 = vperm.slane %v177, 0
    %v181 = vmul.f32 %v176, %v179
    %v182 = vsub.f32 %v177, 1.0
    %v183 = vmul.f32 %v182, 1e+30
    %v185 = vperm.slane %v183, 0
    %v187 = vadd.f32 %v181, %v185
    %v188 = vmax.f32 %v174, %v187
    %189 = vadd.xlane.f32.xlu0 %v188
    %v190 = vpop.xlane.xlu0 %189
    %v191 = vrcp.pop 128.0
    %v192 = vmul.f32 128.0, %v191
    %v193 = vsub.f32 1.0, %v192
    %v194 = vmul.f32 %v191, %v193
    %v195 = vadd.f32 %v191, %v194
    %vm196 = vweird.f32 %v191
    %v197 = vsel %vm196, %v191, %v195
    %v198 = vmul.f32 %v190, %v197
    %v199 = vsub.f32 %v188, %v198
    %v200 = vmul.f32 %v199, %v199
    %201 = vadd.xlane.f32.xlu0 %v200
    %v202 = vpop.xlane.xlu0 %201
    %v203 = vmul.f32 %v202, %v197
    %v204 = vadd.f32 %v203, 1e-05
    %v205 = vrsqrt.pop %v204
    %v206 = vmul.f32 %v205, %v204
    %v207 = vmul.f32 %v206, %v205
    %v208 = vmul.f32 0.5, %v207
    %v209 = vsub.f32 1.5, %v208
    %v210 = vmul.f32 %v205, %v209
    %vm211 = vweird.f32 %v204
    %vm212 = vweird.f32 %v205
    %vm213 = vmor %vm211, %vm212
    %v214 = vsel %vm213, %v205, %v210
    %v215 = vmul.f32 %v199, %v214
    %v216 = vstv %s80
    %v217 = vmul.f32 %v216, %v215
    %s218 = sld [smem:[#allocation2 + $0x2]]
    %v219 = vadd.f32 %v87, %v99
    %v220 = vadd.f32 %v83, %v69
    %v221 = vadd.f32 %v219, %v113
    %v222 = vadd.f32 %v220, %v109
    %v223 = vadd.f32 %v221, %v126
    %v224 = vadd.f32 %v222, %v75
    %v225 = vadd.f32 %v223, %v66
    %v226 = vadd.f32 %v224, 1.0
    %v227 = vadd.f32 %v225, %v140
    %v228 = vadd.f32 %v226, %v76
    %v229 = vadd.f32 %v227, %v154
    %v230 = vadd.f32 %v228, %v150
    %v231 = vadd.f32 %v229, %v167
    %v232 = vadd.f32 %v230, %v70
    %v233 = vadd.f32 %v231, %v181
    %v234 = vadd.f32 %v232, %v177
    %v235 = vrcp.pop %v234
    %v236 = vmul.f32 %v234, %v235
    %v237 = vsub.f32 1.0, %v236
    %v238 = vmul.f32 %v235, %v237
    %v239 = vadd.f32 %v235, %v238
    %vm240 = vweird.f32 %v234
    %vm241 = vweird.f32 %v235
    %vm242 = vmor %vm240, %vm241
    %v243 = vsel %vm242, %v235, %v239
    %v244 = vand.u32 2147483647, %v234
    %vm245 = vcmp.eq.f32.partialorder %v244, 8.507059e+37
    %v246 = vand.u32 %v234, 2147483648
    %v247 = vor.u32 1.1754944e-38, %v246
    %v248 = vsel %vm245, %v247, %v243
    %v249 = vmul.f32 1.0, %v248
    %v251 = vperm.slane %v249, 0
    %v253 = vmul.f32 %v233, %v251
    %254 = vadd.xlane.f32.xlu0 %v253
    %v255 = vpop.xlane.xlu0 %254
    %v256 = vmul.f32 %v255, %v197
    %v257 = vsub.f32 %v253, %v256
    %v258 = vmul.f32 %v257, %v257
    %259 = vadd.xlane.f32.xlu0 %v258
    %v260 = vpop.xlane.xlu0 %259
    %v261 = vmul.f32 %v260, %v197
    %v262 = vadd.f32 %v261, 1e-05
    %v263 = vrsqrt.pop %v262
    %v264 = vmul.f32 %v263, %v262
    %v265 = vmul.f32 %v264, %v263
    %v266 = vmul.f32 0.5, %v265
    %v267 = vsub.f32 1.5, %v266
    %v268 = vmul.f32 %v263, %v267
    %vm269 = vweird.f32 %v262
    %vm270 = vweird.f32 %v263
    %vm271 = vmor %vm269, %vm270
    %v272 = vsel %vm271, %v263, %v268
    %v273 = vmul.f32 %v257, %v272
    %v274 = vstv %s218
    %v275 = vmul.f32 %v274, %v273
    %v276 = vadd.f32 %v217, %v275
    %s277 = sld [smem:[#allocation2 + $0x3]]
    %v278 = vstv %s277
    %v279 = vmul.f32 %v278, %v66
    %v280 = vadd.f32 %v276, %v279
    %s281 = sld [smem:[#allocation2 + $0x4]]
    %v282 = vld [vmem:[%s4] sm:$0xff]
    %v283 = vld [vmem:[%s4 + $0x8] sm:$0xff]
    %v284 = vld [vmem:[%s4 + $0x10] sm:$0xff]
    %v285 = vld [vmem:[%s4 + $0x18] sm:$0xff]
    %v286 = vld [vmem:[%s4 + $0x20] sm:$0xff]
    %v287 = vld [vmem:[%s4 + $0x28] sm:$0xff]
    %v288 = vld [vmem:[%s4 + $0x30] sm:$0xff]
    %v289 = vld [vmem:[%s4 + $0x38] sm:$0xff]
    %v290 = vld [vmem:[%s4 + $0x40] sm:$0xff]
    %v291 = vld [vmem:[%s5] sm:$0xff]
    %v292 = vld [vmem:[%s6] sm:$0xff]
    %v293 = vld [vmem:[%s6 + $0x8] sm:$0xff]
    %v294 = vld [vmem:[%s6 + $0x10] sm:$0xff]
    %v295 = vld [vmem:[%s6 + $0x18] sm:$0xff]
    %v296 = vld [vmem:[%s6 + $0x20] sm:$0xff]
    %v297 = vld [vmem:[%s6 + $0x28] sm:$0xff]
    %v298 = vld [vmem:[%s6 + $0x30] sm:$0xff]
    %v299 = vld [vmem:[%s6 + $0x38] sm:$0xff]
    %v300 = vld [vmem:[%s6 + $0x40] sm:$0xff]
    %v301 = vld [vmem:[%s7] sm:$0xff]
    %302 = vrot.lane.b32.xlu0 %v79, 9
    %v303 = vpop.permute.xlu0 %302
    %v304 = vmul.f32 %v303, %v85
    %306 = vset.pattern.permute.xlu0 0
    %307 = vperm.xlu0 %306, %v282
    %v308 = vpop.permute.xlu0 %307
    %v310 = vmul.f32 %v304, %v308
    %311 = vrot.lane.b32.xlu0 %v79, 8
    %v312 = vpop.permute.xlu0 %311
    %v313 = vmul.f32 %v312, %v97
    %315 = vset.pattern.permute.xlu0 0
    %316 = vperm.xlu0 %315, %v283
    %v317 = vpop.permute.xlu0 %316
    %v319 = vmul.f32 %v313, %v317
    %v320 = vadd.f32 %v310, %v319
    %321 = vrot.lane.b32.xlu0 %v79, 7
    %v322 = vpop.permute.xlu0 %321
    %v323 = vmul.f32 %v322, %v111
    %325 = vset.pattern.permute.xlu0 0
    %326 = vperm.xlu0 %325, %v284
    %v327 = vpop.permute.xlu0 %326
    %v329 = vmul.f32 %v323, %v327
    %v330 = vadd.f32 %v320, %v329
    %331 = vrot.lane.b32.xlu0 %v79, 1
    %v332 = vpop.permute.xlu0 %331
    %v333 = vmul.f32 %v332, %v124
    %335 = vset.pattern.permute.xlu0 0
    %336 = vperm.xlu0 %335, %v285
    %v337 = vpop.permute.xlu0 %336
    %v339 = vmul.f32 %v333, %v337
    %v340 = vadd.f32 %v330, %v339
    %342 = vset.pattern.permute.xlu0 0
    %343 = vperm.xlu0 %342, %v286
    %v344 = vpop.permute.xlu0 %343
    %v346 = vmul.f32 %v79, %v344
    %v347 = vadd.f32 %v340, %v346
    %348 = vrot.lane.b32.xlu0 %v79, 127
    %v349 = vpop.permute.xlu0 %348
    %v350 = vmul.f32 %v349, %v138
    %352 = vset.pattern.permute.xlu0 0
    %353 = vperm.xlu0 %352, %v287
    %v354 = vpop.permute.xlu0 %353
    %v356 = vmul.f32 %v350, %v354
    %v357 = vadd.f32 %v347, %v356
    %358 = vrot.lane.b32.xlu0 %v79, 121
    %v359 = vpop.permute.xlu0 %358
    %v360 = vmul.f32 %v359, %v152
    %362 = vset.pattern.permute.xlu0 0
    %363 = vperm.xlu0 %362, %v288
    %v364 = vpop.permute.xlu0 %363
    %v366 = vmul.f32 %v360, %v364
    %v367 = vadd.f32 %v357, %v366
    %368 = vrot.lane.b32.xlu0 %v79, 120
    %v369 = vpop.permute.xlu0 %368
    %v370 = vmul.f32 %v369, %v165
    %372 = vset.pattern.permute.xlu0 0
    %373 = vperm.xlu0 %372, %v289
    %v374 = vpop.permute.xlu0 %373
    %v376 = vmul.f32 %v370, %v374
    %v377 = vadd.f32 %v367, %v376
    %378 = vrot.lane.b32.xlu0 %v79, 119
    %v379 = vpop.permute.xlu0 %378
    %v380 = vmul.f32 %v379, %v179
    %382 = vset.pattern.permute.xlu0 0
    %383 = vperm.xlu0 %382, %v290
    %v384 = vpop.permute.xlu0 %383
    %v386 = vmul.f32 %v380, %v384
    %v387 = vadd.f32 %v377, %v386
    %vm388 = vcmask 64512
    %v390 = vsel %vm388, %v291, 0
    %392 = vmatpush.msra.mxu0 0.0
    %393 = vmatpush.msra.mxu0 0.0
    %394 = vmatpush.msra.mxu0 0.0
    %395 = vmatpush.msra.mxu0 0.0
    %396 = vmatpush.msra.mxu0 0.0
    %397 = vmatpush.msra.mxu0 0.0
    %398 = vmatpush.msra.mxu0 0.0
    %399 = vmatpush.msra.mxu0 0.0
    %400 = vmatpush.msra.mxu0 0.0
    %401 = vmatpush.msra.mxu0 0.0
    %402 = vmatpush.msra.mxu0 0.0
    %403 = vmatpush.msra.mxu0 0.0
    %404 = vmatpush.msra.mxu0 0.0
    %405 = vmatpush.msra.mxu0 0.0
    %406 = vmatpush.msra.mxu0 0.0
    %407 = vmatpush.msra.mxu0 %v387
    %408 = vmatmul.f32.gmra.mxu0 %v390
    %v409 = vpop.f32.mrf.mxu0
    %v410 = vadd.f32 0.0, %v409
    %411 = vdwg.mxu0
    %412 = vadd.xlane.f32.xlu0 %v410
    %v413 = vpop.xlane.xlu0 %412
    %v414 = vmul.f32 %v413, %v197
    %v415 = vsub.f32 %v410, %v414
    %v416 = vmul.f32 %v415, %v415
    %417 = vadd.xlane.f32.xlu0 %v416
    %v418 = vpop.xlane.xlu0 %417
    %v419 = vmul.f32 %v418, %v197
    %v420 = vadd.f32 %v419, 1e-05
    %v421 = vrsqrt.pop %v420
    %v422 = vmul.f32 %v421, %v420
    %v423 = vmul.f32 %v422, %v421
    %v424 = vmul.f32 0.5, %v423
    %v425 = vsub.f32 1.5, %v424
    %v426 = vmul.f32 %v421, %v425
    %vm427 = vweird.f32 %v420
    %vm428 = vweird.f32 %v421
    %vm429 = vmor %vm427, %vm428
    %v430 = vsel %vm429, %v421, %v426
    %v431 = vmul.f32 %v415, %v430
    %v432 = vmax.f32 %v431, 0.0
    %433 = vrot.lane.b32.xlu0 %v432, 9
    %v434 = vpop.permute.xlu0 %433
    %v435 = vmul.f32 %v434, %v85
    %437 = vset.pattern.permute.xlu0 0
    %438 = vperm.xlu0 %437, %v292
    %v439 = vpop.permute.xlu0 %438
    %v441 = vmul.f32 %v435, %v439
    %442 = vrot.lane.b32.xlu0 %v432, 8
    %v443 = vpop.permute.xlu0 %442
    %v444 = vmul.f32 %v443, %v97
    %446 = vset.pattern.permute.xlu0 0
    %447 = vperm.xlu0 %446, %v293
    %v448 = vpop.permute.xlu0 %447
    %v450 = vmul.f32 %v444, %v448
    %v451 = vadd.f32 %v441, %v450
    %452 = vrot.lane.b32.xlu0 %v432, 7
    %v453 = vpop.permute.xlu0 %452
    %v454 = vmul.f32 %v453, %v111
    %456 = vset.pattern.permute.xlu0 0
    %457 = vperm.xlu0 %456, %v294
    %v458 = vpop.permute.xlu0 %457
    %v460 = vmul.f32 %v454, %v458
    %v461 = vadd.f32 %v451, %v460
    %462 = vrot.lane.b32.xlu0 %v432, 1
    %v463 = vpop.permute.xlu0 %462
    %v464 = vmul.f32 %v463, %v124
    %466 = vset.pattern.permute.xlu0 0
    %467 = vperm.xlu0 %466, %v295
    %v468 = vpop.permute.xlu0 %467
    %v470 = vmul.f32 %v464, %v468
    %v471 = vadd.f32 %v461, %v470
    %473 = vset.pattern.permute.xlu0 0
    %474 = vperm.xlu0 %473, %v296
    %v475 = vpop.permute.xlu0 %474
    %v477 = vmul.f32 %v432, %v475
    %v478 = vadd.f32 %v471, %v477
    %479 = vrot.lane.b32.xlu0 %v432, 127
    %v480 = vpop.permute.xlu0 %479
    %v481 = vmul.f32 %v480, %v138
    %483 = vset.pattern.permute.xlu0 0
    %484 = vperm.xlu0 %483, %v297
    %v485 = vpop.permute.xlu0 %484
    %v487 = vmul.f32 %v481, %v485
    %v488 = vadd.f32 %v478, %v487
    %489 = vrot.lane.b32.xlu0 %v432, 121
    %v490 = vpop.permute.xlu0 %489
    %v491 = vmul.f32 %v490, %v152
    %493 = vset.pattern.permute.xlu0 0
    %494 = vperm.xlu0 %493, %v298
    %v495 = vpop.permute.xlu0 %494
    %v497 = vmul.f32 %v491, %v495
    %v498 = vadd.f32 %v488, %v497
    %499 = vrot.lane.b32.xlu0 %v432, 120
    %v500 = vpop.permute.xlu0 %499
    %v501 = vmul.f32 %v500, %v165
    %503 = vset.pattern.permute.xlu0 0
    %504 = vperm.xlu0 %503, %v299
    %v505 = vpop.permute.xlu0 %504
    %v507 = vmul.f32 %v501, %v505
    %v508 = vadd.f32 %v498, %v507
    %509 = vrot.lane.b32.xlu0 %v432, 119
    %v510 = vpop.permute.xlu0 %509
    %v511 = vmul.f32 %v510, %v179
    %513 = vset.pattern.permute.xlu0 0
    %514 = vperm.xlu0 %513, %v300
    %v515 = vpop.permute.xlu0 %514
    %v517 = vmul.f32 %v511, %v515
    %v518 = vadd.f32 %v508, %v517
    %v520 = vsel %vm388, %v301, 0
    %522 = vmatpush.msra.mxu0 0.0
    %523 = vmatpush.msra.mxu0 0.0
    %524 = vmatpush.msra.mxu0 0.0
    %525 = vmatpush.msra.mxu0 0.0
    %526 = vmatpush.msra.mxu0 0.0
    %527 = vmatpush.msra.mxu0 0.0
    %528 = vmatpush.msra.mxu0 0.0
    %529 = vmatpush.msra.mxu0 0.0
    %530 = vmatpush.msra.mxu0 0.0
    %531 = vmatpush.msra.mxu0 0.0
    %532 = vmatpush.msra.mxu0 0.0
    %533 = vmatpush.msra.mxu0 0.0
    %534 = vmatpush.msra.mxu0 0.0
    %535 = vmatpush.msra.mxu0 0.0
    %536 = vmatpush.msra.mxu0 0.0
    %537 = vmatpush.msra.mxu0 %v518
    %538 = vmatmul.f32.gmra.mxu0 %v520
    %v539 = vpop.f32.mrf.mxu0
    %v540 = vadd.f32 0.0, %v539
    %541 = vdwg.mxu0
    %542 = vadd.xlane.f32.xlu0 %v540
    %v543 = vpop.xlane.xlu0 %542
    %v544 = vmul.f32 %v543, %v197
    %v545 = vsub.f32 %v540, %v544
    %v546 = vmul.f32 %v545, %v545
    %547 = vadd.xlane.f32.xlu0 %v546
    %v548 = vpop.xlane.xlu0 %547
    %v549 = vmul.f32 %v548, %v197
    %v550 = vadd.f32 %v549, 1e-05
    %v551 = vrsqrt.pop %v550
    %v552 = vmul.f32 %v551, %v550
    %v553 = vmul.f32 %v552, %v551
    %v554 = vmul.f32 0.5, %v553
    %v555 = vsub.f32 1.5, %v554
    %v556 = vmul.f32 %v551, %v555
    %vm557 = vweird.f32 %v550
    %vm558 = vweird.f32 %v551
    %vm559 = vmor %vm557, %vm558
    %v560 = vsel %vm559, %v551, %v556
    %v561 = vmul.f32 %v545, %v560
    %v562 = vstv %s281
    %v563 = vmul.f32 %v562, %v561
    %v564 = vadd.f32 %v280, %v563
    %s565 = sld [smem:[#allocation2 + $0x5]]
    %v566 = vld [vmem:[%s8] sm:$0xff]
    %v567 = vld [vmem:[%s8 + $0x8] sm:$0xff]
    %v568 = vld [vmem:[%s8 + $0x10] sm:$0xff]
    %v569 = vld [vmem:[%s8 + $0x18] sm:$0xff]
    %v570 = vld [vmem:[%s8 + $0x20] sm:$0xff]
    %v571 = vld [vmem:[%s8 + $0x28] sm:$0xff]
    %v572 = vld [vmem:[%s8 + $0x30] sm:$0xff]
    %v573 = vld [vmem:[%s8 + $0x38] sm:$0xff]
    %v574 = vld [vmem:[%s8 + $0x40] sm:$0xff]
    %v575 = vld [vmem:[%s8 + $0x48] sm:$0xff]
    %v576 = vld [vmem:[%s8 + $0x50] sm:$0xff]
    %v577 = vld [vmem:[%s8 + $0x58] sm:$0xff]
    %v578 = vld [vmem:[%s8 + $0x60] sm:$0xff]
    %v579 = vld [vmem:[%s8 + $0x68] sm:$0xff]
    %v580 = vld [vmem:[%s8 + $0x70] sm:$0xff]
    %v581 = vld [vmem:[%s8 + $0x78] sm:$0xff]
    %v582 = vld [vmem:[%s8 + $0x80] sm:$0xff]
    %v583 = vld [vmem:[%s8 + $0x88] sm:$0xff]
    %v584 = vld [vmem:[%s8 + $0x90] sm:$0xff]
    %v585 = vld [vmem:[%s8 + $0x98] sm:$0xff]
    %v586 = vld [vmem:[%s8 + $0xa0] sm:$0xff]
    %v587 = vld [vmem:[%s8 + $0xa8] sm:$0xff]
    %v588 = vld [vmem:[%s8 + $0xb0] sm:$0xff]
    %v589 = vld [vmem:[%s8 + $0xb8] sm:$0xff]
    %v590 = vld [vmem:[%s8 + $0xc0] sm:$0xff]
    %v591 = vld [vmem:[%s9] sm:$0xff]
    %v592 = vld [vmem:[%s10] sm:$0xff]
    %v593 = vld [vmem:[%s10 + $0x8] sm:$0xff]
    %v594 = vld [vmem:[%s10 + $0x10] sm:$0xff]
    %v595 = vld [vmem:[%s10 + $0x18] sm:$0xff]
    %v596 = vld [vmem:[%s10 + $0x20] sm:$0xff]
    %v597 = vld [vmem:[%s10 + $0x28] sm:$0xff]
    %v598 = vld [vmem:[%s10 + $0x30] sm:$0xff]
    %v599 = vld [vmem:[%s10 + $0x38] sm:$0xff]
    %v600 = vld [vmem:[%s10 + $0x40] sm:$0xff]
    %v601 = vld [vmem:[%s10 + $0x48] sm:$0xff]
    %v602 = vld [vmem:[%s10 + $0x50] sm:$0xff]
    %v603 = vld [vmem:[%s10 + $0x58] sm:$0xff]
    %v604 = vld [vmem:[%s10 + $0x60] sm:$0xff]
    %v605 = vld [vmem:[%s10 + $0x68] sm:$0xff]
    %v606 = vld [vmem:[%s10 + $0x70] sm:$0xff]
    %v607 = vld [vmem:[%s10 + $0x78] sm:$0xff]
    %v608 = vld [vmem:[%s10 + $0x80] sm:$0xff]
    %v609 = vld [vmem:[%s10 + $0x88] sm:$0xff]
    %v610 = vld [vmem:[%s10 + $0x90] sm:$0xff]
    %v611 = vld [vmem:[%s10 + $0x98] sm:$0xff]
    %v612 = vld [vmem:[%s10 + $0xa0] sm:$0xff]
    %v613 = vld [vmem:[%s10 + $0xa8] sm:$0xff]
    %v614 = vld [vmem:[%s10 + $0xb0] sm:$0xff]
    %v615 = vld [vmem:[%s10 + $0xb8] sm:$0xff]
    %v616 = vld [vmem:[%s10 + $0xc0] sm:$0xff]
    %v617 = vld [vmem:[%s11] sm:$0xff]
    %618 = vrot.lane.b32.xlu0 %v79, 18
    %v619 = vpop.permute.xlu0 %618
    %v620 = vmul.f32 %v68, %v74
    %v622 = vperm.slane %v620, 0
    %v624 = vmul.f32 %v619, %v622
    %626 = vset.pattern.permute.xlu0 0
    %627 = vperm.xlu0 %626, %v566
    %v628 = vpop.permute.xlu0 %627
    %v630 = vmul.f32 %v624, %v628
    %631 = vrot.lane.b32.xlu0 %v79, 17
    %v632 = vpop.permute.xlu0 %631
    %v633 = vmul.f32 %v68, %v75
    %v635 = vperm.slane %v633, 0
    %v637 = vmul.f32 %v632, %v635
    %639 = vset.pattern.permute.xlu0 0
    %640 = vperm.xlu0 %639, %v567
    %v641 = vpop.permute.xlu0 %640
    %v643 = vmul.f32 %v637, %v641
    %v644 = vadd.f32 %v630, %v643
    %645 = vrot.lane.b32.xlu0 %v79, 16
    %v646 = vpop.permute.xlu0 %645
    %v648 = vperm.slane %v68, 0
    %v650 = vmul.f32 %v646, %v648
    %652 = vset.pattern.permute.xlu0 0
    %653 = vperm.xlu0 %652, %v568
    %v654 = vpop.permute.xlu0 %653
    %v656 = vmul.f32 %v650, %v654
    %v657 = vadd.f32 %v644, %v656
    %658 = vrot.lane.b32.xlu0 %v79, 15
    %v659 = vpop.permute.xlu0 %658
    %v660 = vmul.f32 %v68, %v76
    %v662 = vperm.slane %v660, 0
    %v664 = vmul.f32 %v659, %v662
    %666 = vset.pattern.permute.xlu0 0
    %667 = vperm.xlu0 %666, %v569
    %v668 = vpop.permute.xlu0 %667
    %v670 = vmul.f32 %v664, %v668
    %v671 = vadd.f32 %v657, %v670
    %672 = vrot.lane.b32.xlu0 %v79, 14
    %v673 = vpop.permute.xlu0 %672
    %v674 = vmul.f32 %v68, %v77
    %v676 = vperm.slane %v674, 0
    %v678 = vmul.f32 %v673, %v676
    %680 = vset.pattern.permute.xlu0 0
    %681 = vperm.xlu0 %680, %v570
    %v682 = vpop.permute.xlu0 %681
    %v684 = vmul.f32 %v678, %v682
    %v685 = vadd.f32 %v671, %v684
    %686 = vrot.lane.b32.xlu0 %v79, 10
    %v687 = vpop.permute.xlu0 %686
    %v688 = vmul.f32 %v69, %v74
    %v690 = vperm.slane %v688, 0
    %v692 = vmul.f32 %v687, %v690
    %694 = vset.pattern.permute.xlu0 0
    %695 = vperm.xlu0 %694, %v571
    %v696 = vpop.permute.xlu0 %695
    %v698 = vmul.f32 %v692, %v696
    %v699 = vadd.f32 %v685, %v698
    %701 = vset.pattern.permute.xlu0 0
    %702 = vperm.xlu0 %701, %v572
    %v703 = vpop.permute.xlu0 %702
    %v705 = vmul.f32 %v304, %v703
    %v706 = vadd.f32 %v699, %v705
    %708 = vset.pattern.permute.xlu0 0
    %709 = vperm.xlu0 %708, %v573
    %v710 = vpop.permute.xlu0 %709
    %v712 = vmul.f32 %v313, %v710
    %v713 = vadd.f32 %v706, %v712
    %715 = vset.pattern.permute.xlu0 0
    %716 = vperm.xlu0 %715, %v574
    %v717 = vpop.permute.xlu0 %716
    %v719 = vmul.f32 %v323, %v717
    %v720 = vadd.f32 %v713, %v719
    %721 = vrot.lane.b32.xlu0 %v79, 6
    %v722 = vpop.permute.xlu0 %721
    %v723 = vmul.f32 %v69, %v77
    %v725 = vperm.slane %v723, 0
    %v727 = vmul.f32 %v722, %v725
    %729 = vset.pattern.permute.xlu0 0
    %730 = vperm.xlu0 %729, %v575
    %v731 = vpop.permute.xlu0 %730
    %v733 = vmul.f32 %v727, %v731
    %v734 = vadd.f32 %v720, %v733
    %735 = vrot.lane.b32.xlu0 %v79, 2
    %v736 = vpop.permute.xlu0 %735
    %v738 = vperm.slane %v74, 0
    %v740 = vmul.f32 %v736, %v738
    %742 = vset.pattern.permute.xlu0 0
    %743 = vperm.xlu0 %742, %v576
    %v744 = vpop.permute.xlu0 %743
    %v746 = vmul.f32 %v740, %v744
    %v747 = vadd.f32 %v734, %v746
    %749 = vset.pattern.permute.xlu0 0
    %750 = vperm.xlu0 %749, %v577
    %v751 = vpop.permute.xlu0 %750
    %v753 = vmul.f32 %v333, %v751
    %v754 = vadd.f32 %v747, %v753
    %756 = vset.pattern.permute.xlu0 0
    %757 = vperm.xlu0 %756, %v578
    %v758 = vpop.permute.xlu0 %757
    %v760 = vmul.f32 %v79, %v758
    %v761 = vadd.f32 %v754, %v760
    %763 = vset.pattern.permute.xlu0 0
    %764 = vperm.xlu0 %763, %v579
    %v765 = vpop.permute.xlu0 %764
    %v767 = vmul.f32 %v350, %v765
    %v768 = vadd.f32 %v761, %v767
    %769 = vrot.lane.b32.xlu0 %v79, 126
    %v770 = vpop.permute.xlu0 %769
    %v772 = vperm.slane %v77, 0
    %v774 = vmul.f32 %v770, %v772
    %776 = vset.pattern.permute.xlu0 0
    %777 = vperm.xlu0 %776, %v580
    %v778 = vpop.permute.xlu0 %777
    %v780 = vmul.f32 %v774, %v778
    %v781 = vadd.f32 %v768, %v780
    %782 = vrot.lane.b32.xlu0 %v79, 122
    %v783 = vpop.permute.xlu0 %782
    %v784 = vmul.f32 %v70, %v74
    %v786 = vperm.slane %v784, 0
    %v788 = vmul.f32 %v783, %v786
    %790 = vset.pattern.permute.xlu0 0
    %791 = vperm.xlu0 %790, %v581
    %v792 = vpop.permute.xlu0 %791
    %v794 = vmul.f32 %v788, %v792
    %v795 = vadd.f32 %v781, %v794
    %797 = vset.pattern.permute.xlu0 0
    %798 = vperm.xlu0 %797, %v582
    %v799 = vpop.permute.xlu0 %798
    %v801 = vmul.f32 %v360, %v799
    %v802 = vadd.f32 %v795, %v801
    %804 = vset.pattern.permute.xlu0 0
    %805 = vperm.xlu0 %804, %v583
    %v806 = vpop.permute.xlu0 %805
    %v808 = vmul.f32 %v370, %v806
    %v809 = vadd.f32 %v802, %v808
    %811 = vset.pattern.permute.xlu0 0
    %812 = vperm.xlu0 %811, %v584
    %v813 = vpop.permute.xlu0 %812
    %v815 = vmul.f32 %v380, %v813
    %v816 = vadd.f32 %v809, %v815
    %817 = vrot.lane.b32.xlu0 %v79, 118
    %v818 = vpop.permute.xlu0 %817
    %v819 = vmul.f32 %v70, %v77
    %v821 = vperm.slane %v819, 0
    %v823 = vmul.f32 %v818, %v821
    %825 = vset.pattern.permute.xlu0 0
    %826 = vperm.xlu0 %825, %v585
    %v827 = vpop.permute.xlu0 %826
    %v829 = vmul.f32 %v823, %v827
    %v830 = vadd.f32 %v816, %v829
    %831 = vrot.lane.b32.xlu0 %v79, 114
    %v832 = vpop.permute.xlu0 %831
    %v833 = vmul.f32 %v71, %v74
    %v835 = vperm.slane %v833, 0
    %v837 = vmul.f32 %v832, %v835
    %839 = vset.pattern.permute.xlu0 0
    %840 = vperm.xlu0 %839, %v586
    %v841 = vpop.permute.xlu0 %840
    %v843 = vmul.f32 %v837, %v841
    %v844 = vadd.f32 %v830, %v843
    %845 = vrot.lane.b32.xlu0 %v79, 113
    %v846 = vpop.permute.xlu0 %845
    %v847 = vmul.f32 %v71, %v75
    %v849 = vperm.slane %v847, 0
    %v851 = vmul.f32 %v846, %v849
    %853 = vset.pattern.permute.xlu0 0
    %854 = vperm.xlu0 %853, %v587
    %v855 = vpop.permute.xlu0 %854
    %v857 = vmul.f32 %v851, %v855
    %v858 = vadd.f32 %v844, %v857
    %859 = vrot.lane.b32.xlu0 %v79, 112
    %v860 = vpop.permute.xlu0 %859
    %v862 = vperm.slane %v71, 0
    %v864 = vmul.f32 %v860, %v862
    %866 = vset.pattern.permute.xlu0 0
    %867 = vperm.xlu0 %866, %v588
    %v868 = vpop.permute.xlu0 %867
    %v870 = vmul.f32 %v864, %v868
    %v871 = vadd.f32 %v858, %v870
    %872 = vrot.lane.b32.xlu0 %v79, 111
    %v873 = vpop.permute.xlu0 %872
    %v874 = vmul.f32 %v71, %v76
    %v876 = vperm.slane %v874, 0
    %v878 = vmul.f32 %v873, %v876
    %880 = vset.pattern.permute.xlu0 0
    %881 = vperm.xlu0 %880, %v589
    %v882 = vpop.permute.xlu0 %881
    %v884 = vmul.f32 %v878, %v882
    %v885 = vadd.f32 %v871, %v884
    %886 = vrot.lane.b32.xlu0 %v79, 110
    %v887 = vpop.permute.xlu0 %886
    %v888 = vmul.f32 %v71, %v77
    %v890 = vperm.slane %v888, 0
    %v892 = vmul.f32 %v887, %v890
    %894 = vset.pattern.permute.xlu0 0
    %895 = vperm.xlu0 %894, %v590
    %v896 = vpop.permute.xlu0 %895
    %v898 = vmul.f32 %v892, %v896
    %v899 = vadd.f32 %v885, %v898
    %v901 = vsel %vm388, %v591, 0
    %903 = vmatpush.msra.mxu0 0.0
    %904 = vmatpush.msra.mxu0 0.0
    %905 = vmatpush.msra.mxu0 0.0
    %906 = vmatpush.msra.mxu0 0.0
    %907 = vmatpush.msra.mxu0 0.0
    %908 = vmatpush.msra.mxu0 0.0
    %909 = vmatpush.msra.mxu0 0.0
    %910 = vmatpush.msra.mxu0 0.0
    %911 = vmatpush.msra.mxu0 0.0
    %912 = vmatpush.msra.mxu0 0.0
    %913 = vmatpush.msra.mxu0 0.0
    %914 = vmatpush.msra.mxu0 0.0
    %915 = vmatpush.msra.mxu0 0.0
    %916 = vmatpush.msra.mxu0 0.0
    %917 = vmatpush.msra.mxu0 0.0
    %918 = vmatpush.msra.mxu0 %v899
    %919 = vmatmul.f32.gmra.mxu0 %v901
    %v920 = vpop.f32.mrf.mxu0
    %v921 = vadd.f32 0.0, %v920
    %922 = vdwg.mxu0
    %923 = vadd.xlane.f32.xlu0 %v921
    %v924 = vpop.xlane.xlu0 %923
    %v925 = vmul.f32 %v924, %v197
    %v926 = vsub.f32 %v921, %v925
    %v927 = vmul.f32 %v926, %v926
    %928 = vadd.xlane.f32.xlu0 %v927
    %v929 = vpop.xlane.xlu0 %928
    %v930 = vmul.f32 %v929, %v197
    %v931 = vadd.f32 %v930, 1e-05
    %v932 = vrsqrt.pop %v931
    %v933 = vmul.f32 %v932, %v931
    %v934 = vmul.f32 %v933, %v932
    %v935 = vmul.f32 0.5, %v934
    %v936 = vsub.f32 1.5, %v935
    %v937 = vmul.f32 %v932, %v936
    %vm938 = vweird.f32 %v931
    %vm939 = vweird.f32 %v932
    %vm940 = vmor %vm938, %vm939
    %v941 = vsel %vm940, %v932, %v937
    %v942 = vmul.f32 %v926, %v941
    %v943 = vmax.f32 %v942, 0.0
    %944 = vrot.lane.b32.xlu0 %v943, 18
    %v945 = vpop.permute.xlu0 %944
    %v946 = vmul.f32 %v945, %v622
    %948 = vset.pattern.permute.xlu0 0
    %949 = vperm.xlu0 %948, %v592
    %v950 = vpop.permute.xlu0 %949
    %v952 = vmul.f32 %v946, %v950
    %953 = vrot.lane.b32.xlu0 %v943, 17
    %v954 = vpop.permute.xlu0 %953
    %v955 = vmul.f32 %v954, %v635
    %957 = vset.pattern.permute.xlu0 0
    %958 = vperm.xlu0 %957, %v593
    %v959 = vpop.permute.xlu0 %958
    %v961 = vmul.f32 %v955, %v959
    %v962 = vadd.f32 %v952, %v961
    %963 = vrot.lane.b32.xlu0 %v943, 16
    %v964 = vpop.permute.xlu0 %963
    %v965 = vmul.f32 %v964, %v648
    %967 = vset.pattern.permute.xlu0 0
    %968 = vperm.xlu0 %967, %v594
    %v969 = vpop.permute.xlu0 %968
    %v971 = vmul.f32 %v965, %v969
    %v972 = vadd.f32 %v962, %v971
    %973 = vrot.lane.b32.xlu0 %v943, 15
    %v974 = vpop.permute.xlu0 %973
    %v975 = vmul.f32 %v974, %v662
    %977 = vset.pattern.permute.xlu0 0
    %978 = vperm.xlu0 %977, %v595
    %v979 = vpop.permute.xlu0 %978
    %v981 = vmul.f32 %v975, %v979
    %v982 = vadd.f32 %v972, %v981
    %983 = vrot.lane.b32.xlu0 %v943, 14
    %v984 = vpop.permute.xlu0 %983
    %v985 = vmul.f32 %v984, %v676
    %987 = vset.pattern.permute.xlu0 0
    %988 = vperm.xlu0 %987, %v596
    %v989 = vpop.permute.xlu0 %988
    %v991 = vmul.f32 %v985, %v989
    %v992 = vadd.f32 %v982, %v991
    %993 = vrot.lane.b32.xlu0 %v943, 10
    %v994 = vpop.permute.xlu0 %993
    %v995 = vmul.f32 %v994, %v690
    %997 = vset.pattern.permute.xlu0 0
    %998 = vperm.xlu0 %997, %v597
    %v999 = vpop.permute.xlu0 %998
    %v1001 = vmul.f32 %v995, %v999
    %v1002 = vadd.f32 %v992, %v1001
    %1003 = vrot.lane.b32.xlu0 %v943, 9
    %v1004 = vpop.permute.xlu0 %1003
    %v1005 = vmul.f32 %v1004, %v85
    %1007 = vset.pattern.permute.xlu0 0
    %1008 = vperm.xlu0 %1007, %v598
    %v1009 = vpop.permute.xlu0 %1008
    %v1011 = vmul.f32 %v1005, %v1009
    %v1012 = vadd.f32 %v1002, %v1011
    %1013 = vrot.lane.b32.xlu0 %v943, 8
    %v1014 = vpop.permute.xlu0 %1013
    %v1015 = vmul.f32 %v1014, %v97
    %1017 = vset.pattern.permute.xlu0 0
    %1018 = vperm.xlu0 %1017, %v599
    %v1019 = vpop.permute.xlu0 %1018
    %v1021 = vmul.f32 %v1015, %v1019
    %v1022 = vadd.f32 %v1012, %v1021
    %1023 = vrot.lane.b32.xlu0 %v943, 7
    %v1024 = vpop.permute.xlu0 %1023
    %v1025 = vmul.f32 %v1024, %v111
    %1027 = vset.pattern.permute.xlu0 0
    %1028 = vperm.xlu0 %1027, %v600
    %v1029 = vpop.permute.xlu0 %1028
    %v1031 = vmul.f32 %v1025, %v1029
    %v1032 = vadd.f32 %v1022, %v1031
    %1033 = vrot.lane.b32.xlu0 %v943, 6
    %v1034 = vpop.permute.xlu0 %1033
    %v1035 = vmul.f32 %v1034, %v725
    %1037 = vset.pattern.permute.xlu0 0
    %1038 = vperm.xlu0 %1037, %v601
    %v1039 = vpop.permute.xlu0 %1038
    %v1041 = vmul.f32 %v1035, %v1039
    %v1042 = vadd.f32 %v1032, %v1041
    %1043 = vrot.lane.b32.xlu0 %v943, 2
    %v1044 = vpop.permute.xlu0 %1043
    %v1045 = vmul.f32 %v1044, %v738
    %1047 = vset.pattern.permute.xlu0 0
    %1048 = vperm.xlu0 %1047, %v602
    %v1049 = vpop.permute.xlu0 %1048
    %v1051 = vmul.f32 %v1045, %v1049
    %v1052 = vadd.f32 %v1042, %v1051
    %1053 = vrot.lane.b32.xlu0 %v943, 1
    %v1054 = vpop.permute.xlu0 %1053
    %v1055 = vmul.f32 %v1054, %v124
    %1057 = vset.pattern.permute.xlu0 0
    %1058 = vperm.xlu0 %1057, %v603
    %v1059 = vpop.permute.xlu0 %1058
    %v1061 = vmul.f32 %v1055, %v1059
    %v1062 = vadd.f32 %v1052, %v1061
    %1064 = vset.pattern.permute.xlu0 0
    %1065 = vperm.xlu0 %1064, %v604
    %v1066 = vpop.permute.xlu0 %1065
    %v1068 = vmul.f32 %v943, %v1066
    %v1069 = vadd.f32 %v1062, %v1068
    %1070 = vrot.lane.b32.xlu0 %v943, 127
    %v1071 = vpop.permute.xlu0 %1070
    %v1072 = vmul.f32 %v1071, %v138
    %1074 = vset.pattern.permute.xlu0 0
    %1075 = vperm.xlu0 %1074, %v605
    %v1076 = vpop.permute.xlu0 %1075
    %v1078 = vmul.f32 %v1072, %v1076
    %v1079 = vadd.f32 %v1069, %v1078
    %1080 = vrot.lane.b32.xlu0 %v943, 126
    %v1081 = vpop.permute.xlu0 %1080
    %v1082 = vmul.f32 %v1081, %v772
    %1084 = vset.pattern.permute.xlu0 0
    %1085 = vperm.xlu0 %1084, %v606
    %v1086 = vpop.permute.xlu0 %1085
    %v1088 = vmul.f32 %v1082, %v1086
    %v1089 = vadd.f32 %v1079, %v1088
    %1090 = vrot.lane.b32.xlu0 %v943, 122
    %v1091 = vpop.permute.xlu0 %1090
    %v1092 = vmul.f32 %v1091, %v786
    %1094 = vset.pattern.permute.xlu0 0
    %1095 = vperm.xlu0 %1094, %v607
    %v1096 = vpop.permute.xlu0 %1095
    %v1098 = vmul.f32 %v1092, %v1096
    %v1099 = vadd.f32 %v1089, %v1098
    %1100 = vrot.lane.b32.xlu0 %v943, 121
    %v1101 = vpop.permute.xlu0 %1100
    %v1102 = vmul.f32 %v1101, %v152
    %1104 = vset.pattern.permute.xlu0 0
    %1105 = vperm.xlu0 %1104, %v608
    %v1106 = vpop.permute.xlu0 %1105
    %v1108 = vmul.f32 %v1102, %v1106
    %v1109 = vadd.f32 %v1099, %v1108
    %1110 = vrot.lane.b32.xlu0 %v943, 120
    %v1111 = vpop.permute.xlu0 %1110
    %v1112 = vmul.f32 %v1111, %v165
    %1114 = vset.pattern.permute.xlu0 0
    %1115 = vperm.xlu0 %1114, %v609
    %v1116 = vpop.permute.xlu0 %1115
    %v1118 = vmul.f32 %v1112, %v1116
    %v1119 = vadd.f32 %v1109, %v1118
    %1120 = vrot.lane.b32.xlu0 %v943, 119
    %v1121 = vpop.permute.xlu0 %1120
    %v1122 = vmul.f32 %v1121, %v179
    %1124 = vset.pattern.permute.xlu0 0
    %1125 = vperm.xlu0 %1124, %v610
    %v1126 = vpop.permute.xlu0 %1125
    %v1128 = vmul.f32 %v1122, %v1126
    %v1129 = vadd.f32 %v1119, %v1128
    %1130 = vrot.lane.b32.xlu0 %v943, 118
    %v1131 = vpop.permute.xlu0 %1130
    %v1132 = vmul.f32 %v1131, %v821
    %1134 = vset.pattern.permute.xlu0 0
    %1135 = vperm.xlu0 %1134, %v611
    %v1136 = vpop.permute.xlu0 %1135
    %v1138 = vmul.f32 %v1132, %v1136
    %v1139 = vadd.f32 %v1129, %v1138
    %1140 = vrot.lane.b32.xlu0 %v943, 114
    %v1141 = vpop.permute.xlu0 %1140
    %v1142 = vmul.f32 %v1141, %v835
    %1144 = vset.pattern.permute.xlu0 0
    %1145 = vperm.xlu0 %1144, %v612
    %v1146 = vpop.permute.xlu0 %1145
    %v1148 = vmul.f32 %v1142, %v1146
    %v1149 = vadd.f32 %v1139, %v1148
    %1150 = vrot.lane.b32.xlu0 %v943, 113
    %v1151 = vpop.permute.xlu0 %1150
    %v1152 = vmul.f32 %v1151, %v849
    %1154 = vset.pattern.permute.xlu0 0
    %1155 = vperm.xlu0 %1154, %v613
    %v1156 = vpop.permute.xlu0 %1155
    %v1158 = vmul.f32 %v1152, %v1156
    %v1159 = vadd.f32 %v1149, %v1158
    %1160 = vrot.lane.b32.xlu0 %v943, 112
    %v1161 = vpop.permute.xlu0 %1160
    %v1162 = vmul.f32 %v1161, %v862
    %1164 = vset.pattern.permute.xlu0 0
    %1165 = vperm.xlu0 %1164, %v614
    %v1166 = vpop.permute.xlu0 %1165
    %v1168 = vmul.f32 %v1162, %v1166
    %v1169 = vadd.f32 %v1159, %v1168
    %1170 = vrot.lane.b32.xlu0 %v943, 111
    %v1171 = vpop.permute.xlu0 %1170
    %v1172 = vmul.f32 %v1171, %v876
    %1174 = vset.pattern.permute.xlu0 0
    %1175 = vperm.xlu0 %1174, %v615
    %v1176 = vpop.permute.xlu0 %1175
    %v1178 = vmul.f32 %v1172, %v1176
    %v1179 = vadd.f32 %v1169, %v1178
    %1180 = vrot.lane.b32.xlu0 %v943, 110
    %v1181 = vpop.permute.xlu0 %1180
    %v1182 = vmul.f32 %v1181, %v890
    %1184 = vset.pattern.permute.xlu0 0
    %1185 = vperm.xlu0 %1184, %v616
    %v1186 = vpop.permute.xlu0 %1185
    %v1188 = vmul.f32 %v1182, %v1186
    %v1189 = vadd.f32 %v1179, %v1188
    %v1191 = vsel %vm388, %v617, 0
    %1193 = vmatpush.msra.mxu0 0.0
    %1194 = vmatpush.msra.mxu0 0.0
    %1195 = vmatpush.msra.mxu0 0.0
    %1196 = vmatpush.msra.mxu0 0.0
    %1197 = vmatpush.msra.mxu0 0.0
    %1198 = vmatpush.msra.mxu0 0.0
    %1199 = vmatpush.msra.mxu0 0.0
    %1200 = vmatpush.msra.mxu0 0.0
    %1201 = vmatpush.msra.mxu0 0.0
    %1202 = vmatpush.msra.mxu0 0.0
    %1203 = vmatpush.msra.mxu0 0.0
    %1204 = vmatpush.msra.mxu0 0.0
    %1205 = vmatpush.msra.mxu0 0.0
    %1206 = vmatpush.msra.mxu0 0.0
    %1207 = vmatpush.msra.mxu0 0.0
    %1208 = vmatpush.msra.mxu0 %v1189
    %1209 = vmatmul.f32.gmra.mxu0 %v1191
    %v1210 = vpop.f32.mrf.mxu0
    %v1211 = vadd.f32 0.0, %v1210
    %1212 = vdwg.mxu0
    %1213 = vadd.xlane.f32.xlu0 %v1211
    %v1214 = vpop.xlane.xlu0 %1213
    %v1215 = vmul.f32 %v1214, %v197
    %v1216 = vsub.f32 %v1211, %v1215
    %v1217 = vmul.f32 %v1216, %v1216
    %1218 = vadd.xlane.f32.xlu0 %v1217
    %v1219 = vpop.xlane.xlu0 %1218
    %v1220 = vmul.f32 %v1219, %v197
    %v1221 = vadd.f32 %v1220, 1e-05
    %v1222 = vrsqrt.pop %v1221
    %v1223 = vmul.f32 %v1222, %v1221
    %v1224 = vmul.f32 %v1223, %v1222
    %v1225 = vmul.f32 0.5, %v1224
    %v1226 = vsub.f32 1.5, %v1225
    %v1227 = vmul.f32 %v1222, %v1226
    %vm1228 = vweird.f32 %v1221
    %vm1229 = vweird.f32 %v1222
    %vm1230 = vmor %vm1228, %vm1229
    %v1231 = vsel %vm1230, %v1222, %v1227
    %v1232 = vmul.f32 %v1216, %v1231
    %v1233 = vstv %s565
    %v1234 = vmul.f32 %v1233, %v1232
    %v1235 = vadd.f32 %v564, %v1234
    %s1236 = sld [smem:[#allocation2 + $0x6]]
    %v1237 = vld [vmem:[%s12] sm:$0xff]
    %v1238 = vld [vmem:[%s12 + $0x8] sm:$0xff]
    %v1239 = vld [vmem:[%s12 + $0x10] sm:$0xff]
    %v1240 = vld [vmem:[%s12 + $0x18] sm:$0xff]
    %v1241 = vld [vmem:[%s12 + $0x20] sm:$0xff]
    %v1242 = vld [vmem:[%s12 + $0x28] sm:$0xff]
    %v1243 = vld [vmem:[%s12 + $0x30] sm:$0xff]
    %v1244 = vld [vmem:[%s12 + $0x38] sm:$0xff]
    %v1245 = vld [vmem:[%s12 + $0x40] sm:$0xff]
    %v1246 = vld [vmem:[%s13] sm:$0xff]
    %1248 = vset.pattern.permute.xlu0 0
    %1249 = vperm.xlu0 %1248, %v1237
    %v1250 = vpop.permute.xlu0 %1249
    %v1252 = vmul.f32 %v624, %v1250
    %1254 = vset.pattern.permute.xlu0 0
    %1255 = vperm.xlu0 %1254, %v1238
    %v1256 = vpop.permute.xlu0 %1255
    %v1258 = vmul.f32 %v650, %v1256
    %v1259 = vadd.f32 %v1252, %v1258
    %1261 = vset.pattern.permute.xlu0 0
    %1262 = vperm.xlu0 %1261, %v1239
    %v1263 = vpop.permute.xlu0 %1262
    %v1265 = vmul.f32 %v678, %v1263
    %v1266 = vadd.f32 %v1259, %v1265
    %1268 = vset.pattern.permute.xlu0 0
    %1269 = vperm.xlu0 %1268, %v1240
    %v1270 = vpop.permute.xlu0 %1269
    %v1272 = vmul.f32 %v740, %v1270
    %v1273 = vadd.f32 %v1266, %v1272
    %1275 = vset.pattern.permute.xlu0 0
    %1276 = vperm.xlu0 %1275, %v1241
    %v1277 = vpop.permute.xlu0 %1276
    %v1279 = vmul.f32 %v79, %v1277
    %v1280 = vadd.f32 %v1273, %v1279
    %1282 = vset.pattern.permute.xlu0 0
    %1283 = vperm.xlu0 %1282, %v1242
    %v1284 = vpop.permute.xlu0 %1283
    %v1286 = vmul.f32 %v774, %v1284
    %v1287 = vadd.f32 %v1280, %v1286
    %1289 = vset.pattern.permute.xlu0 0
    %1290 = vperm.xlu0 %1289, %v1243
    %v1291 = vpop.permute.xlu0 %1290
    %v1293 = vmul.f32 %v837, %v1291
    %v1294 = vadd.f32 %v1287, %v1293
    %1296 = vset.pattern.permute.xlu0 0
    %1297 = vperm.xlu0 %1296, %v1244
    %v1298 = vpop.permute.xlu0 %1297
    %v1300 = vmul.f32 %v864, %v1298
    %v1301 = vadd.f32 %v1294, %v1300
    %1303 = vset.pattern.permute.xlu0 0
    %1304 = vperm.xlu0 %1303, %v1245
    %v1305 = vpop.permute.xlu0 %1304
    %v1307 = vmul.f32 %v892, %v1305
    %v1308 = vadd.f32 %v1301, %v1307
    %v1310 = vsel %vm388, %v1246, 0
    %1312 = vmatpush.msra.mxu0 0.0
    %1313 = vmatpush.msra.mxu0 0.0
    %1314 = vmatpush.msra.mxu0 0.0
    %1315 = vmatpush.msra.mxu0 0.0
    %1316 = vmatpush.msra.mxu0 0.0
    %1317 = vmatpush.msra.mxu0 0.0
    %1318 = vmatpush.msra.mxu0 0.0
    %1319 = vmatpush.msra.mxu0 0.0
    %1320 = vmatpush.msra.mxu0 0.0
    %1321 = vmatpush.msra.mxu0 0.0
    %1322 = vmatpush.msra.mxu0 0.0
    %1323 = vmatpush.msra.mxu0 0.0
    %1324 = vmatpush.msra.mxu0 0.0
    %1325 = vmatpush.msra.mxu0 0.0
    %1326 = vmatpush.msra.mxu0 0.0
    %1327 = vmatpush.msra.mxu0 %v1308
    %1328 = vmatmul.f32.gmra.mxu0 %v1310
    %v1329 = vpop.f32.mrf.mxu0
    %v1330 = vadd.f32 0.0, %v1329
    %1331 = vdwg.mxu0
    %1332 = vadd.xlane.f32.xlu0 %v1330
    %v1333 = vpop.xlane.xlu0 %1332
    %v1334 = vmul.f32 %v1333, %v197
    %v1335 = vsub.f32 %v1330, %v1334
    %v1336 = vmul.f32 %v1335, %v1335
    %1337 = vadd.xlane.f32.xlu0 %v1336
    %v1338 = vpop.xlane.xlu0 %1337
    %v1339 = vmul.f32 %v1338, %v197
    %v1340 = vadd.f32 %v1339, 1e-05
    %v1341 = vrsqrt.pop %v1340
    %v1342 = vmul.f32 %v1341, %v1340
    %v1343 = vmul.f32 %v1342, %v1341
    %v1344 = vmul.f32 0.5, %v1343
    %v1345 = vsub.f32 1.5, %v1344
    %v1346 = vmul.f32 %v1341, %v1345
    %vm1347 = vweird.f32 %v1340
    %vm1348 = vweird.f32 %v1341
    %vm1349 = vmor %vm1347, %vm1348
    %v1350 = vsel %vm1349, %v1341, %v1346
    %v1351 = vmul.f32 %v1335, %v1350
    %v1352 = vstv %s1236
    %v1353 = vmul.f32 %v1352, %v1351
    %v1354 = vadd.f32 %v1235, %v1353
    %s1355 = sld [smem:[#allocation2 + $0x7]]
    %v1356 = vld [vmem:[%s14] sm:$0xff]
    %v1357 = vld [vmem:[%s14 + $0x8] sm:$0xff]
    %v1358 = vld [vmem:[%s14 + $0x10] sm:$0xff]
    %v1359 = vld [vmem:[%s14 + $0x18] sm:$0xff]
    %v1360 = vld [vmem:[%s14 + $0x20] sm:$0xff]
    %v1361 = vld [vmem:[%s14 + $0x28] sm:$0xff]
    %v1362 = vld [vmem:[%s14 + $0x30] sm:$0xff]
    %v1363 = vld [vmem:[%s14 + $0x38] sm:$0xff]
    %v1364 = vld [vmem:[%s14 + $0x40] sm:$0xff]
    %v1365 = vld [vmem:[%s14 + $0x48] sm:$0xff]
    %v1366 = vld [vmem:[%s14 + $0x50] sm:$0xff]
    %v1367 = vld [vmem:[%s14 + $0x58] sm:$0xff]
    %v1368 = vld [vmem:[%s14 + $0x60] sm:$0xff]
    %v1369 = vld [vmem:[%s14 + $0x68] sm:$0xff]
    %v1370 = vld [vmem:[%s14 + $0x70] sm:$0xff]
    %v1371 = vld [vmem:[%s14 + $0x78] sm:$0xff]
    %v1372 = vld [vmem:[%s14 + $0x80] sm:$0xff]
    %v1373 = vld [vmem:[%s14 + $0x88] sm:$0xff]
    %v1374 = vld [vmem:[%s14 + $0x90] sm:$0xff]
    %v1375 = vld [vmem:[%s14 + $0x98] sm:$0xff]
    %v1376 = vld [vmem:[%s14 + $0xa0] sm:$0xff]
    %v1377 = vld [vmem:[%s14 + $0xa8] sm:$0xff]
    %v1378 = vld [vmem:[%s14 + $0xb0] sm:$0xff]
    %v1379 = vld [vmem:[%s14 + $0xb8] sm:$0xff]
    %v1380 = vld [vmem:[%s14 + $0xc0] sm:$0xff]
    %v1381 = vld [vmem:[%s15] sm:$0xff]
    %1382 = vrot.lane.b32.xlu0 %v79, 36
    %v1383 = vpop.permute.xlu0 %1382
    %v1384 = vmul.f32 %v67, %v73
    %v1386 = vperm.slane %v1384, 0
    %v1388 = vmul.f32 %v1383, %v1386
    %1390 = vset.pattern.permute.xlu0 0
    %1391 = vperm.xlu0 %1390, %v1356
    %v1392 = vpop.permute.xlu0 %1391
    %v1394 = vmul.f32 %v1388, %v1392
    %1395 = vrot.lane.b32.xlu0 %v79, 34
    %v1396 = vpop.permute.xlu0 %1395
    %v1397 = vmul.f32 %v67, %v74
    %v1399 = vperm.slane %v1397, 0
    %v1401 = vmul.f32 %v1396, %v1399
    %1403 = vset.pattern.permute.xlu0 0
    %1404 = vperm.xlu0 %1403, %v1357
    %v1405 = vpop.permute.xlu0 %1404
    %v1407 = vmul.f32 %v1401, %v1405
    %v1408 = vadd.f32 %v1394, %v1407
    %1409 = vrot.lane.b32.xlu0 %v79, 32
    %v1410 = vpop.permute.xlu0 %1409
    %v1412 = vperm.slane %v67, 0
    %v1414 = vmul.f32 %v1410, %v1412
    %1416 = vset.pattern.permute.xlu0 0
    %1417 = vperm.xlu0 %1416, %v1358
    %v1418 = vpop.permute.xlu0 %1417
    %v1420 = vmul.f32 %v1414, %v1418
    %v1421 = vadd.f32 %v1408, %v1420
    %1422 = vrot.lane.b32.xlu0 %v79, 30
    %v1423 = vpop.permute.xlu0 %1422
    %v1424 = vmul.f32 %v67, %v77
    %v1426 = vperm.slane %v1424, 0
    %v1428 = vmul.f32 %v1423, %v1426
    %1430 = vset.pattern.permute.xlu0 0
    %1431 = vperm.xlu0 %1430, %v1359
    %v1432 = vpop.permute.xlu0 %1431
    %v1434 = vmul.f32 %v1428, %v1432
    %v1435 = vadd.f32 %v1421, %v1434
    %1436 = vrot.lane.b32.xlu0 %v79, 28
    %v1437 = vpop.permute.xlu0 %1436
    %v1438 = vmul.f32 %v67, %v78
    %v1440 = vperm.slane %v1438, 0
    %v1442 = vmul.f32 %v1437, %v1440
    %1444 = vset.pattern.permute.xlu0 0
    %1445 = vperm.xlu0 %1444, %v1360
    %v1446 = vpop.permute.xlu0 %1445
    %v1448 = vmul.f32 %v1442, %v1446
    %v1449 = vadd.f32 %v1435, %v1448
    %1450 = vrot.lane.b32.xlu0 %v79, 20
    %v1451 = vpop.permute.xlu0 %1450
    %v1452 = vmul.f32 %v68, %v73
    %v1454 = vperm.slane %v1452, 0
    %v1456 = vmul.f32 %v1451, %v1454
    %1458 = vset.pattern.permute.xlu0 0
    %1459 = vperm.xlu0 %1458, %v1361
    %v1460 = vpop.permute.xlu0 %1459
    %v1462 = vmul.f32 %v1456, %v1460
    %v1463 = vadd.f32 %v1449, %v1462
    %1465 = vset.pattern.permute.xlu0 0
    %1466 = vperm.xlu0 %1465, %v1362
    %v1467 = vpop.permute.xlu0 %1466
    %v1469 = vmul.f32 %v624, %v1467
    %v1470 = vadd.f32 %v1463, %v1469
    %1472 = vset.pattern.permute.xlu0 0
    %1473 = vperm.xlu0 %1472, %v1363
    %v1474 = vpop.permute.xlu0 %1473
    %v1476 = vmul.f32 %v650, %v1474
    %v1477 = vadd.f32 %v1470, %v1476
    %1479 = vset.pattern.permute.xlu0 0
    %1480 = vperm.xlu0 %1479, %v1364
    %v1481 = vpop.permute.xlu0 %1480
    %v1483 = vmul.f32 %v678, %v1481
    %v1484 = vadd.f32 %v1477, %v1483
    %1485 = vrot.lane.b32.xlu0 %v79, 12
    %v1486 = vpop.permute.xlu0 %1485
    %v1487 = vmul.f32 %v68, %v78
    %v1489 = vperm.slane %v1487, 0
    %v1491 = vmul.f32 %v1486, %v1489
    %1493 = vset.pattern.permute.xlu0 0
    %1494 = vperm.xlu0 %1493, %v1365
    %v1495 = vpop.permute.xlu0 %1494
    %v1497 = vmul.f32 %v1491, %v1495
    %v1498 = vadd.f32 %v1484, %v1497
    %1499 = vrot.lane.b32.xlu0 %v79, 4
    %v1500 = vpop.permute.xlu0 %1499
    %v1502 = vperm.slane %v73, 0
    %v1504 = vmul.f32 %v1500, %v1502
    %1506 = vset.pattern.permute.xlu0 0
    %1507 = vperm.xlu0 %1506, %v1366
    %v1508 = vpop.permute.xlu0 %1507
    %v1510 = vmul.f32 %v1504, %v1508
    %v1511 = vadd.f32 %v1498, %v1510
    %1513 = vset.pattern.permute.xlu0 0
    %1514 = vperm.xlu0 %1513, %v1367
    %v1515 = vpop.permute.xlu0 %1514
    %v1517 = vmul.f32 %v740, %v1515
    %v1518 = vadd.f32 %v1511, %v1517
    %1520 = vset.pattern.permute.xlu0 0
    %1521 = vperm.xlu0 %1520, %v1368
    %v1522 = vpop.permute.xlu0 %1521
    %v1524 = vmul.f32 %v79, %v1522
    %v1525 = vadd.f32 %v1518, %v1524
    %1527 = vset.pattern.permute.xlu0 0
    %1528 = vperm.xlu0 %1527, %v1369
    %v1529 = vpop.permute.xlu0 %1528
    %v1531 = vmul.f32 %v774, %v1529
    %v1532 = vadd.f32 %v1525, %v1531
    %1533 = vrot.lane.b32.xlu0 %v79, 124
    %v1534 = vpop.permute.xlu0 %1533
    %v1536 = vperm.slane %v78, 0
    %v1538 = vmul.f32 %v1534, %v1536
    %1540 = vset.pattern.permute.xlu0 0
    %1541 = vperm.xlu0 %1540, %v1370
    %v1542 = vpop.permute.xlu0 %1541
    %v1544 = vmul.f32 %v1538, %v1542
    %v1545 = vadd.f32 %v1532, %v1544
    %1546 = vrot.lane.b32.xlu0 %v79, 116
    %v1547 = vpop.permute.xlu0 %1546
    %v1548 = vmul.f32 %v71, %v73
    %v1550 = vperm.slane %v1548, 0
    %v1552 = vmul.f32 %v1547, %v1550
    %1554 = vset.pattern.permute.xlu0 0
    %1555 = vperm.xlu0 %1554, %v1371
    %v1556 = vpop.permute.xlu0 %1555
    %v1558 = vmul.f32 %v1552, %v1556
    %v1559 = vadd.f32 %v1545, %v1558
    %1561 = vset.pattern.permute.xlu0 0
    %1562 = vperm.xlu0 %1561, %v1372
    %v1563 = vpop.permute.xlu0 %1562
    %v1565 = vmul.f32 %v837, %v1563
    %v1566 = vadd.f32 %v1559, %v1565
    %1568 = vset.pattern.permute.xlu0 0
    %1569 = vperm.xlu0 %1568, %v1373
    %v1570 = vpop.permute.xlu0 %1569
    %v1572 = vmul.f32 %v864, %v1570
    %v1573 = vadd.f32 %v1566, %v1572
    %1575 = vset.pattern.permute.xlu0 0
    %1576 = vperm.xlu0 %1575, %v1374
    %v1577 = vpop.permute.xlu0 %1576
    %v1579 = vmul.f32 %v892, %v1577
    %v1580 = vadd.f32 %v1573, %v1579
    %1581 = vrot.lane.b32.xlu0 %v79, 108
    %v1582 = vpop.permute.xlu0 %1581
    %v1583 = vmul.f32 %v71, %v78
    %v1585 = vperm.slane %v1583, 0
    %v1587 = vmul.f32 %v1582, %v1585
    %1589 = vset.pattern.permute.xlu0 0
    %1590 = vperm.xlu0 %1589, %v1375
    %v1591 = vpop.permute.xlu0 %1590
    %v1593 = vmul.f32 %v1587, %v1591
    %v1594 = vadd.f32 %v1580, %v1593
    %1595 = vrot.lane.b32.xlu0 %v79, 100
    %v1596 = vpop.permute.xlu0 %1595
    %v1597 = vmul.f32 %v72, %v73
    %v1599 = vperm.slane %v1597, 0
    %v1601 = vmul.f32 %v1596, %v1599
    %1603 = vset.pattern.permute.xlu0 0
    %1604 = vperm.xlu0 %1603, %v1376
    %v1605 = vpop.permute.xlu0 %1604
    %v1607 = vmul.f32 %v1601, %v1605
    %v1608 = vadd.f32 %v1594, %v1607
    %1609 = vrot.lane.b32.xlu0 %v79, 98
    %v1610 = vpop.permute.xlu0 %1609
    %v1611 = vmul.f32 %v72, %v74
    %v1613 = vperm.slane %v1611, 0
    %v1615 = vmul.f32 %v1610, %v1613
    %1617 = vset.pattern.permute.xlu0 0
    %1618 = vperm.xlu0 %1617, %v1377
    %v1619 = vpop.permute.xlu0 %1618
    %v1621 = vmul.f32 %v1615, %v1619
    %v1622 = vadd.f32 %v1608, %v1621
    %1623 = vrot.lane.b32.xlu0 %v79, 96
    %v1624 = vpop.permute.xlu0 %1623
    %v1626 = vperm.slane %v72, 0
    %v1628 = vmul.f32 %v1624, %v1626
    %1630 = vset.pattern.permute.xlu0 0
    %1631 = vperm.xlu0 %1630, %v1378
    %v1632 = vpop.permute.xlu0 %1631
    %v1634 = vmul.f32 %v1628, %v1632
    %v1635 = vadd.f32 %v1622, %v1634
    %1636 = vrot.lane.b32.xlu0 %v79, 94
    %v1637 = vpop.permute.xlu0 %1636
    %v1638 = vmul.f32 %v72, %v77
    %v1640 = vperm.slane %v1638, 0
    %v1642 = vmul.f32 %v1637, %v1640
    %1644 = vset.pattern.permute.xlu0 0
    %1645 = vperm.xlu0 %1644, %v1379
    %v1646 = vpop.permute.xlu0 %1645
    %v1648 = vmul.f32 %v1642, %v1646
    %v1649 = vadd.f32 %v1635, %v1648
    %1650 = vrot.lane.b32.xlu0 %v79, 92
    %v1651 = vpop.permute.xlu0 %1650
    %v1652 = vmul.f32 %v72, %v78
    %v1654 = vperm.slane %v1652, 0
    %v1656 = vmul.f32 %v1651, %v1654
    %1658 = vset.pattern.permute.xlu0 0
    %1659 = vperm.xlu0 %1658, %v1380
    %v1660 = vpop.permute.xlu0 %1659
    %v1662 = vmul.f32 %v1656, %v1660
    %v1663 = vadd.f32 %v1649, %v1662
    %v1665 = vsel %vm388, %v1381, 0
    %1667 = vmatpush.msra.mxu0 0.0
    %1668 = vmatpush.msra.mxu0 0.0
    %1669 = vmatpush.msra.mxu0 0.0
    %1670 = vmatpush.msra.mxu0 0.0
    %1671 = vmatpush.msra.mxu0 0.0
    %1672 = vmatpush.msra.mxu0 0.0
    %1673 = vmatpush.msra.mxu0 0.0
    %1674 = vmatpush.msra.mxu0 0.0
    %1675 = vmatpush.msra.mxu0 0.0
    %1676 = vmatpush.msra.mxu0 0.0
    %1677 = vmatpush.msra.mxu0 0.0
    %1678 = vmatpush.msra.mxu0 0.0
    %1679 = vmatpush.msra.mxu0 0.0
    %1680 = vmatpush.msra.mxu0 0.0
    %1681 = vmatpush.msra.mxu0 0.0
    %1682 = vmatpush.msra.mxu0 %v1663
    %1683 = vmatmul.f32.gmra.mxu0 %v1665
    %v1684 = vpop.f32.mrf.mxu0
    %v1685 = vadd.f32 0.0, %v1684
    %1686 = vdwg.mxu0
    %1687 = vadd.xlane.f32.xlu0 %v1685
    %v1688 = vpop.xlane.xlu0 %1687
    %v1689 = vmul.f32 %v1688, %v197
    %v1690 = vsub.f32 %v1685, %v1689
    %v1691 = vmul.f32 %v1690, %v1690
    %1692 = vadd.xlane.f32.xlu0 %v1691
    %v1693 = vpop.xlane.xlu0 %1692
    %v1694 = vmul.f32 %v1693, %v197
    %v1695 = vadd.f32 %v1694, 1e-05
    %v1696 = vrsqrt.pop %v1695
    %v1697 = vmul.f32 %v1696, %v1695
    %v1698 = vmul.f32 %v1697, %v1696
    %v1699 = vmul.f32 0.5, %v1698
    %v1700 = vsub.f32 1.5, %v1699
    %v1701 = vmul.f32 %v1696, %v1700
    %vm1702 = vweird.f32 %v1695
    %vm1703 = vweird.f32 %v1696
    %vm1704 = vmor %vm1702, %vm1703
    %v1705 = vsel %vm1704, %v1696, %v1701
    %v1706 = vmul.f32 %v1690, %v1705
    %v1707 = vstv %s1355
    %v1708 = vmul.f32 %v1707, %v1706
    %v1709 = vadd.f32 %v1354, %v1708
    %1710 = vst [vmem:[%s16] sm:$0xff] %v1709
    // Predicated region
    $region70: #{cell_forward.7} parent=1 // pred_check
      _
    $region71: #{cell_forward.7} parent=1 // pred_check_branch
      %1712 = sbr.rel (0) target = $region73
    $region72: #{cell_forward.7} parent=1 // pred_region
      _
    $region73: #{cell_forward.7} parent=1 // pred_fallthru
      _
    // Predicated region
    $region74: #{cell_forward.7} parent=1 // pred_check
      _
    $region75: #{cell_forward.7} parent=1 // pred_check_branch
      %1714 = sbr.rel (0) target = $region77
    $region76: #{cell_forward.7} parent=1 // pred_region
      _
    $region77: #{cell_forward.7} parent=1 // pred_fallthru
      _
    %1715 = vsyncpa [#allocation3], 1

// kernel: cell_forward.8
$region0: #{cell_forward.8}
  #allocation0 [shape = 'u32[]', space=smem, size = 0x4, offset = 0x4, fixed_abs, tag = 'smem constant byte address 0x4 - core index']
  #allocation1 [shape = 'u32[72,128]{1,0:T(1,128)}', space=vmem, size = 0x9000, scoped, tag = 'internal scratch']
  %s0 = inlined_call_operand.vmem [shape: f32[8], index: 0, kind: input, shape index: {}]
  %s1 = inlined_call_operand.vmem [shape: f32[9,1,128], index: 1, kind: input, shape index: {}]
  %s2 = inlined_call_operand.vmem [shape: f32[9,1,128], index: 2, kind: input, shape index: {}]
  %s3 = inlined_call_operand.vmem [shape: f32[8,128], index: 3, kind: input, shape index: {}]
  %s4 = inlined_call_operand.vmem [shape: f32[9,8,1], index: 4, kind: input, shape index: {}]
  %s5 = inlined_call_operand.vmem [shape: f32[8,8], index: 5, kind: input, shape index: {}]
  %s6 = inlined_call_operand.vmem [shape: f32[9,8,1], index: 6, kind: input, shape index: {}]
  %s7 = inlined_call_operand.vmem [shape: f32[8,8], index: 7, kind: input, shape index: {}]
  %s8 = inlined_call_operand.vmem [shape: f32[25,8,1], index: 8, kind: input, shape index: {}]
  %s9 = inlined_call_operand.vmem [shape: f32[8,8], index: 9, kind: input, shape index: {}]
  %s10 = inlined_call_operand.vmem [shape: f32[25,8,1], index: 10, kind: input, shape index: {}]
  %s11 = inlined_call_operand.vmem [shape: f32[8,8], index: 11, kind: input, shape index: {}]
  %s12 = inlined_call_operand.vmem [shape: f32[9,8,1], index: 12, kind: input, shape index: {}]
  %s13 = inlined_call_operand.vmem [shape: f32[8,8], index: 13, kind: input, shape index: {}]
  %s14 = inlined_call_operand.vmem [shape: f32[25,8,1], index: 14, kind: input, shape index: {}]
  %s15 = inlined_call_operand.vmem [shape: f32[8,8], index: 15, kind: input, shape index: {}]
  %s16 = inlined_call_operand.vmem [shape: f32[8,128], index: 16, kind: input, shape index: {}, may-alias: {16,17}]
  %s17 = inlined_call_operand.vmem [shape: f32[8,128], index: 17, kind: output, shape index: {}, may-alias: {16,17}]
  %s18 = sld [smem:[#allocation0]]
  $region82: #{cell_forward.8} parent=0
    _
  %s20 = ssub.s32 1, %s18
  %s21 = scalar_select 0, %s20, %s18
  $region1: #{cell_forward.8} parent=0
    #allocation2 [shape = 'u8[512]{0}', space=smem, size = 0x200, scoped, tag = 'input window, operand 0, single buffered']
    #allocation3 [shape = 's32[1]{0}', space=sflag, size = 0x4, scoped, tag = 'scoped memory for cell_forward.8']
    %22 = vsyncpa [#allocation3], 0
    // Predicated region
    $region2: #{cell_forward.8} parent=1 // pred_check
      _
    $region3: #{cell_forward.8} parent=1 // pred_check_branch
      %24 = sbr.rel (0) target = $region5
    $region4: #{cell_forward.8} parent=1 // pred_region
      %26 = vsyncadd [#allocation3], 0
      %s28 = sshll.u32 %s0, 4
      %s29 = int_to_ptr.vmem [resolvable:$true] %s28
      %31 = dma.vmem_to_smem %s29, 16, [#allocation2], [#allocation3]
    $region5: #{cell_forward.8} parent=1 // pred_fallthru
      _
    // Predicated region
    $region6: #{cell_forward.8} parent=1 // pred_check
      _
    $region7: #{cell_forward.8} parent=1 // pred_check_branch
      %33 = sbr.rel (0) target = $region9
    $region8: #{cell_forward.8} parent=1 // pred_region
      _
    $region9: #{cell_forward.8} parent=1 // pred_fallthru
      _
    // Predicated region
    $region10: #{cell_forward.8} parent=1 // pred_check
      _
    $region11: #{cell_forward.8} parent=1 // pred_check_branch
      %35 = sbr.rel (0) target = $region13
    $region12: #{cell_forward.8} parent=1 // pred_region
      _
    $region13: #{cell_forward.8} parent=1 // pred_fallthru
      _
    // Predicated region
    $region14: #{cell_forward.8} parent=1 // pred_check
      _
    $region15: #{cell_forward.8} parent=1 // pred_check_branch
      %37 = sbr.rel (0) target = $region17
    $region16: #{cell_forward.8} parent=1 // pred_region
      _
    $region17: #{cell_forward.8} parent=1 // pred_fallthru
      _
    // Predicated region
    $region18: #{cell_forward.8} parent=1 // pred_check
      _
    $region19: #{cell_forward.8} parent=1 // pred_check_branch
      %39 = sbr.rel (0) target = $region21
    $region20: #{cell_forward.8} parent=1 // pred_region
      _
    $region21: #{cell_forward.8} parent=1 // pred_fallthru
      _
    // Predicated region
    $region22: #{cell_forward.8} parent=1 // pred_check
      _
    $region23: #{cell_forward.8} parent=1 // pred_check_branch
      %41 = sbr.rel (0) target = $region25
    $region24: #{cell_forward.8} parent=1 // pred_region
      _
    $region25: #{cell_forward.8} parent=1 // pred_fallthru
      _
    // Predicated region
    $region26: #{cell_forward.8} parent=1 // pred_check
      _
    $region27: #{cell_forward.8} parent=1 // pred_check_branch
      %43 = sbr.rel (0) target = $region29
    $region28: #{cell_forward.8} parent=1 // pred_region
      _
    $region29: #{cell_forward.8} parent=1 // pred_fallthru
      _
    // Predicated region
    $region30: #{cell_forward.8} parent=1 // pred_check
      _
    $region31: #{cell_forward.8} parent=1 // pred_check_branch
      %45 = sbr.rel (0) target = $region33
    $region32: #{cell_forward.8} parent=1 // pred_region
      _
    $region33: #{cell_forward.8} parent=1 // pred_fallthru
      _
    // Predicated region
    $region34: #{cell_forward.8} parent=1 // pred_check
      _
    $region35: #{cell_forward.8} parent=1 // pred_check_branch
      %47 = sbr.rel (0) target = $region37
    $region36: #{cell_forward.8} parent=1 // pred_region
      _
    $region37: #{cell_forward.8} parent=1 // pred_fallthru
      _
    // Predicated region
    $region38: #{cell_forward.8} parent=1 // pred_check
      _
    $region39: #{cell_forward.8} parent=1 // pred_check_branch
      %49 = sbr.rel (0) target = $region41
    $region40: #{cell_forward.8} parent=1 // pred_region
      _
    $region41: #{cell_forward.8} parent=1 // pred_fallthru
      _
    // Predicated region
    $region42: #{cell_forward.8} parent=1 // pred_check
      _
    $region43: #{cell_forward.8} parent=1 // pred_check_branch
      %51 = sbr.rel (0) target = $region45
    $region44: #{cell_forward.8} parent=1 // pred_region
      _
    $region45: #{cell_forward.8} parent=1 // pred_fallthru
      _
    // Predicated region
    $region46: #{cell_forward.8} parent=1 // pred_check
      _
    $region47: #{cell_forward.8} parent=1 // pred_check_branch
      %53 = sbr.rel (0) target = $region49
    $region48: #{cell_forward.8} parent=1 // pred_region
      _
    $region49: #{cell_forward.8} parent=1 // pred_fallthru
      _
    // Predicated region
    $region50: #{cell_forward.8} parent=1 // pred_check
      _
    $region51: #{cell_forward.8} parent=1 // pred_check_branch
      %55 = sbr.rel (0) target = $region53
    $region52: #{cell_forward.8} parent=1 // pred_region
      _
    $region53: #{cell_forward.8} parent=1 // pred_fallthru
      _
    // Predicated region
    $region54: #{cell_forward.8} parent=1 // pred_check
      _
    $region55: #{cell_forward.8} parent=1 // pred_check_branch
      %57 = sbr.rel (0) target = $region57
    $region56: #{cell_forward.8} parent=1 // pred_region
      _
    $region57: #{cell_forward.8} parent=1 // pred_fallthru
      _
    // Predicated region
    $region58: #{cell_forward.8} parent=1 // pred_check
      _
    $region59: #{cell_forward.8} parent=1 // pred_check_branch
      %59 = sbr.rel (0) target = $region61
    $region60: #{cell_forward.8} parent=1 // pred_region
      _
    $region61: #{cell_forward.8} parent=1 // pred_fallthru
      _
    // Predicated region
    $region62: #{cell_forward.8} parent=1 // pred_check
      _
    $region63: #{cell_forward.8} parent=1 // pred_check_branch
      %61 = sbr.rel (0) target = $region65
    $region64: #{cell_forward.8} parent=1 // pred_region
      _
    $region65: #{cell_forward.8} parent=1 // pred_fallthru
      _
    // Predicated region
    $region66: #{cell_forward.8} parent=1 // pred_check
      _
    $region67: #{cell_forward.8} parent=1 // pred_check_branch
      %63 = sbr.rel (0) target = $region69
    $region68: #{cell_forward.8} parent=1 // pred_region
      _
    $region69: #{cell_forward.8} parent=1 // pred_fallthru
      _
    // Predicated region
    $region70: #{cell_forward.8} parent=1 // pred_check
      _
    $region71: #{cell_forward.8} parent=1 // pred_check_branch
      %65 = sbr.rel (0) target = $region73
    $region72: #{cell_forward.8} parent=1 // pred_region
      %67 = dma.done [#allocation3], 16
    $region73: #{cell_forward.8} parent=1 // pred_fallthru
      _
    %68 = sfence
    %v69 = vld [vmem:[%s3] sm:$0xff]
    %v70 = vld [vmem:[%s1] sm:$0x1]
    %v71 = vld [vmem:[%s1 + $0x2] sm:$0x1]
    %v72 = vld [vmem:[%s1 + $0x3] sm:$0x1]
    %v73 = vld [vmem:[%s1 + $0x5] sm:$0x1]
    %v74 = vld [vmem:[%s1 + $0x6] sm:$0x1]
    %v75 = vld [vmem:[%s1 + $0x8] sm:$0x1]
    %v76 = vld [vmem:[%s2] sm:$0x1]
    %v77 = vld [vmem:[%s2 + $0x2] sm:$0x1]
    %v78 = vld [vmem:[%s2 + $0x3] sm:$0x1]
    %v79 = vld [vmem:[%s2 + $0x5] sm:$0x1]
    %v80 = vld [vmem:[%s2 + $0x6] sm:$0x1]
    %v81 = vld [vmem:[%s2 + $0x8] sm:$0x1]
    %v82 = vmax.f32 %v69, 0.0
    %s83 = sld [smem:[#allocation2 + $0x1]]
    %84 = vrot.lane.b32.xlu0 %v69, 9
    %v85 = vpop.permute.xlu0 %84
    %v86 = vmul.f32 %v72, %v78
    %v88 = vperm.slane %v86, 0
    %v90 = vmul.f32 %v85, %v88
    %v91 = vsub.f32 %v86, 1.0
    %v92 = vmul.f32 %v91, 1e+30
    %v94 = vperm.slane %v92, 0
    %v96 = vadd.f32 %v90, %v94
    %97 = vrot.lane.b32.xlu0 %v69, 8
    %v98 = vpop.permute.xlu0 %97
    %v100 = vperm.slane %v72, 0
    %v102 = vmul.f32 %v98, %v100
    %v103 = vsub.f32 %v72, 1.0
    %v104 = vmul.f32 %v103, 1e+30
    %v106 = vperm.slane %v104, 0
    %v108 = vadd.f32 %v102, %v106
    %v109 = vmax.f32 %v96, %v108
    %110 = vrot.lane.b32.xlu0 %v69, 7
    %v111 = vpop.permute.xlu0 %110
    %v112 = vmul.f32 %v72, %v79
    %v114 = vperm.slane %v112, 0
    %v116 = vmul.f32 %v111, %v114
    %v117 = vsub.f32 %v112, 1.0
    %v118 = vmul.f32 %v117, 1e+30
    %v120 = vperm.slane %v118, 0
    %v122 = vadd.f32 %v116, %v120
    %v123 = vmax.f32 %v109, %v122
    %124 = vrot.lane.b32.xlu0 %v69, 1
    %v125 = vpop.permute.xlu0 %124
    %v127 = vperm.slane %v78, 0
    %v129 = vmul.f32 %v125, %v127
    %v130 = vsub.f32 %v78, 1.0
    %v131 = vmul.f32 %v130, 1e+30
    %v133 = vperm.slane %v131, 0
    %v135 = vadd.f32 %v129, %v133
    %v136 = vmax.f32 %v123, %v135
    %v137 = vmax.f32 %v136, %v69
    %138 = vrot.lane.b32.xlu0 %v69, 127
    %v139 = vpop.permute.xlu0 %138
    %v141 = vperm.slane %v79, 0
    %v143 = vmul.f32 %v139, %v141
    %v144 = vsub.f32 %v79, 1.0
    %v145 = vmul.f32 %v144, 1e+30
    %v147 = vperm.slane %v145, 0
    %v149 = vadd.f32 %v143, %v147
    %v150 = vmax.f32 %v137, %v149
    %151 = vrot.lane.b32.xlu0 %v69, 121
    %v152 = vpop.permute.xlu0 %151
    %v153 = vmul.f32 %v73, %v78
    %v155 = vperm.slane %v153, 0
    %v157 = vmul.f32 %v152, %v155
    %v158 = vsub.f32 %v153, 1.0
    %v159 = vmul.f32 %v158, 1e+30
    %v161 = vperm.slane %v159, 0
    %v163 = vadd.f32 %v157, %v161
    %v164 = vmax.f32 %v150, %v163
    %165 = vrot.lane.b32.xlu0 %v69, 120
    %v166 = vpop.permute.xlu0 %165
    %v168 = vperm.slane %v73, 0
    %v170 = vmul.f32 %v166, %v168
    %v171 = vsub.f32 %v73, 1.0
    %v172 = vmul.f32 %v171, 1e+30
    %v174 = vperm.slane %v172, 0
    %v176 = vadd.f32 %v170, %v174
    %v177 = vmax.f32 %v164, %v176
    %178 = vrot.lane.b32.xlu0 %v69, 119
    %v179 = vpop.permute.xlu0 %178
    %v180 = vmul.f32 %v73, %v79
    %v182 = vperm.slane %v180, 0
    %v184 = vmul.f32 %v179, %v182
    %v185 = vsub.f32 %v180, 1.0
    %v186 = vmul.f32 %v185, 1e+30
    %v188 = vperm.slane %v186, 0
    %v190 = vadd.f32 %v184, %v188
    %v191 = vmax.f32 %v177, %v190
    %192 = vadd.xlane.f32.xlu0 %v191
    %v193 = vpop.xlane.xlu0 %192
    %v194 = vrcp.pop 128.0
    %v195 = vmul.f32 128.0, %v194
    %v196 = vsub.f32 1.0, %v195
    %v197 = vmul.f32 %v194, %v196
    %v198 = vadd.f32 %v194, %v197
    %vm199 = vweird.f32 %v194
    %v200 = vsel %vm199, %v194, %v198
    %v201 = vmul.f32 %v193, %v200
    %v202 = vsub.f32 %v191, %v201
    %v203 = vmul.f32 %v202, %v202
    %204 = vadd.xlane.f32.xlu0 %v203
    %v205 = vpop.xlane.xlu0 %204
    %v206 = vmul.f32 %v205, %v200
    %v207 = vadd.f32 %v206, 1e-05
    %v208 = vrsqrt.pop %v207
    %v209 = vmul.f32 %v208, %v207
    %v210 = vmul.f32 %v209, %v208
    %v211 = vmul.f32 0.5, %v210
    %v212 = vsub.f32 1.5, %v211
    %v213 = vmul.f32 %v208, %v212
    %vm214 = vweird.f32 %v207
    %vm215 = vweird.f32 %v208
    %vm216 = vmor %vm214, %vm215
    %v217 = vsel %vm216, %v208, %v213
    %v218 = vmul.f32 %v202, %v217
    %v219 = vstv %s83
    %v220 = vmul.f32 %v219, %v218
    %s221 = sld [smem:[#allocation2 + $0x2]]
    %v222 = vadd.f32 %v90, %v102
    %v223 = vadd.f32 %v86, %v72
    %v224 = vadd.f32 %v222, %v116
    %v225 = vadd.f32 %v223, %v112
    %v226 = vadd.f32 %v224, %v129
    %v227 = vadd.f32 %v225, %v78
    %v228 = vadd.f32 %v226, %v69
    %v229 = vadd.f32 %v227, 1.0
    %v230 = vadd.f32 %v228, %v143
    %v231 = vadd.f32 %v229, %v79
    %v232 = vadd.f32 %v230, %v157
    %v233 = vadd.f32 %v231, %v153
    %v234 = vadd.f32 %v232, %v170
    %v235 = vadd.f32 %v233, %v73
    %v236 = vadd.f32 %v234, %v184
    %v237 = vadd.f32 %v235, %v180
    %v238 = vrcp.pop %v237
    %v239 = vmul.f32 %v237, %v238
    %v240 = vsub.f32 1.0, %v239
    %v241 = vmul.f32 %v238, %v240
    %v242 = vadd.f32 %v238, %v241
    %vm243 = vweird.f32 %v237
    %vm244 = vweird.f32 %v238
    %vm245 = vmor %vm243, %vm244
    %v246 = vsel %vm245, %v238, %v242
    %v247 = vand.u32 2147483647, %v237
    %vm248 = vcmp.eq.f32.partialorder %v247, 8.507059e+37
    %v249 = vand.u32 %v237, 2147483648
    %v250 = vor.u32 1.1754944e-38, %v249
    %v251 = vsel %vm248, %v250, %v246
    %v252 = vmul.f32 1.0, %v251
    %v254 = vperm.slane %v252, 0
    %v256 = vmul.f32 %v236, %v254
    %257 = vadd.xlane.f32.xlu0 %v256
    %v258 = vpop.xlane.xlu0 %257
    %v259 = vmul.f32 %v258, %v200
    %v260 = vsub.f32 %v256, %v259
    %v261 = vmul.f32 %v260, %v260
    %262 = vadd.xlane.f32.xlu0 %v261
    %v263 = vpop.xlane.xlu0 %262
    %v264 = vmul.f32 %v263, %v200
    %v265 = vadd.f32 %v264, 1e-05
    %v266 = vrsqrt.pop %v265
    %v267 = vmul.f32 %v266, %v265
    %v268 = vmul.f32 %v267, %v266
    %v269 = vmul.f32 0.5, %v268
    %v270 = vsub.f32 1.5, %v269
    %v271 = vmul.f32 %v266, %v270
    %vm272 = vweird.f32 %v265
    %vm273 = vweird.f32 %v266
    %vm274 = vmor %vm272, %vm273
    %v275 = vsel %vm274, %v266, %v271
    %v276 = vmul.f32 %v260, %v275
    %v277 = vstv %s221
    %v278 = vmul.f32 %v277, %v276
    %v279 = vadd.f32 %v220, %v278
    %s280 = sld [smem:[#allocation2 + $0x3]]
    %v281 = vstv %s280
    %v282 = vmul.f32 %v281, %v69
    %v283 = vadd.f32 %v279, %v282
    %s284 = sld [smem:[#allocation2 + $0x4]]
    %v285 = vld [vmem:[%s4] sm:$0xff]
    %v286 = vld [vmem:[%s4 + $0x8] sm:$0xff]
    %v287 = vld [vmem:[%s4 + $0x10] sm:$0xff]
    %v288 = vld [vmem:[%s4 + $0x18] sm:$0xff]
    %v289 = vld [vmem:[%s4 + $0x20] sm:$0xff]
    %v290 = vld [vmem:[%s4 + $0x28] sm:$0xff]
    %v291 = vld [vmem:[%s4 + $0x30] sm:$0xff]
    %v292 = vld [vmem:[%s4 + $0x38] sm:$0xff]
    %v293 = vld [vmem:[%s4 + $0x40] sm:$0xff]
    %v294 = vld [vmem:[%s5] sm:$0xff]
    %v295 = vld [vmem:[%s6] sm:$0xff]
    %v296 = vld [vmem:[%s6 + $0x8] sm:$0xff]
    %v297 = vld [vmem:[%s6 + $0x10] sm:$0xff]
    %v298 = vld [vmem:[%s6 + $0x18] sm:$0xff]
    %v299 = vld [vmem:[%s6 + $0x20] sm:$0xff]
    %v300 = vld [vmem:[%s6 + $0x28] sm:$0xff]
    %v301 = vld [vmem:[%s6 + $0x30] sm:$0xff]
    %v302 = vld [vmem:[%s6 + $0x38] sm:$0xff]
    %v303 = vld [vmem:[%s6 + $0x40] sm:$0xff]
    %v304 = vld [vmem:[%s7] sm:$0xff]
    %305 = vrot.lane.b32.xlu0 %v82, 9
    %v306 = vpop.permute.xlu0 %305
    %v307 = vmul.f32 %v306, %v88
    %309 = vset.pattern.permute.xlu0 0
    %310 = vperm.xlu0 %309, %v285
    %v311 = vpop.permute.xlu0 %310
    %v313 = vmul.f32 %v307, %v311
    %314 = vrot.lane.b32.xlu0 %v82, 8
    %v315 = vpop.permute.xlu0 %314
    %v316 = vmul.f32 %v315, %v100
    %318 = vset.pattern.permute.xlu0 0
    %319 = vperm.xlu0 %318, %v286
    %v320 = vpop.permute.xlu0 %319
    %v322 = vmul.f32 %v316, %v320
    %v323 = vadd.f32 %v313, %v322
    %324 = vrot.lane.b32.xlu0 %v82, 7
    %v325 = vpop.permute.xlu0 %324
    %v326 = vmul.f32 %v325, %v114
    %328 = vset.pattern.permute.xlu0 0
    %329 = vperm.xlu0 %328, %v287
    %v330 = vpop.permute.xlu0 %329
    %v332 = vmul.f32 %v326, %v330
    %v333 = vadd.f32 %v323, %v332
    %334 = vrot.lane.b32.xlu0 %v82, 1
    %v335 = vpop.permute.xlu0 %334
    %v336 = vmul.f32 %v335, %v127
    %338 = vset.pattern.permute.xlu0 0
    %339 = vperm.xlu0 %338, %v288
    %v340 = vpop.permute.xlu0 %339
    %v342 = vmul.f32 %v336, %v340
    %v343 = vadd.f32 %v333, %v342
    %345 = vset.pattern.permute.xlu0 0
    %346 = vperm.xlu0 %345, %v289
    %v347 = vpop.permute.xlu0 %346
    %v349 = vmul.f32 %v82, %v347
    %v350 = vadd.f32 %v343, %v349
    %351 = vrot.lane.b32.xlu0 %v82, 127
    %v352 = vpop.permute.xlu0 %351
    %v353 = vmul.f32 %v352, %v141
    %355 = vset.pattern.permute.xlu0 0
    %356 = vperm.xlu0 %355, %v290
    %v357 = vpop.permute.xlu0 %356
    %v359 = vmul.f32 %v353, %v357
    %v360 = vadd.f32 %v350, %v359
    %361 = vrot.lane.b32.xlu0 %v82, 121
    %v362 = vpop.permute.xlu0 %361
    %v363 = vmul.f32 %v362, %v155
    %365 = vset.pattern.permute.xlu0 0
    %366 = vperm.xlu0 %365, %v291
    %v367 = vpop.permute.xlu0 %366
    %v369 = vmul.f32 %v363, %v367
    %v370 = vadd.f32 %v360, %v369
    %371 = vrot.lane.b32.xlu0 %v82, 120
    %v372 = vpop.permute.xlu0 %371
    %v373 = vmul.f32 %v372, %v168
    %375 = vset.pattern.permute.xlu0 0
    %376 = vperm.xlu0 %375, %v292
    %v377 = vpop.permute.xlu0 %376
    %v379 = vmul.f32 %v373, %v377
    %v380 = vadd.f32 %v370, %v379
    %381 = vrot.lane.b32.xlu0 %v82, 119
    %v382 = vpop.permute.xlu0 %381
    %v383 = vmul.f32 %v382, %v182
    %385 = vset.pattern.permute.xlu0 0
    %386 = vperm.xlu0 %385, %v293
    %v387 = vpop.permute.xlu0 %386
    %v389 = vmul.f32 %v383, %v387
    %v390 = vadd.f32 %v380, %v389
    %vm391 = vcmask 64512
    %v393 = vsel %vm391, %v294, 0
    %395 = vmatpush.msra.mxu0 0.0
    %396 = vmatpush.msra.mxu0 0.0
    %397 = vmatpush.msra.mxu0 0.0
    %398 = vmatpush.msra.mxu0 0.0
    %399 = vmatpush.msra.mxu0 0.0
    %400 = vmatpush.msra.mxu0 0.0
    %401 = vmatpush.msra.mxu0 0.0
    %402 = vmatpush.msra.mxu0 0.0
    %403 = vmatpush.msra.mxu0 0.0
    %404 = vmatpush.msra.mxu0 0.0
    %405 = vmatpush.msra.mxu0 0.0
    %406 = vmatpush.msra.mxu0 0.0
    %407 = vmatpush.msra.mxu0 0.0
    %408 = vmatpush.msra.mxu0 0.0
    %409 = vmatpush.msra.mxu0 0.0
    %410 = vmatpush.msra.mxu0 %v390
    %411 = vmatmul.f32.gmra.mxu0 %v393
    %v412 = vpop.f32.mrf.mxu0
    %v413 = vadd.f32 0.0, %v412
    %414 = vdwg.mxu0
    %415 = vadd.xlane.f32.xlu0 %v413
    %v416 = vpop.xlane.xlu0 %415
    %v417 = vmul.f32 %v416, %v200
    %v418 = vsub.f32 %v413, %v417
    %v419 = vmul.f32 %v418, %v418
    %420 = vadd.xlane.f32.xlu0 %v419
    %v421 = vpop.xlane.xlu0 %420
    %v422 = vmul.f32 %v421, %v200
    %v423 = vadd.f32 %v422, 1e-05
    %v424 = vrsqrt.pop %v423
    %v425 = vmul.f32 %v424, %v423
    %v426 = vmul.f32 %v425, %v424
    %v427 = vmul.f32 0.5, %v426
    %v428 = vsub.f32 1.5, %v427
    %v429 = vmul.f32 %v424, %v428
    %vm430 = vweird.f32 %v423
    %vm431 = vweird.f32 %v424
    %vm432 = vmor %vm430, %vm431
    %v433 = vsel %vm432, %v424, %v429
    %v434 = vmul.f32 %v418, %v433
    %v435 = vmax.f32 %v434, 0.0
    %436 = vrot.lane.b32.xlu0 %v435, 9
    %v437 = vpop.permute.xlu0 %436
    %v438 = vmul.f32 %v437, %v88
    %440 = vset.pattern.permute.xlu0 0
    %441 = vperm.xlu0 %440, %v295
    %v442 = vpop.permute.xlu0 %441
    %v444 = vmul.f32 %v438, %v442
    %445 = vrot.lane.b32.xlu0 %v435, 8
    %v446 = vpop.permute.xlu0 %445
    %v447 = vmul.f32 %v446, %v100
    %449 = vset.pattern.permute.xlu0 0
    %450 = vperm.xlu0 %449, %v296
    %v451 = vpop.permute.xlu0 %450
    %v453 = vmul.f32 %v447, %v451
    %v454 = vadd.f32 %v444, %v453
    %455 = vrot.lane.b32.xlu0 %v435, 7
    %v456 = vpop.permute.xlu0 %455
    %v457 = vmul.f32 %v456, %v114
    %459 = vset.pattern.permute.xlu0 0
    %460 = vperm.xlu0 %459, %v297
    %v461 = vpop.permute.xlu0 %460
    %v463 = vmul.f32 %v457, %v461
    %v464 = vadd.f32 %v454, %v463
    %465 = vrot.lane.b32.xlu0 %v435, 1
    %v466 = vpop.permute.xlu0 %465
    %v467 = vmul.f32 %v466, %v127
    %469 = vset.pattern.permute.xlu0 0
    %470 = vperm.xlu0 %469, %v298
    %v471 = vpop.permute.xlu0 %470
    %v473 = vmul.f32 %v467, %v471
    %v474 = vadd.f32 %v464, %v473
    %476 = vset.pattern.permute.xlu0 0
    %477 = vperm.xlu0 %476, %v299
    %v478 = vpop.permute.xlu0 %477
    %v480 = vmul.f32 %v435, %v478
    %v481 = vadd.f32 %v474, %v480
    %482 = vrot.lane.b32.xlu0 %v435, 127
    %v483 = vpop.permute.xlu0 %482
    %v484 = vmul.f32 %v483, %v141
    %486 = vset.pattern.permute.xlu0 0
    %487 = vperm.xlu0 %486, %v300
    %v488 = vpop.permute.xlu0 %487
    %v490 = vmul.f32 %v484, %v488
    %v491 = vadd.f32 %v481, %v490
    %492 = vrot.lane.b32.xlu0 %v435, 121
    %v493 = vpop.permute.xlu0 %492
    %v494 = vmul.f32 %v493, %v155
    %496 = vset.pattern.permute.xlu0 0
    %497 = vperm.xlu0 %496, %v301
    %v498 = vpop.permute.xlu0 %497
    %v500 = vmul.f32 %v494, %v498
    %v501 = vadd.f32 %v491, %v500
    %502 = vrot.lane.b32.xlu0 %v435, 120
    %v503 = vpop.permute.xlu0 %502
    %v504 = vmul.f32 %v503, %v168
    %506 = vset.pattern.permute.xlu0 0
    %507 = vperm.xlu0 %506, %v302
    %v508 = vpop.permute.xlu0 %507
    %v510 = vmul.f32 %v504, %v508
    %v511 = vadd.f32 %v501, %v510
    %512 = vrot.lane.b32.xlu0 %v435, 119
    %v513 = vpop.permute.xlu0 %512
    %v514 = vmul.f32 %v513, %v182
    %516 = vset.pattern.permute.xlu0 0
    %517 = vperm.xlu0 %516, %v303
    %v518 = vpop.permute.xlu0 %517
    %v520 = vmul.f32 %v514, %v518
    %v521 = vadd.f32 %v511, %v520
    %v523 = vsel %vm391, %v304, 0
    %525 = vmatpush.msra.mxu0 0.0
    %526 = vmatpush.msra.mxu0 0.0
    %527 = vmatpush.msra.mxu0 0.0
    %528 = vmatpush.msra.mxu0 0.0
    %529 = vmatpush.msra.mxu0 0.0
    %530 = vmatpush.msra.mxu0 0.0
    %531 = vmatpush.msra.mxu0 0.0
    %532 = vmatpush.msra.mxu0 0.0
    %533 = vmatpush.msra.mxu0 0.0
    %534 = vmatpush.msra.mxu0 0.0
    %535 = vmatpush.msra.mxu0 0.0
    %536 = vmatpush.msra.mxu0 0.0
    %537 = vmatpush.msra.mxu0 0.0
    %538 = vmatpush.msra.mxu0 0.0
    %539 = vmatpush.msra.mxu0 0.0
    %540 = vmatpush.msra.mxu0 %v521
    %541 = vmatmul.f32.gmra.mxu0 %v523
    %v542 = vpop.f32.mrf.mxu0
    %v543 = vadd.f32 0.0, %v542
    %544 = vdwg.mxu0
    %545 = vadd.xlane.f32.xlu0 %v543
    %v546 = vpop.xlane.xlu0 %545
    %v547 = vmul.f32 %v546, %v200
    %v548 = vsub.f32 %v543, %v547
    %v549 = vmul.f32 %v548, %v548
    %550 = vadd.xlane.f32.xlu0 %v549
    %v551 = vpop.xlane.xlu0 %550
    %v552 = vmul.f32 %v551, %v200
    %v553 = vadd.f32 %v552, 1e-05
    %v554 = vrsqrt.pop %v553
    %v555 = vmul.f32 %v554, %v553
    %v556 = vmul.f32 %v555, %v554
    %v557 = vmul.f32 0.5, %v556
    %v558 = vsub.f32 1.5, %v557
    %v559 = vmul.f32 %v554, %v558
    %vm560 = vweird.f32 %v553
    %vm561 = vweird.f32 %v554
    %vm562 = vmor %vm560, %vm561
    %v563 = vsel %vm562, %v554, %v559
    %v564 = vmul.f32 %v548, %v563
    %v565 = vstv %s284
    %v566 = vmul.f32 %v565, %v564
    %v567 = vadd.f32 %v283, %v566
    %s568 = sld [smem:[#allocation2 + $0x5]]
    %v569 = vld [vmem:[%s8] sm:$0xff]
    %v570 = vld [vmem:[%s8 + $0x8] sm:$0xff]
    %v571 = vld [vmem:[%s8 + $0x10] sm:$0xff]
    %v572 = vld [vmem:[%s8 + $0x18] sm:$0xff]
    %v573 = vld [vmem:[%s8 + $0x20] sm:$0xff]
    %v574 = vld [vmem:[%s8 + $0x28] sm:$0xff]
    %v575 = vld [vmem:[%s8 + $0x30] sm:$0xff]
    %v576 = vld [vmem:[%s8 + $0x38] sm:$0xff]
    %v577 = vld [vmem:[%s8 + $0x40] sm:$0xff]
    %v578 = vld [vmem:[%s8 + $0x48] sm:$0xff]
    %v579 = vld [vmem:[%s8 + $0x50] sm:$0xff]
    %v580 = vld [vmem:[%s8 + $0x58] sm:$0xff]
    %v581 = vld [vmem:[%s8 + $0x60] sm:$0xff]
    %v582 = vld [vmem:[%s8 + $0x68] sm:$0xff]
    %v583 = vld [vmem:[%s8 + $0x70] sm:$0xff]
    %v584 = vld [vmem:[%s8 + $0x78] sm:$0xff]
    %v585 = vld [vmem:[%s8 + $0x80] sm:$0xff]
    %v586 = vld [vmem:[%s8 + $0x88] sm:$0xff]
    %v587 = vld [vmem:[%s8 + $0x90] sm:$0xff]
    %v588 = vld [vmem:[%s8 + $0x98] sm:$0xff]
    %v589 = vld [vmem:[%s8 + $0xa0] sm:$0xff]
    %v590 = vld [vmem:[%s8 + $0xa8] sm:$0xff]
    %v591 = vld [vmem:[%s8 + $0xb0] sm:$0xff]
    %v592 = vld [vmem:[%s8 + $0xb8] sm:$0xff]
    %v593 = vld [vmem:[%s8 + $0xc0] sm:$0xff]
    %v594 = vld [vmem:[%s9] sm:$0xff]
    %v595 = vld [vmem:[%s10] sm:$0xff]
    %v596 = vld [vmem:[%s10 + $0x8] sm:$0xff]
    %v597 = vld [vmem:[%s10 + $0x10] sm:$0xff]
    %v598 = vld [vmem:[%s10 + $0x18] sm:$0xff]
    %v599 = vld [vmem:[%s10 + $0x20] sm:$0xff]
    %v600 = vld [vmem:[%s10 + $0x28] sm:$0xff]
    %v601 = vld [vmem:[%s10 + $0x30] sm:$0xff]
    %v602 = vld [vmem:[%s10 + $0x38] sm:$0xff]
    %v603 = vld [vmem:[%s10 + $0x40] sm:$0xff]
    %v604 = vld [vmem:[%s10 + $0x48] sm:$0xff]
    %v605 = vld [vmem:[%s10 + $0x50] sm:$0xff]
    %v606 = vld [vmem:[%s10 + $0x58] sm:$0xff]
    %v607 = vld [vmem:[%s10 + $0x60] sm:$0xff]
    %v608 = vld [vmem:[%s10 + $0x68] sm:$0xff]
    %v609 = vld [vmem:[%s10 + $0x70] sm:$0xff]
    %v610 = vld [vmem:[%s10 + $0x78] sm:$0xff]
    %v611 = vld [vmem:[%s10 + $0x80] sm:$0xff]
    %v612 = vld [vmem:[%s10 + $0x88] sm:$0xff]
    %v613 = vld [vmem:[%s10 + $0x90] sm:$0xff]
    %v614 = vld [vmem:[%s10 + $0x98] sm:$0xff]
    %v615 = vld [vmem:[%s10 + $0xa0] sm:$0xff]
    %v616 = vld [vmem:[%s10 + $0xa8] sm:$0xff]
    %v617 = vld [vmem:[%s10 + $0xb0] sm:$0xff]
    %v618 = vld [vmem:[%s10 + $0xb8] sm:$0xff]
    %v619 = vld [vmem:[%s10 + $0xc0] sm:$0xff]
    %v620 = vld [vmem:[%s11] sm:$0xff]
    %621 = vrot.lane.b32.xlu0 %v82, 18
    %v622 = vpop.permute.xlu0 %621
    %v623 = vmul.f32 %v71, %v77
    %v625 = vperm.slane %v623, 0
    %v627 = vmul.f32 %v622, %v625
    %629 = vset.pattern.permute.xlu0 0
    %630 = vperm.xlu0 %629, %v569
    %v631 = vpop.permute.xlu0 %630
    %v633 = vmul.f32 %v627, %v631
    %634 = vrot.lane.b32.xlu0 %v82, 17
    %v635 = vpop.permute.xlu0 %634
    %v636 = vmul.f32 %v71, %v78
    %v638 = vperm.slane %v636, 0
    %v640 = vmul.f32 %v635, %v638
    %642 = vset.pattern.permute.xlu0 0
    %643 = vperm.xlu0 %642, %v570
    %v644 = vpop.permute.xlu0 %643
    %v646 = vmul.f32 %v640, %v644
    %v647 = vadd.f32 %v633, %v646
    %648 = vrot.lane.b32.xlu0 %v82, 16
    %v649 = vpop.permute.xlu0 %648
    %v651 = vperm.slane %v71, 0
    %v653 = vmul.f32 %v649, %v651
    %655 = vset.pattern.permute.xlu0 0
    %656 = vperm.xlu0 %655, %v571
    %v657 = vpop.permute.xlu0 %656
    %v659 = vmul.f32 %v653, %v657
    %v660 = vadd.f32 %v647, %v659
    %661 = vrot.lane.b32.xlu0 %v82, 15
    %v662 = vpop.permute.xlu0 %661
    %v663 = vmul.f32 %v71, %v79
    %v665 = vperm.slane %v663, 0
    %v667 = vmul.f32 %v662, %v665
    %669 = vset.pattern.permute.xlu0 0
    %670 = vperm.xlu0 %669, %v572
    %v671 = vpop.permute.xlu0 %670
    %v673 = vmul.f32 %v667, %v671
    %v674 = vadd.f32 %v660, %v673
    %675 = vrot.lane.b32.xlu0 %v82, 14
    %v676 = vpop.permute.xlu0 %675
    %v677 = vmul.f32 %v71, %v80
    %v679 = vperm.slane %v677, 0
    %v681 = vmul.f32 %v676, %v679
    %683 = vset.pattern.permute.xlu0 0
    %684 = vperm.xlu0 %683, %v573
    %v685 = vpop.permute.xlu0 %684
    %v687 = vmul.f32 %v681, %v685
    %v688 = vadd.f32 %v674, %v687
    %689 = vrot.lane.b32.xlu0 %v82, 10
    %v690 = vpop.permute.xlu0 %689
    %v691 = vmul.f32 %v72, %v77
    %v693 = vperm.slane %v691, 0
    %v695 = vmul.f32 %v690, %v693
    %697 = vset.pattern.permute.xlu0 0
    %698 = vperm.xlu0 %697, %v574
    %v699 = vpop.permute.xlu0 %698
    %v701 = vmul.f32 %v695, %v699
    %v702 = vadd.f32 %v688, %v701
    %704 = vset.pattern.permute.xlu0 0
    %705 = vperm.xlu0 %704, %v575
    %v706 = vpop.permute.xlu0 %705
    %v708 = vmul.f32 %v307, %v706
    %v709 = vadd.f32 %v702, %v708
    %711 = vset.pattern.permute.xlu0 0
    %712 = vperm.xlu0 %711, %v576
    %v713 = vpop.permute.xlu0 %712
    %v715 = vmul.f32 %v316, %v713
    %v716 = vadd.f32 %v709, %v715
    %718 = vset.pattern.permute.xlu0 0
    %719 = vperm.xlu0 %718, %v577
    %v720 = vpop.permute.xlu0 %719
    %v722 = vmul.f32 %v326, %v720
    %v723 = vadd.f32 %v716, %v722
    %724 = vrot.lane.b32.xlu0 %v82, 6
    %v725 = vpop.permute.xlu0 %724
    %v726 = vmul.f32 %v72, %v80
    %v728 = vperm.slane %v726, 0
    %v730 = vmul.f32 %v725, %v728
    %732 = vset.pattern.permute.xlu0 0
    %733 = vperm.xlu0 %732, %v578
    %v734 = vpop.permute.xlu0 %733
    %v736 = vmul.f32 %v730, %v734
    %v737 = vadd.f32 %v723, %v736
    %738 = vrot.lane.b32.xlu0 %v82, 2
    %v739 = vpop.permute.xlu0 %738
    %v741 = vperm.slane %v77, 0
    %v743 = vmul.f32 %v739, %v741
    %745 = vset.pattern.permute.xlu0 0
    %746 = vperm.xlu0 %745, %v579
    %v747 = vpop.permute.xlu0 %746
    %v749 = vmul.f32 %v743, %v747
    %v750 = vadd.f32 %v737, %v749
    %752 = vset.pattern.permute.xlu0 0
    %753 = vperm.xlu0 %752, %v580
    %v754 = vpop.permute.xlu0 %753
    %v756 = vmul.f32 %v336, %v754
    %v757 = vadd.f32 %v750, %v756
    %759 = vset.pattern.permute.xlu0 0
    %760 = vperm.xlu0 %759, %v581
    %v761 = vpop.permute.xlu0 %760
    %v763 = vmul.f32 %v82, %v761
    %v764 = vadd.f32 %v757, %v763
    %766 = vset.pattern.permute.xlu0 0
    %767 = vperm.xlu0 %766, %v582
    %v768 = vpop.permute.xlu0 %767
    %v770 = vmul.f32 %v353, %v768
    %v771 = vadd.f32 %v764, %v770
    %772 = vrot.lane.b32.xlu0 %v82, 126
    %v773 = vpop.permute.xlu0 %772
    %v775 = vperm.slane %v80, 0
    %v777 = vmul.f32 %v773, %v775
    %779 = vset.pattern.permute.xlu0 0
    %780 = vperm.xlu0 %779, %v583
    %v781 = vpop.permute.xlu0 %780
    %v783 = vmul.f32 %v777, %v781
    %v784 = vadd.f32 %v771, %v783
    %785 = vrot.lane.b32.xlu0 %v82, 122
    %v786 = vpop.permute.xlu0 %785
    %v787 = vmul.f32 %v73, %v77
    %v789 = vperm.slane %v787, 0
    %v791 = vmul.f32 %v786, %v789
    %793 = vset.pattern.permute.xlu0 0
    %794 = vperm.xlu0 %793, %v584
    %v795 = vpop.permute.xlu0 %794
    %v797 = vmul.f32 %v791, %v795
    %v798 = vadd.f32 %v784, %v797
    %800 = vset.pattern.permute.xlu0 0
    %801 = vperm.xlu0 %800, %v585
    %v802 = vpop.permute.xlu0 %801
    %v804 = vmul.f32 %v363, %v802
    %v805 = vadd.f32 %v798, %v804
    %807 = vset.pattern.permute.xlu0 0
    %808 = vperm.xlu0 %807, %v586
    %v809 = vpop.permute.xlu0 %808
    %v811 = vmul.f32 %v373, %v809
    %v812 = vadd.f32 %v805, %v811
    %814 = vset.pattern.permute.xlu0 0
    %815 = vperm.xlu0 %814, %v587
    %v816 = vpop.permute.xlu0 %815
    %v818 = vmul.f32 %v383, %v816
    %v819 = vadd.f32 %v812, %v818
    %820 = vrot.lane.b32.xlu0 %v82, 118
    %v821 = vpop.permute.xlu0 %820
    %v822 = vmul.f32 %v73, %v80
    %v824 = vperm.slane %v822, 0
    %v826 = vmul.f32 %v821, %v824
    %828 = vset.pattern.permute.xlu0 0
    %829 = vperm.xlu0 %828, %v588
    %v830 = vpop.permute.xlu0 %829
    %v832 = vmul.f32 %v826, %v830
    %v833 = vadd.f32 %v819, %v832
    %834 = vrot.lane.b32.xlu0 %v82, 114
    %v835 = vpop.permute.xlu0 %834
    %v836 = vmul.f32 %v74, %v77
    %v838 = vperm.slane %v836, 0
    %v840 = vmul.f32 %v835, %v838
    %842 = vset.pattern.permute.xlu0 0
    %843 = vperm.xlu0 %842, %v589
    %v844 = vpop.permute.xlu0 %843
    %v846 = vmul.f32 %v840, %v844
    %v847 = vadd.f32 %v833, %v846
    %848 = vrot.lane.b32.xlu0 %v82, 113
    %v849 = vpop.permute.xlu0 %848
    %v850 = vmul.f32 %v74, %v78
    %v852 = vperm.slane %v850, 0
    %v854 = vmul.f32 %v849, %v852
    %856 = vset.pattern.permute.xlu0 0
    %857 = vperm.xlu0 %856, %v590
    %v858 = vpop.permute.xlu0 %857
    %v860 = vmul.f32 %v854, %v858
    %v861 = vadd.f32 %v847, %v860
    %862 = vrot.lane.b32.xlu0 %v82, 112
    %v863 = vpop.permute.xlu0 %862
    %v865 = vperm.slane %v74, 0
    %v867 = vmul.f32 %v863, %v865
    %869 = vset.pattern.permute.xlu0 0
    %870 = vperm.xlu0 %869, %v591
    %v871 = vpop.permute.xlu0 %870
    %v873 = vmul.f32 %v867, %v871
    %v874 = vadd.f32 %v861, %v873
    %875 = vrot.lane.b32.xlu0 %v82, 111
    %v876 = vpop.permute.xlu0 %875
    %v877 = vmul.f32 %v74, %v79
    %v879 = vperm.slane %v877, 0
    %v881 = vmul.f32 %v876, %v879
    %883 = vset.pattern.permute.xlu0 0
    %884 = vperm.xlu0 %883, %v592
    %v885 = vpop.permute.xlu0 %884
    %v887 = vmul.f32 %v881, %v885
    %v888 = vadd.f32 %v874, %v887
    %889 = vrot.lane.b32.xlu0 %v82, 110
    %v890 = vpop.permute.xlu0 %889
    %v891 = vmul.f32 %v74, %v80
    %v893 = vperm.slane %v891, 0
    %v895 = vmul.f32 %v890, %v893
    %897 = vset.pattern.permute.xlu0 0
    %898 = vperm.xlu0 %897, %v593
    %v899 = vpop.permute.xlu0 %898
    %v901 = vmul.f32 %v895, %v899
    %v902 = vadd.f32 %v888, %v901
    %v904 = vsel %vm391, %v594, 0
    %906 = vmatpush.msra.mxu0 0.0
    %907 = vmatpush.msra.mxu0 0.0
    %908 = vmatpush.msra.mxu0 0.0
    %909 = vmatpush.msra.mxu0 0.0
    %910 = vmatpush.msra.mxu0 0.0
    %911 = vmatpush.msra.mxu0 0.0
    %912 = vmatpush.msra.mxu0 0.0
    %913 = vmatpush.msra.mxu0 0.0
    %914 = vmatpush.msra.mxu0 0.0
    %915 = vmatpush.msra.mxu0 0.0
    %916 = vmatpush.msra.mxu0 0.0
    %917 = vmatpush.msra.mxu0 0.0
    %918 = vmatpush.msra.mxu0 0.0
    %919 = vmatpush.msra.mxu0 0.0
    %920 = vmatpush.msra.mxu0 0.0
    %921 = vmatpush.msra.mxu0 %v902
    %922 = vmatmul.f32.gmra.mxu0 %v904
    %v923 = vpop.f32.mrf.mxu0
    %v924 = vadd.f32 0.0, %v923
    %925 = vdwg.mxu0
    %926 = vadd.xlane.f32.xlu0 %v924
    %v927 = vpop.xlane.xlu0 %926
    %v928 = vmul.f32 %v927, %v200
    %v929 = vsub.f32 %v924, %v928
    %v930 = vmul.f32 %v929, %v929
    %931 = vadd.xlane.f32.xlu0 %v930
    %v932 = vpop.xlane.xlu0 %931
    %v933 = vmul.f32 %v932, %v200
    %v934 = vadd.f32 %v933, 1e-05
    %v935 = vrsqrt.pop %v934
    %v936 = vmul.f32 %v935, %v934
    %v937 = vmul.f32 %v936, %v935
    %v938 = vmul.f32 0.5, %v937
    %v939 = vsub.f32 1.5, %v938
    %v940 = vmul.f32 %v935, %v939
    %vm941 = vweird.f32 %v934
    %vm942 = vweird.f32 %v935
    %vm943 = vmor %vm941, %vm942
    %v944 = vsel %vm943, %v935, %v940
    %v945 = vmul.f32 %v929, %v944
    %v946 = vmax.f32 %v945, 0.0
    %947 = vrot.lane.b32.xlu0 %v946, 18
    %v948 = vpop.permute.xlu0 %947
    %v949 = vmul.f32 %v948, %v625
    %951 = vset.pattern.permute.xlu0 0
    %952 = vperm.xlu0 %951, %v595
    %v953 = vpop.permute.xlu0 %952
    %v955 = vmul.f32 %v949, %v953
    %956 = vrot.lane.b32.xlu0 %v946, 17
    %v957 = vpop.permute.xlu0 %956
    %v958 = vmul.f32 %v957, %v638
    %960 = vset.pattern.permute.xlu0 0
    %961 = vperm.xlu0 %960, %v596
    %v962 = vpop.permute.xlu0 %961
    %v964 = vmul.f32 %v958, %v962
    %v965 = vadd.f32 %v955, %v964
    %966 = vrot.lane.b32.xlu0 %v946, 16
    %v967 = vpop.permute.xlu0 %966
    %v968 = vmul.f32 %v967, %v651
    %970 = vset.pattern.permute.xlu0 0
    %971 = vperm.xlu0 %970, %v597
    %v972 = vpop.permute.xlu0 %971
    %v974 = vmul.f32 %v968, %v972
    %v975 = vadd.f32 %v965, %v974
    %976 = vrot.lane.b32.xlu0 %v946, 15
    %v977 = vpop.permute.xlu0 %976
    %v978 = vmul.f32 %v977, %v665
    %980 = vset.pattern.permute.xlu0 0
    %981 = vperm.xlu0 %980, %v598
    %v982 = vpop.permute.xlu0 %981
    %v984 = vmul.f32 %v978, %v982
    %v985 = vadd.f32 %v975, %v984
    %986 = vrot.lane.b32.xlu0 %v946, 14
    %v987 = vpop.permute.xlu0 %986
    %v988 = vmul.f32 %v987, %v679
    %990 = vset.pattern.permute.xlu0 0
    %991 = vperm.xlu0 %990, %v599
    %v992 = vpop.permute.xlu0 %991
    %v994 = vmul.f32 %v988, %v992
    %v995 = vadd.f32 %v985, %v994
    %996 = vrot.lane.b32.xlu0 %v946, 10
    %v997 = vpop.permute.xlu0 %996
    %v998 = vmul.f32 %v997, %v693
    %1000 = vset.pattern.permute.xlu0 0
    %1001 = vperm.xlu0 %1000, %v600
    %v1002 = vpop.permute.xlu0 %1001
    %v1004 = vmul.f32 %v998, %v1002
    %v1005 = vadd.f32 %v995, %v1004
    %1006 = vrot.lane.b32.xlu0 %v946, 9
    %v1007 = vpop.permute.xlu0 %1006
    %v1008 = vmul.f32 %v1007, %v88
    %1010 = vset.pattern.permute.xlu0 0
    %1011 = vperm.xlu0 %1010, %v601
    %v1012 = vpop.permute.xlu0 %1011
    %v1014 = vmul.f32 %v1008, %v1012
    %v1015 = vadd.f32 %v1005, %v1014
    %1016 = vrot.lane.b32.xlu0 %v946, 8
    %v1017 = vpop.permute.xlu0 %1016
    %v1018 = vmul.f32 %v1017, %v100
    %1020 = vset.pattern.permute.xlu0 0
    %1021 = vperm.xlu0 %1020, %v602
    %v1022 = vpop.permute.xlu0 %1021
    %v1024 = vmul.f32 %v1018, %v1022
    %v1025 = vadd.f32 %v1015, %v1024
    %1026 = vrot.lane.b32.xlu0 %v946, 7
    %v1027 = vpop.permute.xlu0 %1026
    %v1028 = vmul.f32 %v1027, %v114
    %1030 = vset.pattern.permute.xlu0 0
    %1031 = vperm.xlu0 %1030, %v603
    %v1032 = vpop.permute.xlu0 %1031
    %v1034 = vmul.f32 %v1028, %v1032
    %v1035 = vadd.f32 %v1025, %v1034
    %1036 = vrot.lane.b32.xlu0 %v946, 6
    %v1037 = vpop.permute.xlu0 %1036
    %v1038 = vmul.f32 %v1037, %v728
    %1040 = vset.pattern.permute.xlu0 0
    %1041 = vperm.xlu0 %1040, %v604
    %v1042 = vpop.permute.xlu0 %1041
    %v1044 = vmul.f32 %v1038, %v1042
    %v1045 = vadd.f32 %v1035, %v1044
    %1046 = vrot.lane.b32.xlu0 %v946, 2
    %v1047 = vpop.permute.xlu0 %1046
    %v1048 = vmul.f32 %v1047, %v741
    %1050 = vset.pattern.permute.xlu0 0
    %1051 = vperm.xlu0 %1050, %v605
    %v1052 = vpop.permute.xlu0 %1051
    %v1054 = vmul.f32 %v1048, %v1052
    %v1055 = vadd.f32 %v1045, %v1054
    %1056 = vrot.lane.b32.xlu0 %v946, 1
    %v1057 = vpop.permute.xlu0 %1056
    %v1058 = vmul.f32 %v1057, %v127
    %1060 = vset.pattern.permute.xlu0 0
    %1061 = vperm.xlu0 %1060, %v606
    %v1062 = vpop.permute.xlu0 %1061
    %v1064 = vmul.f32 %v1058, %v1062
    %v1065 = vadd.f32 %v1055, %v1064
    %1067 = vset.pattern.permute.xlu0 0
    %1068 = vperm.xlu0 %1067, %v607
    %v1069 = vpop.permute.xlu0 %1068
    %v1071 = vmul.f32 %v946, %v1069
    %v1072 = vadd.f32 %v1065, %v1071
    %1073 = vrot.lane.b32.xlu0 %v946, 127
    %v1074 = vpop.permute.xlu0 %1073
    %v1075 = vmul.f32 %v1074, %v141
    %1077 = vset.pattern.permute.xlu0 0
    %1078 = vperm.xlu0 %1077, %v608
    %v1079 = vpop.permute.xlu0 %1078
    %v1081 = vmul.f32 %v1075, %v1079
    %v1082 = vadd.f32 %v1072, %v1081
    %1083 = vrot.lane.b32.xlu0 %v946, 126
    %v1084 = vpop.permute.xlu0 %1083
    %v1085 = vmul.f32 %v1084, %v775
    %1087 = vset.pattern.permute.xlu0 0
    %1088 = vperm.xlu0 %1087, %v609
    %v1089 = vpop.permute.xlu0 %1088
    %v1091 = vmul.f32 %v1085, %v1089
    %v1092 = vadd.f32 %v1082, %v1091
    %1093 = vrot.lane.b32.xlu0 %v946, 122
    %v1094 = vpop.permute.xlu0 %1093
    %v1095 = vmul.f32 %v1094, %v789
    %1097 = vset.pattern.permute.xlu0 0
    %1098 = vperm.xlu0 %1097, %v610
    %v1099 = vpop.permute.xlu0 %1098
    %v1101 = vmul.f32 %v1095, %v1099
    %v1102 = vadd.f32 %v1092, %v1101
    %1103 = vrot.lane.b32.xlu0 %v946, 121
    %v1104 = vpop.permute.xlu0 %1103
    %v1105 = vmul.f32 %v1104, %v155
    %1107 = vset.pattern.permute.xlu0 0
    %1108 = vperm.xlu0 %1107, %v611
    %v1109 = vpop.permute.xlu0 %1108
    %v1111 = vmul.f32 %v1105, %v1109
    %v1112 = vadd.f32 %v1102, %v1111
    %1113 = vrot.lane.b32.xlu0 %v946, 120
    %v1114 = vpop.permute.xlu0 %1113
    %v1115 = vmul.f32 %v1114, %v168
    %1117 = vset.pattern.permute.xlu0 0
    %1118 = vperm.xlu0 %1117, %v612
    %v1119 = vpop.permute.xlu0 %1118
    %v1121 = vmul.f32 %v1115, %v1119
    %v1122 = vadd.f32 %v1112, %v1121
    %1123 = vrot.lane.b32.xlu0 %v946, 119
    %v1124 = vpop.permute.xlu0 %1123
    %v1125 = vmul.f32 %v1124, %v182
    %1127 = vset.pattern.permute.xlu0 0
    %1128 = vperm.xlu0 %1127, %v613
    %v1129 = vpop.permute.xlu0 %1128
    %v1131 = vmul.f32 %v1125, %v1129
    %v1132 = vadd.f32 %v1122, %v1131
    %1133 = vrot.lane.b32.xlu0 %v946, 118
    %v1134 = vpop.permute.xlu0 %1133
    %v1135 = vmul.f32 %v1134, %v824
    %1137 = vset.pattern.permute.xlu0 0
    %1138 = vperm.xlu0 %1137, %v614
    %v1139 = vpop.permute.xlu0 %1138
    %v1141 = vmul.f32 %v1135, %v1139
    %v1142 = vadd.f32 %v1132, %v1141
    %1143 = vrot.lane.b32.xlu0 %v946, 114
    %v1144 = vpop.permute.xlu0 %1143
    %v1145 = vmul.f32 %v1144, %v838
    %1147 = vset.pattern.permute.xlu0 0
    %1148 = vperm.xlu0 %1147, %v615
    %v1149 = vpop.permute.xlu0 %1148
    %v1151 = vmul.f32 %v1145, %v1149
    %v1152 = vadd.f32 %v1142, %v1151
    %1153 = vrot.lane.b32.xlu0 %v946, 113
    %v1154 = vpop.permute.xlu0 %1153
    %v1155 = vmul.f32 %v1154, %v852
    %1157 = vset.pattern.permute.xlu0 0
    %1158 = vperm.xlu0 %1157, %v616
    %v1159 = vpop.permute.xlu0 %1158
    %v1161 = vmul.f32 %v1155, %v1159
    %v1162 = vadd.f32 %v1152, %v1161
    %1163 = vrot.lane.b32.xlu0 %v946, 112
    %v1164 = vpop.permute.xlu0 %1163
    %v1165 = vmul.f32 %v1164, %v865
    %1167 = vset.pattern.permute.xlu0 0
    %1168 = vperm.xlu0 %1167, %v617
    %v1169 = vpop.permute.xlu0 %1168
    %v1171 = vmul.f32 %v1165, %v1169
    %v1172 = vadd.f32 %v1162, %v1171
    %1173 = vrot.lane.b32.xlu0 %v946, 111
    %v1174 = vpop.permute.xlu0 %1173
    %v1175 = vmul.f32 %v1174, %v879
    %1177 = vset.pattern.permute.xlu0 0
    %1178 = vperm.xlu0 %1177, %v618
    %v1179 = vpop.permute.xlu0 %1178
    %v1181 = vmul.f32 %v1175, %v1179
    %v1182 = vadd.f32 %v1172, %v1181
    %1183 = vrot.lane.b32.xlu0 %v946, 110
    %v1184 = vpop.permute.xlu0 %1183
    %v1185 = vmul.f32 %v1184, %v893
    %1187 = vset.pattern.permute.xlu0 0
    %1188 = vperm.xlu0 %1187, %v619
    %v1189 = vpop.permute.xlu0 %1188
    %v1191 = vmul.f32 %v1185, %v1189
    %v1192 = vadd.f32 %v1182, %v1191
    %v1194 = vsel %vm391, %v620, 0
    %1196 = vmatpush.msra.mxu0 0.0
    %1197 = vmatpush.msra.mxu0 0.0
    %1198 = vmatpush.msra.mxu0 0.0
    %1199 = vmatpush.msra.mxu0 0.0
    %1200 = vmatpush.msra.mxu0 0.0
    %1201 = vmatpush.msra.mxu0 0.0
    %1202 = vmatpush.msra.mxu0 0.0
    %1203 = vmatpush.msra.mxu0 0.0
    %1204 = vmatpush.msra.mxu0 0.0
    %1205 = vmatpush.msra.mxu0 0.0
    %1206 = vmatpush.msra.mxu0 0.0
    %1207 = vmatpush.msra.mxu0 0.0
    %1208 = vmatpush.msra.mxu0 0.0
    %1209 = vmatpush.msra.mxu0 0.0
    %1210 = vmatpush.msra.mxu0 0.0
    %1211 = vmatpush.msra.mxu0 %v1192
    %1212 = vmatmul.f32.gmra.mxu0 %v1194
    %v1213 = vpop.f32.mrf.mxu0
    %v1214 = vadd.f32 0.0, %v1213
    %1215 = vdwg.mxu0
    %1216 = vadd.xlane.f32.xlu0 %v1214
    %v1217 = vpop.xlane.xlu0 %1216
    %v1218 = vmul.f32 %v1217, %v200
    %v1219 = vsub.f32 %v1214, %v1218
    %v1220 = vmul.f32 %v1219, %v1219
    %1221 = vadd.xlane.f32.xlu0 %v1220
    %v1222 = vpop.xlane.xlu0 %1221
    %v1223 = vmul.f32 %v1222, %v200
    %v1224 = vadd.f32 %v1223, 1e-05
    %v1225 = vrsqrt.pop %v1224
    %v1226 = vmul.f32 %v1225, %v1224
    %v1227 = vmul.f32 %v1226, %v1225
    %v1228 = vmul.f32 0.5, %v1227
    %v1229 = vsub.f32 1.5, %v1228
    %v1230 = vmul.f32 %v1225, %v1229
    %vm1231 = vweird.f32 %v1224
    %vm1232 = vweird.f32 %v1225
    %vm1233 = vmor %vm1231, %vm1232
    %v1234 = vsel %vm1233, %v1225, %v1230
    %v1235 = vmul.f32 %v1219, %v1234
    %v1236 = vstv %s568
    %v1237 = vmul.f32 %v1236, %v1235
    %v1238 = vadd.f32 %v567, %v1237
    %s1239 = sld [smem:[#allocation2 + $0x6]]
    %v1240 = vld [vmem:[%s12] sm:$0xff]
    %v1241 = vld [vmem:[%s12 + $0x8] sm:$0xff]
    %v1242 = vld [vmem:[%s12 + $0x10] sm:$0xff]
    %v1243 = vld [vmem:[%s12 + $0x18] sm:$0xff]
    %v1244 = vld [vmem:[%s12 + $0x20] sm:$0xff]
    %v1245 = vld [vmem:[%s12 + $0x28] sm:$0xff]
    %v1246 = vld [vmem:[%s12 + $0x30] sm:$0xff]
    %v1247 = vld [vmem:[%s12 + $0x38] sm:$0xff]
    %v1248 = vld [vmem:[%s12 + $0x40] sm:$0xff]
    %v1249 = vld [vmem:[%s13] sm:$0xff]
    %1251 = vset.pattern.permute.xlu0 0
    %1252 = vperm.xlu0 %1251, %v1240
    %v1253 = vpop.permute.xlu0 %1252
    %v1255 = vmul.f32 %v627, %v1253
    %1257 = vset.pattern.permute.xlu0 0
    %1258 = vperm.xlu0 %1257, %v1241
    %v1259 = vpop.permute.xlu0 %1258
    %v1261 = vmul.f32 %v653, %v1259
    %v1262 = vadd.f32 %v1255, %v1261
    %1264 = vset.pattern.permute.xlu0 0
    %1265 = vperm.xlu0 %1264, %v1242
    %v1266 = vpop.permute.xlu0 %1265
    %v1268 = vmul.f32 %v681, %v1266
    %v1269 = vadd.f32 %v1262, %v1268
    %1271 = vset.pattern.permute.xlu0 0
    %1272 = vperm.xlu0 %1271, %v1243
    %v1273 = vpop.permute.xlu0 %1272
    %v1275 = vmul.f32 %v743, %v1273
    %v1276 = vadd.f32 %v1269, %v1275
    %1278 = vset.pattern.permute.xlu0 0
    %1279 = vperm.xlu0 %1278, %v1244
    %v1280 = vpop.permute.xlu0 %1279
    %v1282 = vmul.f32 %v82, %v1280
    %v1283 = vadd.f32 %v1276, %v1282
    %1285 = vset.pattern.permute.xlu0 0
    %1286 = vperm.xlu0 %1285, %v1245
    %v1287 = vpop.permute.xlu0 %1286
    %v1289 = vmul.f32 %v777, %v1287
    %v1290 = vadd.f32 %v1283, %v1289
    %1292 = vset.pattern.permute.xlu0 0
    %1293 = vperm.xlu0 %1292, %v1246
    %v1294 = vpop.permute.xlu0 %1293
    %v1296 = vmul.f32 %v840, %v1294
    %v1297 = vadd.f32 %v1290, %v1296
    %1299 = vset.pattern.permute.xlu0 0
    %1300 = vperm.xlu0 %1299, %v1247
    %v1301 = vpop.permute.xlu0 %1300
    %v1303 = vmul.f32 %v867, %v1301
    %v1304 = vadd.f32 %v1297, %v1303
    %1306 = vset.pattern.permute.xlu0 0
    %1307 = vperm.xlu0 %1306, %v1248
    %v1308 = vpop.permute.xlu0 %1307
    %v1310 = vmul.f32 %v895, %v1308
    %v1311 = vadd.f32 %v1304, %v1310
    %v1313 = vsel %vm391, %v1249, 0
    %1315 = vmatpush.msra.mxu0 0.0
    %1316 = vmatpush.msra.mxu0 0.0
    %1317 = vmatpush.msra.mxu0 0.0
    %1318 = vmatpush.msra.mxu0 0.0
    %1319 = vmatpush.msra.mxu0 0.0
    %1320 = vmatpush.msra.mxu0 0.0
    %1321 = vmatpush.msra.mxu0 0.0
    %1322 = vmatpush.msra.mxu0 0.0
    %1323 = vmatpush.msra.mxu0 0.0
    %1324 = vmatpush.msra.mxu0 0.0
    %1325 = vmatpush.msra.mxu0 0.0
    %1326 = vmatpush.msra.mxu0 0.0
    %1327 = vmatpush.msra.mxu0 0.0
    %1328 = vmatpush.msra.mxu0 0.0
    %1329 = vmatpush.msra.mxu0 0.0
    %1330 = vmatpush.msra.mxu0 %v1311
    %1331 = vmatmul.f32.gmra.mxu0 %v1313
    %v1332 = vpop.f32.mrf.mxu0
    %v1333 = vadd.f32 0.0, %v1332
    %1334 = vdwg.mxu0
    %1335 = vadd.xlane.f32.xlu0 %v1333
    %v1336 = vpop.xlane.xlu0 %1335
    %v1337 = vmul.f32 %v1336, %v200
    %v1338 = vsub.f32 %v1333, %v1337
    %v1339 = vmul.f32 %v1338, %v1338
    %1340 = vadd.xlane.f32.xlu0 %v1339
    %v1341 = vpop.xlane.xlu0 %1340
    %v1342 = vmul.f32 %v1341, %v200
    %v1343 = vadd.f32 %v1342, 1e-05
    %v1344 = vrsqrt.pop %v1343
    %v1345 = vmul.f32 %v1344, %v1343
    %v1346 = vmul.f32 %v1345, %v1344
    %v1347 = vmul.f32 0.5, %v1346
    %v1348 = vsub.f32 1.5, %v1347
    %v1349 = vmul.f32 %v1344, %v1348
    %vm1350 = vweird.f32 %v1343
    %vm1351 = vweird.f32 %v1344
    %vm1352 = vmor %vm1350, %vm1351
    %v1353 = vsel %vm1352, %v1344, %v1349
    %v1354 = vmul.f32 %v1338, %v1353
    %v1355 = vstv %s1239
    %v1356 = vmul.f32 %v1355, %v1354
    %v1357 = vadd.f32 %v1238, %v1356
    %s1358 = sld [smem:[#allocation2 + $0x7]]
    %v1359 = vld [vmem:[%s14] sm:$0xff]
    %v1360 = vld [vmem:[%s14 + $0x8] sm:$0xff]
    %v1361 = vld [vmem:[%s14 + $0x10] sm:$0xff]
    %v1362 = vld [vmem:[%s14 + $0x18] sm:$0xff]
    %v1363 = vld [vmem:[%s14 + $0x20] sm:$0xff]
    %v1364 = vld [vmem:[%s14 + $0x28] sm:$0xff]
    %v1365 = vld [vmem:[%s14 + $0x30] sm:$0xff]
    %v1366 = vld [vmem:[%s14 + $0x38] sm:$0xff]
    %v1367 = vld [vmem:[%s14 + $0x40] sm:$0xff]
    %v1368 = vld [vmem:[%s14 + $0x48] sm:$0xff]
    %v1369 = vld [vmem:[%s14 + $0x50] sm:$0xff]
    %v1370 = vld [vmem:[%s14 + $0x58] sm:$0xff]
    %v1371 = vld [vmem:[%s14 + $0x60] sm:$0xff]
    %v1372 = vld [vmem:[%s14 + $0x68] sm:$0xff]
    %v1373 = vld [vmem:[%s14 + $0x70] sm:$0xff]
    %v1374 = vld [vmem:[%s14 + $0x78] sm:$0xff]
    %v1375 = vld [vmem:[%s14 + $0x80] sm:$0xff]
    %v1376 = vld [vmem:[%s14 + $0x88] sm:$0xff]
    %v1377 = vld [vmem:[%s14 + $0x90] sm:$0xff]
    %v1378 = vld [vmem:[%s14 + $0x98] sm:$0xff]
    %v1379 = vld [vmem:[%s14 + $0xa0] sm:$0xff]
    %v1380 = vld [vmem:[%s14 + $0xa8] sm:$0xff]
    %v1381 = vld [vmem:[%s14 + $0xb0] sm:$0xff]
    %v1382 = vld [vmem:[%s14 + $0xb8] sm:$0xff]
    %v1383 = vld [vmem:[%s14 + $0xc0] sm:$0xff]
    %v1384 = vld [vmem:[%s15] sm:$0xff]
    %1385 = vrot.lane.b32.xlu0 %v82, 36
    %v1386 = vpop.permute.xlu0 %1385
    %v1387 = vmul.f32 %v70, %v76
    %v1389 = vperm.slane %v1387, 0
    %v1391 = vmul.f32 %v1386, %v1389
    %1393 = vset.pattern.permute.xlu0 0
    %1394 = vperm.xlu0 %1393, %v1359
    %v1395 = vpop.permute.xlu0 %1394
    %v1397 = vmul.f32 %v1391, %v1395
    %1398 = vrot.lane.b32.xlu0 %v82, 34
    %v1399 = vpop.permute.xlu0 %1398
    %v1400 = vmul.f32 %v70, %v77
    %v1402 = vperm.slane %v1400, 0
    %v1404 = vmul.f32 %v1399, %v1402
    %1406 = vset.pattern.permute.xlu0 0
    %1407 = vperm.xlu0 %1406, %v1360
    %v1408 = vpop.permute.xlu0 %1407
    %v1410 = vmul.f32 %v1404, %v1408
    %v1411 = vadd.f32 %v1397, %v1410
    %1412 = vrot.lane.b32.xlu0 %v82, 32
    %v1413 = vpop.permute.xlu0 %1412
    %v1415 = vperm.slane %v70, 0
    %v1417 = vmul.f32 %v1413, %v1415
    %1419 = vset.pattern.permute.xlu0 0
    %1420 = vperm.xlu0 %1419, %v1361
    %v1421 = vpop.permute.xlu0 %1420
    %v1423 = vmul.f32 %v1417, %v1421
    %v1424 = vadd.f32 %v1411, %v1423
    %1425 = vrot.lane.b32.xlu0 %v82, 30
    %v1426 = vpop.permute.xlu0 %1425
    %v1427 = vmul.f32 %v70, %v80
    %v1429 = vperm.slane %v1427, 0
    %v1431 = vmul.f32 %v1426, %v1429
    %1433 = vset.pattern.permute.xlu0 0
    %1434 = vperm.xlu0 %1433, %v1362
    %v1435 = vpop.permute.xlu0 %1434
    %v1437 = vmul.f32 %v1431, %v1435
    %v1438 = vadd.f32 %v1424, %v1437
    %1439 = vrot.lane.b32.xlu0 %v82, 28
    %v1440 = vpop.permute.xlu0 %1439
    %v1441 = vmul.f32 %v70, %v81
    %v1443 = vperm.slane %v1441, 0
    %v1445 = vmul.f32 %v1440, %v1443
    %1447 = vset.pattern.permute.xlu0 0
    %1448 = vperm.xlu0 %1447, %v1363
    %v1449 = vpop.permute.xlu0 %1448
    %v1451 = vmul.f32 %v1445, %v1449
    %v1452 = vadd.f32 %v1438, %v1451
    %1453 = vrot.lane.b32.xlu0 %v82, 20
    %v1454 = vpop.permute.xlu0 %1453
    %v1455 = vmul.f32 %v71, %v76
    %v1457 = vperm.slane %v1455, 0
    %v1459 = vmul.f32 %v1454, %v1457
    %1461 = vset.pattern.permute.xlu0 0
    %1462 = vperm.xlu0 %1461, %v1364
    %v1463 = vpop.permute.xlu0 %1462
    %v1465 = vmul.f32 %v1459, %v1463
    %v1466 = vadd.f32 %v1452, %v1465
    %1468 = vset.pattern.permute.xlu0 0
    %1469 = vperm.xlu0 %1468, %v1365
    %v1470 = vpop.permute.xlu0 %1469
    %v1472 = vmul.f32 %v627, %v1470
    %v1473 = vadd.f32 %v1466, %v1472
    %1475 = vset.pattern.permute.xlu0 0
    %1476 = vperm.xlu0 %1475, %v1366
    %v1477 = vpop.permute.xlu0 %1476
    %v1479 = vmul.f32 %v653, %v1477
    %v1480 = vadd.f32 %v1473, %v1479
    %1482 = vset.pattern.permute.xlu0 0
    %1483 = vperm.xlu0 %1482, %v1367
    %v1484 = vpop.permute.xlu0 %1483
    %v1486 = vmul.f32 %v681, %v1484
    %v1487 = vadd.f32 %v1480, %v1486
    %1488 = vrot.lane.b32.xlu0 %v82, 12
    %v1489 = vpop.permute.xlu0 %1488
    %v1490 = vmul.f32 %v71, %v81
    %v1492 = vperm.slane %v1490, 0
    %v1494 = vmul.f32 %v1489, %v1492
    %1496 = vset.pattern.permute.xlu0 0
    %1497 = vperm.xlu0 %1496, %v1368
    %v1498 = vpop.permute.xlu0 %1497
    %v1500 = vmul.f32 %v1494, %v1498
    %v1501 = vadd.f32 %v1487, %v1500
    %1502 = vrot.lane.b32.xlu0 %v82, 4
    %v1503 = vpop.permute.xlu0 %1502
    %v1505 = vperm.slane %v76, 0
    %v1507 = vmul.f32 %v1503, %v1505
    %1509 = vset.pattern.permute.xlu0 0
    %1510 = vperm.xlu0 %1509, %v1369
    %v1511 = vpop.permute.xlu0 %1510
    %v1513 = vmul.f32 %v1507, %v1511
    %v1514 = vadd.f32 %v1501, %v1513
    %1516 = vset.pattern.permute.xlu0 0
    %1517 = vperm.xlu0 %1516, %v1370
    %v1518 = vpop.permute.xlu0 %1517
    %v1520 = vmul.f32 %v743, %v1518
    %v1521 = vadd.f32 %v1514, %v1520
    %1523 = vset.pattern.permute.xlu0 0
    %1524 = vperm.xlu0 %1523, %v1371
    %v1525 = vpop.permute.xlu0 %1524
    %v1527 = vmul.f32 %v82, %v1525
    %v1528 = vadd.f32 %v1521, %v1527
    %1530 = vset.pattern.permute.xlu0 0
    %1531 = vperm.xlu0 %1530, %v1372
    %v1532 = vpop.permute.xlu0 %1531
    %v1534 = vmul.f32 %v777, %v1532
    %v1535 = vadd.f32 %v1528, %v1534
    %1536 = vrot.lane.b32.xlu0 %v82, 124
    %v1537 = vpop.permute.xlu0 %1536
    %v1539 = vperm.slane %v81, 0
    %v1541 = vmul.f32 %v1537, %v1539
    %1543 = vset.pattern.permute.xlu0 0
    %1544 = vperm.xlu0 %1543, %v1373
    %v1545 = vpop.permute.xlu0 %1544
    %v1547 = vmul.f32 %v1541, %v1545
    %v1548 = vadd.f32 %v1535, %v1547
    %1549 = vrot.lane.b32.xlu0 %v82, 116
    %v1550 = vpop.permute.xlu0 %1549
    %v1551 = vmul.f32 %v74, %v76
    %v1553 = vperm.slane %v1551, 0
    %v1555 = vmul.f32 %v1550, %v1553
    %1557 = vset.pattern.permute.xlu0 0
    %1558 = vperm.xlu0 %1557, %v1374
    %v1559 = vpop.permute.xlu0 %1558
    %v1561 = vmul.f32 %v1555, %v1559
    %v1562 = vadd.f32 %v1548, %v1561
    %1564 = vset.pattern.permute.xlu0 0
    %1565 = vperm.xlu0 %1564, %v1375
    %v1566 = vpop.permute.xlu0 %1565
    %v1568 = vmul.f32 %v840, %v1566
    %v1569 = vadd.f32 %v1562, %v1568
    %1571 = vset.pattern.permute.xlu0 0
    %1572 = vperm.xlu0 %1571, %v1376
    %v1573 = vpop.permute.xlu0 %1572
    %v1575 = vmul.f32 %v867, %v1573
    %v1576 = vadd.f32 %v1569, %v1575
    %1578 = vset.pattern.permute.xlu0 0
    %1579 = vperm.xlu0 %1578, %v1377
    %v1580 = vpop.permute.xlu0 %1579
    %v1582 = vmul.f32 %v895, %v1580
    %v1583 = vadd.f32 %v1576, %v1582
    %1584 = vrot.lane.b32.xlu0 %v82, 108
    %v1585 = vpop.permute.xlu0 %1584
    %v1586 = vmul.f32 %v74, %v81
    %v1588 = vperm.slane %v1586, 0
    %v1590 = vmul.f32 %v1585, %v1588
    %1592 = vset.pattern.permute.xlu0 0
    %1593 = vperm.xlu0 %1592, %v1378
    %v1594 = vpop.permute.xlu0 %1593
    %v1596 = vmul.f32 %v1590, %v1594
    %v1597 = vadd.f32 %v1583, %v1596
    %1598 = vrot.lane.b32.xlu0 %v82, 100
    %v1599 = vpop.permute.xlu0 %1598
    %v1600 = vmul.f32 %v75, %v76
    %v1602 = vperm.slane %v1600, 0
    %v1604 = vmul.f32 %v1599, %v1602
    %1606 = vset.pattern.permute.xlu0 0
    %1607 = vperm.xlu0 %1606, %v1379
    %v1608 = vpop.permute.xlu0 %1607
    %v1610 = vmul.f32 %v1604, %v1608
    %v1611 = vadd.f32 %v1597, %v1610
    %1612 = vrot.lane.b32.xlu0 %v82, 98
    %v1613 = vpop.permute.xlu0 %1612
    %v1614 = vmul.f32 %v75, %v77
    %v1616 = vperm.slane %v1614, 0
    %v1618 = vmul.f32 %v1613, %v1616
    %1620 = vset.pattern.permute.xlu0 0
    %1621 = vperm.xlu0 %1620, %v1380
    %v1622 = vpop.permute.xlu0 %1621
    %v1624 = vmul.f32 %v1618, %v1622
    %v1625 = vadd.f32 %v1611, %v1624
    %1626 = vrot.lane.b32.xlu0 %v82, 96
    %v1627 = vpop.permute.xlu0 %1626
    %v1629 = vperm.slane %v75, 0
    %v1631 = vmul.f32 %v1627, %v1629
    %1633 = vset.pattern.permute.xlu0 0
    %1634 = vperm.xlu0 %1633, %v1381
    %v1635 = vpop.permute.xlu0 %1634
    %v1637 = vmul.f32 %v1631, %v1635
    %v1638 = vadd.f32 %v1625, %v1637
    %1639 = vrot.lane.b32.xlu0 %v82, 94
    %v1640 = vpop.permute.xlu0 %1639
    %v1641 = vmul.f32 %v75, %v80
    %v1643 = vperm.slane %v1641, 0
    %v1645 = vmul.f32 %v1640, %v1643
    %1647 = vset.pattern.permute.xlu0 0
    %1648 = vperm.xlu0 %1647, %v1382
    %v1649 = vpop.permute.xlu0 %1648
    %v1651 = vmul.f32 %v1645, %v1649
    %v1652 = vadd.f32 %v1638, %v1651
    %1653 = vrot.lane.b32.xlu0 %v82, 92
    %v1654 = vpop.permute.xlu0 %1653
    %v1655 = vmul.f32 %v75, %v81
    %v1657 = vperm.slane %v1655, 0
    %v1659 = vmul.f32 %v1654, %v1657
    %1661 = vset.pattern.permute.xlu0 0
    %1662 = vperm.xlu0 %1661, %v1383
    %v1663 = vpop.permute.xlu0 %1662
    %v1665 = vmul.f32 %v1659, %v1663
    %v1666 = vadd.f32 %v1652, %v1665
    %v1668 = vsel %vm391, %v1384, 0
    %1670 = vmatpush.msra.mxu0 0.0
    %1671 = vmatpush.msra.mxu0 0.0
    %1672 = vmatpush.msra.mxu0 0.0
    %1673 = vmatpush.msra.mxu0 0.0
    %1674 = vmatpush.msra.mxu0 0.0
    %1675 = vmatpush.msra.mxu0 0.0
    %1676 = vmatpush.msra.mxu0 0.0
    %1677 = vmatpush.msra.mxu0 0.0
    %1678 = vmatpush.msra.mxu0 0.0
    %1679 = vmatpush.msra.mxu0 0.0
    %1680 = vmatpush.msra.mxu0 0.0
    %1681 = vmatpush.msra.mxu0 0.0
    %1682 = vmatpush.msra.mxu0 0.0
    %1683 = vmatpush.msra.mxu0 0.0
    %1684 = vmatpush.msra.mxu0 0.0
    %1685 = vmatpush.msra.mxu0 %v1666
    %1686 = vmatmul.f32.gmra.mxu0 %v1668
    %v1687 = vpop.f32.mrf.mxu0
    %v1688 = vadd.f32 0.0, %v1687
    %1689 = vdwg.mxu0
    %1690 = vadd.xlane.f32.xlu0 %v1688
    %v1691 = vpop.xlane.xlu0 %1690
    %v1692 = vmul.f32 %v1691, %v200
    %v1693 = vsub.f32 %v1688, %v1692
    %v1694 = vmul.f32 %v1693, %v1693
    %1695 = vadd.xlane.f32.xlu0 %v1694
    %v1696 = vpop.xlane.xlu0 %1695
    %v1697 = vmul.f32 %v1696, %v200
    %v1698 = vadd.f32 %v1697, 1e-05
    %v1699 = vrsqrt.pop %v1698
    %v1700 = vmul.f32 %v1699, %v1698
    %v1701 = vmul.f32 %v1700, %v1699
    %v1702 = vmul.f32 0.5, %v1701
    %v1703 = vsub.f32 1.5, %v1702
    %v1704 = vmul.f32 %v1699, %v1703
    %vm1705 = vweird.f32 %v1698
    %vm1706 = vweird.f32 %v1699
    %vm1707 = vmor %vm1705, %vm1706
    %v1708 = vsel %vm1707, %v1699, %v1704
    %v1709 = vmul.f32 %v1693, %v1708
    %v1710 = vstv %s1358
    %v1711 = vmul.f32 %v1710, %v1709
    %v1712 = vadd.f32 %v1357, %v1711
    %v1713 = vld [vmem:[%s16] sm:$0xff]
    %v1714 = vadd.f32 %v1712, %v1713
    %1715 = vst [vmem:[%s17] sm:$0xff] %v1714
    // Predicated region
    $region74: #{cell_forward.8} parent=1 // pred_check
      _
    $region75: #{cell_forward.8} parent=1 // pred_check_branch
      %1717 = sbr.rel (0) target = $region77
    $region76: #{cell_forward.8} parent=1 // pred_region
      _
    $region77: #{cell_forward.8} parent=1 // pred_fallthru
      _
    // Predicated region
    $region78: #{cell_forward.8} parent=1 // pred_check
      _
    $region79: #{cell_forward.8} parent=1 // pred_check_branch
      %1719 = sbr.rel (0) target = $region81
    $region80: #{cell_forward.8} parent=1 // pred_region
      _
    $region81: #{cell_forward.8} parent=1 // pred_fallthru
      _
    %1720 = vsyncpa [#allocation3], 1

</llo_original>
